<compile_context>
chip_gen: v5e
topology: v5e:2x2
jax: 0.10.0
libtpu: 0.0.40
codegen_flags: <defaults>
</compile_context>

<pallas_src>
import functools

import jax
import jax.numpy as jnp
from jax.experimental import pallas as pl
from jax.experimental.pallas import tpu as pltpu


# ---------------------------------------------------------------------------
# In-kernel helpers (all tap/row offsets are compile-time Python ints).
# ---------------------------------------------------------------------------
def _read_rows(ref, start, size, stride):
    """Read rows start, start+stride, ... (size of them) from a flat (P, C) ref."""
    if stride == 1:
        return ref[pl.ds(start, size), :]
    return ref[pl.ds(start, size, stride=stride), :]


def _build_im2col(src_ref, k, s, wp, ho_n, wo_n):
    """im2col of a reflect-padded, row-flattened (Hp*Wp, Cin) activation.

    Returns an (Ho*Wo, K*K*Cin) f32 value whose column order is
    (ki, kj, cin) -- matching the host-side weight reshape
    (K, K, Cin, Cout) -> (K*K*Cin, Cout).
    """
    row_blocks = []
    for ho in range(ho_n):
        pieces = []
        for ki in range(k):
            base = (s * ho + ki) * wp
            for kj in range(k):
                pieces.append(_read_rows(src_ref, base + kj, wo_n, s))  # (Wo, Cin)
        row_blocks.append(jnp.concatenate(pieces, axis=1))              # (Wo, K*K*Cin)
    return jnp.concatenate(row_blocks, axis=0)                          # (Ho*Wo, K*K*Cin)


def _write_reflect_padded(act, pad_ref, ho_n, wo_n):
    """Scatter an (Ho*Wo, C) activation into a flat ((Ho+2)*(Wo+2), C) VMEM
    scratch with reflect(1) padding on every side (PyTorch 'reflect')."""
    wp = wo_n + 2
    hp = ho_n + 2
    for h in range(ho_n):
        base = (h + 1) * wp
        row0 = h * wo_n
        pad_ref[pl.ds(base + 1, wo_n), :] = act[row0:row0 + wo_n, :]          # interior
        pad_ref[pl.ds(base, 1), :] = act[row0 + 1:row0 + 2, :]                # left  <- col 1
        pad_ref[pl.ds(base + wp - 1, 1), :] = act[row0 + wo_n - 2:row0 + wo_n - 1, :]  # right
    # Top / bottom padded rows are full copies of padded rows 2 / Hp-3
    # (their edge columns were already written above).
    pad_ref[pl.ds(0, wp), :] = pad_ref[pl.ds(2 * wp, wp), :]
    pad_ref[pl.ds((hp - 1) * wp, wp), :] = pad_ref[pl.ds((hp - 3) * wp, wp), :]


# ---------------------------------------------------------------------------
# Fused kernel: all 5 conv stages for one sample (one grid step).
# cfg: per-layer static tuples (K, s, Cin, Cout, Hp, Wp, Ho, Wo, mode, has_bias).
# refs: x_ref, <weights/biases>, o_ref, <pad scratch for layers 2..L inputs>.
# ---------------------------------------------------------------------------
def _disc_kernel(*refs, cfg):
    n_layers = len(cfg)
    n_bias = sum(1 for c in cfg if c[9])
    n_in = 1 + n_layers + n_bias

    x_ref = refs[0]
    param_refs = refs[1:n_in]
    o_ref = refs[n_in]
    pad_refs = refs[n_in + 1:]

    src = x_ref
    pi = 0
    for li, (k, s, _cin, _cout, _hp, wp, ho_n, wo_n, mode, has_bias) in enumerate(cfg):
        w_ref = param_refs[pi]
        pi += 1
        b_ref = None
        if has_bias:
            b_ref = param_refs[pi]
            pi += 1

        # im2col (f32) -> one bf16 MXU matmul with f32 accumulation.
        cols = _build_im2col(src, k, s, wp, ho_n, wo_n)            # (M, K*K*Cin) f32
        acc = jnp.dot(cols.astype(jnp.bfloat16), w_ref[...],
                      preferred_element_type=jnp.float32)          # (M, Cout) f32
        if b_ref is not None:
            acc = acc + b_ref[...]

        if mode == "in_lrelu":
            # InstanceNorm2d(affine=False, eps=1e-5): per (sample, channel)
            # stats over spatial positions, biased variance.
            mean = jnp.mean(acc, axis=0, keepdims=True)
            var = jnp.mean(jnp.square(acc - mean), axis=0, keepdims=True)
            acc = (acc - mean) * jax.lax.rsqrt(var + 1e-5)

        if mode in ("lrelu", "in_lrelu"):
            acc = jnp.where(acc > 0, acc, 0.2 * acc)               # LeakyReLU(0.2)
        else:
            acc = jax.nn.sigmoid(acc)

        if li + 1 < n_layers:
            nxt = pad_refs[li]
            _write_reflect_padded(acc, nxt, ho_n, wo_n)
            src = nxt
        else:
            o_ref[...] = acc.astype(o_ref.dtype)


# ---------------------------------------------------------------------------
# Forward pass wrapper: builds operands / specs and launches the fused kernel.
# ---------------------------------------------------------------------------
def discriminator0_forward(x_nchw, params):
    """x: (N, C, H, W) float -> (N, 1, H_out, W_out) float32."""
    n, c, h, w = x_nchw.shape
    x = jnp.transpose(x_nchw, (0, 2, 3, 1)).astype(jnp.float32)          # NHWC
    xp = jnp.pad(x, ((0, 0), (1, 1), (1, 1), (0, 0)), mode="reflect")     # host reflect(1)
    hp0, wp0 = h + 2, w + 2
    xf = xp.reshape(n, hp0 * wp0, c)

    # (weight, bias-or-None, K, stride, mode).  Bias dropped on IN layers
    # (a per-channel constant cancels exactly under affine-free InstanceNorm).
    wi, bi = params["initial"]
    wf, bf = params["final"]
    layer_defs = [(wi, bi, 3, 2, "lrelu")]
    layer_defs += [(wt, None, 4, s, "in_lrelu")
                   for (wt, _), s in zip(params["blocks"], params["block_strides"])]
    layer_defs += [(wf, bf, 4, 1, "sigmoid")]

    operands = [xf]
    in_specs = [pl.BlockSpec((None, hp0 * wp0, c), lambda i: (i, 0, 0))]
    cfg = []
    cur_h, cur_w, cur_c = h, w, c
    for wt, bias, k, stride, mode in layer_defs:
        cin, cout = wt.shape[2], wt.shape[3]
        assert cin == cur_c
        hp, wp = cur_h + 2, cur_w + 2
        ho = (hp - k) // stride + 1
        wo = (wp - k) // stride + 1

        w_mat = wt.reshape(k * k * cin, cout).astype(jnp.bfloat16)       # (ki,kj,cin) rows
        operands.append(w_mat)
        in_specs.append(pl.BlockSpec(w_mat.shape, lambda i: (0, 0)))
        if bias is not None:
            operands.append(bias.reshape(1, cout).astype(jnp.float32))
            in_specs.append(pl.BlockSpec((1, cout), lambda i: (0, 0)))

        cfg.append((k, stride, cin, cout, hp, wp, ho, wo, mode, bias is not None))
        cur_h, cur_w, cur_c = ho, wo, cout

    # Padded f32 activation scratch for the inputs of layers 2..L.
    scratch_shapes = [
        pltpu.VMEM(((ho + 2) * (wo + 2), cout), jnp.float32)
        for (_k, _s, _ci, cout, _hp, _wp, ho, wo, _m, _b) in cfg[:-1]
    ]

    p_out = cur_h * cur_w
    out = pl.pallas_call(
        functools.partial(_disc_kernel, cfg=tuple(cfg)),
        out_shape=jax.ShapeDtypeStruct((n, p_out, 1), jnp.float32),
        grid=(n,),
        in_specs=in_specs,
        out_specs=pl.BlockSpec((None, p_out, 1), lambda i: (i, 0, 0)),
        scratch_shapes=scratch_shapes,
        compiler_params=pltpu.CompilerParams(
            dimension_semantics=("parallel",)),   # one sample per TC on v7x
    )(*operands)
    return jnp.transpose(out.reshape(n, cur_h, cur_w, 1), (0, 3, 1, 2))


# ---------------------------------------------------------------------------
# Parameter init (deterministic, synthetic — no checkpoint loading).
# Weight layout is (kh, kw, cin, cout); a PyTorch (cout, cin, kh, kw) tensor
# would be transposed with (2, 3, 1, 0) when loading a real checkpoint.
# ---------------------------------------------------------------------------
def init_params(key, img_channels=3, features=(8, 16, 32, 64)):
    def conv_init(kw, kb, K, cin, cout):
        fan_in = K * K * cin
        w = jax.random.normal(kw, (K, K, cin, cout), jnp.float32) / jnp.sqrt(fan_in)
        b = jax.random.normal(kb, (cout,), jnp.float32) * 0.01
        return w, b

    keys = jax.random.split(key, 2 * (len(features) + 1))
    params = {"initial": conv_init(keys[0], keys[1], 3, img_channels, features[0])}

    blocks, strides = [], []
    cin = features[0]
    n_blocks = len(features) - 1
    for idx, f in enumerate(features[1:]):
        # Last block has stride 1 (PyTorch keys this off `feature == features[-1]`;
        # keyed off position here for robustness — identical for distinct widths).
        strides.append(1 if idx == n_blocks - 1 else 2)
        blocks.append(conv_init(keys[2 + 2 * idx], keys[3 + 2 * idx], 4, cin, f))
        cin = f
    params["blocks"] = blocks
    params["block_strides"] = strides
    params["final"] = conv_init(keys[-2], keys[-1], 4, cin, 1)
    return params


# ---------------------------------------------------------------------------
# Plain-JAX (XLA) f32 reference of the PyTorch module, for a correctness check.
# ---------------------------------------------------------------------------
def _reference_forward(x_nchw, params):
    x = jnp.transpose(x_nchw, (0, 2, 3, 1)).astype(jnp.float32)

    def conv(x, wt, b, stride):
        xp = jnp.pad(x, ((0, 0), (1, 1), (1, 1), (0, 0)), mode="reflect")
        y = jax.lax.conv_general_dilated(
            xp, wt, window_strides=(stride, stride), padding="VALID",
            dimension_numbers=("NHWC", "HWIO", "NHWC"))
        return y + b

    def leaky(y):
        return jnp.where(y > 0, y, 0.2 * y)

    def inorm(y):
        m = jnp.mean(y, axis=(1, 2), keepdims=True)
        v = jnp.mean(jnp.square(y - m), axis=(1, 2), keepdims=True)
        return (y - m) * jax.lax.rsqrt(v + 1e-5)

    w, b = params["initial"]
    x = leaky(conv(x, w, b, 2))
    for (w, b), s in zip(params["blocks"], params["block_strides"]):
        x = leaky(inorm(conv(x, w, b, s)))
    w, b = params["final"]
    x = jax.nn.sigmoid(conv(x, w, b, 1))
    return jnp.transpose(x, (0, 3, 1, 2))


if __name__ == "__main__":
    key = jax.random.PRNGKey(0)
    k_x, k_p = jax.random.split(key)

    # batch=2, img_channels=3, spatial=32 (smallest size keeping every
    # reflect-pad stage valid), scaled-down feature widths (8, 16, 32, 64).
    x = jax.random.normal(k_x, (2, 3, 32, 32), jnp.float32)
    params = init_params(k_p, img_channels=3, features=(8, 16, 32, 64))

    fwd = jax.jit(lambda inp: discriminator0_forward(inp, params))
    out = jax.block_until_ready(fwd(x))

    assert out.shape == (2, 1, 2, 2), out.shape
    assert bool(jnp.all(jnp.isfinite(out)))
    assert bool(jnp.all((out >= 0.0) & (out <= 1.0)))

    # Compare against the f32 XLA reference (kernel uses bf16 matmul inputs
    # with f32 accumulation -> loose tolerance on the sigmoid output is
    # intentional).
    ref = _reference_forward(x, params)
    err = float(jnp.max(jnp.abs(out - ref)))
    assert err < 0.05, f"max |kernel - reference| = {err}"

    print("KERNEL_OK")
</pallas_src>

<mosaic_0001>
module attributes {stable_mosaic.version = 11 : i64} {
  func.func @_disc_kernel(%arg0: i32, %arg1: memref<1x1156x3xf32, #tpu.memory_space<vmem>>, %arg2: memref<27x8xbf16, #tpu.memory_space<vmem>>, %arg3: memref<1x8xf32, #tpu.memory_space<vmem>>, %arg4: memref<128x16xbf16, #tpu.memory_space<vmem>>, %arg5: memref<256x32xbf16, #tpu.memory_space<vmem>>, %arg6: memref<512x64xbf16, #tpu.memory_space<vmem>>, %arg7: memref<1024x1xbf16, #tpu.memory_space<vmem>>, %arg8: memref<1x1xf32, #tpu.memory_space<vmem>>, %arg9: memref<1x4x1xf32, #tpu.memory_space<vmem>>, %arg10: memref<324x8xf32, #tpu.memory_space<vmem>>, %arg11: memref<100x16xf32, #tpu.memory_space<vmem>>, %arg12: memref<36x32xf32, #tpu.memory_space<vmem>>, %arg13: memref<25x64xf32, #tpu.memory_space<vmem>>) attributes {dimension_semantics = [#tpu.dimension_semantics<parallel>], iteration_bounds = array<i64: 2>, scalar_prefetch = 0 : i64, scratch_operands = 4 : i64, tpu.core_type = #tpu.core_type<tc>, window_params = [{transform_indices = @transform_0, window_bounds = array<i64: 1, 1156, 3>}, {pipeline_mode = #tpu.pipeline_mode<synchronous>, transform_indices = @transform_1, window_bounds = array<i64: 27, 8>}, {pipeline_mode = #tpu.pipeline_mode<synchronous>, transform_indices = @transform_2, window_bounds = array<i64: 1, 8>}, {pipeline_mode = #tpu.pipeline_mode<synchronous>, transform_indices = @transform_3, window_bounds = array<i64: 128, 16>}, {pipeline_mode = #tpu.pipeline_mode<synchronous>, transform_indices = @transform_4, window_bounds = array<i64: 256, 32>}, {pipeline_mode = #tpu.pipeline_mode<synchronous>, transform_indices = @transform_5, window_bounds = array<i64: 512, 64>}, {pipeline_mode = #tpu.pipeline_mode<synchronous>, transform_indices = @transform_6, window_bounds = array<i64: 1024, 1>}, {pipeline_mode = #tpu.pipeline_mode<synchronous>, transform_indices = @transform_7, window_bounds = array<i64: 1, 1>}, {transform_indices = @transform_8, window_bounds = array<i64: 1, 4, 1>}]} {
    %c0 = arith.constant 0 : index
    %c0_0 = arith.constant 0 : index
    %c0_1 = arith.constant 0 : index
    %0 = tpu.strided_load %arg1[%c0, %c0_0, %c0_1] {strides = array<i32: 1, 2, 1>} : memref<1x1156x3xf32, #tpu.memory_space<vmem>>, vector<1x16x3xf32>
    %1 = vector.shape_cast %0 : vector<1x16x3xf32> to vector<16x3xf32>
    %c0_2 = arith.constant 0 : index
    %c1 = arith.constant 1 : index
    %c0_3 = arith.constant 0 : index
    %2 = tpu.strided_load %arg1[%c0_2, %c1, %c0_3] {strides = array<i32: 1, 2, 1>} : memref<1x1156x3xf32, #tpu.memory_space<vmem>>, vector<1x16x3xf32>
    %3 = vector.shape_cast %2 : vector<1x16x3xf32> to vector<16x3xf32>
    %c0_4 = arith.constant 0 : index
    %c2 = arith.constant 2 : index
    %c0_5 = arith.constant 0 : index
    %4 = tpu.strided_load %arg1[%c0_4, %c2, %c0_5] {strides = array<i32: 1, 2, 1>} : memref<1x1156x3xf32, #tpu.memory_space<vmem>>, vector<1x16x3xf32>
    %5 = vector.shape_cast %4 : vector<1x16x3xf32> to vector<16x3xf32>
    %c0_6 = arith.constant 0 : index
    %c34 = arith.constant 34 : index
    %c0_7 = arith.constant 0 : index
    %6 = tpu.strided_load %arg1[%c0_6, %c34, %c0_7] {strides = array<i32: 1, 2, 1>} : memref<1x1156x3xf32, #tpu.memory_space<vmem>>, vector<1x16x3xf32>
    %7 = vector.shape_cast %6 : vector<1x16x3xf32> to vector<16x3xf32>
    %c0_8 = arith.constant 0 : index
    %c35 = arith.constant 35 : index
    %c0_9 = arith.constant 0 : index
    %8 = tpu.strided_load %arg1[%c0_8, %c35, %c0_9] {strides = array<i32: 1, 2, 1>} : memref<1x1156x3xf32, #tpu.memory_space<vmem>>, vector<1x16x3xf32>
    %9 = vector.shape_cast %8 : vector<1x16x3xf32> to vector<16x3xf32>
    %c0_10 = arith.constant 0 : index
    %c36 = arith.constant 36 : index
    %c0_11 = arith.constant 0 : index
    %10 = tpu.strided_load %arg1[%c0_10, %c36, %c0_11] {strides = array<i32: 1, 2, 1>} : memref<1x1156x3xf32, #tpu.memory_space<vmem>>, vector<1x16x3xf32>
    %11 = vector.shape_cast %10 : vector<1x16x3xf32> to vector<16x3xf32>
    %c0_12 = arith.constant 0 : index
    %c68 = arith.constant 68 : index
    %c0_13 = arith.constant 0 : index
    %12 = tpu.strided_load %arg1[%c0_12, %c68, %c0_13] {strides = array<i32: 1, 2, 1>} : memref<1x1156x3xf32, #tpu.memory_space<vmem>>, vector<1x16x3xf32>
    %13 = vector.shape_cast %12 : vector<1x16x3xf32> to vector<16x3xf32>
    %c0_14 = arith.constant 0 : index
    %c69 = arith.constant 69 : index
    %c0_15 = arith.constant 0 : index
    %14 = tpu.strided_load %arg1[%c0_14, %c69, %c0_15] {strides = array<i32: 1, 2, 1>} : memref<1x1156x3xf32, #tpu.memory_space<vmem>>, vector<1x16x3xf32>
    %15 = vector.shape_cast %14 : vector<1x16x3xf32> to vector<16x3xf32>
    %c0_16 = arith.constant 0 : index
    %c70 = arith.constant 70 : index
    %c0_17 = arith.constant 0 : index
    %16 = tpu.strided_load %arg1[%c0_16, %c70, %c0_17] {strides = array<i32: 1, 2, 1>} : memref<1x1156x3xf32, #tpu.memory_space<vmem>>, vector<1x16x3xf32>
    %17 = vector.shape_cast %16 : vector<1x16x3xf32> to vector<16x3xf32>
    %18 = tpu.concatenate %1, %3, %5, %7, %9, %11, %13, %15, %17 in 1 : vector<16x3xf32>, vector<16x3xf32>, vector<16x3xf32>, vector<16x3xf32>, vector<16x3xf32>, vector<16x3xf32>, vector<16x3xf32>, vector<16x3xf32>, vector<16x3xf32> -> vector<16x27xf32>
    %c0_18 = arith.constant 0 : index
    %c68_19 = arith.constant 68 : index
    %c0_20 = arith.constant 0 : index
    %19 = tpu.strided_load %arg1[%c0_18, %c68_19, %c0_20] {strides = array<i32: 1, 2, 1>} : memref<1x1156x3xf32, #tpu.memory_space<vmem>>, vector<1x16x3xf32>
    %20 = vector.shape_cast %19 : vector<1x16x3xf32> to vector<16x3xf32>
    %c0_21 = arith.constant 0 : index
    %c69_22 = arith.constant 69 : index
    %c0_23 = arith.constant 0 : index
    %21 = tpu.strided_load %arg1[%c0_21, %c69_22, %c0_23] {strides = array<i32: 1, 2, 1>} : memref<1x1156x3xf32, #tpu.memory_space<vmem>>, vector<1x16x3xf32>
    %22 = vector.shape_cast %21 : vector<1x16x3xf32> to vector<16x3xf32>
    %c0_24 = arith.constant 0 : index
    %c70_25 = arith.constant 70 : index
    %c0_26 = arith.constant 0 : index
    %23 = tpu.strided_load %arg1[%c0_24, %c70_25, %c0_26] {strides = array<i32: 1, 2, 1>} : memref<1x1156x3xf32, #tpu.memory_space<vmem>>, vector<1x16x3xf32>
    %24 = vector.shape_cast %23 : vector<1x16x3xf32> to vector<16x3xf32>
    %c0_27 = arith.constant 0 : index
    %c102 = arith.constant 102 : index
    %c0_28 = arith.constant 0 : index
    %25 = tpu.strided_load %arg1[%c0_27, %c102, %c0_28] {strides = array<i32: 1, 2, 1>} : memref<1x1156x3xf32, #tpu.memory_space<vmem>>, vector<1x16x3xf32>
    %26 = vector.shape_cast %25 : vector<1x16x3xf32> to vector<16x3xf32>
    %c0_29 = arith.constant 0 : index
    %c103 = arith.constant 103 : index
    %c0_30 = arith.constant 0 : index
    %27 = tpu.strided_load %arg1[%c0_29, %c103, %c0_30] {strides = array<i32: 1, 2, 1>} : memref<1x1156x3xf32, #tpu.memory_space<vmem>>, vector<1x16x3xf32>
    %28 = vector.shape_cast %27 : vector<1x16x3xf32> to vector<16x3xf32>
    %c0_31 = arith.constant 0 : index
    %c104 = arith.constant 104 : index
    %c0_32 = arith.constant 0 : index
    %29 = tpu.strided_load %arg1[%c0_31, %c104, %c0_32] {strides = array<i32: 1, 2, 1>} : memref<1x1156x3xf32, #tpu.memory_space<vmem>>, vector<1x16x3xf32>
    %30 = vector.shape_cast %29 : vector<1x16x3xf32> to vector<16x3xf32>
    %c0_33 = arith.constant 0 : index
    %c136 = arith.constant 136 : index
    %c0_34 = arith.constant 0 : index
    %31 = tpu.strided_load %arg1[%c0_33, %c136, %c0_34] {strides = array<i32: 1, 2, 1>} : memref<1x1156x3xf32, #tpu.memory_space<vmem>>, vector<1x16x3xf32>
    %32 = vector.shape_cast %31 : vector<1x16x3xf32> to vector<16x3xf32>
    %c0_35 = arith.constant 0 : index
    %c137 = arith.constant 137 : index
    %c0_36 = arith.constant 0 : index
    %33 = tpu.strided_load %arg1[%c0_35, %c137, %c0_36] {strides = array<i32: 1, 2, 1>} : memref<1x1156x3xf32, #tpu.memory_space<vmem>>, vector<1x16x3xf32>
    %34 = vector.shape_cast %33 : vector<1x16x3xf32> to vector<16x3xf32>
    %c0_37 = arith.constant 0 : index
    %c138 = arith.constant 138 : index
    %c0_38 = arith.constant 0 : index
    %35 = tpu.strided_load %arg1[%c0_37, %c138, %c0_38] {strides = array<i32: 1, 2, 1>} : memref<1x1156x3xf32, #tpu.memory_space<vmem>>, vector<1x16x3xf32>
    %36 = vector.shape_cast %35 : vector<1x16x3xf32> to vector<16x3xf32>
    %37 = tpu.concatenate %20, %22, %24, %26, %28, %30, %32, %34, %36 in 1 : vector<16x3xf32>, vector<16x3xf32>, vector<16x3xf32>, vector<16x3xf32>, vector<16x3xf32>, vector<16x3xf32>, vector<16x3xf32>, vector<16x3xf32>, vector<16x3xf32> -> vector<16x27xf32>
    %c0_39 = arith.constant 0 : index
    %c136_40 = arith.constant 136 : index
    %c0_41 = arith.constant 0 : index
    %38 = tpu.strided_load %arg1[%c0_39, %c136_40, %c0_41] {strides = array<i32: 1, 2, 1>} : memref<1x1156x3xf32, #tpu.memory_space<vmem>>, vector<1x16x3xf32>
    %39 = vector.shape_cast %38 : vector<1x16x3xf32> to vector<16x3xf32>
    %c0_42 = arith.constant 0 : index
    %c137_43 = arith.constant 137 : index
    %c0_44 = arith.constant 0 : index
    %40 = tpu.strided_load %arg1[%c0_42, %c137_43, %c0_44] {strides = array<i32: 1, 2, 1>} : memref<1x1156x3xf32, #tpu.memory_space<vmem>>, vector<1x16x3xf32>
    %41 = vector.shape_cast %40 : vector<1x16x3xf32> to vector<16x3xf32>
    %c0_45 = arith.constant 0 : index
    %c138_46 = arith.constant 138 : index
    %c0_47 = arith.constant 0 : index
    %42 = tpu.strided_load %arg1[%c0_45, %c138_46, %c0_47] {strides = array<i32: 1, 2, 1>} : memref<1x1156x3xf32, #tpu.memory_space<vmem>>, vector<1x16x3xf32>
    %43 = vector.shape_cast %42 : vector<1x16x3xf32> to vector<16x3xf32>
    %c0_48 = arith.constant 0 : index
    %c170 = arith.constant 170 : index
    %c0_49 = arith.constant 0 : index
    %44 = tpu.strided_load %arg1[%c0_48, %c170, %c0_49] {strides = array<i32: 1, 2, 1>} : memref<1x1156x3xf32, #tpu.memory_space<vmem>>, vector<1x16x3xf32>
    %45 = vector.shape_cast %44 : vector<1x16x3xf32> to vector<16x3xf32>
    %c0_50 = arith.constant 0 : index
    %c171 = arith.constant 171 : index
    %c0_51 = arith.constant 0 : index
    %46 = tpu.strided_load %arg1[%c0_50, %c171, %c0_51] {strides = array<i32: 1, 2, 1>} : memref<1x1156x3xf32, #tpu.memory_space<vmem>>, vector<1x16x3xf32>
    %47 = vector.shape_cast %46 : vector<1x16x3xf32> to vector<16x3xf32>
    %c0_52 = arith.constant 0 : index
    %c172 = arith.constant 172 : index
    %c0_53 = arith.constant 0 : index
    %48 = tpu.strided_load %arg1[%c0_52, %c172, %c0_53] {strides = array<i32: 1, 2, 1>} : memref<1x1156x3xf32, #tpu.memory_space<vmem>>, vector<1x16x3xf32>
    %49 = vector.shape_cast %48 : vector<1x16x3xf32> to vector<16x3xf32>
    %c0_54 = arith.constant 0 : index
    %c204 = arith.constant 204 : index
    %c0_55 = arith.constant 0 : index
    %50 = tpu.strided_load %arg1[%c0_54, %c204, %c0_55] {strides = array<i32: 1, 2, 1>} : memref<1x1156x3xf32, #tpu.memory_space<vmem>>, vector<1x16x3xf32>
    %51 = vector.shape_cast %50 : vector<1x16x3xf32> to vector<16x3xf32>
    %c0_56 = arith.constant 0 : index
    %c205 = arith.constant 205 : index
    %c0_57 = arith.constant 0 : index
    %52 = tpu.strided_load %arg1[%c0_56, %c205, %c0_57] {strides = array<i32: 1, 2, 1>} : memref<1x1156x3xf32, #tpu.memory_space<vmem>>, vector<1x16x3xf32>
    %53 = vector.shape_cast %52 : vector<1x16x3xf32> to vector<16x3xf32>
    %c0_58 = arith.constant 0 : index
    %c206 = arith.constant 206 : index
    %c0_59 = arith.constant 0 : index
    %54 = tpu.strided_load %arg1[%c0_58, %c206, %c0_59] {strides = array<i32: 1, 2, 1>} : memref<1x1156x3xf32, #tpu.memory_space<vmem>>, vector<1x16x3xf32>
    %55 = vector.shape_cast %54 : vector<1x16x3xf32> to vector<16x3xf32>
    %56 = tpu.concatenate %39, %41, %43, %45, %47, %49, %51, %53, %55 in 1 : vector<16x3xf32>, vector<16x3xf32>, vector<16x3xf32>, vector<16x3xf32>, vector<16x3xf32>, vector<16x3xf32>, vector<16x3xf32>, vector<16x3xf32>, vector<16x3xf32> -> vector<16x27xf32>
    %c0_60 = arith.constant 0 : index
    %c204_61 = arith.constant 204 : index
    %c0_62 = arith.constant 0 : index
    %57 = tpu.strided_load %arg1[%c0_60, %c204_61, %c0_62] {strides = array<i32: 1, 2, 1>} : memref<1x1156x3xf32, #tpu.memory_space<vmem>>, vector<1x16x3xf32>
    %58 = vector.shape_cast %57 : vector<1x16x3xf32> to vector<16x3xf32>
    %c0_63 = arith.constant 0 : index
    %c205_64 = arith.constant 205 : index
    %c0_65 = arith.constant 0 : index
    %59 = tpu.strided_load %arg1[%c0_63, %c205_64, %c0_65] {strides = array<i32: 1, 2, 1>} : memref<1x1156x3xf32, #tpu.memory_space<vmem>>, vector<1x16x3xf32>
    %60 = vector.shape_cast %59 : vector<1x16x3xf32> to vector<16x3xf32>
    %c0_66 = arith.constant 0 : index
    %c206_67 = arith.constant 206 : index
    %c0_68 = arith.constant 0 : index
    %61 = tpu.strided_load %arg1[%c0_66, %c206_67, %c0_68] {strides = array<i32: 1, 2, 1>} : memref<1x1156x3xf32, #tpu.memory_space<vmem>>, vector<1x16x3xf32>
    %62 = vector.shape_cast %61 : vector<1x16x3xf32> to vector<16x3xf32>
    %c0_69 = arith.constant 0 : index
    %c238 = arith.constant 238 : index
    %c0_70 = arith.constant 0 : index
    %63 = tpu.strided_load %arg1[%c0_69, %c238, %c0_70] {strides = array<i32: 1, 2, 1>} : memref<1x1156x3xf32, #tpu.memory_space<vmem>>, vector<1x16x3xf32>
    %64 = vector.shape_cast %63 : vector<1x16x3xf32> to vector<16x3xf32>
    %c0_71 = arith.constant 0 : index
    %c239 = arith.constant 239 : index
    %c0_72 = arith.constant 0 : index
    %65 = tpu.strided_load %arg1[%c0_71, %c239, %c0_72] {strides = array<i32: 1, 2, 1>} : memref<1x1156x3xf32, #tpu.memory_space<vmem>>, vector<1x16x3xf32>
    %66 = vector.shape_cast %65 : vector<1x16x3xf32> to vector<16x3xf32>
    %c0_73 = arith.constant 0 : index
    %c240 = arith.constant 240 : index
    %c0_74 = arith.constant 0 : index
    %67 = tpu.strided_load %arg1[%c0_73, %c240, %c0_74] {strides = array<i32: 1, 2, 1>} : memref<1x1156x3xf32, #tpu.memory_space<vmem>>, vector<1x16x3xf32>
    %68 = vector.shape_cast %67 : vector<1x16x3xf32> to vector<16x3xf32>
    %c0_75 = arith.constant 0 : index
    %c272 = arith.constant 272 : index
    %c0_76 = arith.constant 0 : index
    %69 = tpu.strided_load %arg1[%c0_75, %c272, %c0_76] {strides = array<i32: 1, 2, 1>} : memref<1x1156x3xf32, #tpu.memory_space<vmem>>, vector<1x16x3xf32>
    %70 = vector.shape_cast %69 : vector<1x16x3xf32> to vector<16x3xf32>
    %c0_77 = arith.constant 0 : index
    %c273 = arith.constant 273 : index
    %c0_78 = arith.constant 0 : index
    %71 = tpu.strided_load %arg1[%c0_77, %c273, %c0_78] {strides = array<i32: 1, 2, 1>} : memref<1x1156x3xf32, #tpu.memory_space<vmem>>, vector<1x16x3xf32>
    %72 = vector.shape_cast %71 : vector<1x16x3xf32> to vector<16x3xf32>
    %c0_79 = arith.constant 0 : index
    %c274 = arith.constant 274 : index
    %c0_80 = arith.constant 0 : index
    %73 = tpu.strided_load %arg1[%c0_79, %c274, %c0_80] {strides = array<i32: 1, 2, 1>} : memref<1x1156x3xf32, #tpu.memory_space<vmem>>, vector<1x16x3xf32>
    %74 = vector.shape_cast %73 : vector<1x16x3xf32> to vector<16x3xf32>
    %75 = tpu.concatenate %58, %60, %62, %64, %66, %68, %70, %72, %74 in 1 : vector<16x3xf32>, vector<16x3xf32>, vector<16x3xf32>, vector<16x3xf32>, vector<16x3xf32>, vector<16x3xf32>, vector<16x3xf32>, vector<16x3xf32>, vector<16x3xf32> -> vector<16x27xf32>
    %c0_81 = arith.constant 0 : index
    %c272_82 = arith.constant 272 : index
    %c0_83 = arith.constant 0 : index
    %76 = tpu.strided_load %arg1[%c0_81, %c272_82, %c0_83] {strides = array<i32: 1, 2, 1>} : memref<1x1156x3xf32, #tpu.memory_space<vmem>>, vector<1x16x3xf32>
    %77 = vector.shape_cast %76 : vector<1x16x3xf32> to vector<16x3xf32>
    %c0_84 = arith.constant 0 : index
    %c273_85 = arith.constant 273 : index
    %c0_86 = arith.constant 0 : index
    %78 = tpu.strided_load %arg1[%c0_84, %c273_85, %c0_86] {strides = array<i32: 1, 2, 1>} : memref<1x1156x3xf32, #tpu.memory_space<vmem>>, vector<1x16x3xf32>
    %79 = vector.shape_cast %78 : vector<1x16x3xf32> to vector<16x3xf32>
    %c0_87 = arith.constant 0 : index
    %c274_88 = arith.constant 274 : index
    %c0_89 = arith.constant 0 : index
    %80 = tpu.strided_load %arg1[%c0_87, %c274_88, %c0_89] {strides = array<i32: 1, 2, 1>} : memref<1x1156x3xf32, #tpu.memory_space<vmem>>, vector<1x16x3xf32>
    %81 = vector.shape_cast %80 : vector<1x16x3xf32> to vector<16x3xf32>
    %c0_90 = arith.constant 0 : index
    %c306 = arith.constant 306 : index
    %c0_91 = arith.constant 0 : index
    %82 = tpu.strided_load %arg1[%c0_90, %c306, %c0_91] {strides = array<i32: 1, 2, 1>} : memref<1x1156x3xf32, #tpu.memory_space<vmem>>, vector<1x16x3xf32>
    %83 = vector.shape_cast %82 : vector<1x16x3xf32> to vector<16x3xf32>
    %c0_92 = arith.constant 0 : index
    %c307 = arith.constant 307 : index
    %c0_93 = arith.constant 0 : index
    %84 = tpu.strided_load %arg1[%c0_92, %c307, %c0_93] {strides = array<i32: 1, 2, 1>} : memref<1x1156x3xf32, #tpu.memory_space<vmem>>, vector<1x16x3xf32>
    %85 = vector.shape_cast %84 : vector<1x16x3xf32> to vector<16x3xf32>
    %c0_94 = arith.constant 0 : index
    %c308 = arith.constant 308 : index
    %c0_95 = arith.constant 0 : index
    %86 = tpu.strided_load %arg1[%c0_94, %c308, %c0_95] {strides = array<i32: 1, 2, 1>} : memref<1x1156x3xf32, #tpu.memory_space<vmem>>, vector<1x16x3xf32>
    %87 = vector.shape_cast %86 : vector<1x16x3xf32> to vector<16x3xf32>
    %c0_96 = arith.constant 0 : index
    %c340 = arith.constant 340 : index
    %c0_97 = arith.constant 0 : index
    %88 = tpu.strided_load %arg1[%c0_96, %c340, %c0_97] {strides = array<i32: 1, 2, 1>} : memref<1x1156x3xf32, #tpu.memory_space<vmem>>, vector<1x16x3xf32>
    %89 = vector.shape_cast %88 : vector<1x16x3xf32> to vector<16x3xf32>
    %c0_98 = arith.constant 0 : index
    %c341 = arith.constant 341 : index
    %c0_99 = arith.constant 0 : index
    %90 = tpu.strided_load %arg1[%c0_98, %c341, %c0_99] {strides = array<i32: 1, 2, 1>} : memref<1x1156x3xf32, #tpu.memory_space<vmem>>, vector<1x16x3xf32>
    %91 = vector.shape_cast %90 : vector<1x16x3xf32> to vector<16x3xf32>
    %c0_100 = arith.constant 0 : index
    %c342 = arith.constant 342 : index
    %c0_101 = arith.constant 0 : index
    %92 = tpu.strided_load %arg1[%c0_100, %c342, %c0_101] {strides = array<i32: 1, 2, 1>} : memref<1x1156x3xf32, #tpu.memory_space<vmem>>, vector<1x16x3xf32>
    %93 = vector.shape_cast %92 : vector<1x16x3xf32> to vector<16x3xf32>
    %94 = tpu.concatenate %77, %79, %81, %83, %85, %87, %89, %91, %93 in 1 : vector<16x3xf32>, vector<16x3xf32>, vector<16x3xf32>, vector<16x3xf32>, vector<16x3xf32>, vector<16x3xf32>, vector<16x3xf32>, vector<16x3xf32>, vector<16x3xf32> -> vector<16x27xf32>
    %c0_102 = arith.constant 0 : index
    %c340_103 = arith.constant 340 : index
    %c0_104 = arith.constant 0 : index
    %95 = tpu.strided_load %arg1[%c0_102, %c340_103, %c0_104] {strides = array<i32: 1, 2, 1>} : memref<1x1156x3xf32, #tpu.memory_space<vmem>>, vector<1x16x3xf32>
    %96 = vector.shape_cast %95 : vector<1x16x3xf32> to vector<16x3xf32>
    %c0_105 = arith.constant 0 : index
    %c341_106 = arith.constant 341 : index
    %c0_107 = arith.constant 0 : index
    %97 = tpu.strided_load %arg1[%c0_105, %c341_106, %c0_107] {strides = array<i32: 1, 2, 1>} : memref<1x1156x3xf32, #tpu.memory_space<vmem>>, vector<1x16x3xf32>
    %98 = vector.shape_cast %97 : vector<1x16x3xf32> to vector<16x3xf32>
    %c0_108 = arith.constant 0 : index
    %c342_109 = arith.constant 342 : index
    %c0_110 = arith.constant 0 : index
    %99 = tpu.strided_load %arg1[%c0_108, %c342_109, %c0_110] {strides = array<i32: 1, 2, 1>} : memref<1x1156x3xf32, #tpu.memory_space<vmem>>, vector<1x16x3xf32>
    %100 = vector.shape_cast %99 : vector<1x16x3xf32> to vector<16x3xf32>
    %c0_111 = arith.constant 0 : index
    %c374 = arith.constant 374 : index
    %c0_112 = arith.constant 0 : index
    %101 = tpu.strided_load %arg1[%c0_111, %c374, %c0_112] {strides = array<i32: 1, 2, 1>} : memref<1x1156x3xf32, #tpu.memory_space<vmem>>, vector<1x16x3xf32>
    %102 = vector.shape_cast %101 : vector<1x16x3xf32> to vector<16x3xf32>
    %c0_113 = arith.constant 0 : index
    %c375 = arith.constant 375 : index
    %c0_114 = arith.constant 0 : index
    %103 = tpu.strided_load %arg1[%c0_113, %c375, %c0_114] {strides = array<i32: 1, 2, 1>} : memref<1x1156x3xf32, #tpu.memory_space<vmem>>, vector<1x16x3xf32>
    %104 = vector.shape_cast %103 : vector<1x16x3xf32> to vector<16x3xf32>
    %c0_115 = arith.constant 0 : index
    %c376 = arith.constant 376 : index
    %c0_116 = arith.constant 0 : index
    %105 = tpu.strided_load %arg1[%c0_115, %c376, %c0_116] {strides = array<i32: 1, 2, 1>} : memref<1x1156x3xf32, #tpu.memory_space<vmem>>, vector<1x16x3xf32>
    %106 = vector.shape_cast %105 : vector<1x16x3xf32> to vector<16x3xf32>
    %c0_117 = arith.constant 0 : index
    %c408 = arith.constant 408 : index
    %c0_118 = arith.constant 0 : index
    %107 = tpu.strided_load %arg1[%c0_117, %c408, %c0_118] {strides = array<i32: 1, 2, 1>} : memref<1x1156x3xf32, #tpu.memory_space<vmem>>, vector<1x16x3xf32>
    %108 = vector.shape_cast %107 : vector<1x16x3xf32> to vector<16x3xf32>
    %c0_119 = arith.constant 0 : index
    %c409 = arith.constant 409 : index
    %c0_120 = arith.constant 0 : index
    %109 = tpu.strided_load %arg1[%c0_119, %c409, %c0_120] {strides = array<i32: 1, 2, 1>} : memref<1x1156x3xf32, #tpu.memory_space<vmem>>, vector<1x16x3xf32>
    %110 = vector.shape_cast %109 : vector<1x16x3xf32> to vector<16x3xf32>
    %c0_121 = arith.constant 0 : index
    %c410 = arith.constant 410 : index
    %c0_122 = arith.constant 0 : index
    %111 = tpu.strided_load %arg1[%c0_121, %c410, %c0_122] {strides = array<i32: 1, 2, 1>} : memref<1x1156x3xf32, #tpu.memory_space<vmem>>, vector<1x16x3xf32>
    %112 = vector.shape_cast %111 : vector<1x16x3xf32> to vector<16x3xf32>
    %113 = tpu.concatenate %96, %98, %100, %102, %104, %106, %108, %110, %112 in 1 : vector<16x3xf32>, vector<16x3xf32>, vector<16x3xf32>, vector<16x3xf32>, vector<16x3xf32>, vector<16x3xf32>, vector<16x3xf32>, vector<16x3xf32>, vector<16x3xf32> -> vector<16x27xf32>
    %c0_123 = arith.constant 0 : index
    %c408_124 = arith.constant 408 : index
    %c0_125 = arith.constant 0 : index
    %114 = tpu.strided_load %arg1[%c0_123, %c408_124, %c0_125] {strides = array<i32: 1, 2, 1>} : memref<1x1156x3xf32, #tpu.memory_space<vmem>>, vector<1x16x3xf32>
    %115 = vector.shape_cast %114 : vector<1x16x3xf32> to vector<16x3xf32>
    %c0_126 = arith.constant 0 : index
    %c409_127 = arith.constant 409 : index
    %c0_128 = arith.constant 0 : index
    %116 = tpu.strided_load %arg1[%c0_126, %c409_127, %c0_128] {strides = array<i32: 1, 2, 1>} : memref<1x1156x3xf32, #tpu.memory_space<vmem>>, vector<1x16x3xf32>
    %117 = vector.shape_cast %116 : vector<1x16x3xf32> to vector<16x3xf32>
    %c0_129 = arith.constant 0 : index
    %c410_130 = arith.constant 410 : index
    %c0_131 = arith.constant 0 : index
    %118 = tpu.strided_load %arg1[%c0_129, %c410_130, %c0_131] {strides = array<i32: 1, 2, 1>} : memref<1x1156x3xf32, #tpu.memory_space<vmem>>, vector<1x16x3xf32>
    %119 = vector.shape_cast %118 : vector<1x16x3xf32> to vector<16x3xf32>
    %c0_132 = arith.constant 0 : index
    %c442 = arith.constant 442 : index
    %c0_133 = arith.constant 0 : index
    %120 = tpu.strided_load %arg1[%c0_132, %c442, %c0_133] {strides = array<i32: 1, 2, 1>} : memref<1x1156x3xf32, #tpu.memory_space<vmem>>, vector<1x16x3xf32>
    %121 = vector.shape_cast %120 : vector<1x16x3xf32> to vector<16x3xf32>
    %c0_134 = arith.constant 0 : index
    %c443 = arith.constant 443 : index
    %c0_135 = arith.constant 0 : index
    %122 = tpu.strided_load %arg1[%c0_134, %c443, %c0_135] {strides = array<i32: 1, 2, 1>} : memref<1x1156x3xf32, #tpu.memory_space<vmem>>, vector<1x16x3xf32>
    %123 = vector.shape_cast %122 : vector<1x16x3xf32> to vector<16x3xf32>
    %c0_136 = arith.constant 0 : index
    %c444 = arith.constant 444 : index
    %c0_137 = arith.constant 0 : index
    %124 = tpu.strided_load %arg1[%c0_136, %c444, %c0_137] {strides = array<i32: 1, 2, 1>} : memref<1x1156x3xf32, #tpu.memory_space<vmem>>, vector<1x16x3xf32>
    %125 = vector.shape_cast %124 : vector<1x16x3xf32> to vector<16x3xf32>
    %c0_138 = arith.constant 0 : index
    %c476 = arith.constant 476 : index
    %c0_139 = arith.constant 0 : index
    %126 = tpu.strided_load %arg1[%c0_138, %c476, %c0_139] {strides = array<i32: 1, 2, 1>} : memref<1x1156x3xf32, #tpu.memory_space<vmem>>, vector<1x16x3xf32>
    %127 = vector.shape_cast %126 : vector<1x16x3xf32> to vector<16x3xf32>
    %c0_140 = arith.constant 0 : index
    %c477 = arith.constant 477 : index
    %c0_141 = arith.constant 0 : index
    %128 = tpu.strided_load %arg1[%c0_140, %c477, %c0_141] {strides = array<i32: 1, 2, 1>} : memref<1x1156x3xf32, #tpu.memory_space<vmem>>, vector<1x16x3xf32>
    %129 = vector.shape_cast %128 : vector<1x16x3xf32> to vector<16x3xf32>
    %c0_142 = arith.constant 0 : index
    %c478 = arith.constant 478 : index
    %c0_143 = arith.constant 0 : index
    %130 = tpu.strided_load %arg1[%c0_142, %c478, %c0_143] {strides = array<i32: 1, 2, 1>} : memref<1x1156x3xf32, #tpu.memory_space<vmem>>, vector<1x16x3xf32>
    %131 = vector.shape_cast %130 : vector<1x16x3xf32> to vector<16x3xf32>
    %132 = tpu.concatenate %115, %117, %119, %121, %123, %125, %127, %129, %131 in 1 : vector<16x3xf32>, vector<16x3xf32>, vector<16x3xf32>, vector<16x3xf32>, vector<16x3xf32>, vector<16x3xf32>, vector<16x3xf32>, vector<16x3xf32>, vector<16x3xf32> -> vector<16x27xf32>
    %c0_144 = arith.constant 0 : index
    %c476_145 = arith.constant 476 : index
    %c0_146 = arith.constant 0 : index
    %133 = tpu.strided_load %arg1[%c0_144, %c476_145, %c0_146] {strides = array<i32: 1, 2, 1>} : memref<1x1156x3xf32, #tpu.memory_space<vmem>>, vector<1x16x3xf32>
    %134 = vector.shape_cast %133 : vector<1x16x3xf32> to vector<16x3xf32>
    %c0_147 = arith.constant 0 : index
    %c477_148 = arith.constant 477 : index
    %c0_149 = arith.constant 0 : index
    %135 = tpu.strided_load %arg1[%c0_147, %c477_148, %c0_149] {strides = array<i32: 1, 2, 1>} : memref<1x1156x3xf32, #tpu.memory_space<vmem>>, vector<1x16x3xf32>
    %136 = vector.shape_cast %135 : vector<1x16x3xf32> to vector<16x3xf32>
    %c0_150 = arith.constant 0 : index
    %c478_151 = arith.constant 478 : index
    %c0_152 = arith.constant 0 : index
    %137 = tpu.strided_load %arg1[%c0_150, %c478_151, %c0_152] {strides = array<i32: 1, 2, 1>} : memref<1x1156x3xf32, #tpu.memory_space<vmem>>, vector<1x16x3xf32>
    %138 = vector.shape_cast %137 : vector<1x16x3xf32> to vector<16x3xf32>
    %c0_153 = arith.constant 0 : index
    %c510 = arith.constant 510 : index
    %c0_154 = arith.constant 0 : index
    %139 = tpu.strided_load %arg1[%c0_153, %c510, %c0_154] {strides = array<i32: 1, 2, 1>} : memref<1x1156x3xf32, #tpu.memory_space<vmem>>, vector<1x16x3xf32>
    %140 = vector.shape_cast %139 : vector<1x16x3xf32> to vector<16x3xf32>
    %c0_155 = arith.constant 0 : index
    %c511 = arith.constant 511 : index
    %c0_156 = arith.constant 0 : index
    %141 = tpu.strided_load %arg1[%c0_155, %c511, %c0_156] {strides = array<i32: 1, 2, 1>} : memref<1x1156x3xf32, #tpu.memory_space<vmem>>, vector<1x16x3xf32>
    %142 = vector.shape_cast %141 : vector<1x16x3xf32> to vector<16x3xf32>
    %c0_157 = arith.constant 0 : index
    %c512 = arith.constant 512 : index
    %c0_158 = arith.constant 0 : index
    %143 = tpu.strided_load %arg1[%c0_157, %c512, %c0_158] {strides = array<i32: 1, 2, 1>} : memref<1x1156x3xf32, #tpu.memory_space<vmem>>, vector<1x16x3xf32>
    %144 = vector.shape_cast %143 : vector<1x16x3xf32> to vector<16x3xf32>
    %c0_159 = arith.constant 0 : index
    %c544 = arith.constant 544 : index
    %c0_160 = arith.constant 0 : index
    %145 = tpu.strided_load %arg1[%c0_159, %c544, %c0_160] {strides = array<i32: 1, 2, 1>} : memref<1x1156x3xf32, #tpu.memory_space<vmem>>, vector<1x16x3xf32>
    %146 = vector.shape_cast %145 : vector<1x16x3xf32> to vector<16x3xf32>
    %c0_161 = arith.constant 0 : index
    %c545 = arith.constant 545 : index
    %c0_162 = arith.constant 0 : index
    %147 = tpu.strided_load %arg1[%c0_161, %c545, %c0_162] {strides = array<i32: 1, 2, 1>} : memref<1x1156x3xf32, #tpu.memory_space<vmem>>, vector<1x16x3xf32>
    %148 = vector.shape_cast %147 : vector<1x16x3xf32> to vector<16x3xf32>
    %c0_163 = arith.constant 0 : index
    %c546 = arith.constant 546 : index
    %c0_164 = arith.constant 0 : index
    %149 = tpu.strided_load %arg1[%c0_163, %c546, %c0_164] {strides = array<i32: 1, 2, 1>} : memref<1x1156x3xf32, #tpu.memory_space<vmem>>, vector<1x16x3xf32>
    %150 = vector.shape_cast %149 : vector<1x16x3xf32> to vector<16x3xf32>
    %151 = tpu.concatenate %134, %136, %138, %140, %142, %144, %146, %148, %150 in 1 : vector<16x3xf32>, vector<16x3xf32>, vector<16x3xf32>, vector<16x3xf32>, vector<16x3xf32>, vector<16x3xf32>, vector<16x3xf32>, vector<16x3xf32>, vector<16x3xf32> -> vector<16x27xf32>
    %c0_165 = arith.constant 0 : index
    %c544_166 = arith.constant 544 : index
    %c0_167 = arith.constant 0 : index
    %152 = tpu.strided_load %arg1[%c0_165, %c544_166, %c0_167] {strides = array<i32: 1, 2, 1>} : memref<1x1156x3xf32, #tpu.memory_space<vmem>>, vector<1x16x3xf32>
    %153 = vector.shape_cast %152 : vector<1x16x3xf32> to vector<16x3xf32>
    %c0_168 = arith.constant 0 : index
    %c545_169 = arith.constant 545 : index
    %c0_170 = arith.constant 0 : index
    %154 = tpu.strided_load %arg1[%c0_168, %c545_169, %c0_170] {strides = array<i32: 1, 2, 1>} : memref<1x1156x3xf32, #tpu.memory_space<vmem>>, vector<1x16x3xf32>
    %155 = vector.shape_cast %154 : vector<1x16x3xf32> to vector<16x3xf32>
    %c0_171 = arith.constant 0 : index
    %c546_172 = arith.constant 546 : index
    %c0_173 = arith.constant 0 : index
    %156 = tpu.strided_load %arg1[%c0_171, %c546_172, %c0_173] {strides = array<i32: 1, 2, 1>} : memref<1x1156x3xf32, #tpu.memory_space<vmem>>, vector<1x16x3xf32>
    %157 = vector.shape_cast %156 : vector<1x16x3xf32> to vector<16x3xf32>
    %c0_174 = arith.constant 0 : index
    %c578 = arith.constant 578 : index
    %c0_175 = arith.constant 0 : index
    %158 = tpu.strided_load %arg1[%c0_174, %c578, %c0_175] {strides = array<i32: 1, 2, 1>} : memref<1x1156x3xf32, #tpu.memory_space<vmem>>, vector<1x16x3xf32>
    %159 = vector.shape_cast %158 : vector<1x16x3xf32> to vector<16x3xf32>
    %c0_176 = arith.constant 0 : index
    %c579 = arith.constant 579 : index
    %c0_177 = arith.constant 0 : index
    %160 = tpu.strided_load %arg1[%c0_176, %c579, %c0_177] {strides = array<i32: 1, 2, 1>} : memref<1x1156x3xf32, #tpu.memory_space<vmem>>, vector<1x16x3xf32>
    %161 = vector.shape_cast %160 : vector<1x16x3xf32> to vector<16x3xf32>
    %c0_178 = arith.constant 0 : index
    %c580 = arith.constant 580 : index
    %c0_179 = arith.constant 0 : index
    %162 = tpu.strided_load %arg1[%c0_178, %c580, %c0_179] {strides = array<i32: 1, 2, 1>} : memref<1x1156x3xf32, #tpu.memory_space<vmem>>, vector<1x16x3xf32>
    %163 = vector.shape_cast %162 : vector<1x16x3xf32> to vector<16x3xf32>
    %c0_180 = arith.constant 0 : index
    %c612 = arith.constant 612 : index
    %c0_181 = arith.constant 0 : index
    %164 = tpu.strided_load %arg1[%c0_180, %c612, %c0_181] {strides = array<i32: 1, 2, 1>} : memref<1x1156x3xf32, #tpu.memory_space<vmem>>, vector<1x16x3xf32>
    %165 = vector.shape_cast %164 : vector<1x16x3xf32> to vector<16x3xf32>
    %c0_182 = arith.constant 0 : index
    %c613 = arith.constant 613 : index
    %c0_183 = arith.constant 0 : index
    %166 = tpu.strided_load %arg1[%c0_182, %c613, %c0_183] {strides = array<i32: 1, 2, 1>} : memref<1x1156x3xf32, #tpu.memory_space<vmem>>, vector<1x16x3xf32>
    %167 = vector.shape_cast %166 : vector<1x16x3xf32> to vector<16x3xf32>
    %c0_184 = arith.constant 0 : index
    %c614 = arith.constant 614 : index
    %c0_185 = arith.constant 0 : index
    %168 = tpu.strided_load %arg1[%c0_184, %c614, %c0_185] {strides = array<i32: 1, 2, 1>} : memref<1x1156x3xf32, #tpu.memory_space<vmem>>, vector<1x16x3xf32>
    %169 = vector.shape_cast %168 : vector<1x16x3xf32> to vector<16x3xf32>
    %170 = tpu.concatenate %153, %155, %157, %159, %161, %163, %165, %167, %169 in 1 : vector<16x3xf32>, vector<16x3xf32>, vector<16x3xf32>, vector<16x3xf32>, vector<16x3xf32>, vector<16x3xf32>, vector<16x3xf32>, vector<16x3xf32>, vector<16x3xf32> -> vector<16x27xf32>
    %c0_186 = arith.constant 0 : index
    %c612_187 = arith.constant 612 : index
    %c0_188 = arith.constant 0 : index
    %171 = tpu.strided_load %arg1[%c0_186, %c612_187, %c0_188] {strides = array<i32: 1, 2, 1>} : memref<1x1156x3xf32, #tpu.memory_space<vmem>>, vector<1x16x3xf32>
    %172 = vector.shape_cast %171 : vector<1x16x3xf32> to vector<16x3xf32>
    %c0_189 = arith.constant 0 : index
    %c613_190 = arith.constant 613 : index
    %c0_191 = arith.constant 0 : index
    %173 = tpu.strided_load %arg1[%c0_189, %c613_190, %c0_191] {strides = array<i32: 1, 2, 1>} : memref<1x1156x3xf32, #tpu.memory_space<vmem>>, vector<1x16x3xf32>
    %174 = vector.shape_cast %173 : vector<1x16x3xf32> to vector<16x3xf32>
    %c0_192 = arith.constant 0 : index
    %c614_193 = arith.constant 614 : index
    %c0_194 = arith.constant 0 : index
    %175 = tpu.strided_load %arg1[%c0_192, %c614_193, %c0_194] {strides = array<i32: 1, 2, 1>} : memref<1x1156x3xf32, #tpu.memory_space<vmem>>, vector<1x16x3xf32>
    %176 = vector.shape_cast %175 : vector<1x16x3xf32> to vector<16x3xf32>
    %c0_195 = arith.constant 0 : index
    %c646 = arith.constant 646 : index
    %c0_196 = arith.constant 0 : index
    %177 = tpu.strided_load %arg1[%c0_195, %c646, %c0_196] {strides = array<i32: 1, 2, 1>} : memref<1x1156x3xf32, #tpu.memory_space<vmem>>, vector<1x16x3xf32>
    %178 = vector.shape_cast %177 : vector<1x16x3xf32> to vector<16x3xf32>
    %c0_197 = arith.constant 0 : index
    %c647 = arith.constant 647 : index
    %c0_198 = arith.constant 0 : index
    %179 = tpu.strided_load %arg1[%c0_197, %c647, %c0_198] {strides = array<i32: 1, 2, 1>} : memref<1x1156x3xf32, #tpu.memory_space<vmem>>, vector<1x16x3xf32>
    %180 = vector.shape_cast %179 : vector<1x16x3xf32> to vector<16x3xf32>
    %c0_199 = arith.constant 0 : index
    %c648 = arith.constant 648 : index
    %c0_200 = arith.constant 0 : index
    %181 = tpu.strided_load %arg1[%c0_199, %c648, %c0_200] {strides = array<i32: 1, 2, 1>} : memref<1x1156x3xf32, #tpu.memory_space<vmem>>, vector<1x16x3xf32>
    %182 = vector.shape_cast %181 : vector<1x16x3xf32> to vector<16x3xf32>
    %c0_201 = arith.constant 0 : index
    %c680 = arith.constant 680 : index
    %c0_202 = arith.constant 0 : index
    %183 = tpu.strided_load %arg1[%c0_201, %c680, %c0_202] {strides = array<i32: 1, 2, 1>} : memref<1x1156x3xf32, #tpu.memory_space<vmem>>, vector<1x16x3xf32>
    %184 = vector.shape_cast %183 : vector<1x16x3xf32> to vector<16x3xf32>
    %c0_203 = arith.constant 0 : index
    %c681 = arith.constant 681 : index
    %c0_204 = arith.constant 0 : index
    %185 = tpu.strided_load %arg1[%c0_203, %c681, %c0_204] {strides = array<i32: 1, 2, 1>} : memref<1x1156x3xf32, #tpu.memory_space<vmem>>, vector<1x16x3xf32>
    %186 = vector.shape_cast %185 : vector<1x16x3xf32> to vector<16x3xf32>
    %c0_205 = arith.constant 0 : index
    %c682 = arith.constant 682 : index
    %c0_206 = arith.constant 0 : index
    %187 = tpu.strided_load %arg1[%c0_205, %c682, %c0_206] {strides = array<i32: 1, 2, 1>} : memref<1x1156x3xf32, #tpu.memory_space<vmem>>, vector<1x16x3xf32>
    %188 = vector.shape_cast %187 : vector<1x16x3xf32> to vector<16x3xf32>
    %189 = tpu.concatenate %172, %174, %176, %178, %180, %182, %184, %186, %188 in 1 : vector<16x3xf32>, vector<16x3xf32>, vector<16x3xf32>, vector<16x3xf32>, vector<16x3xf32>, vector<16x3xf32>, vector<16x3xf32>, vector<16x3xf32>, vector<16x3xf32> -> vector<16x27xf32>
    %c0_207 = arith.constant 0 : index
    %c680_208 = arith.constant 680 : index
    %c0_209 = arith.constant 0 : index
    %190 = tpu.strided_load %arg1[%c0_207, %c680_208, %c0_209] {strides = array<i32: 1, 2, 1>} : memref<1x1156x3xf32, #tpu.memory_space<vmem>>, vector<1x16x3xf32>
    %191 = vector.shape_cast %190 : vector<1x16x3xf32> to vector<16x3xf32>
    %c0_210 = arith.constant 0 : index
    %c681_211 = arith.constant 681 : index
    %c0_212 = arith.constant 0 : index
    %192 = tpu.strided_load %arg1[%c0_210, %c681_211, %c0_212] {strides = array<i32: 1, 2, 1>} : memref<1x1156x3xf32, #tpu.memory_space<vmem>>, vector<1x16x3xf32>
    %193 = vector.shape_cast %192 : vector<1x16x3xf32> to vector<16x3xf32>
    %c0_213 = arith.constant 0 : index
    %c682_214 = arith.constant 682 : index
    %c0_215 = arith.constant 0 : index
    %194 = tpu.strided_load %arg1[%c0_213, %c682_214, %c0_215] {strides = array<i32: 1, 2, 1>} : memref<1x1156x3xf32, #tpu.memory_space<vmem>>, vector<1x16x3xf32>
    %195 = vector.shape_cast %194 : vector<1x16x3xf32> to vector<16x3xf32>
    %c0_216 = arith.constant 0 : index
    %c714 = arith.constant 714 : index
    %c0_217 = arith.constant 0 : index
    %196 = tpu.strided_load %arg1[%c0_216, %c714, %c0_217] {strides = array<i32: 1, 2, 1>} : memref<1x1156x3xf32, #tpu.memory_space<vmem>>, vector<1x16x3xf32>
    %197 = vector.shape_cast %196 : vector<1x16x3xf32> to vector<16x3xf32>
    %c0_218 = arith.constant 0 : index
    %c715 = arith.constant 715 : index
    %c0_219 = arith.constant 0 : index
    %198 = tpu.strided_load %arg1[%c0_218, %c715, %c0_219] {strides = array<i32: 1, 2, 1>} : memref<1x1156x3xf32, #tpu.memory_space<vmem>>, vector<1x16x3xf32>
    %199 = vector.shape_cast %198 : vector<1x16x3xf32> to vector<16x3xf32>
    %c0_220 = arith.constant 0 : index
    %c716 = arith.constant 716 : index
    %c0_221 = arith.constant 0 : index
    %200 = tpu.strided_load %arg1[%c0_220, %c716, %c0_221] {strides = array<i32: 1, 2, 1>} : memref<1x1156x3xf32, #tpu.memory_space<vmem>>, vector<1x16x3xf32>
    %201 = vector.shape_cast %200 : vector<1x16x3xf32> to vector<16x3xf32>
    %c0_222 = arith.constant 0 : index
    %c748 = arith.constant 748 : index
    %c0_223 = arith.constant 0 : index
    %202 = tpu.strided_load %arg1[%c0_222, %c748, %c0_223] {strides = array<i32: 1, 2, 1>} : memref<1x1156x3xf32, #tpu.memory_space<vmem>>, vector<1x16x3xf32>
    %203 = vector.shape_cast %202 : vector<1x16x3xf32> to vector<16x3xf32>
    %c0_224 = arith.constant 0 : index
    %c749 = arith.constant 749 : index
    %c0_225 = arith.constant 0 : index
    %204 = tpu.strided_load %arg1[%c0_224, %c749, %c0_225] {strides = array<i32: 1, 2, 1>} : memref<1x1156x3xf32, #tpu.memory_space<vmem>>, vector<1x16x3xf32>
    %205 = vector.shape_cast %204 : vector<1x16x3xf32> to vector<16x3xf32>
    %c0_226 = arith.constant 0 : index
    %c750 = arith.constant 750 : index
    %c0_227 = arith.constant 0 : index
    %206 = tpu.strided_load %arg1[%c0_226, %c750, %c0_227] {strides = array<i32: 1, 2, 1>} : memref<1x1156x3xf32, #tpu.memory_space<vmem>>, vector<1x16x3xf32>
    %207 = vector.shape_cast %206 : vector<1x16x3xf32> to vector<16x3xf32>
    %208 = tpu.concatenate %191, %193, %195, %197, %199, %201, %203, %205, %207 in 1 : vector<16x3xf32>, vector<16x3xf32>, vector<16x3xf32>, vector<16x3xf32>, vector<16x3xf32>, vector<16x3xf32>, vector<16x3xf32>, vector<16x3xf32>, vector<16x3xf32> -> vector<16x27xf32>
    %c0_228 = arith.constant 0 : index
    %c748_229 = arith.constant 748 : index
    %c0_230 = arith.constant 0 : index
    %209 = tpu.strided_load %arg1[%c0_228, %c748_229, %c0_230] {strides = array<i32: 1, 2, 1>} : memref<1x1156x3xf32, #tpu.memory_space<vmem>>, vector<1x16x3xf32>
    %210 = vector.shape_cast %209 : vector<1x16x3xf32> to vector<16x3xf32>
    %c0_231 = arith.constant 0 : index
    %c749_232 = arith.constant 749 : index
    %c0_233 = arith.constant 0 : index
    %211 = tpu.strided_load %arg1[%c0_231, %c749_232, %c0_233] {strides = array<i32: 1, 2, 1>} : memref<1x1156x3xf32, #tpu.memory_space<vmem>>, vector<1x16x3xf32>
    %212 = vector.shape_cast %211 : vector<1x16x3xf32> to vector<16x3xf32>
    %c0_234 = arith.constant 0 : index
    %c750_235 = arith.constant 750 : index
    %c0_236 = arith.constant 0 : index
    %213 = tpu.strided_load %arg1[%c0_234, %c750_235, %c0_236] {strides = array<i32: 1, 2, 1>} : memref<1x1156x3xf32, #tpu.memory_space<vmem>>, vector<1x16x3xf32>
    %214 = vector.shape_cast %213 : vector<1x16x3xf32> to vector<16x3xf32>
    %c0_237 = arith.constant 0 : index
    %c782 = arith.constant 782 : index
    %c0_238 = arith.constant 0 : index
    %215 = tpu.strided_load %arg1[%c0_237, %c782, %c0_238] {strides = array<i32: 1, 2, 1>} : memref<1x1156x3xf32, #tpu.memory_space<vmem>>, vector<1x16x3xf32>
    %216 = vector.shape_cast %215 : vector<1x16x3xf32> to vector<16x3xf32>
    %c0_239 = arith.constant 0 : index
    %c783 = arith.constant 783 : index
    %c0_240 = arith.constant 0 : index
    %217 = tpu.strided_load %arg1[%c0_239, %c783, %c0_240] {strides = array<i32: 1, 2, 1>} : memref<1x1156x3xf32, #tpu.memory_space<vmem>>, vector<1x16x3xf32>
    %218 = vector.shape_cast %217 : vector<1x16x3xf32> to vector<16x3xf32>
    %c0_241 = arith.constant 0 : index
    %c784 = arith.constant 784 : index
    %c0_242 = arith.constant 0 : index
    %219 = tpu.strided_load %arg1[%c0_241, %c784, %c0_242] {strides = array<i32: 1, 2, 1>} : memref<1x1156x3xf32, #tpu.memory_space<vmem>>, vector<1x16x3xf32>
    %220 = vector.shape_cast %219 : vector<1x16x3xf32> to vector<16x3xf32>
    %c0_243 = arith.constant 0 : index
    %c816 = arith.constant 816 : index
    %c0_244 = arith.constant 0 : index
    %221 = tpu.strided_load %arg1[%c0_243, %c816, %c0_244] {strides = array<i32: 1, 2, 1>} : memref<1x1156x3xf32, #tpu.memory_space<vmem>>, vector<1x16x3xf32>
    %222 = vector.shape_cast %221 : vector<1x16x3xf32> to vector<16x3xf32>
    %c0_245 = arith.constant 0 : index
    %c817 = arith.constant 817 : index
    %c0_246 = arith.constant 0 : index
    %223 = tpu.strided_load %arg1[%c0_245, %c817, %c0_246] {strides = array<i32: 1, 2, 1>} : memref<1x1156x3xf32, #tpu.memory_space<vmem>>, vector<1x16x3xf32>
    %224 = vector.shape_cast %223 : vector<1x16x3xf32> to vector<16x3xf32>
    %c0_247 = arith.constant 0 : index
    %c818 = arith.constant 818 : index
    %c0_248 = arith.constant 0 : index
    %225 = tpu.strided_load %arg1[%c0_247, %c818, %c0_248] {strides = array<i32: 1, 2, 1>} : memref<1x1156x3xf32, #tpu.memory_space<vmem>>, vector<1x16x3xf32>
    %226 = vector.shape_cast %225 : vector<1x16x3xf32> to vector<16x3xf32>
    %227 = tpu.concatenate %210, %212, %214, %216, %218, %220, %222, %224, %226 in 1 : vector<16x3xf32>, vector<16x3xf32>, vector<16x3xf32>, vector<16x3xf32>, vector<16x3xf32>, vector<16x3xf32>, vector<16x3xf32>, vector<16x3xf32>, vector<16x3xf32> -> vector<16x27xf32>
    %c0_249 = arith.constant 0 : index
    %c816_250 = arith.constant 816 : index
    %c0_251 = arith.constant 0 : index
    %228 = tpu.strided_load %arg1[%c0_249, %c816_250, %c0_251] {strides = array<i32: 1, 2, 1>} : memref<1x1156x3xf32, #tpu.memory_space<vmem>>, vector<1x16x3xf32>
    %229 = vector.shape_cast %228 : vector<1x16x3xf32> to vector<16x3xf32>
    %c0_252 = arith.constant 0 : index
    %c817_253 = arith.constant 817 : index
    %c0_254 = arith.constant 0 : index
    %230 = tpu.strided_load %arg1[%c0_252, %c817_253, %c0_254] {strides = array<i32: 1, 2, 1>} : memref<1x1156x3xf32, #tpu.memory_space<vmem>>, vector<1x16x3xf32>
    %231 = vector.shape_cast %230 : vector<1x16x3xf32> to vector<16x3xf32>
    %c0_255 = arith.constant 0 : index
    %c818_256 = arith.constant 818 : index
    %c0_257 = arith.constant 0 : index
    %232 = tpu.strided_load %arg1[%c0_255, %c818_256, %c0_257] {strides = array<i32: 1, 2, 1>} : memref<1x1156x3xf32, #tpu.memory_space<vmem>>, vector<1x16x3xf32>
    %233 = vector.shape_cast %232 : vector<1x16x3xf32> to vector<16x3xf32>
    %c0_258 = arith.constant 0 : index
    %c850 = arith.constant 850 : index
    %c0_259 = arith.constant 0 : index
    %234 = tpu.strided_load %arg1[%c0_258, %c850, %c0_259] {strides = array<i32: 1, 2, 1>} : memref<1x1156x3xf32, #tpu.memory_space<vmem>>, vector<1x16x3xf32>
    %235 = vector.shape_cast %234 : vector<1x16x3xf32> to vector<16x3xf32>
    %c0_260 = arith.constant 0 : index
    %c851 = arith.constant 851 : index
    %c0_261 = arith.constant 0 : index
    %236 = tpu.strided_load %arg1[%c0_260, %c851, %c0_261] {strides = array<i32: 1, 2, 1>} : memref<1x1156x3xf32, #tpu.memory_space<vmem>>, vector<1x16x3xf32>
    %237 = vector.shape_cast %236 : vector<1x16x3xf32> to vector<16x3xf32>
    %c0_262 = arith.constant 0 : index
    %c852 = arith.constant 852 : index
    %c0_263 = arith.constant 0 : index
    %238 = tpu.strided_load %arg1[%c0_262, %c852, %c0_263] {strides = array<i32: 1, 2, 1>} : memref<1x1156x3xf32, #tpu.memory_space<vmem>>, vector<1x16x3xf32>
    %239 = vector.shape_cast %238 : vector<1x16x3xf32> to vector<16x3xf32>
    %c0_264 = arith.constant 0 : index
    %c884 = arith.constant 884 : index
    %c0_265 = arith.constant 0 : index
    %240 = tpu.strided_load %arg1[%c0_264, %c884, %c0_265] {strides = array<i32: 1, 2, 1>} : memref<1x1156x3xf32, #tpu.memory_space<vmem>>, vector<1x16x3xf32>
    %241 = vector.shape_cast %240 : vector<1x16x3xf32> to vector<16x3xf32>
    %c0_266 = arith.constant 0 : index
    %c885 = arith.constant 885 : index
    %c0_267 = arith.constant 0 : index
    %242 = tpu.strided_load %arg1[%c0_266, %c885, %c0_267] {strides = array<i32: 1, 2, 1>} : memref<1x1156x3xf32, #tpu.memory_space<vmem>>, vector<1x16x3xf32>
    %243 = vector.shape_cast %242 : vector<1x16x3xf32> to vector<16x3xf32>
    %c0_268 = arith.constant 0 : index
    %c886 = arith.constant 886 : index
    %c0_269 = arith.constant 0 : index
    %244 = tpu.strided_load %arg1[%c0_268, %c886, %c0_269] {strides = array<i32: 1, 2, 1>} : memref<1x1156x3xf32, #tpu.memory_space<vmem>>, vector<1x16x3xf32>
    %245 = vector.shape_cast %244 : vector<1x16x3xf32> to vector<16x3xf32>
    %246 = tpu.concatenate %229, %231, %233, %235, %237, %239, %241, %243, %245 in 1 : vector<16x3xf32>, vector<16x3xf32>, vector<16x3xf32>, vector<16x3xf32>, vector<16x3xf32>, vector<16x3xf32>, vector<16x3xf32>, vector<16x3xf32>, vector<16x3xf32> -> vector<16x27xf32>
    %c0_270 = arith.constant 0 : index
    %c884_271 = arith.constant 884 : index
    %c0_272 = arith.constant 0 : index
    %247 = tpu.strided_load %arg1[%c0_270, %c884_271, %c0_272] {strides = array<i32: 1, 2, 1>} : memref<1x1156x3xf32, #tpu.memory_space<vmem>>, vector<1x16x3xf32>
    %248 = vector.shape_cast %247 : vector<1x16x3xf32> to vector<16x3xf32>
    %c0_273 = arith.constant 0 : index
    %c885_274 = arith.constant 885 : index
    %c0_275 = arith.constant 0 : index
    %249 = tpu.strided_load %arg1[%c0_273, %c885_274, %c0_275] {strides = array<i32: 1, 2, 1>} : memref<1x1156x3xf32, #tpu.memory_space<vmem>>, vector<1x16x3xf32>
    %250 = vector.shape_cast %249 : vector<1x16x3xf32> to vector<16x3xf32>
    %c0_276 = arith.constant 0 : index
    %c886_277 = arith.constant 886 : index
    %c0_278 = arith.constant 0 : index
    %251 = tpu.strided_load %arg1[%c0_276, %c886_277, %c0_278] {strides = array<i32: 1, 2, 1>} : memref<1x1156x3xf32, #tpu.memory_space<vmem>>, vector<1x16x3xf32>
    %252 = vector.shape_cast %251 : vector<1x16x3xf32> to vector<16x3xf32>
    %c0_279 = arith.constant 0 : index
    %c918 = arith.constant 918 : index
    %c0_280 = arith.constant 0 : index
    %253 = tpu.strided_load %arg1[%c0_279, %c918, %c0_280] {strides = array<i32: 1, 2, 1>} : memref<1x1156x3xf32, #tpu.memory_space<vmem>>, vector<1x16x3xf32>
    %254 = vector.shape_cast %253 : vector<1x16x3xf32> to vector<16x3xf32>
    %c0_281 = arith.constant 0 : index
    %c919 = arith.constant 919 : index
    %c0_282 = arith.constant 0 : index
    %255 = tpu.strided_load %arg1[%c0_281, %c919, %c0_282] {strides = array<i32: 1, 2, 1>} : memref<1x1156x3xf32, #tpu.memory_space<vmem>>, vector<1x16x3xf32>
    %256 = vector.shape_cast %255 : vector<1x16x3xf32> to vector<16x3xf32>
    %c0_283 = arith.constant 0 : index
    %c920 = arith.constant 920 : index
    %c0_284 = arith.constant 0 : index
    %257 = tpu.strided_load %arg1[%c0_283, %c920, %c0_284] {strides = array<i32: 1, 2, 1>} : memref<1x1156x3xf32, #tpu.memory_space<vmem>>, vector<1x16x3xf32>
    %258 = vector.shape_cast %257 : vector<1x16x3xf32> to vector<16x3xf32>
    %c0_285 = arith.constant 0 : index
    %c952 = arith.constant 952 : index
    %c0_286 = arith.constant 0 : index
    %259 = tpu.strided_load %arg1[%c0_285, %c952, %c0_286] {strides = array<i32: 1, 2, 1>} : memref<1x1156x3xf32, #tpu.memory_space<vmem>>, vector<1x16x3xf32>
    %260 = vector.shape_cast %259 : vector<1x16x3xf32> to vector<16x3xf32>
    %c0_287 = arith.constant 0 : index
    %c953 = arith.constant 953 : index
    %c0_288 = arith.constant 0 : index
    %261 = tpu.strided_load %arg1[%c0_287, %c953, %c0_288] {strides = array<i32: 1, 2, 1>} : memref<1x1156x3xf32, #tpu.memory_space<vmem>>, vector<1x16x3xf32>
    %262 = vector.shape_cast %261 : vector<1x16x3xf32> to vector<16x3xf32>
    %c0_289 = arith.constant 0 : index
    %c954 = arith.constant 954 : index
    %c0_290 = arith.constant 0 : index
    %263 = tpu.strided_load %arg1[%c0_289, %c954, %c0_290] {strides = array<i32: 1, 2, 1>} : memref<1x1156x3xf32, #tpu.memory_space<vmem>>, vector<1x16x3xf32>
    %264 = vector.shape_cast %263 : vector<1x16x3xf32> to vector<16x3xf32>
    %265 = tpu.concatenate %248, %250, %252, %254, %256, %258, %260, %262, %264 in 1 : vector<16x3xf32>, vector<16x3xf32>, vector<16x3xf32>, vector<16x3xf32>, vector<16x3xf32>, vector<16x3xf32>, vector<16x3xf32>, vector<16x3xf32>, vector<16x3xf32> -> vector<16x27xf32>
    %c0_291 = arith.constant 0 : index
    %c952_292 = arith.constant 952 : index
    %c0_293 = arith.constant 0 : index
    %266 = tpu.strided_load %arg1[%c0_291, %c952_292, %c0_293] {strides = array<i32: 1, 2, 1>} : memref<1x1156x3xf32, #tpu.memory_space<vmem>>, vector<1x16x3xf32>
    %267 = vector.shape_cast %266 : vector<1x16x3xf32> to vector<16x3xf32>
    %c0_294 = arith.constant 0 : index
    %c953_295 = arith.constant 953 : index
    %c0_296 = arith.constant 0 : index
    %268 = tpu.strided_load %arg1[%c0_294, %c953_295, %c0_296] {strides = array<i32: 1, 2, 1>} : memref<1x1156x3xf32, #tpu.memory_space<vmem>>, vector<1x16x3xf32>
    %269 = vector.shape_cast %268 : vector<1x16x3xf32> to vector<16x3xf32>
    %c0_297 = arith.constant 0 : index
    %c954_298 = arith.constant 954 : index
    %c0_299 = arith.constant 0 : index
    %270 = tpu.strided_load %arg1[%c0_297, %c954_298, %c0_299] {strides = array<i32: 1, 2, 1>} : memref<1x1156x3xf32, #tpu.memory_space<vmem>>, vector<1x16x3xf32>
    %271 = vector.shape_cast %270 : vector<1x16x3xf32> to vector<16x3xf32>
    %c0_300 = arith.constant 0 : index
    %c986 = arith.constant 986 : index
    %c0_301 = arith.constant 0 : index
    %272 = tpu.strided_load %arg1[%c0_300, %c986, %c0_301] {strides = array<i32: 1, 2, 1>} : memref<1x1156x3xf32, #tpu.memory_space<vmem>>, vector<1x16x3xf32>
    %273 = vector.shape_cast %272 : vector<1x16x3xf32> to vector<16x3xf32>
    %c0_302 = arith.constant 0 : index
    %c987 = arith.constant 987 : index
    %c0_303 = arith.constant 0 : index
    %274 = tpu.strided_load %arg1[%c0_302, %c987, %c0_303] {strides = array<i32: 1, 2, 1>} : memref<1x1156x3xf32, #tpu.memory_space<vmem>>, vector<1x16x3xf32>
    %275 = vector.shape_cast %274 : vector<1x16x3xf32> to vector<16x3xf32>
    %c0_304 = arith.constant 0 : index
    %c988 = arith.constant 988 : index
    %c0_305 = arith.constant 0 : index
    %276 = tpu.strided_load %arg1[%c0_304, %c988, %c0_305] {strides = array<i32: 1, 2, 1>} : memref<1x1156x3xf32, #tpu.memory_space<vmem>>, vector<1x16x3xf32>
    %277 = vector.shape_cast %276 : vector<1x16x3xf32> to vector<16x3xf32>
    %c0_306 = arith.constant 0 : index
    %c1020 = arith.constant 1020 : index
    %c0_307 = arith.constant 0 : index
    %278 = tpu.strided_load %arg1[%c0_306, %c1020, %c0_307] {strides = array<i32: 1, 2, 1>} : memref<1x1156x3xf32, #tpu.memory_space<vmem>>, vector<1x16x3xf32>
    %279 = vector.shape_cast %278 : vector<1x16x3xf32> to vector<16x3xf32>
    %c0_308 = arith.constant 0 : index
    %c1021 = arith.constant 1021 : index
    %c0_309 = arith.constant 0 : index
    %280 = tpu.strided_load %arg1[%c0_308, %c1021, %c0_309] {strides = array<i32: 1, 2, 1>} : memref<1x1156x3xf32, #tpu.memory_space<vmem>>, vector<1x16x3xf32>
    %281 = vector.shape_cast %280 : vector<1x16x3xf32> to vector<16x3xf32>
    %c0_310 = arith.constant 0 : index
    %c1022 = arith.constant 1022 : index
    %c0_311 = arith.constant 0 : index
    %282 = tpu.strided_load %arg1[%c0_310, %c1022, %c0_311] {strides = array<i32: 1, 2, 1>} : memref<1x1156x3xf32, #tpu.memory_space<vmem>>, vector<1x16x3xf32>
    %283 = vector.shape_cast %282 : vector<1x16x3xf32> to vector<16x3xf32>
    %284 = tpu.concatenate %267, %269, %271, %273, %275, %277, %279, %281, %283 in 1 : vector<16x3xf32>, vector<16x3xf32>, vector<16x3xf32>, vector<16x3xf32>, vector<16x3xf32>, vector<16x3xf32>, vector<16x3xf32>, vector<16x3xf32>, vector<16x3xf32> -> vector<16x27xf32>
    %c0_312 = arith.constant 0 : index
    %c1020_313 = arith.constant 1020 : index
    %c0_314 = arith.constant 0 : index
    %285 = tpu.strided_load %arg1[%c0_312, %c1020_313, %c0_314] {strides = array<i32: 1, 2, 1>} : memref<1x1156x3xf32, #tpu.memory_space<vmem>>, vector<1x16x3xf32>
    %286 = vector.shape_cast %285 : vector<1x16x3xf32> to vector<16x3xf32>
    %c0_315 = arith.constant 0 : index
    %c1021_316 = arith.constant 1021 : index
    %c0_317 = arith.constant 0 : index
    %287 = tpu.strided_load %arg1[%c0_315, %c1021_316, %c0_317] {strides = array<i32: 1, 2, 1>} : memref<1x1156x3xf32, #tpu.memory_space<vmem>>, vector<1x16x3xf32>
    %288 = vector.shape_cast %287 : vector<1x16x3xf32> to vector<16x3xf32>
    %c0_318 = arith.constant 0 : index
    %c1022_319 = arith.constant 1022 : index
    %c0_320 = arith.constant 0 : index
    %289 = tpu.strided_load %arg1[%c0_318, %c1022_319, %c0_320] {strides = array<i32: 1, 2, 1>} : memref<1x1156x3xf32, #tpu.memory_space<vmem>>, vector<1x16x3xf32>
    %290 = vector.shape_cast %289 : vector<1x16x3xf32> to vector<16x3xf32>
    %c0_321 = arith.constant 0 : index
    %c1054 = arith.constant 1054 : index
    %c0_322 = arith.constant 0 : index
    %291 = tpu.strided_load %arg1[%c0_321, %c1054, %c0_322] {strides = array<i32: 1, 2, 1>} : memref<1x1156x3xf32, #tpu.memory_space<vmem>>, vector<1x16x3xf32>
    %292 = vector.shape_cast %291 : vector<1x16x3xf32> to vector<16x3xf32>
    %c0_323 = arith.constant 0 : index
    %c1055 = arith.constant 1055 : index
    %c0_324 = arith.constant 0 : index
    %293 = tpu.strided_load %arg1[%c0_323, %c1055, %c0_324] {strides = array<i32: 1, 2, 1>} : memref<1x1156x3xf32, #tpu.memory_space<vmem>>, vector<1x16x3xf32>
    %294 = vector.shape_cast %293 : vector<1x16x3xf32> to vector<16x3xf32>
    %c0_325 = arith.constant 0 : index
    %c1056 = arith.constant 1056 : index
    %c0_326 = arith.constant 0 : index
    %295 = tpu.strided_load %arg1[%c0_325, %c1056, %c0_326] {strides = array<i32: 1, 2, 1>} : memref<1x1156x3xf32, #tpu.memory_space<vmem>>, vector<1x16x3xf32>
    %296 = vector.shape_cast %295 : vector<1x16x3xf32> to vector<16x3xf32>
    %c0_327 = arith.constant 0 : index
    %c1088 = arith.constant 1088 : index
    %c0_328 = arith.constant 0 : index
    %297 = tpu.strided_load %arg1[%c0_327, %c1088, %c0_328] {strides = array<i32: 1, 2, 1>} : memref<1x1156x3xf32, #tpu.memory_space<vmem>>, vector<1x16x3xf32>
    %298 = vector.shape_cast %297 : vector<1x16x3xf32> to vector<16x3xf32>
    %c0_329 = arith.constant 0 : index
    %c1089 = arith.constant 1089 : index
    %c0_330 = arith.constant 0 : index
    %299 = tpu.strided_load %arg1[%c0_329, %c1089, %c0_330] {strides = array<i32: 1, 2, 1>} : memref<1x1156x3xf32, #tpu.memory_space<vmem>>, vector<1x16x3xf32>
    %300 = vector.shape_cast %299 : vector<1x16x3xf32> to vector<16x3xf32>
    %c0_331 = arith.constant 0 : index
    %c1090 = arith.constant 1090 : index
    %c0_332 = arith.constant 0 : index
    %301 = tpu.strided_load %arg1[%c0_331, %c1090, %c0_332] {strides = array<i32: 1, 2, 1>} : memref<1x1156x3xf32, #tpu.memory_space<vmem>>, vector<1x16x3xf32>
    %302 = vector.shape_cast %301 : vector<1x16x3xf32> to vector<16x3xf32>
    %303 = tpu.concatenate %286, %288, %290, %292, %294, %296, %298, %300, %302 in 1 : vector<16x3xf32>, vector<16x3xf32>, vector<16x3xf32>, vector<16x3xf32>, vector<16x3xf32>, vector<16x3xf32>, vector<16x3xf32>, vector<16x3xf32>, vector<16x3xf32> -> vector<16x27xf32>
    %304 = tpu.concatenate %18, %37, %56, %75, %94, %113, %132, %151, %170, %189, %208, %227, %246, %265, %284, %303 in 0 : vector<16x27xf32>, vector<16x27xf32>, vector<16x27xf32>, vector<16x27xf32>, vector<16x27xf32>, vector<16x27xf32>, vector<16x27xf32>, vector<16x27xf32>, vector<16x27xf32>, vector<16x27xf32>, vector<16x27xf32>, vector<16x27xf32>, vector<16x27xf32>, vector<16x27xf32>, vector<16x27xf32>, vector<16x27xf32> -> vector<256x27xf32>
    %305 = arith.truncf %304 : vector<256x27xf32> to vector<256x27xbf16>
    %c0_333 = arith.constant 0 : index
    %c0_334 = arith.constant 0 : index
    %306 = vector.load %arg2[%c0_333, %c0_334] : memref<27x8xbf16, #tpu.memory_space<vmem>>, vector<27x8xbf16>
    %cst = arith.constant dense<0.000000e+00> : vector<256x8xf32>
    %307 = tpu.matmul %305, %306, %cst {dimension_numbers = #tpu.dot_dimension_numbers<[1], [0], [0], [1], [0, 0, 1, 1], [], []>} : vector<256x27xbf16>, vector<27x8xbf16>, vector<256x8xf32> -> vector<256x8xf32>
    %c0_335 = arith.constant 0 : index
    %c0_336 = arith.constant 0 : index
    %308 = vector.load %arg3[%c0_335, %c0_336] : memref<1x8xf32, #tpu.memory_space<vmem>>, vector<1x8xf32>
    %309 = vector.broadcast %308 : vector<1x8xf32> to vector<256x8xf32>
    %310 = arith.addf %307, %309 : vector<256x8xf32>
    %cst_337 = arith.constant 0.000000e+00 : f32
    %311 = vector.broadcast %cst_337 : f32 to vector<256x8xf32>
    %312 = arith.cmpf ogt, %310, %311 : vector<256x8xf32>
    %cst_338 = arith.constant 2.000000e-01 : f32
    %313 = vector.broadcast %cst_338 : f32 to vector<256x8xf32>
    %314 = arith.mulf %313, %310 : vector<256x8xf32>
    %315 = arith.select %312, %310, %314 : vector<256x8xi1>, vector<256x8xf32>
    %316 = vector.extract_strided_slice %315 {offsets = [0, 0], sizes = [16, 8], strides = [1, 1]} : vector<256x8xf32> to vector<16x8xf32>
    %c19 = arith.constant 19 : index
    %c0_339 = arith.constant 0 : index
    %317 = vector.load %arg10[%c19, %c0_339] : memref<324x8xf32, #tpu.memory_space<vmem>>, vector<16x8xf32>
    tpu.vector_store %arg10[%c19, %c0_339], %316 {strides = array<i32>} : memref<324x8xf32, #tpu.memory_space<vmem>>, vector<16x8xf32>,
    %318 = vector.extract_strided_slice %315 {offsets = [1, 0], sizes = [1, 8], strides = [1, 1]} : vector<256x8xf32> to vector<1x8xf32>
    %c18 = arith.constant 18 : index
    %c0_340 = arith.constant 0 : index
    %319 = vector.load %arg10[%c18, %c0_340] : memref<324x8xf32, #tpu.memory_space<vmem>>, vector<1x8xf32>
    tpu.vector_store %arg10[%c18, %c0_340], %318 {strides = array<i32>} : memref<324x8xf32, #tpu.memory_space<vmem>>, vector<1x8xf32>,
    %320 = vector.extract_strided_slice %315 {offsets = [14, 0], sizes = [1, 8], strides = [1, 1]} : vector<256x8xf32> to vector<1x8xf32>
    %c35_341 = arith.constant 35 : index
    %c0_342 = arith.constant 0 : index
    %321 = vector.load %arg10[%c35_341, %c0_342] : memref<324x8xf32, #tpu.memory_space<vmem>>, vector<1x8xf32>
    tpu.vector_store %arg10[%c35_341, %c0_342], %320 {strides = array<i32>} : memref<324x8xf32, #tpu.memory_space<vmem>>, vector<1x8xf32>,
    %322 = vector.extract_strided_slice %315 {offsets = [16, 0], sizes = [16, 8], strides = [1, 1]} : vector<256x8xf32> to vector<16x8xf32>
    %c37 = arith.constant 37 : index
    %c0_343 = arith.constant 0 : index
    %323 = vector.load %arg10[%c37, %c0_343] : memref<324x8xf32, #tpu.memory_space<vmem>>, vector<16x8xf32>
    tpu.vector_store %arg10[%c37, %c0_343], %322 {strides = array<i32>} : memref<324x8xf32, #tpu.memory_space<vmem>>, vector<16x8xf32>,
    %324 = vector.extract_strided_slice %315 {offsets = [17, 0], sizes = [1, 8], strides = [1, 1]} : vector<256x8xf32> to vector<1x8xf32>
    %c36_344 = arith.constant 36 : index
    %c0_345 = arith.constant 0 : index
    %325 = vector.load %arg10[%c36_344, %c0_345] : memref<324x8xf32, #tpu.memory_space<vmem>>, vector<1x8xf32>
    tpu.vector_store %arg10[%c36_344, %c0_345], %324 {strides = array<i32>} : memref<324x8xf32, #tpu.memory_space<vmem>>, vector<1x8xf32>,
    %326 = vector.extract_strided_slice %315 {offsets = [30, 0], sizes = [1, 8], strides = [1, 1]} : vector<256x8xf32> to vector<1x8xf32>
    %c53 = arith.constant 53 : index
    %c0_346 = arith.constant 0 : index
    %327 = vector.load %arg10[%c53, %c0_346] : memref<324x8xf32, #tpu.memory_space<vmem>>, vector<1x8xf32>
    tpu.vector_store %arg10[%c53, %c0_346], %326 {strides = array<i32>} : memref<324x8xf32, #tpu.memory_space<vmem>>, vector<1x8xf32>,
    %328 = vector.extract_strided_slice %315 {offsets = [32, 0], sizes = [16, 8], strides = [1, 1]} : vector<256x8xf32> to vector<16x8xf32>
    %c55 = arith.constant 55 : index
    %c0_347 = arith.constant 0 : index
    %329 = vector.load %arg10[%c55, %c0_347] : memref<324x8xf32, #tpu.memory_space<vmem>>, vector<16x8xf32>
    tpu.vector_store %arg10[%c55, %c0_347], %328 {strides = array<i32>} : memref<324x8xf32, #tpu.memory_space<vmem>>, vector<16x8xf32>,
    %330 = vector.extract_strided_slice %315 {offsets = [33, 0], sizes = [1, 8], strides = [1, 1]} : vector<256x8xf32> to vector<1x8xf32>
    %c54 = arith.constant 54 : index
    %c0_348 = arith.constant 0 : index
    %331 = vector.load %arg10[%c54, %c0_348] : memref<324x8xf32, #tpu.memory_space<vmem>>, vector<1x8xf32>
    tpu.vector_store %arg10[%c54, %c0_348], %330 {strides = array<i32>} : memref<324x8xf32, #tpu.memory_space<vmem>>, vector<1x8xf32>,
    %332 = vector.extract_strided_slice %315 {offsets = [46, 0], sizes = [1, 8], strides = [1, 1]} : vector<256x8xf32> to vector<1x8xf32>
    %c71 = arith.constant 71 : index
    %c0_349 = arith.constant 0 : index
    %333 = vector.load %arg10[%c71, %c0_349] : memref<324x8xf32, #tpu.memory_space<vmem>>, vector<1x8xf32>
    tpu.vector_store %arg10[%c71, %c0_349], %332 {strides = array<i32>} : memref<324x8xf32, #tpu.memory_space<vmem>>, vector<1x8xf32>,
    %334 = vector.extract_strided_slice %315 {offsets = [48, 0], sizes = [16, 8], strides = [1, 1]} : vector<256x8xf32> to vector<16x8xf32>
    %c73 = arith.constant 73 : index
    %c0_350 = arith.constant 0 : index
    %335 = vector.load %arg10[%c73, %c0_350] : memref<324x8xf32, #tpu.memory_space<vmem>>, vector<16x8xf32>
    tpu.vector_store %arg10[%c73, %c0_350], %334 {strides = array<i32>} : memref<324x8xf32, #tpu.memory_space<vmem>>, vector<16x8xf32>,
    %336 = vector.extract_strided_slice %315 {offsets = [49, 0], sizes = [1, 8], strides = [1, 1]} : vector<256x8xf32> to vector<1x8xf32>
    %c72 = arith.constant 72 : index
    %c0_351 = arith.constant 0 : index
    %337 = vector.load %arg10[%c72, %c0_351] : memref<324x8xf32, #tpu.memory_space<vmem>>, vector<1x8xf32>
    tpu.vector_store %arg10[%c72, %c0_351], %336 {strides = array<i32>} : memref<324x8xf32, #tpu.memory_space<vmem>>, vector<1x8xf32>,
    %338 = vector.extract_strided_slice %315 {offsets = [62, 0], sizes = [1, 8], strides = [1, 1]} : vector<256x8xf32> to vector<1x8xf32>
    %c89 = arith.constant 89 : index
    %c0_352 = arith.constant 0 : index
    %339 = vector.load %arg10[%c89, %c0_352] : memref<324x8xf32, #tpu.memory_space<vmem>>, vector<1x8xf32>
    tpu.vector_store %arg10[%c89, %c0_352], %338 {strides = array<i32>} : memref<324x8xf32, #tpu.memory_space<vmem>>, vector<1x8xf32>,
    %340 = vector.extract_strided_slice %315 {offsets = [64, 0], sizes = [16, 8], strides = [1, 1]} : vector<256x8xf32> to vector<16x8xf32>
    %c91 = arith.constant 91 : index
    %c0_353 = arith.constant 0 : index
    %341 = vector.load %arg10[%c91, %c0_353] : memref<324x8xf32, #tpu.memory_space<vmem>>, vector<16x8xf32>
    tpu.vector_store %arg10[%c91, %c0_353], %340 {strides = array<i32>} : memref<324x8xf32, #tpu.memory_space<vmem>>, vector<16x8xf32>,
    %342 = vector.extract_strided_slice %315 {offsets = [65, 0], sizes = [1, 8], strides = [1, 1]} : vector<256x8xf32> to vector<1x8xf32>
    %c90 = arith.constant 90 : index
    %c0_354 = arith.constant 0 : index
    %343 = vector.load %arg10[%c90, %c0_354] : memref<324x8xf32, #tpu.memory_space<vmem>>, vector<1x8xf32>
    tpu.vector_store %arg10[%c90, %c0_354], %342 {strides = array<i32>} : memref<324x8xf32, #tpu.memory_space<vmem>>, vector<1x8xf32>,
    %344 = vector.extract_strided_slice %315 {offsets = [78, 0], sizes = [1, 8], strides = [1, 1]} : vector<256x8xf32> to vector<1x8xf32>
    %c107 = arith.constant 107 : index
    %c0_355 = arith.constant 0 : index
    %345 = vector.load %arg10[%c107, %c0_355] : memref<324x8xf32, #tpu.memory_space<vmem>>, vector<1x8xf32>
    tpu.vector_store %arg10[%c107, %c0_355], %344 {strides = array<i32>} : memref<324x8xf32, #tpu.memory_space<vmem>>, vector<1x8xf32>,
    %346 = vector.extract_strided_slice %315 {offsets = [80, 0], sizes = [16, 8], strides = [1, 1]} : vector<256x8xf32> to vector<16x8xf32>
    %c109 = arith.constant 109 : index
    %c0_356 = arith.constant 0 : index
    %347 = vector.load %arg10[%c109, %c0_356] : memref<324x8xf32, #tpu.memory_space<vmem>>, vector<16x8xf32>
    tpu.vector_store %arg10[%c109, %c0_356], %346 {strides = array<i32>} : memref<324x8xf32, #tpu.memory_space<vmem>>, vector<16x8xf32>,
    %348 = vector.extract_strided_slice %315 {offsets = [81, 0], sizes = [1, 8], strides = [1, 1]} : vector<256x8xf32> to vector<1x8xf32>
    %c108 = arith.constant 108 : index
    %c0_357 = arith.constant 0 : index
    %349 = vector.load %arg10[%c108, %c0_357] : memref<324x8xf32, #tpu.memory_space<vmem>>, vector<1x8xf32>
    tpu.vector_store %arg10[%c108, %c0_357], %348 {strides = array<i32>} : memref<324x8xf32, #tpu.memory_space<vmem>>, vector<1x8xf32>,
    %350 = vector.extract_strided_slice %315 {offsets = [94, 0], sizes = [1, 8], strides = [1, 1]} : vector<256x8xf32> to vector<1x8xf32>
    %c125 = arith.constant 125 : index
    %c0_358 = arith.constant 0 : index
    %351 = vector.load %arg10[%c125, %c0_358] : memref<324x8xf32, #tpu.memory_space<vmem>>, vector<1x8xf32>
    tpu.vector_store %arg10[%c125, %c0_358], %350 {strides = array<i32>} : memref<324x8xf32, #tpu.memory_space<vmem>>, vector<1x8xf32>,
    %352 = vector.extract_strided_slice %315 {offsets = [96, 0], sizes = [16, 8], strides = [1, 1]} : vector<256x8xf32> to vector<16x8xf32>
    %c127 = arith.constant 127 : index
    %c0_359 = arith.constant 0 : index
    %353 = vector.load %arg10[%c127, %c0_359] : memref<324x8xf32, #tpu.memory_space<vmem>>, vector<16x8xf32>
    tpu.vector_store %arg10[%c127, %c0_359], %352 {strides = array<i32>} : memref<324x8xf32, #tpu.memory_space<vmem>>, vector<16x8xf32>,
    %354 = vector.extract_strided_slice %315 {offsets = [97, 0], sizes = [1, 8], strides = [1, 1]} : vector<256x8xf32> to vector<1x8xf32>
    %c126 = arith.constant 126 : index
    %c0_360 = arith.constant 0 : index
    %355 = vector.load %arg10[%c126, %c0_360] : memref<324x8xf32, #tpu.memory_space<vmem>>, vector<1x8xf32>
    tpu.vector_store %arg10[%c126, %c0_360], %354 {strides = array<i32>} : memref<324x8xf32, #tpu.memory_space<vmem>>, vector<1x8xf32>,
    %356 = vector.extract_strided_slice %315 {offsets = [110, 0], sizes = [1, 8], strides = [1, 1]} : vector<256x8xf32> to vector<1x8xf32>
    %c143 = arith.constant 143 : index
    %c0_361 = arith.constant 0 : index
    %357 = vector.load %arg10[%c143, %c0_361] : memref<324x8xf32, #tpu.memory_space<vmem>>, vector<1x8xf32>
    tpu.vector_store %arg10[%c143, %c0_361], %356 {strides = array<i32>} : memref<324x8xf32, #tpu.memory_space<vmem>>, vector<1x8xf32>,
    %358 = vector.extract_strided_slice %315 {offsets = [112, 0], sizes = [16, 8], strides = [1, 1]} : vector<256x8xf32> to vector<16x8xf32>
    %c145 = arith.constant 145 : index
    %c0_362 = arith.constant 0 : index
    %359 = vector.load %arg10[%c145, %c0_362] : memref<324x8xf32, #tpu.memory_space<vmem>>, vector<16x8xf32>
    tpu.vector_store %arg10[%c145, %c0_362], %358 {strides = array<i32>} : memref<324x8xf32, #tpu.memory_space<vmem>>, vector<16x8xf32>,
    %360 = vector.extract_strided_slice %315 {offsets = [113, 0], sizes = [1, 8], strides = [1, 1]} : vector<256x8xf32> to vector<1x8xf32>
    %c144 = arith.constant 144 : index
    %c0_363 = arith.constant 0 : index
    %361 = vector.load %arg10[%c144, %c0_363] : memref<324x8xf32, #tpu.memory_space<vmem>>, vector<1x8xf32>
    tpu.vector_store %arg10[%c144, %c0_363], %360 {strides = array<i32>} : memref<324x8xf32, #tpu.memory_space<vmem>>, vector<1x8xf32>,
    %362 = vector.extract_strided_slice %315 {offsets = [126, 0], sizes = [1, 8], strides = [1, 1]} : vector<256x8xf32> to vector<1x8xf32>
    %c161 = arith.constant 161 : index
    %c0_364 = arith.constant 0 : index
    %363 = vector.load %arg10[%c161, %c0_364] : memref<324x8xf32, #tpu.memory_space<vmem>>, vector<1x8xf32>
    tpu.vector_store %arg10[%c161, %c0_364], %362 {strides = array<i32>} : memref<324x8xf32, #tpu.memory_space<vmem>>, vector<1x8xf32>,
    %364 = vector.extract_strided_slice %315 {offsets = [128, 0], sizes = [16, 8], strides = [1, 1]} : vector<256x8xf32> to vector<16x8xf32>
    %c163 = arith.constant 163 : index
    %c0_365 = arith.constant 0 : index
    %365 = vector.load %arg10[%c163, %c0_365] : memref<324x8xf32, #tpu.memory_space<vmem>>, vector<16x8xf32>
    tpu.vector_store %arg10[%c163, %c0_365], %364 {strides = array<i32>} : memref<324x8xf32, #tpu.memory_space<vmem>>, vector<16x8xf32>,
    %366 = vector.extract_strided_slice %315 {offsets = [129, 0], sizes = [1, 8], strides = [1, 1]} : vector<256x8xf32> to vector<1x8xf32>
    %c162 = arith.constant 162 : index
    %c0_366 = arith.constant 0 : index
    %367 = vector.load %arg10[%c162, %c0_366] : memref<324x8xf32, #tpu.memory_space<vmem>>, vector<1x8xf32>
    tpu.vector_store %arg10[%c162, %c0_366], %366 {strides = array<i32>} : memref<324x8xf32, #tpu.memory_space<vmem>>, vector<1x8xf32>,
    %368 = vector.extract_strided_slice %315 {offsets = [142, 0], sizes = [1, 8], strides = [1, 1]} : vector<256x8xf32> to vector<1x8xf32>
    %c179 = arith.constant 179 : index
    %c0_367 = arith.constant 0 : index
    %369 = vector.load %arg10[%c179, %c0_367] : memref<324x8xf32, #tpu.memory_space<vmem>>, vector<1x8xf32>
    tpu.vector_store %arg10[%c179, %c0_367], %368 {strides = array<i32>} : memref<324x8xf32, #tpu.memory_space<vmem>>, vector<1x8xf32>,
    %370 = vector.extract_strided_slice %315 {offsets = [144, 0], sizes = [16, 8], strides = [1, 1]} : vector<256x8xf32> to vector<16x8xf32>
    %c181 = arith.constant 181 : index
    %c0_368 = arith.constant 0 : index
    %371 = vector.load %arg10[%c181, %c0_368] : memref<324x8xf32, #tpu.memory_space<vmem>>, vector<16x8xf32>
    tpu.vector_store %arg10[%c181, %c0_368], %370 {strides = array<i32>} : memref<324x8xf32, #tpu.memory_space<vmem>>, vector<16x8xf32>,
    %372 = vector.extract_strided_slice %315 {offsets = [145, 0], sizes = [1, 8], strides = [1, 1]} : vector<256x8xf32> to vector<1x8xf32>
    %c180 = arith.constant 180 : index
    %c0_369 = arith.constant 0 : index
    %373 = vector.load %arg10[%c180, %c0_369] : memref<324x8xf32, #tpu.memory_space<vmem>>, vector<1x8xf32>
    tpu.vector_store %arg10[%c180, %c0_369], %372 {strides = array<i32>} : memref<324x8xf32, #tpu.memory_space<vmem>>, vector<1x8xf32>,
    %374 = vector.extract_strided_slice %315 {offsets = [158, 0], sizes = [1, 8], strides = [1, 1]} : vector<256x8xf32> to vector<1x8xf32>
    %c197 = arith.constant 197 : index
    %c0_370 = arith.constant 0 : index
    %375 = vector.load %arg10[%c197, %c0_370] : memref<324x8xf32, #tpu.memory_space<vmem>>, vector<1x8xf32>
    tpu.vector_store %arg10[%c197, %c0_370], %374 {strides = array<i32>} : memref<324x8xf32, #tpu.memory_space<vmem>>, vector<1x8xf32>,
    %376 = vector.extract_strided_slice %315 {offsets = [160, 0], sizes = [16, 8], strides = [1, 1]} : vector<256x8xf32> to vector<16x8xf32>
    %c199 = arith.constant 199 : index
    %c0_371 = arith.constant 0 : index
    %377 = vector.load %arg10[%c199, %c0_371] : memref<324x8xf32, #tpu.memory_space<vmem>>, vector<16x8xf32>
    tpu.vector_store %arg10[%c199, %c0_371], %376 {strides = array<i32>} : memref<324x8xf32, #tpu.memory_space<vmem>>, vector<16x8xf32>,
    %378 = vector.extract_strided_slice %315 {offsets = [161, 0], sizes = [1, 8], strides = [1, 1]} : vector<256x8xf32> to vector<1x8xf32>
    %c198 = arith.constant 198 : index
    %c0_372 = arith.constant 0 : index
    %379 = vector.load %arg10[%c198, %c0_372] : memref<324x8xf32, #tpu.memory_space<vmem>>, vector<1x8xf32>
    tpu.vector_store %arg10[%c198, %c0_372], %378 {strides = array<i32>} : memref<324x8xf32, #tpu.memory_space<vmem>>, vector<1x8xf32>,
    %380 = vector.extract_strided_slice %315 {offsets = [174, 0], sizes = [1, 8], strides = [1, 1]} : vector<256x8xf32> to vector<1x8xf32>
    %c215 = arith.constant 215 : index
    %c0_373 = arith.constant 0 : index
    %381 = vector.load %arg10[%c215, %c0_373] : memref<324x8xf32, #tpu.memory_space<vmem>>, vector<1x8xf32>
    tpu.vector_store %arg10[%c215, %c0_373], %380 {strides = array<i32>} : memref<324x8xf32, #tpu.memory_space<vmem>>, vector<1x8xf32>,
    %382 = vector.extract_strided_slice %315 {offsets = [176, 0], sizes = [16, 8], strides = [1, 1]} : vector<256x8xf32> to vector<16x8xf32>
    %c217 = arith.constant 217 : index
    %c0_374 = arith.constant 0 : index
    %383 = vector.load %arg10[%c217, %c0_374] : memref<324x8xf32, #tpu.memory_space<vmem>>, vector<16x8xf32>
    tpu.vector_store %arg10[%c217, %c0_374], %382 {strides = array<i32>} : memref<324x8xf32, #tpu.memory_space<vmem>>, vector<16x8xf32>,
    %384 = vector.extract_strided_slice %315 {offsets = [177, 0], sizes = [1, 8], strides = [1, 1]} : vector<256x8xf32> to vector<1x8xf32>
    %c216 = arith.constant 216 : index
    %c0_375 = arith.constant 0 : index
    %385 = vector.load %arg10[%c216, %c0_375] : memref<324x8xf32, #tpu.memory_space<vmem>>, vector<1x8xf32>
    tpu.vector_store %arg10[%c216, %c0_375], %384 {strides = array<i32>} : memref<324x8xf32, #tpu.memory_space<vmem>>, vector<1x8xf32>,
    %386 = vector.extract_strided_slice %315 {offsets = [190, 0], sizes = [1, 8], strides = [1, 1]} : vector<256x8xf32> to vector<1x8xf32>
    %c233 = arith.constant 233 : index
    %c0_376 = arith.constant 0 : index
    %387 = vector.load %arg10[%c233, %c0_376] : memref<324x8xf32, #tpu.memory_space<vmem>>, vector<1x8xf32>
    tpu.vector_store %arg10[%c233, %c0_376], %386 {strides = array<i32>} : memref<324x8xf32, #tpu.memory_space<vmem>>, vector<1x8xf32>,
    %388 = vector.extract_strided_slice %315 {offsets = [192, 0], sizes = [16, 8], strides = [1, 1]} : vector<256x8xf32> to vector<16x8xf32>
    %c235 = arith.constant 235 : index
    %c0_377 = arith.constant 0 : index
    %389 = vector.load %arg10[%c235, %c0_377] : memref<324x8xf32, #tpu.memory_space<vmem>>, vector<16x8xf32>
    tpu.vector_store %arg10[%c235, %c0_377], %388 {strides = array<i32>} : memref<324x8xf32, #tpu.memory_space<vmem>>, vector<16x8xf32>,
    %390 = vector.extract_strided_slice %315 {offsets = [193, 0], sizes = [1, 8], strides = [1, 1]} : vector<256x8xf32> to vector<1x8xf32>
    %c234 = arith.constant 234 : index
    %c0_378 = arith.constant 0 : index
    %391 = vector.load %arg10[%c234, %c0_378] : memref<324x8xf32, #tpu.memory_space<vmem>>, vector<1x8xf32>
    tpu.vector_store %arg10[%c234, %c0_378], %390 {strides = array<i32>} : memref<324x8xf32, #tpu.memory_space<vmem>>, vector<1x8xf32>,
    %392 = vector.extract_strided_slice %315 {offsets = [206, 0], sizes = [1, 8], strides = [1, 1]} : vector<256x8xf32> to vector<1x8xf32>
    %c251 = arith.constant 251 : index
    %c0_379 = arith.constant 0 : index
    %393 = vector.load %arg10[%c251, %c0_379] : memref<324x8xf32, #tpu.memory_space<vmem>>, vector<1x8xf32>
    tpu.vector_store %arg10[%c251, %c0_379], %392 {strides = array<i32>} : memref<324x8xf32, #tpu.memory_space<vmem>>, vector<1x8xf32>,
    %394 = vector.extract_strided_slice %315 {offsets = [208, 0], sizes = [16, 8], strides = [1, 1]} : vector<256x8xf32> to vector<16x8xf32>
    %c253 = arith.constant 253 : index
    %c0_380 = arith.constant 0 : index
    %395 = vector.load %arg10[%c253, %c0_380] : memref<324x8xf32, #tpu.memory_space<vmem>>, vector<16x8xf32>
    tpu.vector_store %arg10[%c253, %c0_380], %394 {strides = array<i32>} : memref<324x8xf32, #tpu.memory_space<vmem>>, vector<16x8xf32>,
    %396 = vector.extract_strided_slice %315 {offsets = [209, 0], sizes = [1, 8], strides = [1, 1]} : vector<256x8xf32> to vector<1x8xf32>
    %c252 = arith.constant 252 : index
    %c0_381 = arith.constant 0 : index
    %397 = vector.load %arg10[%c252, %c0_381] : memref<324x8xf32, #tpu.memory_space<vmem>>, vector<1x8xf32>
    tpu.vector_store %arg10[%c252, %c0_381], %396 {strides = array<i32>} : memref<324x8xf32, #tpu.memory_space<vmem>>, vector<1x8xf32>,
    %398 = vector.extract_strided_slice %315 {offsets = [222, 0], sizes = [1, 8], strides = [1, 1]} : vector<256x8xf32> to vector<1x8xf32>
    %c269 = arith.constant 269 : index
    %c0_382 = arith.constant 0 : index
    %399 = vector.load %arg10[%c269, %c0_382] : memref<324x8xf32, #tpu.memory_space<vmem>>, vector<1x8xf32>
    tpu.vector_store %arg10[%c269, %c0_382], %398 {strides = array<i32>} : memref<324x8xf32, #tpu.memory_space<vmem>>, vector<1x8xf32>,
    %400 = vector.extract_strided_slice %315 {offsets = [224, 0], sizes = [16, 8], strides = [1, 1]} : vector<256x8xf32> to vector<16x8xf32>
    %c271 = arith.constant 271 : index
    %c0_383 = arith.constant 0 : index
    %401 = vector.load %arg10[%c271, %c0_383] : memref<324x8xf32, #tpu.memory_space<vmem>>, vector<16x8xf32>
    tpu.vector_store %arg10[%c271, %c0_383], %400 {strides = array<i32>} : memref<324x8xf32, #tpu.memory_space<vmem>>, vector<16x8xf32>,
    %402 = vector.extract_strided_slice %315 {offsets = [225, 0], sizes = [1, 8], strides = [1, 1]} : vector<256x8xf32> to vector<1x8xf32>
    %c270 = arith.constant 270 : index
    %c0_384 = arith.constant 0 : index
    %403 = vector.load %arg10[%c270, %c0_384] : memref<324x8xf32, #tpu.memory_space<vmem>>, vector<1x8xf32>
    tpu.vector_store %arg10[%c270, %c0_384], %402 {strides = array<i32>} : memref<324x8xf32, #tpu.memory_space<vmem>>, vector<1x8xf32>,
    %404 = vector.extract_strided_slice %315 {offsets = [238, 0], sizes = [1, 8], strides = [1, 1]} : vector<256x8xf32> to vector<1x8xf32>
    %c287 = arith.constant 287 : index
    %c0_385 = arith.constant 0 : index
    %405 = vector.load %arg10[%c287, %c0_385] : memref<324x8xf32, #tpu.memory_space<vmem>>, vector<1x8xf32>
    tpu.vector_store %arg10[%c287, %c0_385], %404 {strides = array<i32>} : memref<324x8xf32, #tpu.memory_space<vmem>>, vector<1x8xf32>,
    %406 = vector.extract_strided_slice %315 {offsets = [240, 0], sizes = [16, 8], strides = [1, 1]} : vector<256x8xf32> to vector<16x8xf32>
    %c289 = arith.constant 289 : index
    %c0_386 = arith.constant 0 : index
    %407 = vector.load %arg10[%c289, %c0_386] : memref<324x8xf32, #tpu.memory_space<vmem>>, vector<16x8xf32>
    tpu.vector_store %arg10[%c289, %c0_386], %406 {strides = array<i32>} : memref<324x8xf32, #tpu.memory_space<vmem>>, vector<16x8xf32>,
    %408 = vector.extract_strided_slice %315 {offsets = [241, 0], sizes = [1, 8], strides = [1, 1]} : vector<256x8xf32> to vector<1x8xf32>
    %c288 = arith.constant 288 : index
    %c0_387 = arith.constant 0 : index
    %409 = vector.load %arg10[%c288, %c0_387] : memref<324x8xf32, #tpu.memory_space<vmem>>, vector<1x8xf32>
    tpu.vector_store %arg10[%c288, %c0_387], %408 {strides = array<i32>} : memref<324x8xf32, #tpu.memory_space<vmem>>, vector<1x8xf32>,
    %410 = vector.extract_strided_slice %315 {offsets = [254, 0], sizes = [1, 8], strides = [1, 1]} : vector<256x8xf32> to vector<1x8xf32>
    %c305 = arith.constant 305 : index
    %c0_388 = arith.constant 0 : index
    %411 = vector.load %arg10[%c305, %c0_388] : memref<324x8xf32, #tpu.memory_space<vmem>>, vector<1x8xf32>
    tpu.vector_store %arg10[%c305, %c0_388], %410 {strides = array<i32>} : memref<324x8xf32, #tpu.memory_space<vmem>>, vector<1x8xf32>,
    %c36_389 = arith.constant 36 : index
    %c0_390 = arith.constant 0 : index
    %412 = vector.load %arg10[%c36_389, %c0_390] : memref<324x8xf32, #tpu.memory_space<vmem>>, vector<18x8xf32>
    %c0_391 = arith.constant 0 : index
    %c0_392 = arith.constant 0 : index
    %413 = vector.load %arg10[%c0_391, %c0_392] : memref<324x8xf32, #tpu.memory_space<vmem>>, vector<18x8xf32>
    tpu.vector_store %arg10[%c0_391, %c0_392], %412 {strides = array<i32>} : memref<324x8xf32, #tpu.memory_space<vmem>>, vector<18x8xf32>,
    %c270_393 = arith.constant 270 : index
    %c0_394 = arith.constant 0 : index
    %414 = vector.load %arg10[%c270_393, %c0_394] : memref<324x8xf32, #tpu.memory_space<vmem>>, vector<18x8xf32>
    %c306_395 = arith.constant 306 : index
    %c0_396 = arith.constant 0 : index
    %415 = vector.load %arg10[%c306_395, %c0_396] : memref<324x8xf32, #tpu.memory_space<vmem>>, vector<18x8xf32>
    tpu.vector_store %arg10[%c306_395, %c0_396], %414 {strides = array<i32>} : memref<324x8xf32, #tpu.memory_space<vmem>>, vector<18x8xf32>,
    %c0_397 = arith.constant 0 : index
    %c0_398 = arith.constant 0 : index
    %416 = tpu.strided_load %arg10[%c0_397, %c0_398] {strides = array<i32: 2, 1>} : memref<324x8xf32, #tpu.memory_space<vmem>>, vector<8x8xf32>
    %c1_399 = arith.constant 1 : index
    %c0_400 = arith.constant 0 : index
    %417 = tpu.strided_load %arg10[%c1_399, %c0_400] {strides = array<i32: 2, 1>} : memref<324x8xf32, #tpu.memory_space<vmem>>, vector<8x8xf32>
    %c2_401 = arith.constant 2 : index
    %c0_402 = arith.constant 0 : index
    %418 = tpu.strided_load %arg10[%c2_401, %c0_402] {strides = array<i32: 2, 1>} : memref<324x8xf32, #tpu.memory_space<vmem>>, vector<8x8xf32>
    %c3 = arith.constant 3 : index
    %c0_403 = arith.constant 0 : index
    %419 = tpu.strided_load %arg10[%c3, %c0_403] {strides = array<i32: 2, 1>} : memref<324x8xf32, #tpu.memory_space<vmem>>, vector<8x8xf32>
    %c18_404 = arith.constant 18 : index
    %c0_405 = arith.constant 0 : index
    %420 = tpu.strided_load %arg10[%c18_404, %c0_405] {strides = array<i32: 2, 1>} : memref<324x8xf32, #tpu.memory_space<vmem>>, vector<8x8xf32>
    %c19_406 = arith.constant 19 : index
    %c0_407 = arith.constant 0 : index
    %421 = tpu.strided_load %arg10[%c19_406, %c0_407] {strides = array<i32: 2, 1>} : memref<324x8xf32, #tpu.memory_space<vmem>>, vector<8x8xf32>
    %c20 = arith.constant 20 : index
    %c0_408 = arith.constant 0 : index
    %422 = tpu.strided_load %arg10[%c20, %c0_408] {strides = array<i32: 2, 1>} : memref<324x8xf32, #tpu.memory_space<vmem>>, vector<8x8xf32>
    %c21 = arith.constant 21 : index
    %c0_409 = arith.constant 0 : index
    %423 = tpu.strided_load %arg10[%c21, %c0_409] {strides = array<i32: 2, 1>} : memref<324x8xf32, #tpu.memory_space<vmem>>, vector<8x8xf32>
    %c36_410 = arith.constant 36 : index
    %c0_411 = arith.constant 0 : index
    %424 = tpu.strided_load %arg10[%c36_410, %c0_411] {strides = array<i32: 2, 1>} : memref<324x8xf32, #tpu.memory_space<vmem>>, vector<8x8xf32>
    %c37_412 = arith.constant 37 : index
    %c0_413 = arith.constant 0 : index
    %425 = tpu.strided_load %arg10[%c37_412, %c0_413] {strides = array<i32: 2, 1>} : memref<324x8xf32, #tpu.memory_space<vmem>>, vector<8x8xf32>
    %c38 = arith.constant 38 : index
    %c0_414 = arith.constant 0 : index
    %426 = tpu.strided_load %arg10[%c38, %c0_414] {strides = array<i32: 2, 1>} : memref<324x8xf32, #tpu.memory_space<vmem>>, vector<8x8xf32>
    %c39 = arith.constant 39 : index
    %c0_415 = arith.constant 0 : index
    %427 = tpu.strided_load %arg10[%c39, %c0_415] {strides = array<i32: 2, 1>} : memref<324x8xf32, #tpu.memory_space<vmem>>, vector<8x8xf32>
    %c54_416 = arith.constant 54 : index
    %c0_417 = arith.constant 0 : index
    %428 = tpu.strided_load %arg10[%c54_416, %c0_417] {strides = array<i32: 2, 1>} : memref<324x8xf32, #tpu.memory_space<vmem>>, vector<8x8xf32>
    %c55_418 = arith.constant 55 : index
    %c0_419 = arith.constant 0 : index
    %429 = tpu.strided_load %arg10[%c55_418, %c0_419] {strides = array<i32: 2, 1>} : memref<324x8xf32, #tpu.memory_space<vmem>>, vector<8x8xf32>
    %c56 = arith.constant 56 : index
    %c0_420 = arith.constant 0 : index
    %430 = tpu.strided_load %arg10[%c56, %c0_420] {strides = array<i32: 2, 1>} : memref<324x8xf32, #tpu.memory_space<vmem>>, vector<8x8xf32>
    %c57 = arith.constant 57 : index
    %c0_421 = arith.constant 0 : index
    %431 = tpu.strided_load %arg10[%c57, %c0_421] {strides = array<i32: 2, 1>} : memref<324x8xf32, #tpu.memory_space<vmem>>, vector<8x8xf32>
    %432 = tpu.concatenate %416, %417, %418, %419, %420, %421, %422, %423, %424, %425, %426, %427, %428, %429, %430, %431 in 1 : vector<8x8xf32>, vector<8x8xf32>, vector<8x8xf32>, vector<8x8xf32>, vector<8x8xf32>, vector<8x8xf32>, vector<8x8xf32>, vector<8x8xf32>, vector<8x8xf32>, vector<8x8xf32>, vector<8x8xf32>, vector<8x8xf32>, vector<8x8xf32>, vector<8x8xf32>, vector<8x8xf32>, vector<8x8xf32> -> vector<8x128xf32>
    %c36_422 = arith.constant 36 : index
    %c0_423 = arith.constant 0 : index
    %433 = tpu.strided_load %arg10[%c36_422, %c0_423] {strides = array<i32: 2, 1>} : memref<324x8xf32, #tpu.memory_space<vmem>>, vector<8x8xf32>
    %c37_424 = arith.constant 37 : index
    %c0_425 = arith.constant 0 : index
    %434 = tpu.strided_load %arg10[%c37_424, %c0_425] {strides = array<i32: 2, 1>} : memref<324x8xf32, #tpu.memory_space<vmem>>, vector<8x8xf32>
    %c38_426 = arith.constant 38 : index
    %c0_427 = arith.constant 0 : index
    %435 = tpu.strided_load %arg10[%c38_426, %c0_427] {strides = array<i32: 2, 1>} : memref<324x8xf32, #tpu.memory_space<vmem>>, vector<8x8xf32>
    %c39_428 = arith.constant 39 : index
    %c0_429 = arith.constant 0 : index
    %436 = tpu.strided_load %arg10[%c39_428, %c0_429] {strides = array<i32: 2, 1>} : memref<324x8xf32, #tpu.memory_space<vmem>>, vector<8x8xf32>
    %c54_430 = arith.constant 54 : index
    %c0_431 = arith.constant 0 : index
    %437 = tpu.strided_load %arg10[%c54_430, %c0_431] {strides = array<i32: 2, 1>} : memref<324x8xf32, #tpu.memory_space<vmem>>, vector<8x8xf32>
    %c55_432 = arith.constant 55 : index
    %c0_433 = arith.constant 0 : index
    %438 = tpu.strided_load %arg10[%c55_432, %c0_433] {strides = array<i32: 2, 1>} : memref<324x8xf32, #tpu.memory_space<vmem>>, vector<8x8xf32>
    %c56_434 = arith.constant 56 : index
    %c0_435 = arith.constant 0 : index
    %439 = tpu.strided_load %arg10[%c56_434, %c0_435] {strides = array<i32: 2, 1>} : memref<324x8xf32, #tpu.memory_space<vmem>>, vector<8x8xf32>
    %c57_436 = arith.constant 57 : index
    %c0_437 = arith.constant 0 : index
    %440 = tpu.strided_load %arg10[%c57_436, %c0_437] {strides = array<i32: 2, 1>} : memref<324x8xf32, #tpu.memory_space<vmem>>, vector<8x8xf32>
    %c72_438 = arith.constant 72 : index
    %c0_439 = arith.constant 0 : index
    %441 = tpu.strided_load %arg10[%c72_438, %c0_439] {strides = array<i32: 2, 1>} : memref<324x8xf32, #tpu.memory_space<vmem>>, vector<8x8xf32>
    %c73_440 = arith.constant 73 : index
    %c0_441 = arith.constant 0 : index
    %442 = tpu.strided_load %arg10[%c73_440, %c0_441] {strides = array<i32: 2, 1>} : memref<324x8xf32, #tpu.memory_space<vmem>>, vector<8x8xf32>
    %c74 = arith.constant 74 : index
    %c0_442 = arith.constant 0 : index
    %443 = tpu.strided_load %arg10[%c74, %c0_442] {strides = array<i32: 2, 1>} : memref<324x8xf32, #tpu.memory_space<vmem>>, vector<8x8xf32>
    %c75 = arith.constant 75 : index
    %c0_443 = arith.constant 0 : index
    %444 = tpu.strided_load %arg10[%c75, %c0_443] {strides = array<i32: 2, 1>} : memref<324x8xf32, #tpu.memory_space<vmem>>, vector<8x8xf32>
    %c90_444 = arith.constant 90 : index
    %c0_445 = arith.constant 0 : index
    %445 = tpu.strided_load %arg10[%c90_444, %c0_445] {strides = array<i32: 2, 1>} : memref<324x8xf32, #tpu.memory_space<vmem>>, vector<8x8xf32>
    %c91_446 = arith.constant 91 : index
    %c0_447 = arith.constant 0 : index
    %446 = tpu.strided_load %arg10[%c91_446, %c0_447] {strides = array<i32: 2, 1>} : memref<324x8xf32, #tpu.memory_space<vmem>>, vector<8x8xf32>
    %c92 = arith.constant 92 : index
    %c0_448 = arith.constant 0 : index
    %447 = tpu.strided_load %arg10[%c92, %c0_448] {strides = array<i32: 2, 1>} : memref<324x8xf32, #tpu.memory_space<vmem>>, vector<8x8xf32>
    %c93 = arith.constant 93 : index
    %c0_449 = arith.constant 0 : index
    %448 = tpu.strided_load %arg10[%c93, %c0_449] {strides = array<i32: 2, 1>} : memref<324x8xf32, #tpu.memory_space<vmem>>, vector<8x8xf32>
    %449 = tpu.concatenate %433, %434, %435, %436, %437, %438, %439, %440, %441, %442, %443, %444, %445, %446, %447, %448 in 1 : vector<8x8xf32>, vector<8x8xf32>, vector<8x8xf32>, vector<8x8xf32>, vector<8x8xf32>, vector<8x8xf32>, vector<8x8xf32>, vector<8x8xf32>, vector<8x8xf32>, vector<8x8xf32>, vector<8x8xf32>, vector<8x8xf32>, vector<8x8xf32>, vector<8x8xf32>, vector<8x8xf32>, vector<8x8xf32> -> vector<8x128xf32>
    %c72_450 = arith.constant 72 : index
    %c0_451 = arith.constant 0 : index
    %450 = tpu.strided_load %arg10[%c72_450, %c0_451] {strides = array<i32: 2, 1>} : memref<324x8xf32, #tpu.memory_space<vmem>>, vector<8x8xf32>
    %c73_452 = arith.constant 73 : index
    %c0_453 = arith.constant 0 : index
    %451 = tpu.strided_load %arg10[%c73_452, %c0_453] {strides = array<i32: 2, 1>} : memref<324x8xf32, #tpu.memory_space<vmem>>, vector<8x8xf32>
    %c74_454 = arith.constant 74 : index
    %c0_455 = arith.constant 0 : index
    %452 = tpu.strided_load %arg10[%c74_454, %c0_455] {strides = array<i32: 2, 1>} : memref<324x8xf32, #tpu.memory_space<vmem>>, vector<8x8xf32>
    %c75_456 = arith.constant 75 : index
    %c0_457 = arith.constant 0 : index
    %453 = tpu.strided_load %arg10[%c75_456, %c0_457] {strides = array<i32: 2, 1>} : memref<324x8xf32, #tpu.memory_space<vmem>>, vector<8x8xf32>
    %c90_458 = arith.constant 90 : index
    %c0_459 = arith.constant 0 : index
    %454 = tpu.strided_load %arg10[%c90_458, %c0_459] {strides = array<i32: 2, 1>} : memref<324x8xf32, #tpu.memory_space<vmem>>, vector<8x8xf32>
    %c91_460 = arith.constant 91 : index
    %c0_461 = arith.constant 0 : index
    %455 = tpu.strided_load %arg10[%c91_460, %c0_461] {strides = array<i32: 2, 1>} : memref<324x8xf32, #tpu.memory_space<vmem>>, vector<8x8xf32>
    %c92_462 = arith.constant 92 : index
    %c0_463 = arith.constant 0 : index
    %456 = tpu.strided_load %arg10[%c92_462, %c0_463] {strides = array<i32: 2, 1>} : memref<324x8xf32, #tpu.memory_space<vmem>>, vector<8x8xf32>
    %c93_464 = arith.constant 93 : index
    %c0_465 = arith.constant 0 : index
    %457 = tpu.strided_load %arg10[%c93_464, %c0_465] {strides = array<i32: 2, 1>} : memref<324x8xf32, #tpu.memory_space<vmem>>, vector<8x8xf32>
    %c108_466 = arith.constant 108 : index
    %c0_467 = arith.constant 0 : index
    %458 = tpu.strided_load %arg10[%c108_466, %c0_467] {strides = array<i32: 2, 1>} : memref<324x8xf32, #tpu.memory_space<vmem>>, vector<8x8xf32>
    %c109_468 = arith.constant 109 : index
    %c0_469 = arith.constant 0 : index
    %459 = tpu.strided_load %arg10[%c109_468, %c0_469] {strides = array<i32: 2, 1>} : memref<324x8xf32, #tpu.memory_space<vmem>>, vector<8x8xf32>
    %c110 = arith.constant 110 : index
    %c0_470 = arith.constant 0 : index
    %460 = tpu.strided_load %arg10[%c110, %c0_470] {strides = array<i32: 2, 1>} : memref<324x8xf32, #tpu.memory_space<vmem>>, vector<8x8xf32>
    %c111 = arith.constant 111 : index
    %c0_471 = arith.constant 0 : index
    %461 = tpu.strided_load %arg10[%c111, %c0_471] {strides = array<i32: 2, 1>} : memref<324x8xf32, #tpu.memory_space<vmem>>, vector<8x8xf32>
    %c126_472 = arith.constant 126 : index
    %c0_473 = arith.constant 0 : index
    %462 = tpu.strided_load %arg10[%c126_472, %c0_473] {strides = array<i32: 2, 1>} : memref<324x8xf32, #tpu.memory_space<vmem>>, vector<8x8xf32>
    %c127_474 = arith.constant 127 : index
    %c0_475 = arith.constant 0 : index
    %463 = tpu.strided_load %arg10[%c127_474, %c0_475] {strides = array<i32: 2, 1>} : memref<324x8xf32, #tpu.memory_space<vmem>>, vector<8x8xf32>
    %c128 = arith.constant 128 : index
    %c0_476 = arith.constant 0 : index
    %464 = tpu.strided_load %arg10[%c128, %c0_476] {strides = array<i32: 2, 1>} : memref<324x8xf32, #tpu.memory_space<vmem>>, vector<8x8xf32>
    %c129 = arith.constant 129 : index
    %c0_477 = arith.constant 0 : index
    %465 = tpu.strided_load %arg10[%c129, %c0_477] {strides = array<i32: 2, 1>} : memref<324x8xf32, #tpu.memory_space<vmem>>, vector<8x8xf32>
    %466 = tpu.concatenate %450, %451, %452, %453, %454, %455, %456, %457, %458, %459, %460, %461, %462, %463, %464, %465 in 1 : vector<8x8xf32>, vector<8x8xf32>, vector<8x8xf32>, vector<8x8xf32>, vector<8x8xf32>, vector<8x8xf32>, vector<8x8xf32>, vector<8x8xf32>, vector<8x8xf32>, vector<8x8xf32>, vector<8x8xf32>, vector<8x8xf32>, vector<8x8xf32>, vector<8x8xf32>, vector<8x8xf32>, vector<8x8xf32> -> vector<8x128xf32>
    %c108_478 = arith.constant 108 : index
    %c0_479 = arith.constant 0 : index
    %467 = tpu.strided_load %arg10[%c108_478, %c0_479] {strides = array<i32: 2, 1>} : memref<324x8xf32, #tpu.memory_space<vmem>>, vector<8x8xf32>
    %c109_480 = arith.constant 109 : index
    %c0_481 = arith.constant 0 : index
    %468 = tpu.strided_load %arg10[%c109_480, %c0_481] {strides = array<i32: 2, 1>} : memref<324x8xf32, #tpu.memory_space<vmem>>, vector<8x8xf32>
    %c110_482 = arith.constant 110 : index
    %c0_483 = arith.constant 0 : index
    %469 = tpu.strided_load %arg10[%c110_482, %c0_483] {strides = array<i32: 2, 1>} : memref<324x8xf32, #tpu.memory_space<vmem>>, vector<8x8xf32>
    %c111_484 = arith.constant 111 : index
    %c0_485 = arith.constant 0 : index
    %470 = tpu.strided_load %arg10[%c111_484, %c0_485] {strides = array<i32: 2, 1>} : memref<324x8xf32, #tpu.memory_space<vmem>>, vector<8x8xf32>
    %c126_486 = arith.constant 126 : index
    %c0_487 = arith.constant 0 : index
    %471 = tpu.strided_load %arg10[%c126_486, %c0_487] {strides = array<i32: 2, 1>} : memref<324x8xf32, #tpu.memory_space<vmem>>, vector<8x8xf32>
    %c127_488 = arith.constant 127 : index
    %c0_489 = arith.constant 0 : index
    %472 = tpu.strided_load %arg10[%c127_488, %c0_489] {strides = array<i32: 2, 1>} : memref<324x8xf32, #tpu.memory_space<vmem>>, vector<8x8xf32>
    %c128_490 = arith.constant 128 : index
    %c0_491 = arith.constant 0 : index
    %473 = tpu.strided_load %arg10[%c128_490, %c0_491] {strides = array<i32: 2, 1>} : memref<324x8xf32, #tpu.memory_space<vmem>>, vector<8x8xf32>
    %c129_492 = arith.constant 129 : index
    %c0_493 = arith.constant 0 : index
    %474 = tpu.strided_load %arg10[%c129_492, %c0_493] {strides = array<i32: 2, 1>} : memref<324x8xf32, #tpu.memory_space<vmem>>, vector<8x8xf32>
    %c144_494 = arith.constant 144 : index
    %c0_495 = arith.constant 0 : index
    %475 = tpu.strided_load %arg10[%c144_494, %c0_495] {strides = array<i32: 2, 1>} : memref<324x8xf32, #tpu.memory_space<vmem>>, vector<8x8xf32>
    %c145_496 = arith.constant 145 : index
    %c0_497 = arith.constant 0 : index
    %476 = tpu.strided_load %arg10[%c145_496, %c0_497] {strides = array<i32: 2, 1>} : memref<324x8xf32, #tpu.memory_space<vmem>>, vector<8x8xf32>
    %c146 = arith.constant 146 : index
    %c0_498 = arith.constant 0 : index
    %477 = tpu.strided_load %arg10[%c146, %c0_498] {strides = array<i32: 2, 1>} : memref<324x8xf32, #tpu.memory_space<vmem>>, vector<8x8xf32>
    %c147 = arith.constant 147 : index
    %c0_499 = arith.constant 0 : index
    %478 = tpu.strided_load %arg10[%c147, %c0_499] {strides = array<i32: 2, 1>} : memref<324x8xf32, #tpu.memory_space<vmem>>, vector<8x8xf32>
    %c162_500 = arith.constant 162 : index
    %c0_501 = arith.constant 0 : index
    %479 = tpu.strided_load %arg10[%c162_500, %c0_501] {strides = array<i32: 2, 1>} : memref<324x8xf32, #tpu.memory_space<vmem>>, vector<8x8xf32>
    %c163_502 = arith.constant 163 : index
    %c0_503 = arith.constant 0 : index
    %480 = tpu.strided_load %arg10[%c163_502, %c0_503] {strides = array<i32: 2, 1>} : memref<324x8xf32, #tpu.memory_space<vmem>>, vector<8x8xf32>
    %c164 = arith.constant 164 : index
    %c0_504 = arith.constant 0 : index
    %481 = tpu.strided_load %arg10[%c164, %c0_504] {strides = array<i32: 2, 1>} : memref<324x8xf32, #tpu.memory_space<vmem>>, vector<8x8xf32>
    %c165 = arith.constant 165 : index
    %c0_505 = arith.constant 0 : index
    %482 = tpu.strided_load %arg10[%c165, %c0_505] {strides = array<i32: 2, 1>} : memref<324x8xf32, #tpu.memory_space<vmem>>, vector<8x8xf32>
    %483 = tpu.concatenate %467, %468, %469, %470, %471, %472, %473, %474, %475, %476, %477, %478, %479, %480, %481, %482 in 1 : vector<8x8xf32>, vector<8x8xf32>, vector<8x8xf32>, vector<8x8xf32>, vector<8x8xf32>, vector<8x8xf32>, vector<8x8xf32>, vector<8x8xf32>, vector<8x8xf32>, vector<8x8xf32>, vector<8x8xf32>, vector<8x8xf32>, vector<8x8xf32>, vector<8x8xf32>, vector<8x8xf32>, vector<8x8xf32> -> vector<8x128xf32>
    %c144_506 = arith.constant 144 : index
    %c0_507 = arith.constant 0 : index
    %484 = tpu.strided_load %arg10[%c144_506, %c0_507] {strides = array<i32: 2, 1>} : memref<324x8xf32, #tpu.memory_space<vmem>>, vector<8x8xf32>
    %c145_508 = arith.constant 145 : index
    %c0_509 = arith.constant 0 : index
    %485 = tpu.strided_load %arg10[%c145_508, %c0_509] {strides = array<i32: 2, 1>} : memref<324x8xf32, #tpu.memory_space<vmem>>, vector<8x8xf32>
    %c146_510 = arith.constant 146 : index
    %c0_511 = arith.constant 0 : index
    %486 = tpu.strided_load %arg10[%c146_510, %c0_511] {strides = array<i32: 2, 1>} : memref<324x8xf32, #tpu.memory_space<vmem>>, vector<8x8xf32>
    %c147_512 = arith.constant 147 : index
    %c0_513 = arith.constant 0 : index
    %487 = tpu.strided_load %arg10[%c147_512, %c0_513] {strides = array<i32: 2, 1>} : memref<324x8xf32, #tpu.memory_space<vmem>>, vector<8x8xf32>
    %c162_514 = arith.constant 162 : index
    %c0_515 = arith.constant 0 : index
    %488 = tpu.strided_load %arg10[%c162_514, %c0_515] {strides = array<i32: 2, 1>} : memref<324x8xf32, #tpu.memory_space<vmem>>, vector<8x8xf32>
    %c163_516 = arith.constant 163 : index
    %c0_517 = arith.constant 0 : index
    %489 = tpu.strided_load %arg10[%c163_516, %c0_517] {strides = array<i32: 2, 1>} : memref<324x8xf32, #tpu.memory_space<vmem>>, vector<8x8xf32>
    %c164_518 = arith.constant 164 : index
    %c0_519 = arith.constant 0 : index
    %490 = tpu.strided_load %arg10[%c164_518, %c0_519] {strides = array<i32: 2, 1>} : memref<324x8xf32, #tpu.memory_space<vmem>>, vector<8x8xf32>
    %c165_520 = arith.constant 165 : index
    %c0_521 = arith.constant 0 : index
    %491 = tpu.strided_load %arg10[%c165_520, %c0_521] {strides = array<i32: 2, 1>} : memref<324x8xf32, #tpu.memory_space<vmem>>, vector<8x8xf32>
    %c180_522 = arith.constant 180 : index
    %c0_523 = arith.constant 0 : index
    %492 = tpu.strided_load %arg10[%c180_522, %c0_523] {strides = array<i32: 2, 1>} : memref<324x8xf32, #tpu.memory_space<vmem>>, vector<8x8xf32>
    %c181_524 = arith.constant 181 : index
    %c0_525 = arith.constant 0 : index
    %493 = tpu.strided_load %arg10[%c181_524, %c0_525] {strides = array<i32: 2, 1>} : memref<324x8xf32, #tpu.memory_space<vmem>>, vector<8x8xf32>
    %c182 = arith.constant 182 : index
    %c0_526 = arith.constant 0 : index
    %494 = tpu.strided_load %arg10[%c182, %c0_526] {strides = array<i32: 2, 1>} : memref<324x8xf32, #tpu.memory_space<vmem>>, vector<8x8xf32>
    %c183 = arith.constant 183 : index
    %c0_527 = arith.constant 0 : index
    %495 = tpu.strided_load %arg10[%c183, %c0_527] {strides = array<i32: 2, 1>} : memref<324x8xf32, #tpu.memory_space<vmem>>, vector<8x8xf32>
    %c198_528 = arith.constant 198 : index
    %c0_529 = arith.constant 0 : index
    %496 = tpu.strided_load %arg10[%c198_528, %c0_529] {strides = array<i32: 2, 1>} : memref<324x8xf32, #tpu.memory_space<vmem>>, vector<8x8xf32>
    %c199_530 = arith.constant 199 : index
    %c0_531 = arith.constant 0 : index
    %497 = tpu.strided_load %arg10[%c199_530, %c0_531] {strides = array<i32: 2, 1>} : memref<324x8xf32, #tpu.memory_space<vmem>>, vector<8x8xf32>
    %c200 = arith.constant 200 : index
    %c0_532 = arith.constant 0 : index
    %498 = tpu.strided_load %arg10[%c200, %c0_532] {strides = array<i32: 2, 1>} : memref<324x8xf32, #tpu.memory_space<vmem>>, vector<8x8xf32>
    %c201 = arith.constant 201 : index
    %c0_533 = arith.constant 0 : index
    %499 = tpu.strided_load %arg10[%c201, %c0_533] {strides = array<i32: 2, 1>} : memref<324x8xf32, #tpu.memory_space<vmem>>, vector<8x8xf32>
    %500 = tpu.concatenate %484, %485, %486, %487, %488, %489, %490, %491, %492, %493, %494, %495, %496, %497, %498, %499 in 1 : vector<8x8xf32>, vector<8x8xf32>, vector<8x8xf32>, vector<8x8xf32>, vector<8x8xf32>, vector<8x8xf32>, vector<8x8xf32>, vector<8x8xf32>, vector<8x8xf32>, vector<8x8xf32>, vector<8x8xf32>, vector<8x8xf32>, vector<8x8xf32>, vector<8x8xf32>, vector<8x8xf32>, vector<8x8xf32> -> vector<8x128xf32>
    %c180_534 = arith.constant 180 : index
    %c0_535 = arith.constant 0 : index
    %501 = tpu.strided_load %arg10[%c180_534, %c0_535] {strides = array<i32: 2, 1>} : memref<324x8xf32, #tpu.memory_space<vmem>>, vector<8x8xf32>
    %c181_536 = arith.constant 181 : index
    %c0_537 = arith.constant 0 : index
    %502 = tpu.strided_load %arg10[%c181_536, %c0_537] {strides = array<i32: 2, 1>} : memref<324x8xf32, #tpu.memory_space<vmem>>, vector<8x8xf32>
    %c182_538 = arith.constant 182 : index
    %c0_539 = arith.constant 0 : index
    %503 = tpu.strided_load %arg10[%c182_538, %c0_539] {strides = array<i32: 2, 1>} : memref<324x8xf32, #tpu.memory_space<vmem>>, vector<8x8xf32>
    %c183_540 = arith.constant 183 : index
    %c0_541 = arith.constant 0 : index
    %504 = tpu.strided_load %arg10[%c183_540, %c0_541] {strides = array<i32: 2, 1>} : memref<324x8xf32, #tpu.memory_space<vmem>>, vector<8x8xf32>
    %c198_542 = arith.constant 198 : index
    %c0_543 = arith.constant 0 : index
    %505 = tpu.strided_load %arg10[%c198_542, %c0_543] {strides = array<i32: 2, 1>} : memref<324x8xf32, #tpu.memory_space<vmem>>, vector<8x8xf32>
    %c199_544 = arith.constant 199 : index
    %c0_545 = arith.constant 0 : index
    %506 = tpu.strided_load %arg10[%c199_544, %c0_545] {strides = array<i32: 2, 1>} : memref<324x8xf32, #tpu.memory_space<vmem>>, vector<8x8xf32>
    %c200_546 = arith.constant 200 : index
    %c0_547 = arith.constant 0 : index
    %507 = tpu.strided_load %arg10[%c200_546, %c0_547] {strides = array<i32: 2, 1>} : memref<324x8xf32, #tpu.memory_space<vmem>>, vector<8x8xf32>
    %c201_548 = arith.constant 201 : index
    %c0_549 = arith.constant 0 : index
    %508 = tpu.strided_load %arg10[%c201_548, %c0_549] {strides = array<i32: 2, 1>} : memref<324x8xf32, #tpu.memory_space<vmem>>, vector<8x8xf32>
    %c216_550 = arith.constant 216 : index
    %c0_551 = arith.constant 0 : index
    %509 = tpu.strided_load %arg10[%c216_550, %c0_551] {strides = array<i32: 2, 1>} : memref<324x8xf32, #tpu.memory_space<vmem>>, vector<8x8xf32>
    %c217_552 = arith.constant 217 : index
    %c0_553 = arith.constant 0 : index
    %510 = tpu.strided_load %arg10[%c217_552, %c0_553] {strides = array<i32: 2, 1>} : memref<324x8xf32, #tpu.memory_space<vmem>>, vector<8x8xf32>
    %c218 = arith.constant 218 : index
    %c0_554 = arith.constant 0 : index
    %511 = tpu.strided_load %arg10[%c218, %c0_554] {strides = array<i32: 2, 1>} : memref<324x8xf32, #tpu.memory_space<vmem>>, vector<8x8xf32>
    %c219 = arith.constant 219 : index
    %c0_555 = arith.constant 0 : index
    %512 = tpu.strided_load %arg10[%c219, %c0_555] {strides = array<i32: 2, 1>} : memref<324x8xf32, #tpu.memory_space<vmem>>, vector<8x8xf32>
    %c234_556 = arith.constant 234 : index
    %c0_557 = arith.constant 0 : index
    %513 = tpu.strided_load %arg10[%c234_556, %c0_557] {strides = array<i32: 2, 1>} : memref<324x8xf32, #tpu.memory_space<vmem>>, vector<8x8xf32>
    %c235_558 = arith.constant 235 : index
    %c0_559 = arith.constant 0 : index
    %514 = tpu.strided_load %arg10[%c235_558, %c0_559] {strides = array<i32: 2, 1>} : memref<324x8xf32, #tpu.memory_space<vmem>>, vector<8x8xf32>
    %c236 = arith.constant 236 : index
    %c0_560 = arith.constant 0 : index
    %515 = tpu.strided_load %arg10[%c236, %c0_560] {strides = array<i32: 2, 1>} : memref<324x8xf32, #tpu.memory_space<vmem>>, vector<8x8xf32>
    %c237 = arith.constant 237 : index
    %c0_561 = arith.constant 0 : index
    %516 = tpu.strided_load %arg10[%c237, %c0_561] {strides = array<i32: 2, 1>} : memref<324x8xf32, #tpu.memory_space<vmem>>, vector<8x8xf32>
    %517 = tpu.concatenate %501, %502, %503, %504, %505, %506, %507, %508, %509, %510, %511, %512, %513, %514, %515, %516 in 1 : vector<8x8xf32>, vector<8x8xf32>, vector<8x8xf32>, vector<8x8xf32>, vector<8x8xf32>, vector<8x8xf32>, vector<8x8xf32>, vector<8x8xf32>, vector<8x8xf32>, vector<8x8xf32>, vector<8x8xf32>, vector<8x8xf32>, vector<8x8xf32>, vector<8x8xf32>, vector<8x8xf32>, vector<8x8xf32> -> vector<8x128xf32>
    %c216_562 = arith.constant 216 : index
    %c0_563 = arith.constant 0 : index
    %518 = tpu.strided_load %arg10[%c216_562, %c0_563] {strides = array<i32: 2, 1>} : memref<324x8xf32, #tpu.memory_space<vmem>>, vector<8x8xf32>
    %c217_564 = arith.constant 217 : index
    %c0_565 = arith.constant 0 : index
    %519 = tpu.strided_load %arg10[%c217_564, %c0_565] {strides = array<i32: 2, 1>} : memref<324x8xf32, #tpu.memory_space<vmem>>, vector<8x8xf32>
    %c218_566 = arith.constant 218 : index
    %c0_567 = arith.constant 0 : index
    %520 = tpu.strided_load %arg10[%c218_566, %c0_567] {strides = array<i32: 2, 1>} : memref<324x8xf32, #tpu.memory_space<vmem>>, vector<8x8xf32>
    %c219_568 = arith.constant 219 : index
    %c0_569 = arith.constant 0 : index
    %521 = tpu.strided_load %arg10[%c219_568, %c0_569] {strides = array<i32: 2, 1>} : memref<324x8xf32, #tpu.memory_space<vmem>>, vector<8x8xf32>
    %c234_570 = arith.constant 234 : index
    %c0_571 = arith.constant 0 : index
    %522 = tpu.strided_load %arg10[%c234_570, %c0_571] {strides = array<i32: 2, 1>} : memref<324x8xf32, #tpu.memory_space<vmem>>, vector<8x8xf32>
    %c235_572 = arith.constant 235 : index
    %c0_573 = arith.constant 0 : index
    %523 = tpu.strided_load %arg10[%c235_572, %c0_573] {strides = array<i32: 2, 1>} : memref<324x8xf32, #tpu.memory_space<vmem>>, vector<8x8xf32>
    %c236_574 = arith.constant 236 : index
    %c0_575 = arith.constant 0 : index
    %524 = tpu.strided_load %arg10[%c236_574, %c0_575] {strides = array<i32: 2, 1>} : memref<324x8xf32, #tpu.memory_space<vmem>>, vector<8x8xf32>
    %c237_576 = arith.constant 237 : index
    %c0_577 = arith.constant 0 : index
    %525 = tpu.strided_load %arg10[%c237_576, %c0_577] {strides = array<i32: 2, 1>} : memref<324x8xf32, #tpu.memory_space<vmem>>, vector<8x8xf32>
    %c252_578 = arith.constant 252 : index
    %c0_579 = arith.constant 0 : index
    %526 = tpu.strided_load %arg10[%c252_578, %c0_579] {strides = array<i32: 2, 1>} : memref<324x8xf32, #tpu.memory_space<vmem>>, vector<8x8xf32>
    %c253_580 = arith.constant 253 : index
    %c0_581 = arith.constant 0 : index
    %527 = tpu.strided_load %arg10[%c253_580, %c0_581] {strides = array<i32: 2, 1>} : memref<324x8xf32, #tpu.memory_space<vmem>>, vector<8x8xf32>
    %c254 = arith.constant 254 : index
    %c0_582 = arith.constant 0 : index
    %528 = tpu.strided_load %arg10[%c254, %c0_582] {strides = array<i32: 2, 1>} : memref<324x8xf32, #tpu.memory_space<vmem>>, vector<8x8xf32>
    %c255 = arith.constant 255 : index
    %c0_583 = arith.constant 0 : index
    %529 = tpu.strided_load %arg10[%c255, %c0_583] {strides = array<i32: 2, 1>} : memref<324x8xf32, #tpu.memory_space<vmem>>, vector<8x8xf32>
    %c270_584 = arith.constant 270 : index
    %c0_585 = arith.constant 0 : index
    %530 = tpu.strided_load %arg10[%c270_584, %c0_585] {strides = array<i32: 2, 1>} : memref<324x8xf32, #tpu.memory_space<vmem>>, vector<8x8xf32>
    %c271_586 = arith.constant 271 : index
    %c0_587 = arith.constant 0 : index
    %531 = tpu.strided_load %arg10[%c271_586, %c0_587] {strides = array<i32: 2, 1>} : memref<324x8xf32, #tpu.memory_space<vmem>>, vector<8x8xf32>
    %c272_588 = arith.constant 272 : index
    %c0_589 = arith.constant 0 : index
    %532 = tpu.strided_load %arg10[%c272_588, %c0_589] {strides = array<i32: 2, 1>} : memref<324x8xf32, #tpu.memory_space<vmem>>, vector<8x8xf32>
    %c273_590 = arith.constant 273 : index
    %c0_591 = arith.constant 0 : index
    %533 = tpu.strided_load %arg10[%c273_590, %c0_591] {strides = array<i32: 2, 1>} : memref<324x8xf32, #tpu.memory_space<vmem>>, vector<8x8xf32>
    %534 = tpu.concatenate %518, %519, %520, %521, %522, %523, %524, %525, %526, %527, %528, %529, %530, %531, %532, %533 in 1 : vector<8x8xf32>, vector<8x8xf32>, vector<8x8xf32>, vector<8x8xf32>, vector<8x8xf32>, vector<8x8xf32>, vector<8x8xf32>, vector<8x8xf32>, vector<8x8xf32>, vector<8x8xf32>, vector<8x8xf32>, vector<8x8xf32>, vector<8x8xf32>, vector<8x8xf32>, vector<8x8xf32>, vector<8x8xf32> -> vector<8x128xf32>
    %c252_592 = arith.constant 252 : index
    %c0_593 = arith.constant 0 : index
    %535 = tpu.strided_load %arg10[%c252_592, %c0_593] {strides = array<i32: 2, 1>} : memref<324x8xf32, #tpu.memory_space<vmem>>, vector<8x8xf32>
    %c253_594 = arith.constant 253 : index
    %c0_595 = arith.constant 0 : index
    %536 = tpu.strided_load %arg10[%c253_594, %c0_595] {strides = array<i32: 2, 1>} : memref<324x8xf32, #tpu.memory_space<vmem>>, vector<8x8xf32>
    %c254_596 = arith.constant 254 : index
    %c0_597 = arith.constant 0 : index
    %537 = tpu.strided_load %arg10[%c254_596, %c0_597] {strides = array<i32: 2, 1>} : memref<324x8xf32, #tpu.memory_space<vmem>>, vector<8x8xf32>
    %c255_598 = arith.constant 255 : index
    %c0_599 = arith.constant 0 : index
    %538 = tpu.strided_load %arg10[%c255_598, %c0_599] {strides = array<i32: 2, 1>} : memref<324x8xf32, #tpu.memory_space<vmem>>, vector<8x8xf32>
    %c270_600 = arith.constant 270 : index
    %c0_601 = arith.constant 0 : index
    %539 = tpu.strided_load %arg10[%c270_600, %c0_601] {strides = array<i32: 2, 1>} : memref<324x8xf32, #tpu.memory_space<vmem>>, vector<8x8xf32>
    %c271_602 = arith.constant 271 : index
    %c0_603 = arith.constant 0 : index
    %540 = tpu.strided_load %arg10[%c271_602, %c0_603] {strides = array<i32: 2, 1>} : memref<324x8xf32, #tpu.memory_space<vmem>>, vector<8x8xf32>
    %c272_604 = arith.constant 272 : index
    %c0_605 = arith.constant 0 : index
    %541 = tpu.strided_load %arg10[%c272_604, %c0_605] {strides = array<i32: 2, 1>} : memref<324x8xf32, #tpu.memory_space<vmem>>, vector<8x8xf32>
    %c273_606 = arith.constant 273 : index
    %c0_607 = arith.constant 0 : index
    %542 = tpu.strided_load %arg10[%c273_606, %c0_607] {strides = array<i32: 2, 1>} : memref<324x8xf32, #tpu.memory_space<vmem>>, vector<8x8xf32>
    %c288_608 = arith.constant 288 : index
    %c0_609 = arith.constant 0 : index
    %543 = tpu.strided_load %arg10[%c288_608, %c0_609] {strides = array<i32: 2, 1>} : memref<324x8xf32, #tpu.memory_space<vmem>>, vector<8x8xf32>
    %c289_610 = arith.constant 289 : index
    %c0_611 = arith.constant 0 : index
    %544 = tpu.strided_load %arg10[%c289_610, %c0_611] {strides = array<i32: 2, 1>} : memref<324x8xf32, #tpu.memory_space<vmem>>, vector<8x8xf32>
    %c290 = arith.constant 290 : index
    %c0_612 = arith.constant 0 : index
    %545 = tpu.strided_load %arg10[%c290, %c0_612] {strides = array<i32: 2, 1>} : memref<324x8xf32, #tpu.memory_space<vmem>>, vector<8x8xf32>
    %c291 = arith.constant 291 : index
    %c0_613 = arith.constant 0 : index
    %546 = tpu.strided_load %arg10[%c291, %c0_613] {strides = array<i32: 2, 1>} : memref<324x8xf32, #tpu.memory_space<vmem>>, vector<8x8xf32>
    %c306_614 = arith.constant 306 : index
    %c0_615 = arith.constant 0 : index
    %547 = tpu.strided_load %arg10[%c306_614, %c0_615] {strides = array<i32: 2, 1>} : memref<324x8xf32, #tpu.memory_space<vmem>>, vector<8x8xf32>
    %c307_616 = arith.constant 307 : index
    %c0_617 = arith.constant 0 : index
    %548 = tpu.strided_load %arg10[%c307_616, %c0_617] {strides = array<i32: 2, 1>} : memref<324x8xf32, #tpu.memory_space<vmem>>, vector<8x8xf32>
    %c308_618 = arith.constant 308 : index
    %c0_619 = arith.constant 0 : index
    %549 = tpu.strided_load %arg10[%c308_618, %c0_619] {strides = array<i32: 2, 1>} : memref<324x8xf32, #tpu.memory_space<vmem>>, vector<8x8xf32>
    %c309 = arith.constant 309 : index
    %c0_620 = arith.constant 0 : index
    %550 = tpu.strided_load %arg10[%c309, %c0_620] {strides = array<i32: 2, 1>} : memref<324x8xf32, #tpu.memory_space<vmem>>, vector<8x8xf32>
    %551 = tpu.concatenate %535, %536, %537, %538, %539, %540, %541, %542, %543, %544, %545, %546, %547, %548, %549, %550 in 1 : vector<8x8xf32>, vector<8x8xf32>, vector<8x8xf32>, vector<8x8xf32>, vector<8x8xf32>, vector<8x8xf32>, vector<8x8xf32>, vector<8x8xf32>, vector<8x8xf32>, vector<8x8xf32>, vector<8x8xf32>, vector<8x8xf32>, vector<8x8xf32>, vector<8x8xf32>, vector<8x8xf32>, vector<8x8xf32> -> vector<8x128xf32>
    %552 = tpu.concatenate %432, %449, %466, %483, %500, %517, %534, %551 in 0 : vector<8x128xf32>, vector<8x128xf32>, vector<8x128xf32>, vector<8x128xf32>, vector<8x128xf32>, vector<8x128xf32>, vector<8x128xf32>, vector<8x128xf32> -> vector<64x128xf32>
    %553 = arith.truncf %552 : vector<64x128xf32> to vector<64x128xbf16>
    %c0_621 = arith.constant 0 : index
    %c0_622 = arith.constant 0 : index
    %554 = vector.load %arg4[%c0_621, %c0_622] : memref<128x16xbf16, #tpu.memory_space<vmem>>, vector<128x16xbf16>
    %cst_623 = arith.constant dense<0.000000e+00> : vector<64x16xf32>
    %555 = tpu.matmul %553, %554, %cst_623 {dimension_numbers = #tpu.dot_dimension_numbers<[1], [0], [0], [1], [0, 0, 1, 1], [], []>} : vector<64x128xbf16>, vector<128x16xbf16>, vector<64x16xf32> -> vector<64x16xf32>
    %cst_624 = arith.constant dense<0.000000e+00> : vector<16xf32>
    %556 = vector.multi_reduction <add>, %555, %cst_624 [0] : vector<64x16xf32> to vector<16xf32>
    %557 = vector.shape_cast %556 : vector<16xf32> to vector<1x16xf32>
    %cst_625 = arith.constant 6.400000e+01 : f32
    %558 = vector.broadcast %cst_625 : f32 to vector<1x16xf32>
    %559 = arith.divf %557, %558 : vector<1x16xf32>
    %560 = vector.broadcast %559 : vector<1x16xf32> to vector<64x16xf32>
    %561 = arith.subf %555, %560 : vector<64x16xf32>
    %562 = arith.mulf %561, %561 : vector<64x16xf32>
    %cst_626 = arith.constant dense<0.000000e+00> : vector<16xf32>
    %563 = vector.multi_reduction <add>, %562, %cst_626 [0] : vector<64x16xf32> to vector<16xf32>
    %564 = vector.shape_cast %563 : vector<16xf32> to vector<1x16xf32>
    %cst_627 = arith.constant 6.400000e+01 : f32
    %565 = vector.broadcast %cst_627 : f32 to vector<1x16xf32>
    %566 = arith.divf %564, %565 : vector<1x16xf32>
    %567 = vector.broadcast %559 : vector<1x16xf32> to vector<64x16xf32>
    %568 = arith.subf %555, %567 : vector<64x16xf32>
    %cst_628 = arith.constant 9.99999974E-6 : f32
    %569 = vector.broadcast %cst_628 : f32 to vector<1x16xf32>
    %570 = arith.addf %566, %569 : vector<1x16xf32>
    %571 = math.rsqrt %570 : vector<1x16xf32>
    %572 = vector.broadcast %571 : vector<1x16xf32> to vector<64x16xf32>
    %573 = arith.mulf %568, %572 : vector<64x16xf32>
    %cst_629 = arith.constant 0.000000e+00 : f32
    %574 = vector.broadcast %cst_629 : f32 to vector<64x16xf32>
    %575 = arith.cmpf ogt, %573, %574 : vector<64x16xf32>
    %cst_630 = arith.constant 2.000000e-01 : f32
    %576 = vector.broadcast %cst_630 : f32 to vector<64x16xf32>
    %577 = arith.mulf %576, %573 : vector<64x16xf32>
    %578 = arith.select %575, %573, %577 : vector<64x16xi1>, vector<64x16xf32>
    %579 = vector.extract_strided_slice %578 {offsets = [0, 0], sizes = [8, 16], strides = [1, 1]} : vector<64x16xf32> to vector<8x16xf32>
    %c11 = arith.constant 11 : index
    %c0_631 = arith.constant 0 : index
    %580 = vector.load %arg11[%c11, %c0_631] : memref<100x16xf32, #tpu.memory_space<vmem>>, vector<8x16xf32>
    tpu.vector_store %arg11[%c11, %c0_631], %579 {strides = array<i32>} : memref<100x16xf32, #tpu.memory_space<vmem>>, vector<8x16xf32>,
    %581 = vector.extract_strided_slice %578 {offsets = [1, 0], sizes = [1, 16], strides = [1, 1]} : vector<64x16xf32> to vector<1x16xf32>
    %c10 = arith.constant 10 : index
    %c0_632 = arith.constant 0 : index
    %582 = vector.load %arg11[%c10, %c0_632] : memref<100x16xf32, #tpu.memory_space<vmem>>, vector<1x16xf32>
    tpu.vector_store %arg11[%c10, %c0_632], %581 {strides = array<i32>} : memref<100x16xf32, #tpu.memory_space<vmem>>, vector<1x16xf32>,
    %583 = vector.extract_strided_slice %578 {offsets = [6, 0], sizes = [1, 16], strides = [1, 1]} : vector<64x16xf32> to vector<1x16xf32>
    %c19_633 = arith.constant 19 : index
    %c0_634 = arith.constant 0 : index
    %584 = vector.load %arg11[%c19_633, %c0_634] : memref<100x16xf32, #tpu.memory_space<vmem>>, vector<1x16xf32>
    tpu.vector_store %arg11[%c19_633, %c0_634], %583 {strides = array<i32>} : memref<100x16xf32, #tpu.memory_space<vmem>>, vector<1x16xf32>,
    %585 = vector.extract_strided_slice %578 {offsets = [8, 0], sizes = [8, 16], strides = [1, 1]} : vector<64x16xf32> to vector<8x16xf32>
    %c21_635 = arith.constant 21 : index
    %c0_636 = arith.constant 0 : index
    %586 = vector.load %arg11[%c21_635, %c0_636] : memref<100x16xf32, #tpu.memory_space<vmem>>, vector<8x16xf32>
    tpu.vector_store %arg11[%c21_635, %c0_636], %585 {strides = array<i32>} : memref<100x16xf32, #tpu.memory_space<vmem>>, vector<8x16xf32>,
    %587 = vector.extract_strided_slice %578 {offsets = [9, 0], sizes = [1, 16], strides = [1, 1]} : vector<64x16xf32> to vector<1x16xf32>
    %c20_637 = arith.constant 20 : index
    %c0_638 = arith.constant 0 : index
    %588 = vector.load %arg11[%c20_637, %c0_638] : memref<100x16xf32, #tpu.memory_space<vmem>>, vector<1x16xf32>
    tpu.vector_store %arg11[%c20_637, %c0_638], %587 {strides = array<i32>} : memref<100x16xf32, #tpu.memory_space<vmem>>, vector<1x16xf32>,
    %589 = vector.extract_strided_slice %578 {offsets = [14, 0], sizes = [1, 16], strides = [1, 1]} : vector<64x16xf32> to vector<1x16xf32>
    %c29 = arith.constant 29 : index
    %c0_639 = arith.constant 0 : index
    %590 = vector.load %arg11[%c29, %c0_639] : memref<100x16xf32, #tpu.memory_space<vmem>>, vector<1x16xf32>
    tpu.vector_store %arg11[%c29, %c0_639], %589 {strides = array<i32>} : memref<100x16xf32, #tpu.memory_space<vmem>>, vector<1x16xf32>,
    %591 = vector.extract_strided_slice %578 {offsets = [16, 0], sizes = [8, 16], strides = [1, 1]} : vector<64x16xf32> to vector<8x16xf32>
    %c31 = arith.constant 31 : index
    %c0_640 = arith.constant 0 : index
    %592 = vector.load %arg11[%c31, %c0_640] : memref<100x16xf32, #tpu.memory_space<vmem>>, vector<8x16xf32>
    tpu.vector_store %arg11[%c31, %c0_640], %591 {strides = array<i32>} : memref<100x16xf32, #tpu.memory_space<vmem>>, vector<8x16xf32>,
    %593 = vector.extract_strided_slice %578 {offsets = [17, 0], sizes = [1, 16], strides = [1, 1]} : vector<64x16xf32> to vector<1x16xf32>
    %c30 = arith.constant 30 : index
    %c0_641 = arith.constant 0 : index
    %594 = vector.load %arg11[%c30, %c0_641] : memref<100x16xf32, #tpu.memory_space<vmem>>, vector<1x16xf32>
    tpu.vector_store %arg11[%c30, %c0_641], %593 {strides = array<i32>} : memref<100x16xf32, #tpu.memory_space<vmem>>, vector<1x16xf32>,
    %595 = vector.extract_strided_slice %578 {offsets = [22, 0], sizes = [1, 16], strides = [1, 1]} : vector<64x16xf32> to vector<1x16xf32>
    %c39_642 = arith.constant 39 : index
    %c0_643 = arith.constant 0 : index
    %596 = vector.load %arg11[%c39_642, %c0_643] : memref<100x16xf32, #tpu.memory_space<vmem>>, vector<1x16xf32>
    tpu.vector_store %arg11[%c39_642, %c0_643], %595 {strides = array<i32>} : memref<100x16xf32, #tpu.memory_space<vmem>>, vector<1x16xf32>,
    %597 = vector.extract_strided_slice %578 {offsets = [24, 0], sizes = [8, 16], strides = [1, 1]} : vector<64x16xf32> to vector<8x16xf32>
    %c41 = arith.constant 41 : index
    %c0_644 = arith.constant 0 : index
    %598 = vector.load %arg11[%c41, %c0_644] : memref<100x16xf32, #tpu.memory_space<vmem>>, vector<8x16xf32>
    tpu.vector_store %arg11[%c41, %c0_644], %597 {strides = array<i32>} : memref<100x16xf32, #tpu.memory_space<vmem>>, vector<8x16xf32>,
    %599 = vector.extract_strided_slice %578 {offsets = [25, 0], sizes = [1, 16], strides = [1, 1]} : vector<64x16xf32> to vector<1x16xf32>
    %c40 = arith.constant 40 : index
    %c0_645 = arith.constant 0 : index
    %600 = vector.load %arg11[%c40, %c0_645] : memref<100x16xf32, #tpu.memory_space<vmem>>, vector<1x16xf32>
    tpu.vector_store %arg11[%c40, %c0_645], %599 {strides = array<i32>} : memref<100x16xf32, #tpu.memory_space<vmem>>, vector<1x16xf32>,
    %601 = vector.extract_strided_slice %578 {offsets = [30, 0], sizes = [1, 16], strides = [1, 1]} : vector<64x16xf32> to vector<1x16xf32>
    %c49 = arith.constant 49 : index
    %c0_646 = arith.constant 0 : index
    %602 = vector.load %arg11[%c49, %c0_646] : memref<100x16xf32, #tpu.memory_space<vmem>>, vector<1x16xf32>
    tpu.vector_store %arg11[%c49, %c0_646], %601 {strides = array<i32>} : memref<100x16xf32, #tpu.memory_space<vmem>>, vector<1x16xf32>,
    %603 = vector.extract_strided_slice %578 {offsets = [32, 0], sizes = [8, 16], strides = [1, 1]} : vector<64x16xf32> to vector<8x16xf32>
    %c51 = arith.constant 51 : index
    %c0_647 = arith.constant 0 : index
    %604 = vector.load %arg11[%c51, %c0_647] : memref<100x16xf32, #tpu.memory_space<vmem>>, vector<8x16xf32>
    tpu.vector_store %arg11[%c51, %c0_647], %603 {strides = array<i32>} : memref<100x16xf32, #tpu.memory_space<vmem>>, vector<8x16xf32>,
    %605 = vector.extract_strided_slice %578 {offsets = [33, 0], sizes = [1, 16], strides = [1, 1]} : vector<64x16xf32> to vector<1x16xf32>
    %c50 = arith.constant 50 : index
    %c0_648 = arith.constant 0 : index
    %606 = vector.load %arg11[%c50, %c0_648] : memref<100x16xf32, #tpu.memory_space<vmem>>, vector<1x16xf32>
    tpu.vector_store %arg11[%c50, %c0_648], %605 {strides = array<i32>} : memref<100x16xf32, #tpu.memory_space<vmem>>, vector<1x16xf32>,
    %607 = vector.extract_strided_slice %578 {offsets = [38, 0], sizes = [1, 16], strides = [1, 1]} : vector<64x16xf32> to vector<1x16xf32>
    %c59 = arith.constant 59 : index
    %c0_649 = arith.constant 0 : index
    %608 = vector.load %arg11[%c59, %c0_649] : memref<100x16xf32, #tpu.memory_space<vmem>>, vector<1x16xf32>
    tpu.vector_store %arg11[%c59, %c0_649], %607 {strides = array<i32>} : memref<100x16xf32, #tpu.memory_space<vmem>>, vector<1x16xf32>,
    %609 = vector.extract_strided_slice %578 {offsets = [40, 0], sizes = [8, 16], strides = [1, 1]} : vector<64x16xf32> to vector<8x16xf32>
    %c61 = arith.constant 61 : index
    %c0_650 = arith.constant 0 : index
    %610 = vector.load %arg11[%c61, %c0_650] : memref<100x16xf32, #tpu.memory_space<vmem>>, vector<8x16xf32>
    tpu.vector_store %arg11[%c61, %c0_650], %609 {strides = array<i32>} : memref<100x16xf32, #tpu.memory_space<vmem>>, vector<8x16xf32>,
    %611 = vector.extract_strided_slice %578 {offsets = [41, 0], sizes = [1, 16], strides = [1, 1]} : vector<64x16xf32> to vector<1x16xf32>
    %c60 = arith.constant 60 : index
    %c0_651 = arith.constant 0 : index
    %612 = vector.load %arg11[%c60, %c0_651] : memref<100x16xf32, #tpu.memory_space<vmem>>, vector<1x16xf32>
    tpu.vector_store %arg11[%c60, %c0_651], %611 {strides = array<i32>} : memref<100x16xf32, #tpu.memory_space<vmem>>, vector<1x16xf32>,
    %613 = vector.extract_strided_slice %578 {offsets = [46, 0], sizes = [1, 16], strides = [1, 1]} : vector<64x16xf32> to vector<1x16xf32>
    %c69_652 = arith.constant 69 : index
    %c0_653 = arith.constant 0 : index
    %614 = vector.load %arg11[%c69_652, %c0_653] : memref<100x16xf32, #tpu.memory_space<vmem>>, vector<1x16xf32>
    tpu.vector_store %arg11[%c69_652, %c0_653], %613 {strides = array<i32>} : memref<100x16xf32, #tpu.memory_space<vmem>>, vector<1x16xf32>,
    %615 = vector.extract_strided_slice %578 {offsets = [48, 0], sizes = [8, 16], strides = [1, 1]} : vector<64x16xf32> to vector<8x16xf32>
    %c71_654 = arith.constant 71 : index
    %c0_655 = arith.constant 0 : index
    %616 = vector.load %arg11[%c71_654, %c0_655] : memref<100x16xf32, #tpu.memory_space<vmem>>, vector<8x16xf32>
    tpu.vector_store %arg11[%c71_654, %c0_655], %615 {strides = array<i32>} : memref<100x16xf32, #tpu.memory_space<vmem>>, vector<8x16xf32>,
    %617 = vector.extract_strided_slice %578 {offsets = [49, 0], sizes = [1, 16], strides = [1, 1]} : vector<64x16xf32> to vector<1x16xf32>
    %c70_656 = arith.constant 70 : index
    %c0_657 = arith.constant 0 : index
    %618 = vector.load %arg11[%c70_656, %c0_657] : memref<100x16xf32, #tpu.memory_space<vmem>>, vector<1x16xf32>
    tpu.vector_store %arg11[%c70_656, %c0_657], %617 {strides = array<i32>} : memref<100x16xf32, #tpu.memory_space<vmem>>, vector<1x16xf32>,
    %619 = vector.extract_strided_slice %578 {offsets = [54, 0], sizes = [1, 16], strides = [1, 1]} : vector<64x16xf32> to vector<1x16xf32>
    %c79 = arith.constant 79 : index
    %c0_658 = arith.constant 0 : index
    %620 = vector.load %arg11[%c79, %c0_658] : memref<100x16xf32, #tpu.memory_space<vmem>>, vector<1x16xf32>
    tpu.vector_store %arg11[%c79, %c0_658], %619 {strides = array<i32>} : memref<100x16xf32, #tpu.memory_space<vmem>>, vector<1x16xf32>,
    %621 = vector.extract_strided_slice %578 {offsets = [56, 0], sizes = [8, 16], strides = [1, 1]} : vector<64x16xf32> to vector<8x16xf32>
    %c81 = arith.constant 81 : index
    %c0_659 = arith.constant 0 : index
    %622 = vector.load %arg11[%c81, %c0_659] : memref<100x16xf32, #tpu.memory_space<vmem>>, vector<8x16xf32>
    tpu.vector_store %arg11[%c81, %c0_659], %621 {strides = array<i32>} : memref<100x16xf32, #tpu.memory_space<vmem>>, vector<8x16xf32>,
    %623 = vector.extract_strided_slice %578 {offsets = [57, 0], sizes = [1, 16], strides = [1, 1]} : vector<64x16xf32> to vector<1x16xf32>
    %c80 = arith.constant 80 : index
    %c0_660 = arith.constant 0 : index
    %624 = vector.load %arg11[%c80, %c0_660] : memref<100x16xf32, #tpu.memory_space<vmem>>, vector<1x16xf32>
    tpu.vector_store %arg11[%c80, %c0_660], %623 {strides = array<i32>} : memref<100x16xf32, #tpu.memory_space<vmem>>, vector<1x16xf32>,
    %625 = vector.extract_strided_slice %578 {offsets = [62, 0], sizes = [1, 16], strides = [1, 1]} : vector<64x16xf32> to vector<1x16xf32>
    %c89_661 = arith.constant 89 : index
    %c0_662 = arith.constant 0 : index
    %626 = vector.load %arg11[%c89_661, %c0_662] : memref<100x16xf32, #tpu.memory_space<vmem>>, vector<1x16xf32>
    tpu.vector_store %arg11[%c89_661, %c0_662], %625 {strides = array<i32>} : memref<100x16xf32, #tpu.memory_space<vmem>>, vector<1x16xf32>,
    %c20_663 = arith.constant 20 : index
    %c0_664 = arith.constant 0 : index
    %627 = vector.load %arg11[%c20_663, %c0_664] : memref<100x16xf32, #tpu.memory_space<vmem>>, vector<10x16xf32>
    %c0_665 = arith.constant 0 : index
    %c0_666 = arith.constant 0 : index
    %628 = vector.load %arg11[%c0_665, %c0_666] : memref<100x16xf32, #tpu.memory_space<vmem>>, vector<10x16xf32>
    tpu.vector_store %arg11[%c0_665, %c0_666], %627 {strides = array<i32>} : memref<100x16xf32, #tpu.memory_space<vmem>>, vector<10x16xf32>,
    %c70_667 = arith.constant 70 : index
    %c0_668 = arith.constant 0 : index
    %629 = vector.load %arg11[%c70_667, %c0_668] : memref<100x16xf32, #tpu.memory_space<vmem>>, vector<10x16xf32>
    %c90_669 = arith.constant 90 : index
    %c0_670 = arith.constant 0 : index
    %630 = vector.load %arg11[%c90_669, %c0_670] : memref<100x16xf32, #tpu.memory_space<vmem>>, vector<10x16xf32>
    tpu.vector_store %arg11[%c90_669, %c0_670], %629 {strides = array<i32>} : memref<100x16xf32, #tpu.memory_space<vmem>>, vector<10x16xf32>,
    %c0_671 = arith.constant 0 : index
    %c0_672 = arith.constant 0 : index
    %631 = tpu.strided_load %arg11[%c0_671, %c0_672] {strides = array<i32: 2, 1>} : memref<100x16xf32, #tpu.memory_space<vmem>>, vector<4x16xf32>
    %c1_673 = arith.constant 1 : index
    %c0_674 = arith.constant 0 : index
    %632 = tpu.strided_load %arg11[%c1_673, %c0_674] {strides = array<i32: 2, 1>} : memref<100x16xf32, #tpu.memory_space<vmem>>, vector<4x16xf32>
    %c2_675 = arith.constant 2 : index
    %c0_676 = arith.constant 0 : index
    %633 = tpu.strided_load %arg11[%c2_675, %c0_676] {strides = array<i32: 2, 1>} : memref<100x16xf32, #tpu.memory_space<vmem>>, vector<4x16xf32>
    %c3_677 = arith.constant 3 : index
    %c0_678 = arith.constant 0 : index
    %634 = tpu.strided_load %arg11[%c3_677, %c0_678] {strides = array<i32: 2, 1>} : memref<100x16xf32, #tpu.memory_space<vmem>>, vector<4x16xf32>
    %c10_679 = arith.constant 10 : index
    %c0_680 = arith.constant 0 : index
    %635 = tpu.strided_load %arg11[%c10_679, %c0_680] {strides = array<i32: 2, 1>} : memref<100x16xf32, #tpu.memory_space<vmem>>, vector<4x16xf32>
    %c11_681 = arith.constant 11 : index
    %c0_682 = arith.constant 0 : index
    %636 = tpu.strided_load %arg11[%c11_681, %c0_682] {strides = array<i32: 2, 1>} : memref<100x16xf32, #tpu.memory_space<vmem>>, vector<4x16xf32>
    %c12 = arith.constant 12 : index
    %c0_683 = arith.constant 0 : index
    %637 = tpu.strided_load %arg11[%c12, %c0_683] {strides = array<i32: 2, 1>} : memref<100x16xf32, #tpu.memory_space<vmem>>, vector<4x16xf32>
    %c13 = arith.constant 13 : index
    %c0_684 = arith.constant 0 : index
    %638 = tpu.strided_load %arg11[%c13, %c0_684] {strides = array<i32: 2, 1>} : memref<100x16xf32, #tpu.memory_space<vmem>>, vector<4x16xf32>
    %c20_685 = arith.constant 20 : index
    %c0_686 = arith.constant 0 : index
    %639 = tpu.strided_load %arg11[%c20_685, %c0_686] {strides = array<i32: 2, 1>} : memref<100x16xf32, #tpu.memory_space<vmem>>, vector<4x16xf32>
    %c21_687 = arith.constant 21 : index
    %c0_688 = arith.constant 0 : index
    %640 = tpu.strided_load %arg11[%c21_687, %c0_688] {strides = array<i32: 2, 1>} : memref<100x16xf32, #tpu.memory_space<vmem>>, vector<4x16xf32>
    %c22 = arith.constant 22 : index
    %c0_689 = arith.constant 0 : index
    %641 = tpu.strided_load %arg11[%c22, %c0_689] {strides = array<i32: 2, 1>} : memref<100x16xf32, #tpu.memory_space<vmem>>, vector<4x16xf32>
    %c23 = arith.constant 23 : index
    %c0_690 = arith.constant 0 : index
    %642 = tpu.strided_load %arg11[%c23, %c0_690] {strides = array<i32: 2, 1>} : memref<100x16xf32, #tpu.memory_space<vmem>>, vector<4x16xf32>
    %c30_691 = arith.constant 30 : index
    %c0_692 = arith.constant 0 : index
    %643 = tpu.strided_load %arg11[%c30_691, %c0_692] {strides = array<i32: 2, 1>} : memref<100x16xf32, #tpu.memory_space<vmem>>, vector<4x16xf32>
    %c31_693 = arith.constant 31 : index
    %c0_694 = arith.constant 0 : index
    %644 = tpu.strided_load %arg11[%c31_693, %c0_694] {strides = array<i32: 2, 1>} : memref<100x16xf32, #tpu.memory_space<vmem>>, vector<4x16xf32>
    %c32 = arith.constant 32 : index
    %c0_695 = arith.constant 0 : index
    %645 = tpu.strided_load %arg11[%c32, %c0_695] {strides = array<i32: 2, 1>} : memref<100x16xf32, #tpu.memory_space<vmem>>, vector<4x16xf32>
    %c33 = arith.constant 33 : index
    %c0_696 = arith.constant 0 : index
    %646 = tpu.strided_load %arg11[%c33, %c0_696] {strides = array<i32: 2, 1>} : memref<100x16xf32, #tpu.memory_space<vmem>>, vector<4x16xf32>
    %647 = tpu.concatenate %631, %632, %633, %634, %635, %636, %637, %638, %639, %640, %641, %642, %643, %644, %645, %646 in 1 : vector<4x16xf32>, vector<4x16xf32>, vector<4x16xf32>, vector<4x16xf32>, vector<4x16xf32>, vector<4x16xf32>, vector<4x16xf32>, vector<4x16xf32>, vector<4x16xf32>, vector<4x16xf32>, vector<4x16xf32>, vector<4x16xf32>, vector<4x16xf32>, vector<4x16xf32>, vector<4x16xf32>, vector<4x16xf32> -> vector<4x256xf32>
    %c20_697 = arith.constant 20 : index
    %c0_698 = arith.constant 0 : index
    %648 = tpu.strided_load %arg11[%c20_697, %c0_698] {strides = array<i32: 2, 1>} : memref<100x16xf32, #tpu.memory_space<vmem>>, vector<4x16xf32>
    %c21_699 = arith.constant 21 : index
    %c0_700 = arith.constant 0 : index
    %649 = tpu.strided_load %arg11[%c21_699, %c0_700] {strides = array<i32: 2, 1>} : memref<100x16xf32, #tpu.memory_space<vmem>>, vector<4x16xf32>
    %c22_701 = arith.constant 22 : index
    %c0_702 = arith.constant 0 : index
    %650 = tpu.strided_load %arg11[%c22_701, %c0_702] {strides = array<i32: 2, 1>} : memref<100x16xf32, #tpu.memory_space<vmem>>, vector<4x16xf32>
    %c23_703 = arith.constant 23 : index
    %c0_704 = arith.constant 0 : index
    %651 = tpu.strided_load %arg11[%c23_703, %c0_704] {strides = array<i32: 2, 1>} : memref<100x16xf32, #tpu.memory_space<vmem>>, vector<4x16xf32>
    %c30_705 = arith.constant 30 : index
    %c0_706 = arith.constant 0 : index
    %652 = tpu.strided_load %arg11[%c30_705, %c0_706] {strides = array<i32: 2, 1>} : memref<100x16xf32, #tpu.memory_space<vmem>>, vector<4x16xf32>
    %c31_707 = arith.constant 31 : index
    %c0_708 = arith.constant 0 : index
    %653 = tpu.strided_load %arg11[%c31_707, %c0_708] {strides = array<i32: 2, 1>} : memref<100x16xf32, #tpu.memory_space<vmem>>, vector<4x16xf32>
    %c32_709 = arith.constant 32 : index
    %c0_710 = arith.constant 0 : index
    %654 = tpu.strided_load %arg11[%c32_709, %c0_710] {strides = array<i32: 2, 1>} : memref<100x16xf32, #tpu.memory_space<vmem>>, vector<4x16xf32>
    %c33_711 = arith.constant 33 : index
    %c0_712 = arith.constant 0 : index
    %655 = tpu.strided_load %arg11[%c33_711, %c0_712] {strides = array<i32: 2, 1>} : memref<100x16xf32, #tpu.memory_space<vmem>>, vector<4x16xf32>
    %c40_713 = arith.constant 40 : index
    %c0_714 = arith.constant 0 : index
    %656 = tpu.strided_load %arg11[%c40_713, %c0_714] {strides = array<i32: 2, 1>} : memref<100x16xf32, #tpu.memory_space<vmem>>, vector<4x16xf32>
    %c41_715 = arith.constant 41 : index
    %c0_716 = arith.constant 0 : index
    %657 = tpu.strided_load %arg11[%c41_715, %c0_716] {strides = array<i32: 2, 1>} : memref<100x16xf32, #tpu.memory_space<vmem>>, vector<4x16xf32>
    %c42 = arith.constant 42 : index
    %c0_717 = arith.constant 0 : index
    %658 = tpu.strided_load %arg11[%c42, %c0_717] {strides = array<i32: 2, 1>} : memref<100x16xf32, #tpu.memory_space<vmem>>, vector<4x16xf32>
    %c43 = arith.constant 43 : index
    %c0_718 = arith.constant 0 : index
    %659 = tpu.strided_load %arg11[%c43, %c0_718] {strides = array<i32: 2, 1>} : memref<100x16xf32, #tpu.memory_space<vmem>>, vector<4x16xf32>
    %c50_719 = arith.constant 50 : index
    %c0_720 = arith.constant 0 : index
    %660 = tpu.strided_load %arg11[%c50_719, %c0_720] {strides = array<i32: 2, 1>} : memref<100x16xf32, #tpu.memory_space<vmem>>, vector<4x16xf32>
    %c51_721 = arith.constant 51 : index
    %c0_722 = arith.constant 0 : index
    %661 = tpu.strided_load %arg11[%c51_721, %c0_722] {strides = array<i32: 2, 1>} : memref<100x16xf32, #tpu.memory_space<vmem>>, vector<4x16xf32>
    %c52 = arith.constant 52 : index
    %c0_723 = arith.constant 0 : index
    %662 = tpu.strided_load %arg11[%c52, %c0_723] {strides = array<i32: 2, 1>} : memref<100x16xf32, #tpu.memory_space<vmem>>, vector<4x16xf32>
    %c53_724 = arith.constant 53 : index
    %c0_725 = arith.constant 0 : index
    %663 = tpu.strided_load %arg11[%c53_724, %c0_725] {strides = array<i32: 2, 1>} : memref<100x16xf32, #tpu.memory_space<vmem>>, vector<4x16xf32>
    %664 = tpu.concatenate %648, %649, %650, %651, %652, %653, %654, %655, %656, %657, %658, %659, %660, %661, %662, %663 in 1 : vector<4x16xf32>, vector<4x16xf32>, vector<4x16xf32>, vector<4x16xf32>, vector<4x16xf32>, vector<4x16xf32>, vector<4x16xf32>, vector<4x16xf32>, vector<4x16xf32>, vector<4x16xf32>, vector<4x16xf32>, vector<4x16xf32>, vector<4x16xf32>, vector<4x16xf32>, vector<4x16xf32>, vector<4x16xf32> -> vector<4x256xf32>
    %c40_726 = arith.constant 40 : index
    %c0_727 = arith.constant 0 : index
    %665 = tpu.strided_load %arg11[%c40_726, %c0_727] {strides = array<i32: 2, 1>} : memref<100x16xf32, #tpu.memory_space<vmem>>, vector<4x16xf32>
    %c41_728 = arith.constant 41 : index
    %c0_729 = arith.constant 0 : index
    %666 = tpu.strided_load %arg11[%c41_728, %c0_729] {strides = array<i32: 2, 1>} : memref<100x16xf32, #tpu.memory_space<vmem>>, vector<4x16xf32>
    %c42_730 = arith.constant 42 : index
    %c0_731 = arith.constant 0 : index
    %667 = tpu.strided_load %arg11[%c42_730, %c0_731] {strides = array<i32: 2, 1>} : memref<100x16xf32, #tpu.memory_space<vmem>>, vector<4x16xf32>
    %c43_732 = arith.constant 43 : index
    %c0_733 = arith.constant 0 : index
    %668 = tpu.strided_load %arg11[%c43_732, %c0_733] {strides = array<i32: 2, 1>} : memref<100x16xf32, #tpu.memory_space<vmem>>, vector<4x16xf32>
    %c50_734 = arith.constant 50 : index
    %c0_735 = arith.constant 0 : index
    %669 = tpu.strided_load %arg11[%c50_734, %c0_735] {strides = array<i32: 2, 1>} : memref<100x16xf32, #tpu.memory_space<vmem>>, vector<4x16xf32>
    %c51_736 = arith.constant 51 : index
    %c0_737 = arith.constant 0 : index
    %670 = tpu.strided_load %arg11[%c51_736, %c0_737] {strides = array<i32: 2, 1>} : memref<100x16xf32, #tpu.memory_space<vmem>>, vector<4x16xf32>
    %c52_738 = arith.constant 52 : index
    %c0_739 = arith.constant 0 : index
    %671 = tpu.strided_load %arg11[%c52_738, %c0_739] {strides = array<i32: 2, 1>} : memref<100x16xf32, #tpu.memory_space<vmem>>, vector<4x16xf32>
    %c53_740 = arith.constant 53 : index
    %c0_741 = arith.constant 0 : index
    %672 = tpu.strided_load %arg11[%c53_740, %c0_741] {strides = array<i32: 2, 1>} : memref<100x16xf32, #tpu.memory_space<vmem>>, vector<4x16xf32>
    %c60_742 = arith.constant 60 : index
    %c0_743 = arith.constant 0 : index
    %673 = tpu.strided_load %arg11[%c60_742, %c0_743] {strides = array<i32: 2, 1>} : memref<100x16xf32, #tpu.memory_space<vmem>>, vector<4x16xf32>
    %c61_744 = arith.constant 61 : index
    %c0_745 = arith.constant 0 : index
    %674 = tpu.strided_load %arg11[%c61_744, %c0_745] {strides = array<i32: 2, 1>} : memref<100x16xf32, #tpu.memory_space<vmem>>, vector<4x16xf32>
    %c62 = arith.constant 62 : index
    %c0_746 = arith.constant 0 : index
    %675 = tpu.strided_load %arg11[%c62, %c0_746] {strides = array<i32: 2, 1>} : memref<100x16xf32, #tpu.memory_space<vmem>>, vector<4x16xf32>
    %c63 = arith.constant 63 : index
    %c0_747 = arith.constant 0 : index
    %676 = tpu.strided_load %arg11[%c63, %c0_747] {strides = array<i32: 2, 1>} : memref<100x16xf32, #tpu.memory_space<vmem>>, vector<4x16xf32>
    %c70_748 = arith.constant 70 : index
    %c0_749 = arith.constant 0 : index
    %677 = tpu.strided_load %arg11[%c70_748, %c0_749] {strides = array<i32: 2, 1>} : memref<100x16xf32, #tpu.memory_space<vmem>>, vector<4x16xf32>
    %c71_750 = arith.constant 71 : index
    %c0_751 = arith.constant 0 : index
    %678 = tpu.strided_load %arg11[%c71_750, %c0_751] {strides = array<i32: 2, 1>} : memref<100x16xf32, #tpu.memory_space<vmem>>, vector<4x16xf32>
    %c72_752 = arith.constant 72 : index
    %c0_753 = arith.constant 0 : index
    %679 = tpu.strided_load %arg11[%c72_752, %c0_753] {strides = array<i32: 2, 1>} : memref<100x16xf32, #tpu.memory_space<vmem>>, vector<4x16xf32>
    %c73_754 = arith.constant 73 : index
    %c0_755 = arith.constant 0 : index
    %680 = tpu.strided_load %arg11[%c73_754, %c0_755] {strides = array<i32: 2, 1>} : memref<100x16xf32, #tpu.memory_space<vmem>>, vector<4x16xf32>
    %681 = tpu.concatenate %665, %666, %667, %668, %669, %670, %671, %672, %673, %674, %675, %676, %677, %678, %679, %680 in 1 : vector<4x16xf32>, vector<4x16xf32>, vector<4x16xf32>, vector<4x16xf32>, vector<4x16xf32>, vector<4x16xf32>, vector<4x16xf32>, vector<4x16xf32>, vector<4x16xf32>, vector<4x16xf32>, vector<4x16xf32>, vector<4x16xf32>, vector<4x16xf32>, vector<4x16xf32>, vector<4x16xf32>, vector<4x16xf32> -> vector<4x256xf32>
    %c60_756 = arith.constant 60 : index
    %c0_757 = arith.constant 0 : index
    %682 = tpu.strided_load %arg11[%c60_756, %c0_757] {strides = array<i32: 2, 1>} : memref<100x16xf32, #tpu.memory_space<vmem>>, vector<4x16xf32>
    %c61_758 = arith.constant 61 : index
    %c0_759 = arith.constant 0 : index
    %683 = tpu.strided_load %arg11[%c61_758, %c0_759] {strides = array<i32: 2, 1>} : memref<100x16xf32, #tpu.memory_space<vmem>>, vector<4x16xf32>
    %c62_760 = arith.constant 62 : index
    %c0_761 = arith.constant 0 : index
    %684 = tpu.strided_load %arg11[%c62_760, %c0_761] {strides = array<i32: 2, 1>} : memref<100x16xf32, #tpu.memory_space<vmem>>, vector<4x16xf32>
    %c63_762 = arith.constant 63 : index
    %c0_763 = arith.constant 0 : index
    %685 = tpu.strided_load %arg11[%c63_762, %c0_763] {strides = array<i32: 2, 1>} : memref<100x16xf32, #tpu.memory_space<vmem>>, vector<4x16xf32>
    %c70_764 = arith.constant 70 : index
    %c0_765 = arith.constant 0 : index
    %686 = tpu.strided_load %arg11[%c70_764, %c0_765] {strides = array<i32: 2, 1>} : memref<100x16xf32, #tpu.memory_space<vmem>>, vector<4x16xf32>
    %c71_766 = arith.constant 71 : index
    %c0_767 = arith.constant 0 : index
    %687 = tpu.strided_load %arg11[%c71_766, %c0_767] {strides = array<i32: 2, 1>} : memref<100x16xf32, #tpu.memory_space<vmem>>, vector<4x16xf32>
    %c72_768 = arith.constant 72 : index
    %c0_769 = arith.constant 0 : index
    %688 = tpu.strided_load %arg11[%c72_768, %c0_769] {strides = array<i32: 2, 1>} : memref<100x16xf32, #tpu.memory_space<vmem>>, vector<4x16xf32>
    %c73_770 = arith.constant 73 : index
    %c0_771 = arith.constant 0 : index
    %689 = tpu.strided_load %arg11[%c73_770, %c0_771] {strides = array<i32: 2, 1>} : memref<100x16xf32, #tpu.memory_space<vmem>>, vector<4x16xf32>
    %c80_772 = arith.constant 80 : index
    %c0_773 = arith.constant 0 : index
    %690 = tpu.strided_load %arg11[%c80_772, %c0_773] {strides = array<i32: 2, 1>} : memref<100x16xf32, #tpu.memory_space<vmem>>, vector<4x16xf32>
    %c81_774 = arith.constant 81 : index
    %c0_775 = arith.constant 0 : index
    %691 = tpu.strided_load %arg11[%c81_774, %c0_775] {strides = array<i32: 2, 1>} : memref<100x16xf32, #tpu.memory_space<vmem>>, vector<4x16xf32>
    %c82 = arith.constant 82 : index
    %c0_776 = arith.constant 0 : index
    %692 = tpu.strided_load %arg11[%c82, %c0_776] {strides = array<i32: 2, 1>} : memref<100x16xf32, #tpu.memory_space<vmem>>, vector<4x16xf32>
    %c83 = arith.constant 83 : index
    %c0_777 = arith.constant 0 : index
    %693 = tpu.strided_load %arg11[%c83, %c0_777] {strides = array<i32: 2, 1>} : memref<100x16xf32, #tpu.memory_space<vmem>>, vector<4x16xf32>
    %c90_778 = arith.constant 90 : index
    %c0_779 = arith.constant 0 : index
    %694 = tpu.strided_load %arg11[%c90_778, %c0_779] {strides = array<i32: 2, 1>} : memref<100x16xf32, #tpu.memory_space<vmem>>, vector<4x16xf32>
    %c91_780 = arith.constant 91 : index
    %c0_781 = arith.constant 0 : index
    %695 = tpu.strided_load %arg11[%c91_780, %c0_781] {strides = array<i32: 2, 1>} : memref<100x16xf32, #tpu.memory_space<vmem>>, vector<4x16xf32>
    %c92_782 = arith.constant 92 : index
    %c0_783 = arith.constant 0 : index
    %696 = tpu.strided_load %arg11[%c92_782, %c0_783] {strides = array<i32: 2, 1>} : memref<100x16xf32, #tpu.memory_space<vmem>>, vector<4x16xf32>
    %c93_784 = arith.constant 93 : index
    %c0_785 = arith.constant 0 : index
    %697 = tpu.strided_load %arg11[%c93_784, %c0_785] {strides = array<i32: 2, 1>} : memref<100x16xf32, #tpu.memory_space<vmem>>, vector<4x16xf32>
    %698 = tpu.concatenate %682, %683, %684, %685, %686, %687, %688, %689, %690, %691, %692, %693, %694, %695, %696, %697 in 1 : vector<4x16xf32>, vector<4x16xf32>, vector<4x16xf32>, vector<4x16xf32>, vector<4x16xf32>, vector<4x16xf32>, vector<4x16xf32>, vector<4x16xf32>, vector<4x16xf32>, vector<4x16xf32>, vector<4x16xf32>, vector<4x16xf32>, vector<4x16xf32>, vector<4x16xf32>, vector<4x16xf32>, vector<4x16xf32> -> vector<4x256xf32>
    %699 = tpu.concatenate %647, %664, %681, %698 in 0 : vector<4x256xf32>, vector<4x256xf32>, vector<4x256xf32>, vector<4x256xf32> -> vector<16x256xf32>
    %700 = arith.truncf %699 : vector<16x256xf32> to vector<16x256xbf16>
    %c0_786 = arith.constant 0 : index
    %c0_787 = arith.constant 0 : index
    %701 = vector.load %arg5[%c0_786, %c0_787] : memref<256x32xbf16, #tpu.memory_space<vmem>>, vector<256x32xbf16>
    %cst_788 = arith.constant dense<0.000000e+00> : vector<16x32xf32>
    %702 = tpu.matmul %700, %701, %cst_788 {dimension_numbers = #tpu.dot_dimension_numbers<[1], [0], [0], [1], [0, 0, 1, 1], [], []>} : vector<16x256xbf16>, vector<256x32xbf16>, vector<16x32xf32> -> vector<16x32xf32>
    %cst_789 = arith.constant dense<0.000000e+00> : vector<32xf32>
    %703 = vector.multi_reduction <add>, %702, %cst_789 [0] : vector<16x32xf32> to vector<32xf32>
    %704 = vector.shape_cast %703 : vector<32xf32> to vector<1x32xf32>
    %cst_790 = arith.constant 1.600000e+01 : f32
    %705 = vector.broadcast %cst_790 : f32 to vector<1x32xf32>
    %706 = arith.divf %704, %705 : vector<1x32xf32>
    %707 = vector.broadcast %706 : vector<1x32xf32> to vector<16x32xf32>
    %708 = arith.subf %702, %707 : vector<16x32xf32>
    %709 = arith.mulf %708, %708 : vector<16x32xf32>
    %cst_791 = arith.constant dense<0.000000e+00> : vector<32xf32>
    %710 = vector.multi_reduction <add>, %709, %cst_791 [0] : vector<16x32xf32> to vector<32xf32>
    %711 = vector.shape_cast %710 : vector<32xf32> to vector<1x32xf32>
    %cst_792 = arith.constant 1.600000e+01 : f32
    %712 = vector.broadcast %cst_792 : f32 to vector<1x32xf32>
    %713 = arith.divf %711, %712 : vector<1x32xf32>
    %714 = vector.broadcast %706 : vector<1x32xf32> to vector<16x32xf32>
    %715 = arith.subf %702, %714 : vector<16x32xf32>
    %cst_793 = arith.constant 9.99999974E-6 : f32
    %716 = vector.broadcast %cst_793 : f32 to vector<1x32xf32>
    %717 = arith.addf %713, %716 : vector<1x32xf32>
    %718 = math.rsqrt %717 : vector<1x32xf32>
    %719 = vector.broadcast %718 : vector<1x32xf32> to vector<16x32xf32>
    %720 = arith.mulf %715, %719 : vector<16x32xf32>
    %cst_794 = arith.constant 0.000000e+00 : f32
    %721 = vector.broadcast %cst_794 : f32 to vector<16x32xf32>
    %722 = arith.cmpf ogt, %720, %721 : vector<16x32xf32>
    %cst_795 = arith.constant 2.000000e-01 : f32
    %723 = vector.broadcast %cst_795 : f32 to vector<16x32xf32>
    %724 = arith.mulf %723, %720 : vector<16x32xf32>
    %725 = arith.select %722, %720, %724 : vector<16x32xi1>, vector<16x32xf32>
    %726 = vector.extract_strided_slice %725 {offsets = [0, 0], sizes = [4, 32], strides = [1, 1]} : vector<16x32xf32> to vector<4x32xf32>
    %c7 = arith.constant 7 : index
    %c0_796 = arith.constant 0 : index
    %727 = vector.load %arg12[%c7, %c0_796] : memref<36x32xf32, #tpu.memory_space<vmem>>, vector<4x32xf32>
    tpu.vector_store %arg12[%c7, %c0_796], %726 {strides = array<i32>} : memref<36x32xf32, #tpu.memory_space<vmem>>, vector<4x32xf32>,
    %728 = vector.extract_strided_slice %725 {offsets = [1, 0], sizes = [1, 32], strides = [1, 1]} : vector<16x32xf32> to vector<1x32xf32>
    %c6 = arith.constant 6 : index
    %c0_797 = arith.constant 0 : index
    %729 = vector.load %arg12[%c6, %c0_797] : memref<36x32xf32, #tpu.memory_space<vmem>>, vector<1x32xf32>
    tpu.vector_store %arg12[%c6, %c0_797], %728 {strides = array<i32>} : memref<36x32xf32, #tpu.memory_space<vmem>>, vector<1x32xf32>,
    %730 = vector.extract_strided_slice %725 {offsets = [2, 0], sizes = [1, 32], strides = [1, 1]} : vector<16x32xf32> to vector<1x32xf32>
    %c11_798 = arith.constant 11 : index
    %c0_799 = arith.constant 0 : index
    %731 = vector.load %arg12[%c11_798, %c0_799] : memref<36x32xf32, #tpu.memory_space<vmem>>, vector<1x32xf32>
    tpu.vector_store %arg12[%c11_798, %c0_799], %730 {strides = array<i32>} : memref<36x32xf32, #tpu.memory_space<vmem>>, vector<1x32xf32>,
    %732 = vector.extract_strided_slice %725 {offsets = [4, 0], sizes = [4, 32], strides = [1, 1]} : vector<16x32xf32> to vector<4x32xf32>
    %c13_800 = arith.constant 13 : index
    %c0_801 = arith.constant 0 : index
    %733 = vector.load %arg12[%c13_800, %c0_801] : memref<36x32xf32, #tpu.memory_space<vmem>>, vector<4x32xf32>
    tpu.vector_store %arg12[%c13_800, %c0_801], %732 {strides = array<i32>} : memref<36x32xf32, #tpu.memory_space<vmem>>, vector<4x32xf32>,
    %734 = vector.extract_strided_slice %725 {offsets = [5, 0], sizes = [1, 32], strides = [1, 1]} : vector<16x32xf32> to vector<1x32xf32>
    %c12_802 = arith.constant 12 : index
    %c0_803 = arith.constant 0 : index
    %735 = vector.load %arg12[%c12_802, %c0_803] : memref<36x32xf32, #tpu.memory_space<vmem>>, vector<1x32xf32>
    tpu.vector_store %arg12[%c12_802, %c0_803], %734 {strides = array<i32>} : memref<36x32xf32, #tpu.memory_space<vmem>>, vector<1x32xf32>,
    %736 = vector.extract_strided_slice %725 {offsets = [6, 0], sizes = [1, 32], strides = [1, 1]} : vector<16x32xf32> to vector<1x32xf32>
    %c17 = arith.constant 17 : index
    %c0_804 = arith.constant 0 : index
    %737 = vector.load %arg12[%c17, %c0_804] : memref<36x32xf32, #tpu.memory_space<vmem>>, vector<1x32xf32>
    tpu.vector_store %arg12[%c17, %c0_804], %736 {strides = array<i32>} : memref<36x32xf32, #tpu.memory_space<vmem>>, vector<1x32xf32>,
    %738 = vector.extract_strided_slice %725 {offsets = [8, 0], sizes = [4, 32], strides = [1, 1]} : vector<16x32xf32> to vector<4x32xf32>
    %c19_805 = arith.constant 19 : index
    %c0_806 = arith.constant 0 : index
    %739 = vector.load %arg12[%c19_805, %c0_806] : memref<36x32xf32, #tpu.memory_space<vmem>>, vector<4x32xf32>
    tpu.vector_store %arg12[%c19_805, %c0_806], %738 {strides = array<i32>} : memref<36x32xf32, #tpu.memory_space<vmem>>, vector<4x32xf32>,
    %740 = vector.extract_strided_slice %725 {offsets = [9, 0], sizes = [1, 32], strides = [1, 1]} : vector<16x32xf32> to vector<1x32xf32>
    %c18_807 = arith.constant 18 : index
    %c0_808 = arith.constant 0 : index
    %741 = vector.load %arg12[%c18_807, %c0_808] : memref<36x32xf32, #tpu.memory_space<vmem>>, vector<1x32xf32>
    tpu.vector_store %arg12[%c18_807, %c0_808], %740 {strides = array<i32>} : memref<36x32xf32, #tpu.memory_space<vmem>>, vector<1x32xf32>,
    %742 = vector.extract_strided_slice %725 {offsets = [10, 0], sizes = [1, 32], strides = [1, 1]} : vector<16x32xf32> to vector<1x32xf32>
    %c23_809 = arith.constant 23 : index
    %c0_810 = arith.constant 0 : index
    %743 = vector.load %arg12[%c23_809, %c0_810] : memref<36x32xf32, #tpu.memory_space<vmem>>, vector<1x32xf32>
    tpu.vector_store %arg12[%c23_809, %c0_810], %742 {strides = array<i32>} : memref<36x32xf32, #tpu.memory_space<vmem>>, vector<1x32xf32>,
    %744 = vector.extract_strided_slice %725 {offsets = [12, 0], sizes = [4, 32], strides = [1, 1]} : vector<16x32xf32> to vector<4x32xf32>
    %c25 = arith.constant 25 : index
    %c0_811 = arith.constant 0 : index
    %745 = vector.load %arg12[%c25, %c0_811] : memref<36x32xf32, #tpu.memory_space<vmem>>, vector<4x32xf32>
    tpu.vector_store %arg12[%c25, %c0_811], %744 {strides = array<i32>} : memref<36x32xf32, #tpu.memory_space<vmem>>, vector<4x32xf32>,
    %746 = vector.extract_strided_slice %725 {offsets = [13, 0], sizes = [1, 32], strides = [1, 1]} : vector<16x32xf32> to vector<1x32xf32>
    %c24 = arith.constant 24 : index
    %c0_812 = arith.constant 0 : index
    %747 = vector.load %arg12[%c24, %c0_812] : memref<36x32xf32, #tpu.memory_space<vmem>>, vector<1x32xf32>
    tpu.vector_store %arg12[%c24, %c0_812], %746 {strides = array<i32>} : memref<36x32xf32, #tpu.memory_space<vmem>>, vector<1x32xf32>,
    %748 = vector.extract_strided_slice %725 {offsets = [14, 0], sizes = [1, 32], strides = [1, 1]} : vector<16x32xf32> to vector<1x32xf32>
    %c29_813 = arith.constant 29 : index
    %c0_814 = arith.constant 0 : index
    %749 = vector.load %arg12[%c29_813, %c0_814] : memref<36x32xf32, #tpu.memory_space<vmem>>, vector<1x32xf32>
    tpu.vector_store %arg12[%c29_813, %c0_814], %748 {strides = array<i32>} : memref<36x32xf32, #tpu.memory_space<vmem>>, vector<1x32xf32>,
    %c12_815 = arith.constant 12 : index
    %c0_816 = arith.constant 0 : index
    %750 = vector.load %arg12[%c12_815, %c0_816] : memref<36x32xf32, #tpu.memory_space<vmem>>, vector<6x32xf32>
    %c0_817 = arith.constant 0 : index
    %c0_818 = arith.constant 0 : index
    %751 = vector.load %arg12[%c0_817, %c0_818] : memref<36x32xf32, #tpu.memory_space<vmem>>, vector<6x32xf32>
    tpu.vector_store %arg12[%c0_817, %c0_818], %750 {strides = array<i32>} : memref<36x32xf32, #tpu.memory_space<vmem>>, vector<6x32xf32>,
    %c18_819 = arith.constant 18 : index
    %c0_820 = arith.constant 0 : index
    %752 = vector.load %arg12[%c18_819, %c0_820] : memref<36x32xf32, #tpu.memory_space<vmem>>, vector<6x32xf32>
    %c30_821 = arith.constant 30 : index
    %c0_822 = arith.constant 0 : index
    %753 = vector.load %arg12[%c30_821, %c0_822] : memref<36x32xf32, #tpu.memory_space<vmem>>, vector<6x32xf32>
    tpu.vector_store %arg12[%c30_821, %c0_822], %752 {strides = array<i32>} : memref<36x32xf32, #tpu.memory_space<vmem>>, vector<6x32xf32>,
    %c0_823 = arith.constant 0 : index
    %c0_824 = arith.constant 0 : index
    %754 = vector.load %arg12[%c0_823, %c0_824] : memref<36x32xf32, #tpu.memory_space<vmem>>, vector<3x32xf32>
    %c1_825 = arith.constant 1 : index
    %c0_826 = arith.constant 0 : index
    %755 = vector.load %arg12[%c1_825, %c0_826] : memref<36x32xf32, #tpu.memory_space<vmem>>, vector<3x32xf32>
    %c2_827 = arith.constant 2 : index
    %c0_828 = arith.constant 0 : index
    %756 = vector.load %arg12[%c2_827, %c0_828] : memref<36x32xf32, #tpu.memory_space<vmem>>, vector<3x32xf32>
    %c3_829 = arith.constant 3 : index
    %c0_830 = arith.constant 0 : index
    %757 = vector.load %arg12[%c3_829, %c0_830] : memref<36x32xf32, #tpu.memory_space<vmem>>, vector<3x32xf32>
    %c6_831 = arith.constant 6 : index
    %c0_832 = arith.constant 0 : index
    %758 = vector.load %arg12[%c6_831, %c0_832] : memref<36x32xf32, #tpu.memory_space<vmem>>, vector<3x32xf32>
    %c7_833 = arith.constant 7 : index
    %c0_834 = arith.constant 0 : index
    %759 = vector.load %arg12[%c7_833, %c0_834] : memref<36x32xf32, #tpu.memory_space<vmem>>, vector<3x32xf32>
    %c8 = arith.constant 8 : index
    %c0_835 = arith.constant 0 : index
    %760 = vector.load %arg12[%c8, %c0_835] : memref<36x32xf32, #tpu.memory_space<vmem>>, vector<3x32xf32>
    %c9 = arith.constant 9 : index
    %c0_836 = arith.constant 0 : index
    %761 = vector.load %arg12[%c9, %c0_836] : memref<36x32xf32, #tpu.memory_space<vmem>>, vector<3x32xf32>
    %c12_837 = arith.constant 12 : index
    %c0_838 = arith.constant 0 : index
    %762 = vector.load %arg12[%c12_837, %c0_838] : memref<36x32xf32, #tpu.memory_space<vmem>>, vector<3x32xf32>
    %c13_839 = arith.constant 13 : index
    %c0_840 = arith.constant 0 : index
    %763 = vector.load %arg12[%c13_839, %c0_840] : memref<36x32xf32, #tpu.memory_space<vmem>>, vector<3x32xf32>
    %c14 = arith.constant 14 : index
    %c0_841 = arith.constant 0 : index
    %764 = vector.load %arg12[%c14, %c0_841] : memref<36x32xf32, #tpu.memory_space<vmem>>, vector<3x32xf32>
    %c15 = arith.constant 15 : index
    %c0_842 = arith.constant 0 : index
    %765 = vector.load %arg12[%c15, %c0_842] : memref<36x32xf32, #tpu.memory_space<vmem>>, vector<3x32xf32>
    %c18_843 = arith.constant 18 : index
    %c0_844 = arith.constant 0 : index
    %766 = vector.load %arg12[%c18_843, %c0_844] : memref<36x32xf32, #tpu.memory_space<vmem>>, vector<3x32xf32>
    %c19_845 = arith.constant 19 : index
    %c0_846 = arith.constant 0 : index
    %767 = vector.load %arg12[%c19_845, %c0_846] : memref<36x32xf32, #tpu.memory_space<vmem>>, vector<3x32xf32>
    %c20_847 = arith.constant 20 : index
    %c0_848 = arith.constant 0 : index
    %768 = vector.load %arg12[%c20_847, %c0_848] : memref<36x32xf32, #tpu.memory_space<vmem>>, vector<3x32xf32>
    %c21_849 = arith.constant 21 : index
    %c0_850 = arith.constant 0 : index
    %769 = vector.load %arg12[%c21_849, %c0_850] : memref<36x32xf32, #tpu.memory_space<vmem>>, vector<3x32xf32>
    %770 = tpu.concatenate %754, %755, %756, %757, %758, %759, %760, %761, %762, %763, %764, %765, %766, %767, %768, %769 in 1 : vector<3x32xf32>, vector<3x32xf32>, vector<3x32xf32>, vector<3x32xf32>, vector<3x32xf32>, vector<3x32xf32>, vector<3x32xf32>, vector<3x32xf32>, vector<3x32xf32>, vector<3x32xf32>, vector<3x32xf32>, vector<3x32xf32>, vector<3x32xf32>, vector<3x32xf32>, vector<3x32xf32>, vector<3x32xf32> -> vector<3x512xf32>
    %c6_851 = arith.constant 6 : index
    %c0_852 = arith.constant 0 : index
    %771 = vector.load %arg12[%c6_851, %c0_852] : memref<36x32xf32, #tpu.memory_space<vmem>>, vector<3x32xf32>
    %c7_853 = arith.constant 7 : index
    %c0_854 = arith.constant 0 : index
    %772 = vector.load %arg12[%c7_853, %c0_854] : memref<36x32xf32, #tpu.memory_space<vmem>>, vector<3x32xf32>
    %c8_855 = arith.constant 8 : index
    %c0_856 = arith.constant 0 : index
    %773 = vector.load %arg12[%c8_855, %c0_856] : memref<36x32xf32, #tpu.memory_space<vmem>>, vector<3x32xf32>
    %c9_857 = arith.constant 9 : index
    %c0_858 = arith.constant 0 : index
    %774 = vector.load %arg12[%c9_857, %c0_858] : memref<36x32xf32, #tpu.memory_space<vmem>>, vector<3x32xf32>
    %c12_859 = arith.constant 12 : index
    %c0_860 = arith.constant 0 : index
    %775 = vector.load %arg12[%c12_859, %c0_860] : memref<36x32xf32, #tpu.memory_space<vmem>>, vector<3x32xf32>
    %c13_861 = arith.constant 13 : index
    %c0_862 = arith.constant 0 : index
    %776 = vector.load %arg12[%c13_861, %c0_862] : memref<36x32xf32, #tpu.memory_space<vmem>>, vector<3x32xf32>
    %c14_863 = arith.constant 14 : index
    %c0_864 = arith.constant 0 : index
    %777 = vector.load %arg12[%c14_863, %c0_864] : memref<36x32xf32, #tpu.memory_space<vmem>>, vector<3x32xf32>
    %c15_865 = arith.constant 15 : index
    %c0_866 = arith.constant 0 : index
    %778 = vector.load %arg12[%c15_865, %c0_866] : memref<36x32xf32, #tpu.memory_space<vmem>>, vector<3x32xf32>
    %c18_867 = arith.constant 18 : index
    %c0_868 = arith.constant 0 : index
    %779 = vector.load %arg12[%c18_867, %c0_868] : memref<36x32xf32, #tpu.memory_space<vmem>>, vector<3x32xf32>
    %c19_869 = arith.constant 19 : index
    %c0_870 = arith.constant 0 : index
    %780 = vector.load %arg12[%c19_869, %c0_870] : memref<36x32xf32, #tpu.memory_space<vmem>>, vector<3x32xf32>
    %c20_871 = arith.constant 20 : index
    %c0_872 = arith.constant 0 : index
    %781 = vector.load %arg12[%c20_871, %c0_872] : memref<36x32xf32, #tpu.memory_space<vmem>>, vector<3x32xf32>
    %c21_873 = arith.constant 21 : index
    %c0_874 = arith.constant 0 : index
    %782 = vector.load %arg12[%c21_873, %c0_874] : memref<36x32xf32, #tpu.memory_space<vmem>>, vector<3x32xf32>
    %c24_875 = arith.constant 24 : index
    %c0_876 = arith.constant 0 : index
    %783 = vector.load %arg12[%c24_875, %c0_876] : memref<36x32xf32, #tpu.memory_space<vmem>>, vector<3x32xf32>
    %c25_877 = arith.constant 25 : index
    %c0_878 = arith.constant 0 : index
    %784 = vector.load %arg12[%c25_877, %c0_878] : memref<36x32xf32, #tpu.memory_space<vmem>>, vector<3x32xf32>
    %c26 = arith.constant 26 : index
    %c0_879 = arith.constant 0 : index
    %785 = vector.load %arg12[%c26, %c0_879] : memref<36x32xf32, #tpu.memory_space<vmem>>, vector<3x32xf32>
    %c27 = arith.constant 27 : index
    %c0_880 = arith.constant 0 : index
    %786 = vector.load %arg12[%c27, %c0_880] : memref<36x32xf32, #tpu.memory_space<vmem>>, vector<3x32xf32>
    %787 = tpu.concatenate %771, %772, %773, %774, %775, %776, %777, %778, %779, %780, %781, %782, %783, %784, %785, %786 in 1 : vector<3x32xf32>, vector<3x32xf32>, vector<3x32xf32>, vector<3x32xf32>, vector<3x32xf32>, vector<3x32xf32>, vector<3x32xf32>, vector<3x32xf32>, vector<3x32xf32>, vector<3x32xf32>, vector<3x32xf32>, vector<3x32xf32>, vector<3x32xf32>, vector<3x32xf32>, vector<3x32xf32>, vector<3x32xf32> -> vector<3x512xf32>
    %c12_881 = arith.constant 12 : index
    %c0_882 = arith.constant 0 : index
    %788 = vector.load %arg12[%c12_881, %c0_882] : memref<36x32xf32, #tpu.memory_space<vmem>>, vector<3x32xf32>
    %c13_883 = arith.constant 13 : index
    %c0_884 = arith.constant 0 : index
    %789 = vector.load %arg12[%c13_883, %c0_884] : memref<36x32xf32, #tpu.memory_space<vmem>>, vector<3x32xf32>
    %c14_885 = arith.constant 14 : index
    %c0_886 = arith.constant 0 : index
    %790 = vector.load %arg12[%c14_885, %c0_886] : memref<36x32xf32, #tpu.memory_space<vmem>>, vector<3x32xf32>
    %c15_887 = arith.constant 15 : index
    %c0_888 = arith.constant 0 : index
    %791 = vector.load %arg12[%c15_887, %c0_888] : memref<36x32xf32, #tpu.memory_space<vmem>>, vector<3x32xf32>
    %c18_889 = arith.constant 18 : index
    %c0_890 = arith.constant 0 : index
    %792 = vector.load %arg12[%c18_889, %c0_890] : memref<36x32xf32, #tpu.memory_space<vmem>>, vector<3x32xf32>
    %c19_891 = arith.constant 19 : index
    %c0_892 = arith.constant 0 : index
    %793 = vector.load %arg12[%c19_891, %c0_892] : memref<36x32xf32, #tpu.memory_space<vmem>>, vector<3x32xf32>
    %c20_893 = arith.constant 20 : index
    %c0_894 = arith.constant 0 : index
    %794 = vector.load %arg12[%c20_893, %c0_894] : memref<36x32xf32, #tpu.memory_space<vmem>>, vector<3x32xf32>
    %c21_895 = arith.constant 21 : index
    %c0_896 = arith.constant 0 : index
    %795 = vector.load %arg12[%c21_895, %c0_896] : memref<36x32xf32, #tpu.memory_space<vmem>>, vector<3x32xf32>
    %c24_897 = arith.constant 24 : index
    %c0_898 = arith.constant 0 : index
    %796 = vector.load %arg12[%c24_897, %c0_898] : memref<36x32xf32, #tpu.memory_space<vmem>>, vector<3x32xf32>
    %c25_899 = arith.constant 25 : index
    %c0_900 = arith.constant 0 : index
    %797 = vector.load %arg12[%c25_899, %c0_900] : memref<36x32xf32, #tpu.memory_space<vmem>>, vector<3x32xf32>
    %c26_901 = arith.constant 26 : index
    %c0_902 = arith.constant 0 : index
    %798 = vector.load %arg12[%c26_901, %c0_902] : memref<36x32xf32, #tpu.memory_space<vmem>>, vector<3x32xf32>
    %c27_903 = arith.constant 27 : index
    %c0_904 = arith.constant 0 : index
    %799 = vector.load %arg12[%c27_903, %c0_904] : memref<36x32xf32, #tpu.memory_space<vmem>>, vector<3x32xf32>
    %c30_905 = arith.constant 30 : index
    %c0_906 = arith.constant 0 : index
    %800 = vector.load %arg12[%c30_905, %c0_906] : memref<36x32xf32, #tpu.memory_space<vmem>>, vector<3x32xf32>
    %c31_907 = arith.constant 31 : index
    %c0_908 = arith.constant 0 : index
    %801 = vector.load %arg12[%c31_907, %c0_908] : memref<36x32xf32, #tpu.memory_space<vmem>>, vector<3x32xf32>
    %c32_909 = arith.constant 32 : index
    %c0_910 = arith.constant 0 : index
    %802 = vector.load %arg12[%c32_909, %c0_910] : memref<36x32xf32, #tpu.memory_space<vmem>>, vector<3x32xf32>
    %c33_911 = arith.constant 33 : index
    %c0_912 = arith.constant 0 : index
    %803 = vector.load %arg12[%c33_911, %c0_912] : memref<36x32xf32, #tpu.memory_space<vmem>>, vector<3x32xf32>
    %804 = tpu.concatenate %788, %789, %790, %791, %792, %793, %794, %795, %796, %797, %798, %799, %800, %801, %802, %803 in 1 : vector<3x32xf32>, vector<3x32xf32>, vector<3x32xf32>, vector<3x32xf32>, vector<3x32xf32>, vector<3x32xf32>, vector<3x32xf32>, vector<3x32xf32>, vector<3x32xf32>, vector<3x32xf32>, vector<3x32xf32>, vector<3x32xf32>, vector<3x32xf32>, vector<3x32xf32>, vector<3x32xf32>, vector<3x32xf32> -> vector<3x512xf32>
    %805 = tpu.concatenate %770, %787, %804 in 0 : vector<3x512xf32>, vector<3x512xf32>, vector<3x512xf32> -> vector<9x512xf32>
    %806 = arith.truncf %805 : vector<9x512xf32> to vector<9x512xbf16>
    %c0_913 = arith.constant 0 : index
    %c0_914 = arith.constant 0 : index
    %807 = vector.load %arg6[%c0_913, %c0_914] : memref<512x64xbf16, #tpu.memory_space<vmem>>, vector<512x64xbf16>
    %cst_915 = arith.constant dense<0.000000e+00> : vector<9x64xf32>
    %808 = tpu.matmul %806, %807, %cst_915 {dimension_numbers = #tpu.dot_dimension_numbers<[1], [0], [0], [1], [0, 0, 1, 1], [], []>} : vector<9x512xbf16>, vector<512x64xbf16>, vector<9x64xf32> -> vector<9x64xf32>
    %cst_916 = arith.constant dense<0.000000e+00> : vector<64xf32>
    %809 = vector.multi_reduction <add>, %808, %cst_916 [0] : vector<9x64xf32> to vector<64xf32>
    %810 = vector.shape_cast %809 : vector<64xf32> to vector<1x64xf32>
    %cst_917 = arith.constant 9.000000e+00 : f32
    %811 = vector.broadcast %cst_917 : f32 to vector<1x64xf32>
    %812 = arith.divf %810, %811 : vector<1x64xf32>
    %813 = vector.broadcast %812 : vector<1x64xf32> to vector<9x64xf32>
    %814 = arith.subf %808, %813 : vector<9x64xf32>
    %815 = arith.mulf %814, %814 : vector<9x64xf32>
    %cst_918 = arith.constant dense<0.000000e+00> : vector<64xf32>
    %816 = vector.multi_reduction <add>, %815, %cst_918 [0] : vector<9x64xf32> to vector<64xf32>
    %817 = vector.shape_cast %816 : vector<64xf32> to vector<1x64xf32>
    %cst_919 = arith.constant 9.000000e+00 : f32
    %818 = vector.broadcast %cst_919 : f32 to vector<1x64xf32>
    %819 = arith.divf %817, %818 : vector<1x64xf32>
    %820 = vector.broadcast %812 : vector<1x64xf32> to vector<9x64xf32>
    %821 = arith.subf %808, %820 : vector<9x64xf32>
    %cst_920 = arith.constant 9.99999974E-6 : f32
    %822 = vector.broadcast %cst_920 : f32 to vector<1x64xf32>
    %823 = arith.addf %819, %822 : vector<1x64xf32>
    %824 = math.rsqrt %823 : vector<1x64xf32>
    %825 = vector.broadcast %824 : vector<1x64xf32> to vector<9x64xf32>
    %826 = arith.mulf %821, %825 : vector<9x64xf32>
    %cst_921 = arith.constant 0.000000e+00 : f32
    %827 = vector.broadcast %cst_921 : f32 to vector<9x64xf32>
    %828 = arith.cmpf ogt, %826, %827 : vector<9x64xf32>
    %cst_922 = arith.constant 2.000000e-01 : f32
    %829 = vector.broadcast %cst_922 : f32 to vector<9x64xf32>
    %830 = arith.mulf %829, %826 : vector<9x64xf32>
    %831 = arith.select %828, %826, %830 : vector<9x64xi1>, vector<9x64xf32>
    %832 = vector.extract_strided_slice %831 {offsets = [0, 0], sizes = [3, 64], strides = [1, 1]} : vector<9x64xf32> to vector<3x64xf32>
    %c6_923 = arith.constant 6 : index
    %c0_924 = arith.constant 0 : index
    %833 = vector.load %arg13[%c6_923, %c0_924] : memref<25x64xf32, #tpu.memory_space<vmem>>, vector<3x64xf32>
    tpu.vector_store %arg13[%c6_923, %c0_924], %832 {strides = array<i32>} : memref<25x64xf32, #tpu.memory_space<vmem>>, vector<3x64xf32>,
    %834 = vector.extract_strided_slice %831 {offsets = [1, 0], sizes = [1, 64], strides = [1, 1]} : vector<9x64xf32> to vector<1x64xf32>
    %c5 = arith.constant 5 : index
    %c0_925 = arith.constant 0 : index
    %835 = vector.load %arg13[%c5, %c0_925] : memref<25x64xf32, #tpu.memory_space<vmem>>, vector<1x64xf32>
    tpu.vector_store %arg13[%c5, %c0_925], %834 {strides = array<i32>} : memref<25x64xf32, #tpu.memory_space<vmem>>, vector<1x64xf32>,
    %836 = vector.extract_strided_slice %831 {offsets = [1, 0], sizes = [1, 64], strides = [1, 1]} : vector<9x64xf32> to vector<1x64xf32>
    %c9_926 = arith.constant 9 : index
    %c0_927 = arith.constant 0 : index
    %837 = vector.load %arg13[%c9_926, %c0_927] : memref<25x64xf32, #tpu.memory_space<vmem>>, vector<1x64xf32>
    tpu.vector_store %arg13[%c9_926, %c0_927], %836 {strides = array<i32>} : memref<25x64xf32, #tpu.memory_space<vmem>>, vector<1x64xf32>,
    %838 = vector.extract_strided_slice %831 {offsets = [3, 0], sizes = [3, 64], strides = [1, 1]} : vector<9x64xf32> to vector<3x64xf32>
    %c11_928 = arith.constant 11 : index
    %c0_929 = arith.constant 0 : index
    %839 = vector.load %arg13[%c11_928, %c0_929] : memref<25x64xf32, #tpu.memory_space<vmem>>, vector<3x64xf32>
    tpu.vector_store %arg13[%c11_928, %c0_929], %838 {strides = array<i32>} : memref<25x64xf32, #tpu.memory_space<vmem>>, vector<3x64xf32>,
    %840 = vector.extract_strided_slice %831 {offsets = [4, 0], sizes = [1, 64], strides = [1, 1]} : vector<9x64xf32> to vector<1x64xf32>
    %c10_930 = arith.constant 10 : index
    %c0_931 = arith.constant 0 : index
    %841 = vector.load %arg13[%c10_930, %c0_931] : memref<25x64xf32, #tpu.memory_space<vmem>>, vector<1x64xf32>
    tpu.vector_store %arg13[%c10_930, %c0_931], %840 {strides = array<i32>} : memref<25x64xf32, #tpu.memory_space<vmem>>, vector<1x64xf32>,
    %842 = vector.extract_strided_slice %831 {offsets = [4, 0], sizes = [1, 64], strides = [1, 1]} : vector<9x64xf32> to vector<1x64xf32>
    %c14_932 = arith.constant 14 : index
    %c0_933 = arith.constant 0 : index
    %843 = vector.load %arg13[%c14_932, %c0_933] : memref<25x64xf32, #tpu.memory_space<vmem>>, vector<1x64xf32>
    tpu.vector_store %arg13[%c14_932, %c0_933], %842 {strides = array<i32>} : memref<25x64xf32, #tpu.memory_space<vmem>>, vector<1x64xf32>,
    %844 = vector.extract_strided_slice %831 {offsets = [6, 0], sizes = [3, 64], strides = [1, 1]} : vector<9x64xf32> to vector<3x64xf32>
    %c16 = arith.constant 16 : index
    %c0_934 = arith.constant 0 : index
    %845 = vector.load %arg13[%c16, %c0_934] : memref<25x64xf32, #tpu.memory_space<vmem>>, vector<3x64xf32>
    tpu.vector_store %arg13[%c16, %c0_934], %844 {strides = array<i32>} : memref<25x64xf32, #tpu.memory_space<vmem>>, vector<3x64xf32>,
    %846 = vector.extract_strided_slice %831 {offsets = [7, 0], sizes = [1, 64], strides = [1, 1]} : vector<9x64xf32> to vector<1x64xf32>
    %c15_935 = arith.constant 15 : index
    %c0_936 = arith.constant 0 : index
    %847 = vector.load %arg13[%c15_935, %c0_936] : memref<25x64xf32, #tpu.memory_space<vmem>>, vector<1x64xf32>
    tpu.vector_store %arg13[%c15_935, %c0_936], %846 {strides = array<i32>} : memref<25x64xf32, #tpu.memory_space<vmem>>, vector<1x64xf32>,
    %848 = vector.extract_strided_slice %831 {offsets = [7, 0], sizes = [1, 64], strides = [1, 1]} : vector<9x64xf32> to vector<1x64xf32>
    %c19_937 = arith.constant 19 : index
    %c0_938 = arith.constant 0 : index
    %849 = vector.load %arg13[%c19_937, %c0_938] : memref<25x64xf32, #tpu.memory_space<vmem>>, vector<1x64xf32>
    tpu.vector_store %arg13[%c19_937, %c0_938], %848 {strides = array<i32>} : memref<25x64xf32, #tpu.memory_space<vmem>>, vector<1x64xf32>,
    %c10_939 = arith.constant 10 : index
    %c0_940 = arith.constant 0 : index
    %850 = vector.load %arg13[%c10_939, %c0_940] : memref<25x64xf32, #tpu.memory_space<vmem>>, vector<5x64xf32>
    %c0_941 = arith.constant 0 : index
    %c0_942 = arith.constant 0 : index
    %851 = vector.load %arg13[%c0_941, %c0_942] : memref<25x64xf32, #tpu.memory_space<vmem>>, vector<5x64xf32>
    tpu.vector_store %arg13[%c0_941, %c0_942], %850 {strides = array<i32>} : memref<25x64xf32, #tpu.memory_space<vmem>>, vector<5x64xf32>,
    %c10_943 = arith.constant 10 : index
    %c0_944 = arith.constant 0 : index
    %852 = vector.load %arg13[%c10_943, %c0_944] : memref<25x64xf32, #tpu.memory_space<vmem>>, vector<5x64xf32>
    %c20_945 = arith.constant 20 : index
    %c0_946 = arith.constant 0 : index
    %853 = vector.load %arg13[%c20_945, %c0_946] : memref<25x64xf32, #tpu.memory_space<vmem>>, vector<5x64xf32>
    tpu.vector_store %arg13[%c20_945, %c0_946], %852 {strides = array<i32>} : memref<25x64xf32, #tpu.memory_space<vmem>>, vector<5x64xf32>,
    %c0_947 = arith.constant 0 : index
    %c0_948 = arith.constant 0 : index
    %854 = vector.load %arg13[%c0_947, %c0_948] : memref<25x64xf32, #tpu.memory_space<vmem>>, vector<2x64xf32>
    %c1_949 = arith.constant 1 : index
    %c0_950 = arith.constant 0 : index
    %855 = vector.load %arg13[%c1_949, %c0_950] : memref<25x64xf32, #tpu.memory_space<vmem>>, vector<2x64xf32>
    %c2_951 = arith.constant 2 : index
    %c0_952 = arith.constant 0 : index
    %856 = vector.load %arg13[%c2_951, %c0_952] : memref<25x64xf32, #tpu.memory_space<vmem>>, vector<2x64xf32>
    %c3_953 = arith.constant 3 : index
    %c0_954 = arith.constant 0 : index
    %857 = vector.load %arg13[%c3_953, %c0_954] : memref<25x64xf32, #tpu.memory_space<vmem>>, vector<2x64xf32>
    %c5_955 = arith.constant 5 : index
    %c0_956 = arith.constant 0 : index
    %858 = vector.load %arg13[%c5_955, %c0_956] : memref<25x64xf32, #tpu.memory_space<vmem>>, vector<2x64xf32>
    %c6_957 = arith.constant 6 : index
    %c0_958 = arith.constant 0 : index
    %859 = vector.load %arg13[%c6_957, %c0_958] : memref<25x64xf32, #tpu.memory_space<vmem>>, vector<2x64xf32>
    %c7_959 = arith.constant 7 : index
    %c0_960 = arith.constant 0 : index
    %860 = vector.load %arg13[%c7_959, %c0_960] : memref<25x64xf32, #tpu.memory_space<vmem>>, vector<2x64xf32>
    %c8_961 = arith.constant 8 : index
    %c0_962 = arith.constant 0 : index
    %861 = vector.load %arg13[%c8_961, %c0_962] : memref<25x64xf32, #tpu.memory_space<vmem>>, vector<2x64xf32>
    %c10_963 = arith.constant 10 : index
    %c0_964 = arith.constant 0 : index
    %862 = vector.load %arg13[%c10_963, %c0_964] : memref<25x64xf32, #tpu.memory_space<vmem>>, vector<2x64xf32>
    %c11_965 = arith.constant 11 : index
    %c0_966 = arith.constant 0 : index
    %863 = vector.load %arg13[%c11_965, %c0_966] : memref<25x64xf32, #tpu.memory_space<vmem>>, vector<2x64xf32>
    %c12_967 = arith.constant 12 : index
    %c0_968 = arith.constant 0 : index
    %864 = vector.load %arg13[%c12_967, %c0_968] : memref<25x64xf32, #tpu.memory_space<vmem>>, vector<2x64xf32>
    %c13_969 = arith.constant 13 : index
    %c0_970 = arith.constant 0 : index
    %865 = vector.load %arg13[%c13_969, %c0_970] : memref<25x64xf32, #tpu.memory_space<vmem>>, vector<2x64xf32>
    %c15_971 = arith.constant 15 : index
    %c0_972 = arith.constant 0 : index
    %866 = vector.load %arg13[%c15_971, %c0_972] : memref<25x64xf32, #tpu.memory_space<vmem>>, vector<2x64xf32>
    %c16_973 = arith.constant 16 : index
    %c0_974 = arith.constant 0 : index
    %867 = vector.load %arg13[%c16_973, %c0_974] : memref<25x64xf32, #tpu.memory_space<vmem>>, vector<2x64xf32>
    %c17_975 = arith.constant 17 : index
    %c0_976 = arith.constant 0 : index
    %868 = vector.load %arg13[%c17_975, %c0_976] : memref<25x64xf32, #tpu.memory_space<vmem>>, vector<2x64xf32>
    %c18_977 = arith.constant 18 : index
    %c0_978 = arith.constant 0 : index
    %869 = vector.load %arg13[%c18_977, %c0_978] : memref<25x64xf32, #tpu.memory_space<vmem>>, vector<2x64xf32>
    %870 = tpu.concatenate %854, %855, %856, %857, %858, %859, %860, %861, %862, %863, %864, %865, %866, %867, %868, %869 in 1 : vector<2x64xf32>, vector<2x64xf32>, vector<2x64xf32>, vector<2x64xf32>, vector<2x64xf32>, vector<2x64xf32>, vector<2x64xf32>, vector<2x64xf32>, vector<2x64xf32>, vector<2x64xf32>, vector<2x64xf32>, vector<2x64xf32>, vector<2x64xf32>, vector<2x64xf32>, vector<2x64xf32>, vector<2x64xf32> -> vector<2x1024xf32>
    %c5_979 = arith.constant 5 : index
    %c0_980 = arith.constant 0 : index
    %871 = vector.load %arg13[%c5_979, %c0_980] : memref<25x64xf32, #tpu.memory_space<vmem>>, vector<2x64xf32>
    %c6_981 = arith.constant 6 : index
    %c0_982 = arith.constant 0 : index
    %872 = vector.load %arg13[%c6_981, %c0_982] : memref<25x64xf32, #tpu.memory_space<vmem>>, vector<2x64xf32>
    %c7_983 = arith.constant 7 : index
    %c0_984 = arith.constant 0 : index
    %873 = vector.load %arg13[%c7_983, %c0_984] : memref<25x64xf32, #tpu.memory_space<vmem>>, vector<2x64xf32>
    %c8_985 = arith.constant 8 : index
    %c0_986 = arith.constant 0 : index
    %874 = vector.load %arg13[%c8_985, %c0_986] : memref<25x64xf32, #tpu.memory_space<vmem>>, vector<2x64xf32>
    %c10_987 = arith.constant 10 : index
    %c0_988 = arith.constant 0 : index
    %875 = vector.load %arg13[%c10_987, %c0_988] : memref<25x64xf32, #tpu.memory_space<vmem>>, vector<2x64xf32>
    %c11_989 = arith.constant 11 : index
    %c0_990 = arith.constant 0 : index
    %876 = vector.load %arg13[%c11_989, %c0_990] : memref<25x64xf32, #tpu.memory_space<vmem>>, vector<2x64xf32>
    %c12_991 = arith.constant 12 : index
    %c0_992 = arith.constant 0 : index
    %877 = vector.load %arg13[%c12_991, %c0_992] : memref<25x64xf32, #tpu.memory_space<vmem>>, vector<2x64xf32>
    %c13_993 = arith.constant 13 : index
    %c0_994 = arith.constant 0 : index
    %878 = vector.load %arg13[%c13_993, %c0_994] : memref<25x64xf32, #tpu.memory_space<vmem>>, vector<2x64xf32>
    %c15_995 = arith.constant 15 : index
    %c0_996 = arith.constant 0 : index
    %879 = vector.load %arg13[%c15_995, %c0_996] : memref<25x64xf32, #tpu.memory_space<vmem>>, vector<2x64xf32>
    %c16_997 = arith.constant 16 : index
    %c0_998 = arith.constant 0 : index
    %880 = vector.load %arg13[%c16_997, %c0_998] : memref<25x64xf32, #tpu.memory_space<vmem>>, vector<2x64xf32>
    %c17_999 = arith.constant 17 : index
    %c0_1000 = arith.constant 0 : index
    %881 = vector.load %arg13[%c17_999, %c0_1000] : memref<25x64xf32, #tpu.memory_space<vmem>>, vector<2x64xf32>
    %c18_1001 = arith.constant 18 : index
    %c0_1002 = arith.constant 0 : index
    %882 = vector.load %arg13[%c18_1001, %c0_1002] : memref<25x64xf32, #tpu.memory_space<vmem>>, vector<2x64xf32>
    %c20_1003 = arith.constant 20 : index
    %c0_1004 = arith.constant 0 : index
    %883 = vector.load %arg13[%c20_1003, %c0_1004] : memref<25x64xf32, #tpu.memory_space<vmem>>, vector<2x64xf32>
    %c21_1005 = arith.constant 21 : index
    %c0_1006 = arith.constant 0 : index
    %884 = vector.load %arg13[%c21_1005, %c0_1006] : memref<25x64xf32, #tpu.memory_space<vmem>>, vector<2x64xf32>
    %c22_1007 = arith.constant 22 : index
    %c0_1008 = arith.constant 0 : index
    %885 = vector.load %arg13[%c22_1007, %c0_1008] : memref<25x64xf32, #tpu.memory_space<vmem>>, vector<2x64xf32>
    %c23_1009 = arith.constant 23 : index
    %c0_1010 = arith.constant 0 : index
    %886 = vector.load %arg13[%c23_1009, %c0_1010] : memref<25x64xf32, #tpu.memory_space<vmem>>, vector<2x64xf32>
    %887 = tpu.concatenate %871, %872, %873, %874, %875, %876, %877, %878, %879, %880, %881, %882, %883, %884, %885, %886 in 1 : vector<2x64xf32>, vector<2x64xf32>, vector<2x64xf32>, vector<2x64xf32>, vector<2x64xf32>, vector<2x64xf32>, vector<2x64xf32>, vector<2x64xf32>, vector<2x64xf32>, vector<2x64xf32>, vector<2x64xf32>, vector<2x64xf32>, vector<2x64xf32>, vector<2x64xf32>, vector<2x64xf32>, vector<2x64xf32> -> vector<2x1024xf32>
    %888 = tpu.concatenate %870, %887 in 0 : vector<2x1024xf32>, vector<2x1024xf32> -> vector<4x1024xf32>
    %889 = arith.truncf %888 : vector<4x1024xf32> to vector<4x1024xbf16>
    %c0_1011 = arith.constant 0 : index
    %c0_1012 = arith.constant 0 : index
    %890 = vector.load %arg7[%c0_1011, %c0_1012] : memref<1024x1xbf16, #tpu.memory_space<vmem>>, vector<1024x1xbf16>
    %cst_1013 = arith.constant dense<0.000000e+00> : vector<4x1xf32>
    %891 = tpu.matmul %889, %890, %cst_1013 {dimension_numbers = #tpu.dot_dimension_numbers<[1], [0], [0], [1], [0, 0, 1, 1], [], []>} : vector<4x1024xbf16>, vector<1024x1xbf16>, vector<4x1xf32> -> vector<4x1xf32>
    %c0_1014 = arith.constant 0 : index
    %c0_1015 = arith.constant 0 : index
    %892 = vector.load %arg8[%c0_1014, %c0_1015] : memref<1x1xf32, #tpu.memory_space<vmem>>, vector<1x1xf32>
    %893 = vector.broadcast %892 : vector<1x1xf32> to vector<4x1xf32>
    %894 = arith.addf %891, %893 : vector<4x1xf32>
    %895 = arith.negf %894 : vector<4x1xf32>
    %896 = math.exp %895 : vector<4x1xf32>
    %cst_1016 = arith.constant 1.000000e+00 : f32
    %897 = vector.broadcast %cst_1016 : f32 to vector<4x1xf32>
    %898 = arith.addf %897, %896 : vector<4x1xf32>
    %899 = arith.divf %897, %898 : vector<4x1xf32>
    %c0_1017 = arith.constant 0 : index
    %c0_1018 = arith.constant 0 : index
    %c0_1019 = arith.constant 0 : index
    %900 = vector.load %arg9[%c0_1017, %c0_1018, %c0_1019] : memref<1x4x1xf32, #tpu.memory_space<vmem>>, vector<1x4x1xf32>
    %901 = vector.shape_cast %900 : vector<1x4x1xf32> to vector<4x1xf32>
    %902 = vector.shape_cast %899 : vector<4x1xf32> to vector<1x4x1xf32>
    tpu.vector_store %arg9[%c0_1017, %c0_1018, %c0_1019], %902 {strides = array<i32>} : memref<1x4x1xf32, #tpu.memory_space<vmem>>, vector<1x4x1xf32>,
    return
  }
  func.func @transform_0(%arg0: i32) -> (i32, i32, i32) {
    %c0_i32 = arith.constant 0 : i32
    %c0_i32_0 = arith.constant 0 : i32
    %c0_i32_1 = arith.constant 0 : i32
    return %arg0, %c0_i32, %c0_i32_0 : i32, i32, i32
  }
  func.func @transform_1(%arg0: i32) -> (i32, i32) {
    %c0_i32 = arith.constant 0 : i32
    %c0_i32_0 = arith.constant 0 : i32
    %c0_i32_1 = arith.constant 0 : i32
    return %c0_i32, %c0_i32_0 : i32, i32
  }
  func.func @transform_2(%arg0: i32) -> (i32, i32) {
    %c0_i32 = arith.constant 0 : i32
    %c0_i32_0 = arith.constant 0 : i32
    %c0_i32_1 = arith.constant 0 : i32
    return %c0_i32, %c0_i32_0 : i32, i32
  }
  func.func @transform_3(%arg0: i32) -> (i32, i32) {
    %c0_i32 = arith.constant 0 : i32
    %c0_i32_0 = arith.constant 0 : i32
    %c0_i32_1 = arith.constant 0 : i32
    return %c0_i32, %c0_i32_0 : i32, i32
  }
  func.func @transform_4(%arg0: i32) -> (i32, i32) {
    %c0_i32 = arith.constant 0 : i32
    %c0_i32_0 = arith.constant 0 : i32
    %c0_i32_1 = arith.constant 0 : i32
    return %c0_i32, %c0_i32_0 : i32, i32
  }
  func.func @transform_5(%arg0: i32) -> (i32, i32) {
    %c0_i32 = arith.constant 0 : i32
    %c0_i32_0 = arith.constant 0 : i32
    %c0_i32_1 = arith.constant 0 : i32
    return %c0_i32, %c0_i32_0 : i32, i32
  }
  func.func @transform_6(%arg0: i32) -> (i32, i32) {
    %c0_i32 = arith.constant 0 : i32
    %c0_i32_0 = arith.constant 0 : i32
    %c0_i32_1 = arith.constant 0 : i32
    return %c0_i32, %c0_i32_0 : i32, i32
  }
  func.func @transform_7(%arg0: i32) -> (i32, i32) {
    %c0_i32 = arith.constant 0 : i32
    %c0_i32_0 = arith.constant 0 : i32
    %c0_i32_1 = arith.constant 0 : i32
    return %c0_i32, %c0_i32_0 : i32, i32
  }
  func.func @transform_8(%arg0: i32) -> (i32, i32, i32) {
    %c0_i32 = arith.constant 0 : i32
    %c0_i32_0 = arith.constant 0 : i32
    %c0_i32_1 = arith.constant 0 : i32
    return %arg0, %c0_i32, %c0_i32_0 : i32, i32, i32
  }
}

</mosaic_0001>

<llo_original>
// kernel: _lambda_.1
$region0: #{_lambda_.1}
  #allocation0 [shape = 'u32[]', space=smem, size = 0x4, offset = 0x4, fixed_abs, tag = 'smem constant byte address 0x4 - core index']
  #allocation1 [shape = 'u32[72,128]{1,0:T(1,128)}', space=vmem, size = 0x9000, scoped, tag = 'internal scratch']
  #allocation2 [shape = 'f32[324,8]{1,0:T(8,128)}', space=vmem, size = 0x29000, scoped, tag = 'scratch operand']
  #allocation3 [shape = 'f32[100,16]{1,0:T(8,128)}', space=vmem, size = 0xd000, scoped, tag = 'scratch operand']
  #allocation4 [shape = 'f32[36,32]{1,0:T(8,128)}', space=vmem, size = 0x5000, scoped, tag = 'scratch operand']
  #allocation5 [shape = 'f32[25,64]{1,0:T(8,128)}', space=vmem, size = 0x4000, scoped, tag = 'scratch operand']
  #allocation6 [shape = 'f32[1,1]{1,0:T(1,128)S(1)}', space=vmem, size = 0x200, scoped, tag = 'scoped memory for _lambda_.1']
  %s0 = inlined_call_operand.vmem [shape: f32[2,1156,3], index: 0, kind: input, shape index: {}]
  %s1 = inlined_call_operand.vmem [shape: bf16[27,8], index: 1, kind: input, shape index: {}]
  %s2 = inlined_call_operand.vmem [shape: f32[1,8], index: 2, kind: input, shape index: {}]
  %s3 = inlined_call_operand.vmem [shape: bf16[128,16], index: 3, kind: input, shape index: {}]
  %s4 = inlined_call_operand.vmem [shape: bf16[256,32], index: 4, kind: input, shape index: {}]
  %s5 = inlined_call_operand.vmem [shape: bf16[512,64], index: 5, kind: input, shape index: {}]
  %s6 = inlined_call_operand.vmem [shape: bf16[1024,1], index: 6, kind: input, shape index: {}]
  %s7 = inlined_call_operand.<no memory space> [shape: f32[1,1], index: 7, kind: input, shape index: {}]
  %s8 = inlined_call_operand.vmem [shape: f32[2,4,1], index: 8, kind: output, shape index: {}]
  %s9 = sld [smem:[#allocation0]]
  $region65: #{_lambda_.1} parent=0
    _
  %s11 = ssub.s32 1, %s9
  %s12 = scalar_select 0, %s11, %s9
  %v13 = vstv %s7
  %14 = vst [vmem:[#allocation6] sm:$0x1] %v13
  loop: start=0, step=1, limit=4
  $region2: #{_lambda_.1} parent=0 // loop_pre_header
    _
  $region3: #{_lambda_.1} parent=0 // loop_header
    %s16 = sphi 0, %s20
    %p17 = scmp.ge.s32.totalorder %s16, 4
    %s26 = sphi 0, %s28
    %s29 = sphi 0, %s26
    %s30 = sphi 0, %s29
    %s46 = sphi 0, %s30
    %s50 = sphi 0, %s50
    %s52 = sphi 0, %s50
    %s53 = sphi 0, %s52
    %s67 = sphi 0, %s53
    %s71 = sphi 0, %s71
    %s73 = sphi 0, %s71
    %s74 = sphi 0, %s73
    %s88 = sphi 0, %s74
    %s92 = sphi 0, %s92
    %s94 = sphi 0, %s92
    %s95 = sphi 0, %s94
    %s109 = sphi 0, %s95
    %s113 = sphi 0, %s113
    %s115 = sphi 0, %s113
    %s116 = sphi 0, %s115
    %s130 = sphi 0, %s116
    %s134 = sphi 0, %s134
    %s136 = sphi 0, %s134
    %s137 = sphi 0, %s136
    %s151 = sphi 0, %s137
    %s155 = sphi 0, %s155
    %s157 = sphi 0, %s155
    %s158 = sphi 0, %s157
    %s172 = sphi 0, %s158
    %s176 = sphi 0, %s176
    %s178 = sphi 0, %s176
    %s179 = sphi 0, %s178
    %s193 = sphi 0, %s179
    %s199 = sphi 0, %s201
    %s202 = sphi 0, %s199
    %s203 = sphi 0, %s202
    %s219 = sphi 0, %s203
  $region4: #{_lambda_.1} parent=0 // loop_header_branch
    %19 = sbr.rel (%p17) target = $region8
  $region5: #{_lambda_.1} parent=0 // loop_body
    %s21 = ssub.s32 %s16, 1
    %s22 = ssub.s32 %s16, 2
    %s23 = sadd.s32 %s16, 1
    %s24 = ssub.s32 %s16, %s23
    %p25 = scmp.eq.s32.totalorder %s24, 0
    %s27 = sadd.s32 %s26, 1
    %s28 = scalar_select %p25, %s26, %s27
    %p31 = pneg %p25
    %p32 = scmp.eq.s32.totalorder %s16, 1
    %p33 = por %p31, %p32
    %p34 = scmp.ne.s32.totalorder %s26, %s29
    %p35 = scmp.eq.s32.totalorder %s16, 0
    %p36 = por %p34, %p35
    %p37 = scmp.ne.s32.totalorder %s26, %s29
    %p38 = scmp.eq.s32.totalorder %s21, 1
    %p39 = por %p37, %p38
    %p40 = scmp.ne.s32.totalorder %s29, %s30
    %p41 = scmp.eq.s32.totalorder %s21, 0
    %p42 = por %p40, %p41
    %p43 = scmp.ne.s32.totalorder %s29, %s30
    %p44 = scmp.eq.s32.totalorder %s22, 1
    %p45 = por %p43, %p44
    %p47 = scmp.ne.s32.totalorder %s30, %s46
    %p48 = scmp.eq.s32.totalorder %s22, 0
    %p49 = por %p47, %p48
    %s51 = sadd.s32 %s50, 1
    %p54 = scmp.eq.s32.totalorder %s16, 1
    %p55 = scmp.ne.s32.totalorder %s50, %s52
    %p56 = scmp.eq.s32.totalorder %s16, 0
    %p57 = por %p55, %p56
    %p58 = scmp.ne.s32.totalorder %s50, %s52
    %p59 = scmp.eq.s32.totalorder %s21, 1
    %p60 = por %p58, %p59
    %p61 = scmp.ne.s32.totalorder %s52, %s53
    %p62 = scmp.eq.s32.totalorder %s21, 0
    %p63 = por %p61, %p62
    %p64 = scmp.ne.s32.totalorder %s52, %s53
    %p65 = scmp.eq.s32.totalorder %s22, 1
    %p66 = por %p64, %p65
    %p68 = scmp.ne.s32.totalorder %s53, %s67
    %p69 = scmp.eq.s32.totalorder %s22, 0
    %p70 = por %p68, %p69
    %s72 = sadd.s32 %s71, 1
    %p75 = scmp.eq.s32.totalorder %s16, 1
    %p76 = scmp.ne.s32.totalorder %s71, %s73
    %p77 = scmp.eq.s32.totalorder %s16, 0
    %p78 = por %p76, %p77
    %p79 = scmp.ne.s32.totalorder %s71, %s73
    %p80 = scmp.eq.s32.totalorder %s21, 1
    %p81 = por %p79, %p80
    %p82 = scmp.ne.s32.totalorder %s73, %s74
    %p83 = scmp.eq.s32.totalorder %s21, 0
    %p84 = por %p82, %p83
    %p85 = scmp.ne.s32.totalorder %s73, %s74
    %p86 = scmp.eq.s32.totalorder %s22, 1
    %p87 = por %p85, %p86
    %p89 = scmp.ne.s32.totalorder %s74, %s88
    %p90 = scmp.eq.s32.totalorder %s22, 0
    %p91 = por %p89, %p90
    %s93 = sadd.s32 %s92, 1
    %p96 = scmp.eq.s32.totalorder %s16, 1
    %p97 = scmp.ne.s32.totalorder %s92, %s94
    %p98 = scmp.eq.s32.totalorder %s16, 0
    %p99 = por %p97, %p98
    %p100 = scmp.ne.s32.totalorder %s92, %s94
    %p101 = scmp.eq.s32.totalorder %s21, 1
    %p102 = por %p100, %p101
    %p103 = scmp.ne.s32.totalorder %s94, %s95
    %p104 = scmp.eq.s32.totalorder %s21, 0
    %p105 = por %p103, %p104
    %p106 = scmp.ne.s32.totalorder %s94, %s95
    %p107 = scmp.eq.s32.totalorder %s22, 1
    %p108 = por %p106, %p107
    %p110 = scmp.ne.s32.totalorder %s95, %s109
    %p111 = scmp.eq.s32.totalorder %s22, 0
    %p112 = por %p110, %p111
    %s114 = sadd.s32 %s113, 1
    %p117 = scmp.eq.s32.totalorder %s16, 1
    %p118 = scmp.ne.s32.totalorder %s113, %s115
    %p119 = scmp.eq.s32.totalorder %s16, 0
    %p120 = por %p118, %p119
    %p121 = scmp.ne.s32.totalorder %s113, %s115
    %p122 = scmp.eq.s32.totalorder %s21, 1
    %p123 = por %p121, %p122
    %p124 = scmp.ne.s32.totalorder %s115, %s116
    %p125 = scmp.eq.s32.totalorder %s21, 0
    %p126 = por %p124, %p125
    %p127 = scmp.ne.s32.totalorder %s115, %s116
    %p128 = scmp.eq.s32.totalorder %s22, 1
    %p129 = por %p127, %p128
    %p131 = scmp.ne.s32.totalorder %s116, %s130
    %p132 = scmp.eq.s32.totalorder %s22, 0
    %p133 = por %p131, %p132
    %s135 = sadd.s32 %s134, 1
    %p138 = scmp.eq.s32.totalorder %s16, 1
    %p139 = scmp.ne.s32.totalorder %s134, %s136
    %p140 = scmp.eq.s32.totalorder %s16, 0
    %p141 = por %p139, %p140
    %p142 = scmp.ne.s32.totalorder %s134, %s136
    %p143 = scmp.eq.s32.totalorder %s21, 1
    %p144 = por %p142, %p143
    %p145 = scmp.ne.s32.totalorder %s136, %s137
    %p146 = scmp.eq.s32.totalorder %s21, 0
    %p147 = por %p145, %p146
    %p148 = scmp.ne.s32.totalorder %s136, %s137
    %p149 = scmp.eq.s32.totalorder %s22, 1
    %p150 = por %p148, %p149
    %p152 = scmp.ne.s32.totalorder %s137, %s151
    %p153 = scmp.eq.s32.totalorder %s22, 0
    %p154 = por %p152, %p153
    %s156 = sadd.s32 %s155, 1
    %p159 = scmp.eq.s32.totalorder %s16, 1
    %p160 = scmp.ne.s32.totalorder %s155, %s157
    %p161 = scmp.eq.s32.totalorder %s16, 0
    %p162 = por %p160, %p161
    %p163 = scmp.ne.s32.totalorder %s155, %s157
    %p164 = scmp.eq.s32.totalorder %s21, 1
    %p165 = por %p163, %p164
    %p166 = scmp.ne.s32.totalorder %s157, %s158
    %p167 = scmp.eq.s32.totalorder %s21, 0
    %p168 = por %p166, %p167
    %p169 = scmp.ne.s32.totalorder %s157, %s158
    %p170 = scmp.eq.s32.totalorder %s22, 1
    %p171 = por %p169, %p170
    %p173 = scmp.ne.s32.totalorder %s158, %s172
    %p174 = scmp.eq.s32.totalorder %s22, 0
    %p175 = por %p173, %p174
    %s177 = sadd.s32 %s176, 1
    %p180 = scmp.eq.s32.totalorder %s16, 1
    %p181 = scmp.ne.s32.totalorder %s176, %s178
    %p182 = scmp.eq.s32.totalorder %s16, 0
    %p183 = por %p181, %p182
    %p184 = scmp.ne.s32.totalorder %s176, %s178
    %p185 = scmp.eq.s32.totalorder %s21, 1
    %p186 = por %p184, %p185
    %p187 = scmp.ne.s32.totalorder %s178, %s179
    %p188 = scmp.eq.s32.totalorder %s21, 0
    %p189 = por %p187, %p188
    %p190 = scmp.ne.s32.totalorder %s178, %s179
    %p191 = scmp.eq.s32.totalorder %s22, 1
    %p192 = por %p190, %p191
    %p194 = scmp.ne.s32.totalorder %s179, %s193
    %p195 = scmp.eq.s32.totalorder %s22, 0
    %p196 = por %p194, %p195
    %s197 = ssub.s32 %s16, %s23
    %p198 = scmp.eq.s32.totalorder %s197, 0
    %s200 = sadd.s32 %s199, 1
    %s201 = scalar_select %p198, %s199, %s200
    %p204 = pneg %p198
    %p205 = scmp.eq.s32.totalorder %s16, 1
    %p206 = por %p204, %p205
    %p207 = scmp.ne.s32.totalorder %s199, %s202
    %p208 = scmp.eq.s32.totalorder %s16, 0
    %p209 = por %p207, %p208
    %p210 = scmp.ne.s32.totalorder %s199, %s202
    %p211 = scmp.eq.s32.totalorder %s21, 1
    %p212 = por %p210, %p211
    %p213 = scmp.ne.s32.totalorder %s202, %s203
    %p214 = scmp.eq.s32.totalorder %s21, 0
    %p215 = por %p213, %p214
    %p216 = scmp.ne.s32.totalorder %s202, %s203
    %p217 = scmp.eq.s32.totalorder %s22, 1
    %p218 = por %p216, %p217
    %p220 = scmp.ne.s32.totalorder %s203, %s219
    %p221 = scmp.eq.s32.totalorder %s22, 0
    %p222 = por %p220, %p221
    %p223 = scmp.le.s32.totalorder 1, %s16
    %p224 = scmp.lt.s32.totalorder %s16, 3
    %p225 = pnand %p223, %p224
    %p226 = pneg %p225
    // Predicated region
    $region9: #{_lambda_.1} parent=5 // pred_check
      _
    $region10: #{_lambda_.1} parent=5 // pred_check_branch
      %228 = sbr.rel (%p225) target = $region12
    $region11: #{_lambda_.1} parent=5 // pred_region
      %s229 = ssub.s32 %s16, 1
      // Predicated region
      $region13: #{_lambda_.1} parent=11 // pred_check
        %p230 = pneg %p63
      $region14: #{_lambda_.1} parent=11 // pred_check_branch
        %232 = sbr.rel (%p230) target = $region16
      $region15: #{_lambda_.1} parent=11 // pred_region
        _
      $region16: #{_lambda_.1} parent=11 // pred_fallthru
        _
      // Predicated region
      $region17: #{_lambda_.1} parent=11 // pred_check
        %p233 = pneg %p84
      $region18: #{_lambda_.1} parent=11 // pred_check_branch
        %235 = sbr.rel (%p233) target = $region20
      $region19: #{_lambda_.1} parent=11 // pred_region
        _
      $region20: #{_lambda_.1} parent=11 // pred_fallthru
        _
      // Predicated region
      $region21: #{_lambda_.1} parent=11 // pred_check
        %p236 = pneg %p105
      $region22: #{_lambda_.1} parent=11 // pred_check_branch
        %238 = sbr.rel (%p236) target = $region24
      $region23: #{_lambda_.1} parent=11 // pred_region
        _
      $region24: #{_lambda_.1} parent=11 // pred_fallthru
        _
      // Predicated region
      $region25: #{_lambda_.1} parent=11 // pred_check
        %p239 = pneg %p126
      $region26: #{_lambda_.1} parent=11 // pred_check_branch
        %241 = sbr.rel (%p239) target = $region28
      $region27: #{_lambda_.1} parent=11 // pred_region
        _
      $region28: #{_lambda_.1} parent=11 // pred_fallthru
        _
      // Predicated region
      $region29: #{_lambda_.1} parent=11 // pred_check
        %p242 = pneg %p147
      $region30: #{_lambda_.1} parent=11 // pred_check_branch
        %244 = sbr.rel (%p242) target = $region32
      $region31: #{_lambda_.1} parent=11 // pred_region
        _
      $region32: #{_lambda_.1} parent=11 // pred_fallthru
        _
      // Predicated region
      $region33: #{_lambda_.1} parent=11 // pred_check
        %p245 = pneg %p168
      $region34: #{_lambda_.1} parent=11 // pred_check_branch
        %247 = sbr.rel (%p245) target = $region36
      $region35: #{_lambda_.1} parent=11 // pred_region
        _
      $region36: #{_lambda_.1} parent=11 // pred_fallthru
        _
      // Predicated region
      $region37: #{_lambda_.1} parent=11 // pred_check
        %p248 = pneg %p189
      $region38: #{_lambda_.1} parent=11 // pred_check_branch
        %250 = sbr.rel (%p248) target = $region40
      $region39: #{_lambda_.1} parent=11 // pred_region
        _
      $region40: #{_lambda_.1} parent=11 // pred_fallthru
        _
    $region12: #{_lambda_.1} parent=5 // pred_fallthru
      _
    %p251 = scmp.lt.s32.totalorder %s16, 2
    // Predicated region
    $region41: #{_lambda_.1} parent=5 // pred_check
      %p252 = pneg %p251
    $region42: #{_lambda_.1} parent=5 // pred_check_branch
      %254 = sbr.rel (%p252) target = $region44
    $region43: #{_lambda_.1} parent=5 // pred_region
      // Predicated region
      $region45: #{_lambda_.1} parent=43 // pred_check
        %p255 = pneg %p36
      $region46: #{_lambda_.1} parent=43 // pred_check_branch
        %257 = sbr.rel (%p255) target = $region48
      $region47: #{_lambda_.1} parent=43 // pred_region
        %p258 = scmp.lt.s32.totalorder %s16, 1
        %s259 = scalar_select %p258, %s16, 1
        %s260 = smul.addr %s259, 145
        %s261 = smul.addr %s260, 8
        %s262 = scalar_lea.vmem %s0, %s261
      $region48: #{_lambda_.1} parent=43 // pred_fallthru
        _
    $region44: #{_lambda_.1} parent=5 // pred_fallthru
      _
    %p263 = scmp.le.s32.totalorder 1, %s16
    %p264 = scmp.lt.s32.totalorder %s16, 3
    %p265 = pnand %p263, %p264
    %p266 = pneg %p265
    // Predicated region
    $region49: #{_lambda_.1} parent=5 // pred_check
      _
    $region50: #{_lambda_.1} parent=5 // pred_check_branch
      %268 = sbr.rel (%p265) target = $region52
    $region51: #{_lambda_.1} parent=5 // pred_region
      %s269 = ssub.s32 %s16, 1
      %p270 = scmp.lt.s32.totalorder %s21, 1
      %s271 = scalar_select %p270, %s21, 1
      %s272 = smul.addr %s271, 145
      %s273 = smul.addr %s272, 8
      %s274 = scalar_lea.vmem %s0, %s273
      %p275 = pneg %p42
      %p276 = pneg %p39
      %p277 = pneg %p63
      %p278 = pneg %p60
      %p279 = pneg %p84
      %p280 = pneg %p81
      %p281 = pneg %p105
      %p282 = pneg %p102
      %p283 = pneg %p126
      %p284 = pneg %p123
      %p285 = pneg %p147
      %p286 = pneg %p144
      %p287 = pneg %p168
      %p288 = pneg %p165
      %p289 = pneg %p189
      %p290 = pneg %p186
      %p291 = pneg %p215
      %p292 = pneg %p212
      %p293 = scmp.lt.s32.totalorder %s21, 1
      %s294 = scalar_select %p293, %s21, 1
      %s295 = smul.addr %s294, 4
      %s296 = scalar_lea.vmem %s8, %s295
      %p297 = scmp.lt.s32.totalorder %s21, 1
      %s298 = scalar_select %p297, %s21, 1
      %s299 = smul.addr %s298, 145
      %s300 = smul.addr %s299, 8
      %s301 = scalar_lea.vmem %s0, %s300
      %p302 = scmp.lt.s32.totalorder %s21, 1
      %s303 = scalar_select %p302, %s21, 1
      %s304 = smul.addr %s303, 4
      %s305 = scalar_lea.vmem %s8, %s304
      %v307 = vld [vmem:[%s301] ss:$2 sm:$0xff]
      %s308 = scalar_lea.vmem %s301, 16
      %v309 = vld [vmem:[%s308] ss:$2 sm:$0xff]
      %s310 = scalar_lea.vmem %s301, 1
      %v311 = vld [vmem:[%s310] ss:$2 sm:$0xff]
      %s312 = scalar_lea.vmem %s301, 17
      %v313 = vld [vmem:[%s312] ss:$2 sm:$0xff]
      %s314 = scalar_lea.vmem %s301, 2
      %v315 = vld [vmem:[%s314] ss:$2 sm:$0xff]
      %s316 = scalar_lea.vmem %s301, 18
      %v317 = vld [vmem:[%s316] ss:$2 sm:$0xff]
      %s318 = scalar_lea.vmem %s301, 34
      %v319 = vld [vmem:[%s318] ss:$2 sm:$0xff]
      %s320 = scalar_lea.vmem %s301, 50
      %v321 = vld [vmem:[%s320] ss:$2 sm:$0xff]
      %s322 = scalar_lea.vmem %s301, 35
      %v323 = vld [vmem:[%s322] ss:$2 sm:$0xff]
      %s324 = scalar_lea.vmem %s301, 51
      %v325 = vld [vmem:[%s324] ss:$2 sm:$0xff]
      %s326 = scalar_lea.vmem %s301, 36
      %v327 = vld [vmem:[%s326] ss:$2 sm:$0xff]
      %s328 = scalar_lea.vmem %s301, 52
      %v329 = vld [vmem:[%s328] ss:$2 sm:$0xff]
      %s330 = scalar_lea.vmem %s301, 68
      %v331 = vld [vmem:[%s330] ss:$2 sm:$0xff]
      %s332 = scalar_lea.vmem %s301, 84
      %v333 = vld [vmem:[%s332] ss:$2 sm:$0xff]
      %s334 = scalar_lea.vmem %s301, 69
      %v335 = vld [vmem:[%s334] ss:$2 sm:$0xff]
      %s336 = scalar_lea.vmem %s301, 85
      %v337 = vld [vmem:[%s336] ss:$2 sm:$0xff]
      %s338 = scalar_lea.vmem %s301, 70
      %v339 = vld [vmem:[%s338] ss:$2 sm:$0xff]
      %s340 = scalar_lea.vmem %s301, 86
      %v341 = vld [vmem:[%s340] ss:$2 sm:$0xff]
      %344 = vrot.lane.b32.xlu0 %v311, 3
      %v345 = vpop.permute.xlu0 %344
      %346 = vrot.lane.b32.xlu0 %v313, 3
      %v347 = vpop.permute.xlu0 %346
      %352 = vrot.lane.b32.xlu0 %v315, 6
      %v353 = vpop.permute.xlu0 %352
      %354 = vrot.lane.b32.xlu0 %v317, 6
      %v355 = vpop.permute.xlu0 %354
      %360 = vrot.lane.b32.xlu0 %v319, 9
      %v361 = vpop.permute.xlu0 %360
      %362 = vrot.lane.b32.xlu0 %v321, 9
      %v363 = vpop.permute.xlu0 %362
      %368 = vrot.lane.b32.xlu0 %v323, 12
      %v369 = vpop.permute.xlu0 %368
      %370 = vrot.lane.b32.xlu0 %v325, 12
      %v371 = vpop.permute.xlu0 %370
      %376 = vrot.lane.b32.xlu0 %v327, 15
      %v377 = vpop.permute.xlu0 %376
      %378 = vrot.lane.b32.xlu0 %v329, 15
      %v379 = vpop.permute.xlu0 %378
      %384 = vrot.lane.b32.xlu0 %v331, 18
      %v385 = vpop.permute.xlu0 %384
      %386 = vrot.lane.b32.xlu0 %v333, 18
      %v387 = vpop.permute.xlu0 %386
      %392 = vrot.lane.b32.xlu0 %v335, 21
      %v393 = vpop.permute.xlu0 %392
      %394 = vrot.lane.b32.xlu0 %v337, 21
      %v395 = vpop.permute.xlu0 %394
      %400 = vrot.lane.b32.xlu0 %v339, 24
      %v401 = vpop.permute.xlu0 %400
      %402 = vrot.lane.b32.xlu0 %v341, 24
      %v403 = vpop.permute.xlu0 %402
      %vm406 = vcmask 23552
      %v407 = vsel %vm406, %v307, %v345
      %v408 = vsel %vm406, %v309, %v347
      %vm409 = vcmask 48128
      %v410 = vsel %vm409, %v407, %v353
      %v411 = vsel %vm409, %v408, %v355
      %vm412 = vcmask 72704
      %v413 = vsel %vm412, %v410, %v361
      %v414 = vsel %vm412, %v411, %v363
      %vm415 = vcmask 97280
      %v416 = vsel %vm415, %v413, %v369
      %v417 = vsel %vm415, %v414, %v371
      %vm418 = vcmask 121856
      %v419 = vsel %vm418, %v416, %v377
      %v420 = vsel %vm418, %v417, %v379
      %vm421 = vcmask 146432
      %v422 = vsel %vm421, %v419, %v385
      %v423 = vsel %vm421, %v420, %v387
      %vm424 = vcmask 171008
      %v425 = vsel %vm424, %v422, %v393
      %v426 = vsel %vm424, %v423, %v395
      %vm427 = vcmask 195584
      %v428 = vsel %vm427, %v425, %v401
      %v429 = vsel %vm427, %v426, %v403
      %s430 = scalar_lea.vmem %s301, 102
      %v431 = vld [vmem:[%s430] ss:$2 sm:$0xff]
      %s432 = scalar_lea.vmem %s301, 118
      %v433 = vld [vmem:[%s432] ss:$2 sm:$0xff]
      %s434 = scalar_lea.vmem %s301, 103
      %v435 = vld [vmem:[%s434] ss:$2 sm:$0xff]
      %s436 = scalar_lea.vmem %s301, 119
      %v437 = vld [vmem:[%s436] ss:$2 sm:$0xff]
      %s438 = scalar_lea.vmem %s301, 104
      %v439 = vld [vmem:[%s438] ss:$2 sm:$0xff]
      %s440 = scalar_lea.vmem %s301, 120
      %v441 = vld [vmem:[%s440] ss:$2 sm:$0xff]
      %s442 = scalar_lea.vmem %s301, 136
      %v443 = vld [vmem:[%s442] ss:$2 sm:$0xff]
      %s444 = scalar_lea.vmem %s301, 152
      %v445 = vld [vmem:[%s444] ss:$2 sm:$0xff]
      %s446 = scalar_lea.vmem %s301, 137
      %v447 = vld [vmem:[%s446] ss:$2 sm:$0xff]
      %s448 = scalar_lea.vmem %s301, 153
      %v449 = vld [vmem:[%s448] ss:$2 sm:$0xff]
      %s450 = scalar_lea.vmem %s301, 138
      %v451 = vld [vmem:[%s450] ss:$2 sm:$0xff]
      %s452 = scalar_lea.vmem %s301, 154
      %v453 = vld [vmem:[%s452] ss:$2 sm:$0xff]
      %454 = vrot.lane.b32.xlu0 %v335, 3
      %v455 = vpop.permute.xlu0 %454
      %456 = vrot.lane.b32.xlu0 %v337, 3
      %v457 = vpop.permute.xlu0 %456
      %460 = vrot.lane.b32.xlu0 %v339, 6
      %v461 = vpop.permute.xlu0 %460
      %462 = vrot.lane.b32.xlu0 %v341, 6
      %v463 = vpop.permute.xlu0 %462
      %468 = vrot.lane.b32.xlu0 %v431, 9
      %v469 = vpop.permute.xlu0 %468
      %470 = vrot.lane.b32.xlu0 %v433, 9
      %v471 = vpop.permute.xlu0 %470
      %476 = vrot.lane.b32.xlu0 %v435, 12
      %v477 = vpop.permute.xlu0 %476
      %478 = vrot.lane.b32.xlu0 %v437, 12
      %v479 = vpop.permute.xlu0 %478
      %484 = vrot.lane.b32.xlu0 %v439, 15
      %v485 = vpop.permute.xlu0 %484
      %486 = vrot.lane.b32.xlu0 %v441, 15
      %v487 = vpop.permute.xlu0 %486
      %492 = vrot.lane.b32.xlu0 %v443, 18
      %v493 = vpop.permute.xlu0 %492
      %494 = vrot.lane.b32.xlu0 %v445, 18
      %v495 = vpop.permute.xlu0 %494
      %500 = vrot.lane.b32.xlu0 %v447, 21
      %v501 = vpop.permute.xlu0 %500
      %502 = vrot.lane.b32.xlu0 %v449, 21
      %v503 = vpop.permute.xlu0 %502
      %508 = vrot.lane.b32.xlu0 %v451, 24
      %v509 = vpop.permute.xlu0 %508
      %510 = vrot.lane.b32.xlu0 %v453, 24
      %v511 = vpop.permute.xlu0 %510
      %v514 = vsel %vm406, %v331, %v455
      %v515 = vsel %vm406, %v333, %v457
      %v516 = vsel %vm409, %v514, %v461
      %v517 = vsel %vm409, %v515, %v463
      %v518 = vsel %vm412, %v516, %v469
      %v519 = vsel %vm412, %v517, %v471
      %v520 = vsel %vm415, %v518, %v477
      %v521 = vsel %vm415, %v519, %v479
      %v522 = vsel %vm418, %v520, %v485
      %v523 = vsel %vm418, %v521, %v487
      %v524 = vsel %vm421, %v522, %v493
      %v525 = vsel %vm421, %v523, %v495
      %v526 = vsel %vm424, %v524, %v501
      %v527 = vsel %vm424, %v525, %v503
      %v528 = vsel %vm427, %v526, %v509
      %v529 = vsel %vm427, %v527, %v511
      %s530 = scalar_lea.vmem %s301, 170
      %v531 = vld [vmem:[%s530] ss:$2 sm:$0xff]
      %s532 = scalar_lea.vmem %s301, 186
      %v533 = vld [vmem:[%s532] ss:$2 sm:$0xff]
      %s534 = scalar_lea.vmem %s301, 171
      %v535 = vld [vmem:[%s534] ss:$2 sm:$0xff]
      %s536 = scalar_lea.vmem %s301, 187
      %v537 = vld [vmem:[%s536] ss:$2 sm:$0xff]
      %s538 = scalar_lea.vmem %s301, 172
      %v539 = vld [vmem:[%s538] ss:$2 sm:$0xff]
      %s540 = scalar_lea.vmem %s301, 188
      %v541 = vld [vmem:[%s540] ss:$2 sm:$0xff]
      %s542 = scalar_lea.vmem %s301, 204
      %v543 = vld [vmem:[%s542] ss:$2 sm:$0xff]
      %s544 = scalar_lea.vmem %s301, 220
      %v545 = vld [vmem:[%s544] ss:$2 sm:$0xff]
      %s546 = scalar_lea.vmem %s301, 205
      %v547 = vld [vmem:[%s546] ss:$2 sm:$0xff]
      %s548 = scalar_lea.vmem %s301, 221
      %v549 = vld [vmem:[%s548] ss:$2 sm:$0xff]
      %s550 = scalar_lea.vmem %s301, 206
      %v551 = vld [vmem:[%s550] ss:$2 sm:$0xff]
      %s552 = scalar_lea.vmem %s301, 222
      %v553 = vld [vmem:[%s552] ss:$2 sm:$0xff]
      %554 = vrot.lane.b32.xlu0 %v447, 3
      %v555 = vpop.permute.xlu0 %554
      %556 = vrot.lane.b32.xlu0 %v449, 3
      %v557 = vpop.permute.xlu0 %556
      %560 = vrot.lane.b32.xlu0 %v451, 6
      %v561 = vpop.permute.xlu0 %560
      %562 = vrot.lane.b32.xlu0 %v453, 6
      %v563 = vpop.permute.xlu0 %562
      %568 = vrot.lane.b32.xlu0 %v531, 9
      %v569 = vpop.permute.xlu0 %568
      %570 = vrot.lane.b32.xlu0 %v533, 9
      %v571 = vpop.permute.xlu0 %570
      %576 = vrot.lane.b32.xlu0 %v535, 12
      %v577 = vpop.permute.xlu0 %576
      %578 = vrot.lane.b32.xlu0 %v537, 12
      %v579 = vpop.permute.xlu0 %578
      %584 = vrot.lane.b32.xlu0 %v539, 15
      %v585 = vpop.permute.xlu0 %584
      %586 = vrot.lane.b32.xlu0 %v541, 15
      %v587 = vpop.permute.xlu0 %586
      %592 = vrot.lane.b32.xlu0 %v543, 18
      %v593 = vpop.permute.xlu0 %592
      %594 = vrot.lane.b32.xlu0 %v545, 18
      %v595 = vpop.permute.xlu0 %594
      %600 = vrot.lane.b32.xlu0 %v547, 21
      %v601 = vpop.permute.xlu0 %600
      %602 = vrot.lane.b32.xlu0 %v549, 21
      %v603 = vpop.permute.xlu0 %602
      %608 = vrot.lane.b32.xlu0 %v551, 24
      %v609 = vpop.permute.xlu0 %608
      %610 = vrot.lane.b32.xlu0 %v553, 24
      %v611 = vpop.permute.xlu0 %610
      %v614 = vsel %vm406, %v443, %v555
      %v615 = vsel %vm406, %v445, %v557
      %v616 = vsel %vm409, %v614, %v561
      %v617 = vsel %vm409, %v615, %v563
      %v618 = vsel %vm412, %v616, %v569
      %v619 = vsel %vm412, %v617, %v571
      %v620 = vsel %vm415, %v618, %v577
      %v621 = vsel %vm415, %v619, %v579
      %v622 = vsel %vm418, %v620, %v585
      %v623 = vsel %vm418, %v621, %v587
      %v624 = vsel %vm421, %v622, %v593
      %v625 = vsel %vm421, %v623, %v595
      %v626 = vsel %vm424, %v624, %v601
      %v627 = vsel %vm424, %v625, %v603
      %v628 = vsel %vm427, %v626, %v609
      %v629 = vsel %vm427, %v627, %v611
      %s630 = scalar_lea.vmem %s301, 238
      %v631 = vld [vmem:[%s630] ss:$2 sm:$0xff]
      %s632 = scalar_lea.vmem %s301, 254
      %v633 = vld [vmem:[%s632] ss:$2 sm:$0xff]
      %s634 = scalar_lea.vmem %s301, 239
      %v635 = vld [vmem:[%s634] ss:$2 sm:$0xff]
      %s636 = scalar_lea.vmem %s301, 255
      %v637 = vld [vmem:[%s636] ss:$2 sm:$0xff]
      %s638 = scalar_lea.vmem %s301, 240
      %v639 = vld [vmem:[%s638] ss:$2 sm:$0xff]
      %s640 = scalar_lea.vmem %s301, 256
      %v641 = vld [vmem:[%s640] ss:$2 sm:$0xff]
      %s642 = scalar_lea.vmem %s301, 272
      %v643 = vld [vmem:[%s642] ss:$2 sm:$0xff]
      %s644 = scalar_lea.vmem %s301, 288
      %v645 = vld [vmem:[%s644] ss:$2 sm:$0xff]
      %s646 = scalar_lea.vmem %s301, 273
      %v647 = vld [vmem:[%s646] ss:$2 sm:$0xff]
      %s648 = scalar_lea.vmem %s301, 289
      %v649 = vld [vmem:[%s648] ss:$2 sm:$0xff]
      %s650 = scalar_lea.vmem %s301, 274
      %v651 = vld [vmem:[%s650] ss:$2 sm:$0xff]
      %s652 = scalar_lea.vmem %s301, 290
      %v653 = vld [vmem:[%s652] ss:$2 sm:$0xff]
      %654 = vrot.lane.b32.xlu0 %v547, 3
      %v655 = vpop.permute.xlu0 %654
      %656 = vrot.lane.b32.xlu0 %v549, 3
      %v657 = vpop.permute.xlu0 %656
      %660 = vrot.lane.b32.xlu0 %v551, 6
      %v661 = vpop.permute.xlu0 %660
      %662 = vrot.lane.b32.xlu0 %v553, 6
      %v663 = vpop.permute.xlu0 %662
      %668 = vrot.lane.b32.xlu0 %v631, 9
      %v669 = vpop.permute.xlu0 %668
      %670 = vrot.lane.b32.xlu0 %v633, 9
      %v671 = vpop.permute.xlu0 %670
      %676 = vrot.lane.b32.xlu0 %v635, 12
      %v677 = vpop.permute.xlu0 %676
      %678 = vrot.lane.b32.xlu0 %v637, 12
      %v679 = vpop.permute.xlu0 %678
      %684 = vrot.lane.b32.xlu0 %v639, 15
      %v685 = vpop.permute.xlu0 %684
      %686 = vrot.lane.b32.xlu0 %v641, 15
      %v687 = vpop.permute.xlu0 %686
      %692 = vrot.lane.b32.xlu0 %v643, 18
      %v693 = vpop.permute.xlu0 %692
      %694 = vrot.lane.b32.xlu0 %v645, 18
      %v695 = vpop.permute.xlu0 %694
      %700 = vrot.lane.b32.xlu0 %v647, 21
      %v701 = vpop.permute.xlu0 %700
      %702 = vrot.lane.b32.xlu0 %v649, 21
      %v703 = vpop.permute.xlu0 %702
      %708 = vrot.lane.b32.xlu0 %v651, 24
      %v709 = vpop.permute.xlu0 %708
      %710 = vrot.lane.b32.xlu0 %v653, 24
      %v711 = vpop.permute.xlu0 %710
      %v714 = vsel %vm406, %v543, %v655
      %v715 = vsel %vm406, %v545, %v657
      %v716 = vsel %vm409, %v714, %v661
      %v717 = vsel %vm409, %v715, %v663
      %v718 = vsel %vm412, %v716, %v669
      %v719 = vsel %vm412, %v717, %v671
      %v720 = vsel %vm415, %v718, %v677
      %v721 = vsel %vm415, %v719, %v679
      %v722 = vsel %vm418, %v720, %v685
      %v723 = vsel %vm418, %v721, %v687
      %v724 = vsel %vm421, %v722, %v693
      %v725 = vsel %vm421, %v723, %v695
      %v726 = vsel %vm424, %v724, %v701
      %v727 = vsel %vm424, %v725, %v703
      %v728 = vsel %vm427, %v726, %v709
      %v729 = vsel %vm427, %v727, %v711
      %s730 = scalar_lea.vmem %s301, 306
      %v731 = vld [vmem:[%s730] ss:$2 sm:$0xff]
      %s732 = scalar_lea.vmem %s301, 322
      %v733 = vld [vmem:[%s732] ss:$2 sm:$0xff]
      %s734 = scalar_lea.vmem %s301, 307
      %v735 = vld [vmem:[%s734] ss:$2 sm:$0xff]
      %s736 = scalar_lea.vmem %s301, 323
      %v737 = vld [vmem:[%s736] ss:$2 sm:$0xff]
      %s738 = scalar_lea.vmem %s301, 308
      %v739 = vld [vmem:[%s738] ss:$2 sm:$0xff]
      %s740 = scalar_lea.vmem %s301, 324
      %v741 = vld [vmem:[%s740] ss:$2 sm:$0xff]
      %s742 = scalar_lea.vmem %s301, 340
      %v743 = vld [vmem:[%s742] ss:$2 sm:$0xff]
      %s744 = scalar_lea.vmem %s301, 356
      %v745 = vld [vmem:[%s744] ss:$2 sm:$0xff]
      %s746 = scalar_lea.vmem %s301, 341
      %v747 = vld [vmem:[%s746] ss:$2 sm:$0xff]
      %s748 = scalar_lea.vmem %s301, 357
      %v749 = vld [vmem:[%s748] ss:$2 sm:$0xff]
      %s750 = scalar_lea.vmem %s301, 342
      %v751 = vld [vmem:[%s750] ss:$2 sm:$0xff]
      %s752 = scalar_lea.vmem %s301, 358
      %v753 = vld [vmem:[%s752] ss:$2 sm:$0xff]
      %754 = vrot.lane.b32.xlu0 %v647, 3
      %v755 = vpop.permute.xlu0 %754
      %756 = vrot.lane.b32.xlu0 %v649, 3
      %v757 = vpop.permute.xlu0 %756
      %760 = vrot.lane.b32.xlu0 %v651, 6
      %v761 = vpop.permute.xlu0 %760
      %762 = vrot.lane.b32.xlu0 %v653, 6
      %v763 = vpop.permute.xlu0 %762
      %768 = vrot.lane.b32.xlu0 %v731, 9
      %v769 = vpop.permute.xlu0 %768
      %770 = vrot.lane.b32.xlu0 %v733, 9
      %v771 = vpop.permute.xlu0 %770
      %776 = vrot.lane.b32.xlu0 %v735, 12
      %v777 = vpop.permute.xlu0 %776
      %778 = vrot.lane.b32.xlu0 %v737, 12
      %v779 = vpop.permute.xlu0 %778
      %784 = vrot.lane.b32.xlu0 %v739, 15
      %v785 = vpop.permute.xlu0 %784
      %786 = vrot.lane.b32.xlu0 %v741, 15
      %v787 = vpop.permute.xlu0 %786
      %792 = vrot.lane.b32.xlu0 %v743, 18
      %v793 = vpop.permute.xlu0 %792
      %794 = vrot.lane.b32.xlu0 %v745, 18
      %v795 = vpop.permute.xlu0 %794
      %800 = vrot.lane.b32.xlu0 %v747, 21
      %v801 = vpop.permute.xlu0 %800
      %802 = vrot.lane.b32.xlu0 %v749, 21
      %v803 = vpop.permute.xlu0 %802
      %808 = vrot.lane.b32.xlu0 %v751, 24
      %v809 = vpop.permute.xlu0 %808
      %810 = vrot.lane.b32.xlu0 %v753, 24
      %v811 = vpop.permute.xlu0 %810
      %v814 = vsel %vm406, %v643, %v755
      %v815 = vsel %vm406, %v645, %v757
      %v816 = vsel %vm409, %v814, %v761
      %v817 = vsel %vm409, %v815, %v763
      %v818 = vsel %vm412, %v816, %v769
      %v819 = vsel %vm412, %v817, %v771
      %v820 = vsel %vm415, %v818, %v777
      %v821 = vsel %vm415, %v819, %v779
      %v822 = vsel %vm418, %v820, %v785
      %v823 = vsel %vm418, %v821, %v787
      %v824 = vsel %vm421, %v822, %v793
      %v825 = vsel %vm421, %v823, %v795
      %v826 = vsel %vm424, %v824, %v801
      %v827 = vsel %vm424, %v825, %v803
      %v828 = vsel %vm427, %v826, %v809
      %v829 = vsel %vm427, %v827, %v811
      %s830 = scalar_lea.vmem %s301, 374
      %v831 = vld [vmem:[%s830] ss:$2 sm:$0xff]
      %s832 = scalar_lea.vmem %s301, 390
      %v833 = vld [vmem:[%s832] ss:$2 sm:$0xff]
      %s834 = scalar_lea.vmem %s301, 375
      %v835 = vld [vmem:[%s834] ss:$2 sm:$0xff]
      %s836 = scalar_lea.vmem %s301, 391
      %v837 = vld [vmem:[%s836] ss:$2 sm:$0xff]
      %s838 = scalar_lea.vmem %s301, 376
      %v839 = vld [vmem:[%s838] ss:$2 sm:$0xff]
      %s840 = scalar_lea.vmem %s301, 392
      %v841 = vld [vmem:[%s840] ss:$2 sm:$0xff]
      %s842 = scalar_lea.vmem %s301, 408
      %v843 = vld [vmem:[%s842] ss:$2 sm:$0xff]
      %s844 = scalar_lea.vmem %s301, 424
      %v845 = vld [vmem:[%s844] ss:$2 sm:$0xff]
      %s846 = scalar_lea.vmem %s301, 409
      %v847 = vld [vmem:[%s846] ss:$2 sm:$0xff]
      %s848 = scalar_lea.vmem %s301, 425
      %v849 = vld [vmem:[%s848] ss:$2 sm:$0xff]
      %s850 = scalar_lea.vmem %s301, 410
      %v851 = vld [vmem:[%s850] ss:$2 sm:$0xff]
      %s852 = scalar_lea.vmem %s301, 426
      %v853 = vld [vmem:[%s852] ss:$2 sm:$0xff]
      %854 = vrot.lane.b32.xlu0 %v747, 3
      %v855 = vpop.permute.xlu0 %854
      %856 = vrot.lane.b32.xlu0 %v749, 3
      %v857 = vpop.permute.xlu0 %856
      %860 = vrot.lane.b32.xlu0 %v751, 6
      %v861 = vpop.permute.xlu0 %860
      %862 = vrot.lane.b32.xlu0 %v753, 6
      %v863 = vpop.permute.xlu0 %862
      %868 = vrot.lane.b32.xlu0 %v831, 9
      %v869 = vpop.permute.xlu0 %868
      %870 = vrot.lane.b32.xlu0 %v833, 9
      %v871 = vpop.permute.xlu0 %870
      %876 = vrot.lane.b32.xlu0 %v835, 12
      %v877 = vpop.permute.xlu0 %876
      %878 = vrot.lane.b32.xlu0 %v837, 12
      %v879 = vpop.permute.xlu0 %878
      %884 = vrot.lane.b32.xlu0 %v839, 15
      %v885 = vpop.permute.xlu0 %884
      %886 = vrot.lane.b32.xlu0 %v841, 15
      %v887 = vpop.permute.xlu0 %886
      %892 = vrot.lane.b32.xlu0 %v843, 18
      %v893 = vpop.permute.xlu0 %892
      %894 = vrot.lane.b32.xlu0 %v845, 18
      %v895 = vpop.permute.xlu0 %894
      %900 = vrot.lane.b32.xlu0 %v847, 21
      %v901 = vpop.permute.xlu0 %900
      %902 = vrot.lane.b32.xlu0 %v849, 21
      %v903 = vpop.permute.xlu0 %902
      %908 = vrot.lane.b32.xlu0 %v851, 24
      %v909 = vpop.permute.xlu0 %908
      %910 = vrot.lane.b32.xlu0 %v853, 24
      %v911 = vpop.permute.xlu0 %910
      %v914 = vsel %vm406, %v743, %v855
      %v915 = vsel %vm406, %v745, %v857
      %v916 = vsel %vm409, %v914, %v861
      %v917 = vsel %vm409, %v915, %v863
      %v918 = vsel %vm412, %v916, %v869
      %v919 = vsel %vm412, %v917, %v871
      %v920 = vsel %vm415, %v918, %v877
      %v921 = vsel %vm415, %v919, %v879
      %v922 = vsel %vm418, %v920, %v885
      %v923 = vsel %vm418, %v921, %v887
      %v924 = vsel %vm421, %v922, %v893
      %v925 = vsel %vm421, %v923, %v895
      %v926 = vsel %vm424, %v924, %v901
      %v927 = vsel %vm424, %v925, %v903
      %v928 = vsel %vm427, %v926, %v909
      %v929 = vsel %vm427, %v927, %v911
      %s930 = scalar_lea.vmem %s301, 442
      %v931 = vld [vmem:[%s930] ss:$2 sm:$0xff]
      %s932 = scalar_lea.vmem %s301, 458
      %v933 = vld [vmem:[%s932] ss:$2 sm:$0xff]
      %s934 = scalar_lea.vmem %s301, 443
      %v935 = vld [vmem:[%s934] ss:$2 sm:$0xff]
      %s936 = scalar_lea.vmem %s301, 459
      %v937 = vld [vmem:[%s936] ss:$2 sm:$0xff]
      %s938 = scalar_lea.vmem %s301, 444
      %v939 = vld [vmem:[%s938] ss:$2 sm:$0xff]
      %s940 = scalar_lea.vmem %s301, 460
      %v941 = vld [vmem:[%s940] ss:$2 sm:$0xff]
      %s942 = scalar_lea.vmem %s301, 476
      %v943 = vld [vmem:[%s942] ss:$2 sm:$0xff]
      %s944 = scalar_lea.vmem %s301, 492
      %v945 = vld [vmem:[%s944] ss:$2 sm:$0xff]
      %s946 = scalar_lea.vmem %s301, 477
      %v947 = vld [vmem:[%s946] ss:$2 sm:$0xff]
      %s948 = scalar_lea.vmem %s301, 493
      %v949 = vld [vmem:[%s948] ss:$2 sm:$0xff]
      %s950 = scalar_lea.vmem %s301, 478
      %v951 = vld [vmem:[%s950] ss:$2 sm:$0xff]
      %s952 = scalar_lea.vmem %s301, 494
      %v953 = vld [vmem:[%s952] ss:$2 sm:$0xff]
      %954 = vrot.lane.b32.xlu0 %v847, 3
      %v955 = vpop.permute.xlu0 %954
      %956 = vrot.lane.b32.xlu0 %v849, 3
      %v957 = vpop.permute.xlu0 %956
      %960 = vrot.lane.b32.xlu0 %v851, 6
      %v961 = vpop.permute.xlu0 %960
      %962 = vrot.lane.b32.xlu0 %v853, 6
      %v963 = vpop.permute.xlu0 %962
      %968 = vrot.lane.b32.xlu0 %v931, 9
      %v969 = vpop.permute.xlu0 %968
      %970 = vrot.lane.b32.xlu0 %v933, 9
      %v971 = vpop.permute.xlu0 %970
      %976 = vrot.lane.b32.xlu0 %v935, 12
      %v977 = vpop.permute.xlu0 %976
      %978 = vrot.lane.b32.xlu0 %v937, 12
      %v979 = vpop.permute.xlu0 %978
      %984 = vrot.lane.b32.xlu0 %v939, 15
      %v985 = vpop.permute.xlu0 %984
      %986 = vrot.lane.b32.xlu0 %v941, 15
      %v987 = vpop.permute.xlu0 %986
      %992 = vrot.lane.b32.xlu0 %v943, 18
      %v993 = vpop.permute.xlu0 %992
      %994 = vrot.lane.b32.xlu0 %v945, 18
      %v995 = vpop.permute.xlu0 %994
      %1000 = vrot.lane.b32.xlu0 %v947, 21
      %v1001 = vpop.permute.xlu0 %1000
      %1002 = vrot.lane.b32.xlu0 %v949, 21
      %v1003 = vpop.permute.xlu0 %1002
      %1008 = vrot.lane.b32.xlu0 %v951, 24
      %v1009 = vpop.permute.xlu0 %1008
      %1010 = vrot.lane.b32.xlu0 %v953, 24
      %v1011 = vpop.permute.xlu0 %1010
      %v1014 = vsel %vm406, %v843, %v955
      %v1015 = vsel %vm406, %v845, %v957
      %v1016 = vsel %vm409, %v1014, %v961
      %v1017 = vsel %vm409, %v1015, %v963
      %v1018 = vsel %vm412, %v1016, %v969
      %v1019 = vsel %vm412, %v1017, %v971
      %v1020 = vsel %vm415, %v1018, %v977
      %v1021 = vsel %vm415, %v1019, %v979
      %v1022 = vsel %vm418, %v1020, %v985
      %v1023 = vsel %vm418, %v1021, %v987
      %v1024 = vsel %vm421, %v1022, %v993
      %v1025 = vsel %vm421, %v1023, %v995
      %v1026 = vsel %vm424, %v1024, %v1001
      %v1027 = vsel %vm424, %v1025, %v1003
      %v1028 = vsel %vm427, %v1026, %v1009
      %v1029 = vsel %vm427, %v1027, %v1011
      %s1030 = scalar_lea.vmem %s301, 510
      %v1031 = vld [vmem:[%s1030] ss:$2 sm:$0xff]
      %s1032 = scalar_lea.vmem %s301, 526
      %v1033 = vld [vmem:[%s1032] ss:$2 sm:$0xff]
      %s1034 = scalar_lea.vmem %s301, 511
      %v1035 = vld [vmem:[%s1034] ss:$2 sm:$0xff]
      %s1036 = scalar_lea.vmem %s301, 527
      %v1037 = vld [vmem:[%s1036] ss:$2 sm:$0xff]
      %s1038 = scalar_lea.vmem %s301, 512
      %v1039 = vld [vmem:[%s1038] ss:$2 sm:$0xff]
      %s1040 = scalar_lea.vmem %s301, 528
      %v1041 = vld [vmem:[%s1040] ss:$2 sm:$0xff]
      %s1042 = scalar_lea.vmem %s301, 544
      %v1043 = vld [vmem:[%s1042] ss:$2 sm:$0xff]
      %s1044 = scalar_lea.vmem %s301, 560
      %v1045 = vld [vmem:[%s1044] ss:$2 sm:$0xff]
      %s1046 = scalar_lea.vmem %s301, 545
      %v1047 = vld [vmem:[%s1046] ss:$2 sm:$0xff]
      %s1048 = scalar_lea.vmem %s301, 561
      %v1049 = vld [vmem:[%s1048] ss:$2 sm:$0xff]
      %s1050 = scalar_lea.vmem %s301, 546
      %v1051 = vld [vmem:[%s1050] ss:$2 sm:$0xff]
      %s1052 = scalar_lea.vmem %s301, 562
      %v1053 = vld [vmem:[%s1052] ss:$2 sm:$0xff]
      %1054 = vrot.lane.b32.xlu0 %v947, 3
      %v1055 = vpop.permute.xlu0 %1054
      %1056 = vrot.lane.b32.xlu0 %v949, 3
      %v1057 = vpop.permute.xlu0 %1056
      %1060 = vrot.lane.b32.xlu0 %v951, 6
      %v1061 = vpop.permute.xlu0 %1060
      %1062 = vrot.lane.b32.xlu0 %v953, 6
      %v1063 = vpop.permute.xlu0 %1062
      %1068 = vrot.lane.b32.xlu0 %v1031, 9
      %v1069 = vpop.permute.xlu0 %1068
      %1070 = vrot.lane.b32.xlu0 %v1033, 9
      %v1071 = vpop.permute.xlu0 %1070
      %1076 = vrot.lane.b32.xlu0 %v1035, 12
      %v1077 = vpop.permute.xlu0 %1076
      %1078 = vrot.lane.b32.xlu0 %v1037, 12
      %v1079 = vpop.permute.xlu0 %1078
      %1084 = vrot.lane.b32.xlu0 %v1039, 15
      %v1085 = vpop.permute.xlu0 %1084
      %1086 = vrot.lane.b32.xlu0 %v1041, 15
      %v1087 = vpop.permute.xlu0 %1086
      %1092 = vrot.lane.b32.xlu0 %v1043, 18
      %v1093 = vpop.permute.xlu0 %1092
      %1094 = vrot.lane.b32.xlu0 %v1045, 18
      %v1095 = vpop.permute.xlu0 %1094
      %1100 = vrot.lane.b32.xlu0 %v1047, 21
      %v1101 = vpop.permute.xlu0 %1100
      %1102 = vrot.lane.b32.xlu0 %v1049, 21
      %v1103 = vpop.permute.xlu0 %1102
      %1108 = vrot.lane.b32.xlu0 %v1051, 24
      %v1109 = vpop.permute.xlu0 %1108
      %1110 = vrot.lane.b32.xlu0 %v1053, 24
      %v1111 = vpop.permute.xlu0 %1110
      %v1114 = vsel %vm406, %v943, %v1055
      %v1115 = vsel %vm406, %v945, %v1057
      %v1116 = vsel %vm409, %v1114, %v1061
      %v1117 = vsel %vm409, %v1115, %v1063
      %v1118 = vsel %vm412, %v1116, %v1069
      %v1119 = vsel %vm412, %v1117, %v1071
      %v1120 = vsel %vm415, %v1118, %v1077
      %v1121 = vsel %vm415, %v1119, %v1079
      %v1122 = vsel %vm418, %v1120, %v1085
      %v1123 = vsel %vm418, %v1121, %v1087
      %v1124 = vsel %vm421, %v1122, %v1093
      %v1125 = vsel %vm421, %v1123, %v1095
      %v1126 = vsel %vm424, %v1124, %v1101
      %v1127 = vsel %vm424, %v1125, %v1103
      %v1128 = vsel %vm427, %v1126, %v1109
      %v1129 = vsel %vm427, %v1127, %v1111
      %s1130 = scalar_lea.vmem %s301, 578
      %v1131 = vld [vmem:[%s1130] ss:$2 sm:$0xff]
      %s1132 = scalar_lea.vmem %s301, 594
      %v1133 = vld [vmem:[%s1132] ss:$2 sm:$0xff]
      %s1134 = scalar_lea.vmem %s301, 579
      %v1135 = vld [vmem:[%s1134] ss:$2 sm:$0xff]
      %s1136 = scalar_lea.vmem %s301, 595
      %v1137 = vld [vmem:[%s1136] ss:$2 sm:$0xff]
      %s1138 = scalar_lea.vmem %s301, 580
      %v1139 = vld [vmem:[%s1138] ss:$2 sm:$0xff]
      %s1140 = scalar_lea.vmem %s301, 596
      %v1141 = vld [vmem:[%s1140] ss:$2 sm:$0xff]
      %s1142 = scalar_lea.vmem %s301, 612
      %v1143 = vld [vmem:[%s1142] ss:$2 sm:$0xff]
      %s1144 = scalar_lea.vmem %s301, 628
      %v1145 = vld [vmem:[%s1144] ss:$2 sm:$0xff]
      %s1146 = scalar_lea.vmem %s301, 613
      %v1147 = vld [vmem:[%s1146] ss:$2 sm:$0xff]
      %s1148 = scalar_lea.vmem %s301, 629
      %v1149 = vld [vmem:[%s1148] ss:$2 sm:$0xff]
      %s1150 = scalar_lea.vmem %s301, 614
      %v1151 = vld [vmem:[%s1150] ss:$2 sm:$0xff]
      %s1152 = scalar_lea.vmem %s301, 630
      %v1153 = vld [vmem:[%s1152] ss:$2 sm:$0xff]
      %1154 = vrot.lane.b32.xlu0 %v1047, 3
      %v1155 = vpop.permute.xlu0 %1154
      %1156 = vrot.lane.b32.xlu0 %v1049, 3
      %v1157 = vpop.permute.xlu0 %1156
      %1160 = vrot.lane.b32.xlu0 %v1051, 6
      %v1161 = vpop.permute.xlu0 %1160
      %1162 = vrot.lane.b32.xlu0 %v1053, 6
      %v1163 = vpop.permute.xlu0 %1162
      %1168 = vrot.lane.b32.xlu0 %v1131, 9
      %v1169 = vpop.permute.xlu0 %1168
      %1170 = vrot.lane.b32.xlu0 %v1133, 9
      %v1171 = vpop.permute.xlu0 %1170
      %1176 = vrot.lane.b32.xlu0 %v1135, 12
      %v1177 = vpop.permute.xlu0 %1176
      %1178 = vrot.lane.b32.xlu0 %v1137, 12
      %v1179 = vpop.permute.xlu0 %1178
      %1184 = vrot.lane.b32.xlu0 %v1139, 15
      %v1185 = vpop.permute.xlu0 %1184
      %1186 = vrot.lane.b32.xlu0 %v1141, 15
      %v1187 = vpop.permute.xlu0 %1186
      %1192 = vrot.lane.b32.xlu0 %v1143, 18
      %v1193 = vpop.permute.xlu0 %1192
      %1194 = vrot.lane.b32.xlu0 %v1145, 18
      %v1195 = vpop.permute.xlu0 %1194
      %1200 = vrot.lane.b32.xlu0 %v1147, 21
      %v1201 = vpop.permute.xlu0 %1200
      %1202 = vrot.lane.b32.xlu0 %v1149, 21
      %v1203 = vpop.permute.xlu0 %1202
      %1208 = vrot.lane.b32.xlu0 %v1151, 24
      %v1209 = vpop.permute.xlu0 %1208
      %1210 = vrot.lane.b32.xlu0 %v1153, 24
      %v1211 = vpop.permute.xlu0 %1210
      %v1214 = vsel %vm406, %v1043, %v1155
      %v1215 = vsel %vm406, %v1045, %v1157
      %v1216 = vsel %vm409, %v1214, %v1161
      %v1217 = vsel %vm409, %v1215, %v1163
      %v1218 = vsel %vm412, %v1216, %v1169
      %v1219 = vsel %vm412, %v1217, %v1171
      %v1220 = vsel %vm415, %v1218, %v1177
      %v1221 = vsel %vm415, %v1219, %v1179
      %v1222 = vsel %vm418, %v1220, %v1185
      %v1223 = vsel %vm418, %v1221, %v1187
      %v1224 = vsel %vm421, %v1222, %v1193
      %v1225 = vsel %vm421, %v1223, %v1195
      %v1226 = vsel %vm424, %v1224, %v1201
      %v1227 = vsel %vm424, %v1225, %v1203
      %v1228 = vsel %vm427, %v1226, %v1209
      %v1229 = vsel %vm427, %v1227, %v1211
      %s1230 = scalar_lea.vmem %s301, 646
      %v1231 = vld [vmem:[%s1230] ss:$2 sm:$0xff]
      %s1232 = scalar_lea.vmem %s301, 662
      %v1233 = vld [vmem:[%s1232] ss:$2 sm:$0xff]
      %s1234 = scalar_lea.vmem %s301, 647
      %v1235 = vld [vmem:[%s1234] ss:$2 sm:$0xff]
      %s1236 = scalar_lea.vmem %s301, 663
      %v1237 = vld [vmem:[%s1236] ss:$2 sm:$0xff]
      %s1238 = scalar_lea.vmem %s301, 648
      %v1239 = vld [vmem:[%s1238] ss:$2 sm:$0xff]
      %s1240 = scalar_lea.vmem %s301, 664
      %v1241 = vld [vmem:[%s1240] ss:$2 sm:$0xff]
      %s1242 = scalar_lea.vmem %s301, 680
      %v1243 = vld [vmem:[%s1242] ss:$2 sm:$0xff]
      %s1244 = scalar_lea.vmem %s301, 696
      %v1245 = vld [vmem:[%s1244] ss:$2 sm:$0xff]
      %s1246 = scalar_lea.vmem %s301, 681
      %v1247 = vld [vmem:[%s1246] ss:$2 sm:$0xff]
      %s1248 = scalar_lea.vmem %s301, 697
      %v1249 = vld [vmem:[%s1248] ss:$2 sm:$0xff]
      %s1250 = scalar_lea.vmem %s301, 682
      %v1251 = vld [vmem:[%s1250] ss:$2 sm:$0xff]
      %s1252 = scalar_lea.vmem %s301, 698
      %v1253 = vld [vmem:[%s1252] ss:$2 sm:$0xff]
      %1254 = vrot.lane.b32.xlu0 %v1147, 3
      %v1255 = vpop.permute.xlu0 %1254
      %1256 = vrot.lane.b32.xlu0 %v1149, 3
      %v1257 = vpop.permute.xlu0 %1256
      %1260 = vrot.lane.b32.xlu0 %v1151, 6
      %v1261 = vpop.permute.xlu0 %1260
      %1262 = vrot.lane.b32.xlu0 %v1153, 6
      %v1263 = vpop.permute.xlu0 %1262
      %1268 = vrot.lane.b32.xlu0 %v1231, 9
      %v1269 = vpop.permute.xlu0 %1268
      %1270 = vrot.lane.b32.xlu0 %v1233, 9
      %v1271 = vpop.permute.xlu0 %1270
      %1276 = vrot.lane.b32.xlu0 %v1235, 12
      %v1277 = vpop.permute.xlu0 %1276
      %1278 = vrot.lane.b32.xlu0 %v1237, 12
      %v1279 = vpop.permute.xlu0 %1278
      %1284 = vrot.lane.b32.xlu0 %v1239, 15
      %v1285 = vpop.permute.xlu0 %1284
      %1286 = vrot.lane.b32.xlu0 %v1241, 15
      %v1287 = vpop.permute.xlu0 %1286
      %1292 = vrot.lane.b32.xlu0 %v1243, 18
      %v1293 = vpop.permute.xlu0 %1292
      %1294 = vrot.lane.b32.xlu0 %v1245, 18
      %v1295 = vpop.permute.xlu0 %1294
      %1300 = vrot.lane.b32.xlu0 %v1247, 21
      %v1301 = vpop.permute.xlu0 %1300
      %1302 = vrot.lane.b32.xlu0 %v1249, 21
      %v1303 = vpop.permute.xlu0 %1302
      %1308 = vrot.lane.b32.xlu0 %v1251, 24
      %v1309 = vpop.permute.xlu0 %1308
      %1310 = vrot.lane.b32.xlu0 %v1253, 24
      %v1311 = vpop.permute.xlu0 %1310
      %v1314 = vsel %vm406, %v1143, %v1255
      %v1315 = vsel %vm406, %v1145, %v1257
      %v1316 = vsel %vm409, %v1314, %v1261
      %v1317 = vsel %vm409, %v1315, %v1263
      %v1318 = vsel %vm412, %v1316, %v1269
      %v1319 = vsel %vm412, %v1317, %v1271
      %v1320 = vsel %vm415, %v1318, %v1277
      %v1321 = vsel %vm415, %v1319, %v1279
      %v1322 = vsel %vm418, %v1320, %v1285
      %v1323 = vsel %vm418, %v1321, %v1287
      %v1324 = vsel %vm421, %v1322, %v1293
      %v1325 = vsel %vm421, %v1323, %v1295
      %v1326 = vsel %vm424, %v1324, %v1301
      %v1327 = vsel %vm424, %v1325, %v1303
      %v1328 = vsel %vm427, %v1326, %v1309
      %v1329 = vsel %vm427, %v1327, %v1311
      %s1330 = scalar_lea.vmem %s301, 714
      %v1331 = vld [vmem:[%s1330] ss:$2 sm:$0xff]
      %s1332 = scalar_lea.vmem %s301, 730
      %v1333 = vld [vmem:[%s1332] ss:$2 sm:$0xff]
      %s1334 = scalar_lea.vmem %s301, 715
      %v1335 = vld [vmem:[%s1334] ss:$2 sm:$0xff]
      %s1336 = scalar_lea.vmem %s301, 731
      %v1337 = vld [vmem:[%s1336] ss:$2 sm:$0xff]
      %s1338 = scalar_lea.vmem %s301, 716
      %v1339 = vld [vmem:[%s1338] ss:$2 sm:$0xff]
      %s1340 = scalar_lea.vmem %s301, 732
      %v1341 = vld [vmem:[%s1340] ss:$2 sm:$0xff]
      %s1342 = scalar_lea.vmem %s301, 748
      %v1343 = vld [vmem:[%s1342] ss:$2 sm:$0xff]
      %s1344 = scalar_lea.vmem %s301, 764
      %v1345 = vld [vmem:[%s1344] ss:$2 sm:$0xff]
      %s1346 = scalar_lea.vmem %s301, 749
      %v1347 = vld [vmem:[%s1346] ss:$2 sm:$0xff]
      %s1348 = scalar_lea.vmem %s301, 765
      %v1349 = vld [vmem:[%s1348] ss:$2 sm:$0xff]
      %s1350 = scalar_lea.vmem %s301, 750
      %v1351 = vld [vmem:[%s1350] ss:$2 sm:$0xff]
      %s1352 = scalar_lea.vmem %s301, 766
      %v1353 = vld [vmem:[%s1352] ss:$2 sm:$0xff]
      %1354 = vrot.lane.b32.xlu0 %v1247, 3
      %v1355 = vpop.permute.xlu0 %1354
      %1356 = vrot.lane.b32.xlu0 %v1249, 3
      %v1357 = vpop.permute.xlu0 %1356
      %1360 = vrot.lane.b32.xlu0 %v1251, 6
      %v1361 = vpop.permute.xlu0 %1360
      %1362 = vrot.lane.b32.xlu0 %v1253, 6
      %v1363 = vpop.permute.xlu0 %1362
      %1368 = vrot.lane.b32.xlu0 %v1331, 9
      %v1369 = vpop.permute.xlu0 %1368
      %1370 = vrot.lane.b32.xlu0 %v1333, 9
      %v1371 = vpop.permute.xlu0 %1370
      %1376 = vrot.lane.b32.xlu0 %v1335, 12
      %v1377 = vpop.permute.xlu0 %1376
      %1378 = vrot.lane.b32.xlu0 %v1337, 12
      %v1379 = vpop.permute.xlu0 %1378
      %1384 = vrot.lane.b32.xlu0 %v1339, 15
      %v1385 = vpop.permute.xlu0 %1384
      %1386 = vrot.lane.b32.xlu0 %v1341, 15
      %v1387 = vpop.permute.xlu0 %1386
      %1392 = vrot.lane.b32.xlu0 %v1343, 18
      %v1393 = vpop.permute.xlu0 %1392
      %1394 = vrot.lane.b32.xlu0 %v1345, 18
      %v1395 = vpop.permute.xlu0 %1394
      %1400 = vrot.lane.b32.xlu0 %v1347, 21
      %v1401 = vpop.permute.xlu0 %1400
      %1402 = vrot.lane.b32.xlu0 %v1349, 21
      %v1403 = vpop.permute.xlu0 %1402
      %1408 = vrot.lane.b32.xlu0 %v1351, 24
      %v1409 = vpop.permute.xlu0 %1408
      %1410 = vrot.lane.b32.xlu0 %v1353, 24
      %v1411 = vpop.permute.xlu0 %1410
      %v1414 = vsel %vm406, %v1243, %v1355
      %v1415 = vsel %vm406, %v1245, %v1357
      %v1416 = vsel %vm409, %v1414, %v1361
      %v1417 = vsel %vm409, %v1415, %v1363
      %v1418 = vsel %vm412, %v1416, %v1369
      %v1419 = vsel %vm412, %v1417, %v1371
      %v1420 = vsel %vm415, %v1418, %v1377
      %v1421 = vsel %vm415, %v1419, %v1379
      %v1422 = vsel %vm418, %v1420, %v1385
      %v1423 = vsel %vm418, %v1421, %v1387
      %v1424 = vsel %vm421, %v1422, %v1393
      %v1425 = vsel %vm421, %v1423, %v1395
      %v1426 = vsel %vm424, %v1424, %v1401
      %v1427 = vsel %vm424, %v1425, %v1403
      %v1428 = vsel %vm427, %v1426, %v1409
      %v1429 = vsel %vm427, %v1427, %v1411
      %s1430 = scalar_lea.vmem %s301, 782
      %v1431 = vld [vmem:[%s1430] ss:$2 sm:$0xff]
      %s1432 = scalar_lea.vmem %s301, 798
      %v1433 = vld [vmem:[%s1432] ss:$2 sm:$0xff]
      %s1434 = scalar_lea.vmem %s301, 783
      %v1435 = vld [vmem:[%s1434] ss:$2 sm:$0xff]
      %s1436 = scalar_lea.vmem %s301, 799
      %v1437 = vld [vmem:[%s1436] ss:$2 sm:$0xff]
      %s1438 = scalar_lea.vmem %s301, 784
      %v1439 = vld [vmem:[%s1438] ss:$2 sm:$0xff]
      %s1440 = scalar_lea.vmem %s301, 800
      %v1441 = vld [vmem:[%s1440] ss:$2 sm:$0xff]
      %s1442 = scalar_lea.vmem %s301, 816
      %v1443 = vld [vmem:[%s1442] ss:$2 sm:$0xff]
      %s1444 = scalar_lea.vmem %s301, 832
      %v1445 = vld [vmem:[%s1444] ss:$2 sm:$0xff]
      %s1446 = scalar_lea.vmem %s301, 817
      %v1447 = vld [vmem:[%s1446] ss:$2 sm:$0xff]
      %s1448 = scalar_lea.vmem %s301, 833
      %v1449 = vld [vmem:[%s1448] ss:$2 sm:$0xff]
      %s1450 = scalar_lea.vmem %s301, 818
      %v1451 = vld [vmem:[%s1450] ss:$2 sm:$0xff]
      %s1452 = scalar_lea.vmem %s301, 834
      %v1453 = vld [vmem:[%s1452] ss:$2 sm:$0xff]
      %1454 = vrot.lane.b32.xlu0 %v1347, 3
      %v1455 = vpop.permute.xlu0 %1454
      %1456 = vrot.lane.b32.xlu0 %v1349, 3
      %v1457 = vpop.permute.xlu0 %1456
      %1460 = vrot.lane.b32.xlu0 %v1351, 6
      %v1461 = vpop.permute.xlu0 %1460
      %1462 = vrot.lane.b32.xlu0 %v1353, 6
      %v1463 = vpop.permute.xlu0 %1462
      %1468 = vrot.lane.b32.xlu0 %v1431, 9
      %v1469 = vpop.permute.xlu0 %1468
      %1470 = vrot.lane.b32.xlu0 %v1433, 9
      %v1471 = vpop.permute.xlu0 %1470
      %1476 = vrot.lane.b32.xlu0 %v1435, 12
      %v1477 = vpop.permute.xlu0 %1476
      %1478 = vrot.lane.b32.xlu0 %v1437, 12
      %v1479 = vpop.permute.xlu0 %1478
      %1484 = vrot.lane.b32.xlu0 %v1439, 15
      %v1485 = vpop.permute.xlu0 %1484
      %1486 = vrot.lane.b32.xlu0 %v1441, 15
      %v1487 = vpop.permute.xlu0 %1486
      %1492 = vrot.lane.b32.xlu0 %v1443, 18
      %v1493 = vpop.permute.xlu0 %1492
      %1494 = vrot.lane.b32.xlu0 %v1445, 18
      %v1495 = vpop.permute.xlu0 %1494
      %1500 = vrot.lane.b32.xlu0 %v1447, 21
      %v1501 = vpop.permute.xlu0 %1500
      %1502 = vrot.lane.b32.xlu0 %v1449, 21
      %v1503 = vpop.permute.xlu0 %1502
      %1508 = vrot.lane.b32.xlu0 %v1451, 24
      %v1509 = vpop.permute.xlu0 %1508
      %1510 = vrot.lane.b32.xlu0 %v1453, 24
      %v1511 = vpop.permute.xlu0 %1510
      %v1514 = vsel %vm406, %v1343, %v1455
      %v1515 = vsel %vm406, %v1345, %v1457
      %v1516 = vsel %vm409, %v1514, %v1461
      %v1517 = vsel %vm409, %v1515, %v1463
      %v1518 = vsel %vm412, %v1516, %v1469
      %v1519 = vsel %vm412, %v1517, %v1471
      %v1520 = vsel %vm415, %v1518, %v1477
      %v1521 = vsel %vm415, %v1519, %v1479
      %v1522 = vsel %vm418, %v1520, %v1485
      %v1523 = vsel %vm418, %v1521, %v1487
      %v1524 = vsel %vm421, %v1522, %v1493
      %v1525 = vsel %vm421, %v1523, %v1495
      %v1526 = vsel %vm424, %v1524, %v1501
      %v1527 = vsel %vm424, %v1525, %v1503
      %v1528 = vsel %vm427, %v1526, %v1509
      %v1529 = vsel %vm427, %v1527, %v1511
      %s1530 = scalar_lea.vmem %s301, 850
      %v1531 = vld [vmem:[%s1530] ss:$2 sm:$0xff]
      %s1532 = scalar_lea.vmem %s301, 866
      %v1533 = vld [vmem:[%s1532] ss:$2 sm:$0xff]
      %s1534 = scalar_lea.vmem %s301, 851
      %v1535 = vld [vmem:[%s1534] ss:$2 sm:$0xff]
      %s1536 = scalar_lea.vmem %s301, 867
      %v1537 = vld [vmem:[%s1536] ss:$2 sm:$0xff]
      %s1538 = scalar_lea.vmem %s301, 852
      %v1539 = vld [vmem:[%s1538] ss:$2 sm:$0xff]
      %s1540 = scalar_lea.vmem %s301, 868
      %v1541 = vld [vmem:[%s1540] ss:$2 sm:$0xff]
      %s1542 = scalar_lea.vmem %s301, 884
      %v1543 = vld [vmem:[%s1542] ss:$2 sm:$0xff]
      %s1544 = scalar_lea.vmem %s301, 900
      %v1545 = vld [vmem:[%s1544] ss:$2 sm:$0xff]
      %s1546 = scalar_lea.vmem %s301, 885
      %v1547 = vld [vmem:[%s1546] ss:$2 sm:$0xff]
      %s1548 = scalar_lea.vmem %s301, 901
      %v1549 = vld [vmem:[%s1548] ss:$2 sm:$0xff]
      %s1550 = scalar_lea.vmem %s301, 886
      %v1551 = vld [vmem:[%s1550] ss:$2 sm:$0xff]
      %s1552 = scalar_lea.vmem %s301, 902
      %v1553 = vld [vmem:[%s1552] ss:$2 sm:$0xff]
      %1554 = vrot.lane.b32.xlu0 %v1447, 3
      %v1555 = vpop.permute.xlu0 %1554
      %1556 = vrot.lane.b32.xlu0 %v1449, 3
      %v1557 = vpop.permute.xlu0 %1556
      %1560 = vrot.lane.b32.xlu0 %v1451, 6
      %v1561 = vpop.permute.xlu0 %1560
      %1562 = vrot.lane.b32.xlu0 %v1453, 6
      %v1563 = vpop.permute.xlu0 %1562
      %1568 = vrot.lane.b32.xlu0 %v1531, 9
      %v1569 = vpop.permute.xlu0 %1568
      %1570 = vrot.lane.b32.xlu0 %v1533, 9
      %v1571 = vpop.permute.xlu0 %1570
      %1576 = vrot.lane.b32.xlu0 %v1535, 12
      %v1577 = vpop.permute.xlu0 %1576
      %1578 = vrot.lane.b32.xlu0 %v1537, 12
      %v1579 = vpop.permute.xlu0 %1578
      %1584 = vrot.lane.b32.xlu0 %v1539, 15
      %v1585 = vpop.permute.xlu0 %1584
      %1586 = vrot.lane.b32.xlu0 %v1541, 15
      %v1587 = vpop.permute.xlu0 %1586
      %1592 = vrot.lane.b32.xlu0 %v1543, 18
      %v1593 = vpop.permute.xlu0 %1592
      %1594 = vrot.lane.b32.xlu0 %v1545, 18
      %v1595 = vpop.permute.xlu0 %1594
      %1600 = vrot.lane.b32.xlu0 %v1547, 21
      %v1601 = vpop.permute.xlu0 %1600
      %1602 = vrot.lane.b32.xlu0 %v1549, 21
      %v1603 = vpop.permute.xlu0 %1602
      %1608 = vrot.lane.b32.xlu0 %v1551, 24
      %v1609 = vpop.permute.xlu0 %1608
      %1610 = vrot.lane.b32.xlu0 %v1553, 24
      %v1611 = vpop.permute.xlu0 %1610
      %v1614 = vsel %vm406, %v1443, %v1555
      %v1615 = vsel %vm406, %v1445, %v1557
      %v1616 = vsel %vm409, %v1614, %v1561
      %v1617 = vsel %vm409, %v1615, %v1563
      %v1618 = vsel %vm412, %v1616, %v1569
      %v1619 = vsel %vm412, %v1617, %v1571
      %v1620 = vsel %vm415, %v1618, %v1577
      %v1621 = vsel %vm415, %v1619, %v1579
      %v1622 = vsel %vm418, %v1620, %v1585
      %v1623 = vsel %vm418, %v1621, %v1587
      %v1624 = vsel %vm421, %v1622, %v1593
      %v1625 = vsel %vm421, %v1623, %v1595
      %v1626 = vsel %vm424, %v1624, %v1601
      %v1627 = vsel %vm424, %v1625, %v1603
      %v1628 = vsel %vm427, %v1626, %v1609
      %v1629 = vsel %vm427, %v1627, %v1611
      %s1630 = scalar_lea.vmem %s301, 918
      %v1631 = vld [vmem:[%s1630] ss:$2 sm:$0xff]
      %s1632 = scalar_lea.vmem %s301, 934
      %v1633 = vld [vmem:[%s1632] ss:$2 sm:$0xff]
      %s1634 = scalar_lea.vmem %s301, 919
      %v1635 = vld [vmem:[%s1634] ss:$2 sm:$0xff]
      %s1636 = scalar_lea.vmem %s301, 935
      %v1637 = vld [vmem:[%s1636] ss:$2 sm:$0xff]
      %s1638 = scalar_lea.vmem %s301, 920
      %v1639 = vld [vmem:[%s1638] ss:$2 sm:$0xff]
      %s1640 = scalar_lea.vmem %s301, 936
      %v1641 = vld [vmem:[%s1640] ss:$2 sm:$0xff]
      %s1642 = scalar_lea.vmem %s301, 952
      %v1643 = vld [vmem:[%s1642] ss:$2 sm:$0xff]
      %s1644 = scalar_lea.vmem %s301, 968
      %v1645 = vld [vmem:[%s1644] ss:$2 sm:$0xff]
      %s1646 = scalar_lea.vmem %s301, 953
      %v1647 = vld [vmem:[%s1646] ss:$2 sm:$0xff]
      %s1648 = scalar_lea.vmem %s301, 969
      %v1649 = vld [vmem:[%s1648] ss:$2 sm:$0xff]
      %s1650 = scalar_lea.vmem %s301, 954
      %v1651 = vld [vmem:[%s1650] ss:$2 sm:$0xff]
      %s1652 = scalar_lea.vmem %s301, 970
      %v1653 = vld [vmem:[%s1652] ss:$2 sm:$0xff]
      %1654 = vrot.lane.b32.xlu0 %v1547, 3
      %v1655 = vpop.permute.xlu0 %1654
      %1656 = vrot.lane.b32.xlu0 %v1549, 3
      %v1657 = vpop.permute.xlu0 %1656
      %1660 = vrot.lane.b32.xlu0 %v1551, 6
      %v1661 = vpop.permute.xlu0 %1660
      %1662 = vrot.lane.b32.xlu0 %v1553, 6
      %v1663 = vpop.permute.xlu0 %1662
      %1668 = vrot.lane.b32.xlu0 %v1631, 9
      %v1669 = vpop.permute.xlu0 %1668
      %1670 = vrot.lane.b32.xlu0 %v1633, 9
      %v1671 = vpop.permute.xlu0 %1670
      %1676 = vrot.lane.b32.xlu0 %v1635, 12
      %v1677 = vpop.permute.xlu0 %1676
      %1678 = vrot.lane.b32.xlu0 %v1637, 12
      %v1679 = vpop.permute.xlu0 %1678
      %1684 = vrot.lane.b32.xlu0 %v1639, 15
      %v1685 = vpop.permute.xlu0 %1684
      %1686 = vrot.lane.b32.xlu0 %v1641, 15
      %v1687 = vpop.permute.xlu0 %1686
      %1692 = vrot.lane.b32.xlu0 %v1643, 18
      %v1693 = vpop.permute.xlu0 %1692
      %1694 = vrot.lane.b32.xlu0 %v1645, 18
      %v1695 = vpop.permute.xlu0 %1694
      %1700 = vrot.lane.b32.xlu0 %v1647, 21
      %v1701 = vpop.permute.xlu0 %1700
      %1702 = vrot.lane.b32.xlu0 %v1649, 21
      %v1703 = vpop.permute.xlu0 %1702
      %1708 = vrot.lane.b32.xlu0 %v1651, 24
      %v1709 = vpop.permute.xlu0 %1708
      %1710 = vrot.lane.b32.xlu0 %v1653, 24
      %v1711 = vpop.permute.xlu0 %1710
      %v1714 = vsel %vm406, %v1543, %v1655
      %v1715 = vsel %vm406, %v1545, %v1657
      %v1716 = vsel %vm409, %v1714, %v1661
      %v1717 = vsel %vm409, %v1715, %v1663
      %v1718 = vsel %vm412, %v1716, %v1669
      %v1719 = vsel %vm412, %v1717, %v1671
      %v1720 = vsel %vm415, %v1718, %v1677
      %v1721 = vsel %vm415, %v1719, %v1679
      %v1722 = vsel %vm418, %v1720, %v1685
      %v1723 = vsel %vm418, %v1721, %v1687
      %v1724 = vsel %vm421, %v1722, %v1693
      %v1725 = vsel %vm421, %v1723, %v1695
      %v1726 = vsel %vm424, %v1724, %v1701
      %v1727 = vsel %vm424, %v1725, %v1703
      %v1728 = vsel %vm427, %v1726, %v1709
      %v1729 = vsel %vm427, %v1727, %v1711
      %s1730 = scalar_lea.vmem %s301, 986
      %v1731 = vld [vmem:[%s1730] ss:$2 sm:$0xff]
      %s1732 = scalar_lea.vmem %s301, 1002
      %v1733 = vld [vmem:[%s1732] ss:$2 sm:$0xff]
      %s1734 = scalar_lea.vmem %s301, 987
      %v1735 = vld [vmem:[%s1734] ss:$2 sm:$0xff]
      %s1736 = scalar_lea.vmem %s301, 1003
      %v1737 = vld [vmem:[%s1736] ss:$2 sm:$0xff]
      %s1738 = scalar_lea.vmem %s301, 988
      %v1739 = vld [vmem:[%s1738] ss:$2 sm:$0xff]
      %s1740 = scalar_lea.vmem %s301, 1004
      %v1741 = vld [vmem:[%s1740] ss:$2 sm:$0xff]
      %s1742 = scalar_lea.vmem %s301, 1020
      %v1743 = vld [vmem:[%s1742] ss:$2 sm:$0xff]
      %s1744 = scalar_lea.vmem %s301, 1036
      %v1745 = vld [vmem:[%s1744] ss:$2 sm:$0xff]
      %s1746 = scalar_lea.vmem %s301, 1021
      %v1747 = vld [vmem:[%s1746] ss:$2 sm:$0xff]
      %s1748 = scalar_lea.vmem %s301, 1037
      %v1749 = vld [vmem:[%s1748] ss:$2 sm:$0xff]
      %s1750 = scalar_lea.vmem %s301, 1022
      %v1751 = vld [vmem:[%s1750] ss:$2 sm:$0xff]
      %s1752 = scalar_lea.vmem %s301, 1038
      %v1753 = vld [vmem:[%s1752] ss:$2 sm:$0xff]
      %1754 = vrot.lane.b32.xlu0 %v1647, 3
      %v1755 = vpop.permute.xlu0 %1754
      %1756 = vrot.lane.b32.xlu0 %v1649, 3
      %v1757 = vpop.permute.xlu0 %1756
      %1760 = vrot.lane.b32.xlu0 %v1651, 6
      %v1761 = vpop.permute.xlu0 %1760
      %1762 = vrot.lane.b32.xlu0 %v1653, 6
      %v1763 = vpop.permute.xlu0 %1762
      %1768 = vrot.lane.b32.xlu0 %v1731, 9
      %v1769 = vpop.permute.xlu0 %1768
      %1770 = vrot.lane.b32.xlu0 %v1733, 9
      %v1771 = vpop.permute.xlu0 %1770
      %1776 = vrot.lane.b32.xlu0 %v1735, 12
      %v1777 = vpop.permute.xlu0 %1776
      %1778 = vrot.lane.b32.xlu0 %v1737, 12
      %v1779 = vpop.permute.xlu0 %1778
      %1784 = vrot.lane.b32.xlu0 %v1739, 15
      %v1785 = vpop.permute.xlu0 %1784
      %1786 = vrot.lane.b32.xlu0 %v1741, 15
      %v1787 = vpop.permute.xlu0 %1786
      %1792 = vrot.lane.b32.xlu0 %v1743, 18
      %v1793 = vpop.permute.xlu0 %1792
      %1794 = vrot.lane.b32.xlu0 %v1745, 18
      %v1795 = vpop.permute.xlu0 %1794
      %1800 = vrot.lane.b32.xlu0 %v1747, 21
      %v1801 = vpop.permute.xlu0 %1800
      %1802 = vrot.lane.b32.xlu0 %v1749, 21
      %v1803 = vpop.permute.xlu0 %1802
      %1808 = vrot.lane.b32.xlu0 %v1751, 24
      %v1809 = vpop.permute.xlu0 %1808
      %1810 = vrot.lane.b32.xlu0 %v1753, 24
      %v1811 = vpop.permute.xlu0 %1810
      %v1814 = vsel %vm406, %v1643, %v1755
      %v1815 = vsel %vm406, %v1645, %v1757
      %v1816 = vsel %vm409, %v1814, %v1761
      %v1817 = vsel %vm409, %v1815, %v1763
      %v1818 = vsel %vm412, %v1816, %v1769
      %v1819 = vsel %vm412, %v1817, %v1771
      %v1820 = vsel %vm415, %v1818, %v1777
      %v1821 = vsel %vm415, %v1819, %v1779
      %v1822 = vsel %vm418, %v1820, %v1785
      %v1823 = vsel %vm418, %v1821, %v1787
      %v1824 = vsel %vm421, %v1822, %v1793
      %v1825 = vsel %vm421, %v1823, %v1795
      %v1826 = vsel %vm424, %v1824, %v1801
      %v1827 = vsel %vm424, %v1825, %v1803
      %v1828 = vsel %vm427, %v1826, %v1809
      %v1829 = vsel %vm427, %v1827, %v1811
      %s1830 = scalar_lea.vmem %s301, 1054
      %v1831 = vld [vmem:[%s1830] ss:$2 sm:$0xff]
      %s1832 = scalar_lea.vmem %s301, 1070
      %v1833 = vld [vmem:[%s1832] ss:$2 sm:$0xff]
      %s1834 = scalar_lea.vmem %s301, 1055
      %v1835 = vld [vmem:[%s1834] ss:$2 sm:$0xff]
      %s1836 = scalar_lea.vmem %s301, 1071
      %v1837 = vld [vmem:[%s1836] ss:$2 sm:$0xff]
      %s1838 = scalar_lea.vmem %s301, 1056
      %v1839 = vld [vmem:[%s1838] ss:$2 sm:$0xff]
      %s1840 = scalar_lea.vmem %s301, 1072
      %v1841 = vld [vmem:[%s1840] ss:$2 sm:$0xff]
      %s1842 = scalar_lea.vmem %s301, 1088
      %v1843 = vld [vmem:[%s1842] ss:$2 sm:$0xff]
      %s1844 = scalar_lea.vmem %s301, 1104
      %v1845 = vld [vmem:[%s1844] ss:$2 sm:$0xff]
      %s1846 = scalar_lea.vmem %s301, 1089
      %v1847 = vld [vmem:[%s1846] ss:$2 sm:$0xff]
      %s1848 = scalar_lea.vmem %s301, 1105
      %v1849 = vld [vmem:[%s1848] ss:$2 sm:$0xff]
      %s1850 = scalar_lea.vmem %s301, 1090
      %v1851 = vld [vmem:[%s1850] ss:$2 sm:$0xff]
      %s1852 = scalar_lea.vmem %s301, 1106
      %v1853 = vld [vmem:[%s1852] ss:$2 sm:$0xff]
      %1854 = vrot.lane.b32.xlu0 %v1747, 3
      %v1855 = vpop.permute.xlu0 %1854
      %1856 = vrot.lane.b32.xlu0 %v1749, 3
      %v1857 = vpop.permute.xlu0 %1856
      %1860 = vrot.lane.b32.xlu0 %v1751, 6
      %v1861 = vpop.permute.xlu0 %1860
      %1862 = vrot.lane.b32.xlu0 %v1753, 6
      %v1863 = vpop.permute.xlu0 %1862
      %1868 = vrot.lane.b32.xlu0 %v1831, 9
      %v1869 = vpop.permute.xlu0 %1868
      %1870 = vrot.lane.b32.xlu0 %v1833, 9
      %v1871 = vpop.permute.xlu0 %1870
      %1876 = vrot.lane.b32.xlu0 %v1835, 12
      %v1877 = vpop.permute.xlu0 %1876
      %1878 = vrot.lane.b32.xlu0 %v1837, 12
      %v1879 = vpop.permute.xlu0 %1878
      %1884 = vrot.lane.b32.xlu0 %v1839, 15
      %v1885 = vpop.permute.xlu0 %1884
      %1886 = vrot.lane.b32.xlu0 %v1841, 15
      %v1887 = vpop.permute.xlu0 %1886
      %1892 = vrot.lane.b32.xlu0 %v1843, 18
      %v1893 = vpop.permute.xlu0 %1892
      %1894 = vrot.lane.b32.xlu0 %v1845, 18
      %v1895 = vpop.permute.xlu0 %1894
      %1900 = vrot.lane.b32.xlu0 %v1847, 21
      %v1901 = vpop.permute.xlu0 %1900
      %1902 = vrot.lane.b32.xlu0 %v1849, 21
      %v1903 = vpop.permute.xlu0 %1902
      %1908 = vrot.lane.b32.xlu0 %v1851, 24
      %v1909 = vpop.permute.xlu0 %1908
      %1910 = vrot.lane.b32.xlu0 %v1853, 24
      %v1911 = vpop.permute.xlu0 %1910
      %v1914 = vsel %vm406, %v1743, %v1855
      %v1915 = vsel %vm406, %v1745, %v1857
      %v1916 = vsel %vm409, %v1914, %v1861
      %v1917 = vsel %vm409, %v1915, %v1863
      %v1918 = vsel %vm412, %v1916, %v1869
      %v1919 = vsel %vm412, %v1917, %v1871
      %v1920 = vsel %vm415, %v1918, %v1877
      %v1921 = vsel %vm415, %v1919, %v1879
      %v1922 = vsel %vm418, %v1920, %v1885
      %v1923 = vsel %vm418, %v1921, %v1887
      %v1924 = vsel %vm421, %v1922, %v1893
      %v1925 = vsel %vm421, %v1923, %v1895
      %v1926 = vsel %vm424, %v1924, %v1901
      %v1927 = vsel %vm424, %v1925, %v1903
      %v1928 = vsel %vm427, %v1926, %v1909
      %v1929 = vsel %vm427, %v1927, %v1911
      %v1930 = vpack.c.bf16 %v429, %v428
      %v1931 = vpack.c.bf16 %v529, %v528
      %v1932 = vpack.c.bf16 %v629, %v628
      %v1933 = vpack.c.bf16 %v729, %v728
      %v1934 = vpack.c.bf16 %v829, %v828
      %v1935 = vpack.c.bf16 %v929, %v928
      %v1936 = vpack.c.bf16 %v1029, %v1028
      %v1937 = vpack.c.bf16 %v1129, %v1128
      %v1938 = vpack.c.bf16 %v1229, %v1228
      %v1939 = vpack.c.bf16 %v1329, %v1328
      %v1940 = vpack.c.bf16 %v1429, %v1428
      %v1941 = vpack.c.bf16 %v1529, %v1528
      %v1942 = vpack.c.bf16 %v1629, %v1628
      %v1943 = vpack.c.bf16 %v1729, %v1728
      %v1944 = vpack.c.bf16 %v1829, %v1828
      %v1945 = vpack.c.bf16 %v1929, %v1928
      %v1946 = vld [vmem:[%s1] sm:$0xf]
      %v1947 = vld [vmem:[%s1 + $0x4] sm:$0xf]
      %v1948 = vld [vmem:[%s1 + $0x8] sm:$0xf]
      %v1949 = vld [vmem:[%s1 + $0xc] sm:$0x3]
      %v1950 = vld [vmem:[%s2] sm:$0x1]
      %v1952 = vperm.slane %v1950, 0
      %v1958 = vunpack.c.l.b16 %v1946
      %v1959 = vunpack.c.l.b16 %v1947
      %v1960 = vunpack.c.l.b16 %v1948
      %v1961 = vunpack.c.l.b16 %v1949
      %v1962 = vpack.c.b16 %v1959, %v1958
      %v1963 = vpack.c.b16 %v1961, %v1960
      %vm1965 = vcmask 220160
      %v1967 = vsel %vm1965, %v1930, 0
      %v1970 = vsel %vm1965, %v1931, 0
      %v1973 = vsel %vm1965, %v1932, 0
      %v1976 = vsel %vm1965, %v1933, 0
      %v1979 = vsel %vm1965, %v1934, 0
      %v1982 = vsel %vm1965, %v1935, 0
      %v1985 = vsel %vm1965, %v1936, 0
      %v1988 = vsel %vm1965, %v1937, 0
      %v1991 = vsel %vm1965, %v1938, 0
      %v1994 = vsel %vm1965, %v1939, 0
      %v1997 = vsel %vm1965, %v1940, 0
      %v2000 = vsel %vm1965, %v1941, 0
      %v2003 = vsel %vm1965, %v1942, 0
      %v2006 = vsel %vm1965, %v1943, 0
      %v2009 = vsel %vm1965, %v1944, 0
      %v2012 = vsel %vm1965, %v1945, 0
      %vm2014 = vcmask 1044480
      %vm2015 = vcmask 1045504
      %v2016 = vsel %vm2014, 4294967295, 65535
      %v2017 = vsel %vm2015, %v2016, 0
      %v2019 = vand.u32 %v1963, %v2017
      %2021 = vmatpush.bf16.msra.mxu0 0
      %2022 = vmatpush.bf16.msra.mxu0 0
      %2023 = vmatpush.bf16.msra.mxu0 0
      %2024 = vmatpush.bf16.msra.mxu0 0
      %2025 = vmatpush.bf16.msra.mxu0 0
      %2026 = vmatpush.bf16.msra.mxu0 0
      %2027 = vmatpush.bf16.msra.mxu0 %v2019
      %2028 = vmatpush.bf16.msra.mxu0 %v1962
      %2029 = vmatmul.bf16.gmra.mxu0 %v1967
      %v2030 = vpop.f32.mrf.mxu0
      %v2031 = vadd.f32 %v1952, %v2030
      %v2032 = vpop.f32.mrf.mxu0
      %v2033 = vadd.f32 %v1952, %v2032
      %2034 = vmatmul.bf16.gmra.mxu0 %v1970
      %v2035 = vpop.f32.mrf.mxu0
      %v2036 = vadd.f32 %v1952, %v2035
      %v2037 = vpop.f32.mrf.mxu0
      %v2038 = vadd.f32 %v1952, %v2037
      %2039 = vmatmul.bf16.gmra.mxu0 %v1973
      %v2040 = vpop.f32.mrf.mxu0
      %v2041 = vadd.f32 %v1952, %v2040
      %v2042 = vpop.f32.mrf.mxu0
      %v2043 = vadd.f32 %v1952, %v2042
      %2044 = vmatmul.bf16.gmra.mxu0 %v1976
      %v2045 = vpop.f32.mrf.mxu0
      %v2046 = vadd.f32 %v1952, %v2045
      %v2047 = vpop.f32.mrf.mxu0
      %v2048 = vadd.f32 %v1952, %v2047
      %2049 = vmatmul.bf16.gmra.mxu0 %v1979
      %v2050 = vpop.f32.mrf.mxu0
      %v2051 = vadd.f32 %v1952, %v2050
      %v2052 = vpop.f32.mrf.mxu0
      %v2053 = vadd.f32 %v1952, %v2052
      %2054 = vmatmul.bf16.gmra.mxu0 %v1982
      %v2055 = vpop.f32.mrf.mxu0
      %v2056 = vadd.f32 %v1952, %v2055
      %v2057 = vpop.f32.mrf.mxu0
      %v2058 = vadd.f32 %v1952, %v2057
      %2059 = vmatmul.bf16.gmra.mxu0 %v1985
      %v2060 = vpop.f32.mrf.mxu0
      %v2061 = vadd.f32 %v1952, %v2060
      %v2062 = vpop.f32.mrf.mxu0
      %v2063 = vadd.f32 %v1952, %v2062
      %2064 = vmatmul.bf16.gmra.mxu0 %v1988
      %v2065 = vpop.f32.mrf.mxu0
      %v2066 = vadd.f32 %v1952, %v2065
      %v2067 = vpop.f32.mrf.mxu0
      %v2068 = vadd.f32 %v1952, %v2067
      %2069 = vmatmul.bf16.gmra.mxu0 %v1991
      %v2070 = vpop.f32.mrf.mxu0
      %v2071 = vadd.f32 %v1952, %v2070
      %v2072 = vpop.f32.mrf.mxu0
      %v2073 = vadd.f32 %v1952, %v2072
      %2074 = vmatmul.bf16.gmra.mxu0 %v1994
      %v2075 = vpop.f32.mrf.mxu0
      %v2076 = vadd.f32 %v1952, %v2075
      %v2077 = vpop.f32.mrf.mxu0
      %v2078 = vadd.f32 %v1952, %v2077
      %2079 = vmatmul.bf16.gmra.mxu0 %v1997
      %v2080 = vpop.f32.mrf.mxu0
      %v2081 = vadd.f32 %v1952, %v2080
      %v2082 = vpop.f32.mrf.mxu0
      %v2083 = vadd.f32 %v1952, %v2082
      %2084 = vmatmul.bf16.gmra.mxu0 %v2000
      %v2085 = vpop.f32.mrf.mxu0
      %v2086 = vadd.f32 %v1952, %v2085
      %v2087 = vpop.f32.mrf.mxu0
      %v2088 = vadd.f32 %v1952, %v2087
      %2089 = vmatmul.bf16.gmra.mxu0 %v2003
      %v2090 = vpop.f32.mrf.mxu0
      %v2091 = vadd.f32 %v1952, %v2090
      %v2092 = vpop.f32.mrf.mxu0
      %v2093 = vadd.f32 %v1952, %v2092
      %2094 = vmatmul.bf16.gmra.mxu0 %v2006
      %v2095 = vpop.f32.mrf.mxu0
      %v2096 = vadd.f32 %v1952, %v2095
      %v2097 = vpop.f32.mrf.mxu0
      %v2098 = vadd.f32 %v1952, %v2097
      %2099 = vmatmul.bf16.gmra.mxu0 %v2009
      %v2100 = vpop.f32.mrf.mxu0
      %v2101 = vadd.f32 %v1952, %v2100
      %v2102 = vpop.f32.mrf.mxu0
      %v2103 = vadd.f32 %v1952, %v2102
      %2104 = vmatmul.bf16.gmra.mxu0 %v2012
      %v2105 = vpop.f32.mrf.mxu0
      %v2106 = vadd.f32 %v1952, %v2105
      %v2107 = vpop.f32.mrf.mxu0
      %v2108 = vadd.f32 %v1952, %v2107
      %2109 = vdwg.mxu0
      %vm2110 = vcmp.gt.f32.partialorder %v2031, 0.0
      %vm2111 = vcmp.gt.f32.partialorder %v2033, 0.0
      %vm2112 = vcmp.gt.f32.partialorder %v2036, 0.0
      %vm2113 = vcmp.gt.f32.partialorder %v2038, 0.0
      %vm2114 = vcmp.gt.f32.partialorder %v2041, 0.0
      %vm2115 = vcmp.gt.f32.partialorder %v2043, 0.0
      %vm2116 = vcmp.gt.f32.partialorder %v2046, 0.0
      %vm2117 = vcmp.gt.f32.partialorder %v2048, 0.0
      %vm2118 = vcmp.gt.f32.partialorder %v2051, 0.0
      %vm2119 = vcmp.gt.f32.partialorder %v2053, 0.0
      %vm2120 = vcmp.gt.f32.partialorder %v2056, 0.0
      %vm2121 = vcmp.gt.f32.partialorder %v2058, 0.0
      %vm2122 = vcmp.gt.f32.partialorder %v2061, 0.0
      %vm2123 = vcmp.gt.f32.partialorder %v2063, 0.0
      %vm2124 = vcmp.gt.f32.partialorder %v2066, 0.0
      %vm2125 = vcmp.gt.f32.partialorder %v2068, 0.0
      %vm2126 = vcmp.gt.f32.partialorder %v2071, 0.0
      %vm2127 = vcmp.gt.f32.partialorder %v2073, 0.0
      %vm2128 = vcmp.gt.f32.partialorder %v2076, 0.0
      %vm2129 = vcmp.gt.f32.partialorder %v2078, 0.0
      %vm2130 = vcmp.gt.f32.partialorder %v2081, 0.0
      %vm2131 = vcmp.gt.f32.partialorder %v2083, 0.0
      %vm2132 = vcmp.gt.f32.partialorder %v2086, 0.0
      %vm2133 = vcmp.gt.f32.partialorder %v2088, 0.0
      %vm2134 = vcmp.gt.f32.partialorder %v2091, 0.0
      %vm2135 = vcmp.gt.f32.partialorder %v2093, 0.0
      %vm2136 = vcmp.gt.f32.partialorder %v2096, 0.0
      %vm2137 = vcmp.gt.f32.partialorder %v2098, 0.0
      %vm2138 = vcmp.gt.f32.partialorder %v2101, 0.0
      %vm2139 = vcmp.gt.f32.partialorder %v2103, 0.0
      %vm2140 = vcmp.gt.f32.partialorder %v2106, 0.0
      %vm2141 = vcmp.gt.f32.partialorder %v2108, 0.0
      %v2142 = vmul.f32 %v2031, 0.2
      %v2143 = vmul.f32 %v2033, 0.2
      %v2144 = vmul.f32 %v2036, 0.2
      %v2145 = vmul.f32 %v2038, 0.2
      %v2146 = vmul.f32 %v2041, 0.2
      %v2147 = vmul.f32 %v2043, 0.2
      %v2148 = vmul.f32 %v2046, 0.2
      %v2149 = vmul.f32 %v2048, 0.2
      %v2150 = vmul.f32 %v2051, 0.2
      %v2151 = vmul.f32 %v2053, 0.2
      %v2152 = vmul.f32 %v2056, 0.2
      %v2153 = vmul.f32 %v2058, 0.2
      %v2154 = vmul.f32 %v2061, 0.2
      %v2155 = vmul.f32 %v2063, 0.2
      %v2156 = vmul.f32 %v2066, 0.2
      %v2157 = vmul.f32 %v2068, 0.2
      %v2158 = vmul.f32 %v2071, 0.2
      %v2159 = vmul.f32 %v2073, 0.2
      %v2160 = vmul.f32 %v2076, 0.2
      %v2161 = vmul.f32 %v2078, 0.2
      %v2162 = vmul.f32 %v2081, 0.2
      %v2163 = vmul.f32 %v2083, 0.2
      %v2164 = vmul.f32 %v2086, 0.2
      %v2165 = vmul.f32 %v2088, 0.2
      %v2166 = vmul.f32 %v2091, 0.2
      %v2167 = vmul.f32 %v2093, 0.2
      %v2168 = vmul.f32 %v2096, 0.2
      %v2169 = vmul.f32 %v2098, 0.2
      %v2170 = vmul.f32 %v2101, 0.2
      %v2171 = vmul.f32 %v2103, 0.2
      %v2172 = vmul.f32 %v2106, 0.2
      %v2173 = vmul.f32 %v2108, 0.2
      %v2174 = vsel %vm2110, %v2031, %v2142
      %v2175 = vsel %vm2111, %v2033, %v2143
      %v2176 = vsel %vm2112, %v2036, %v2144
      %v2177 = vsel %vm2113, %v2038, %v2145
      %v2178 = vsel %vm2114, %v2041, %v2146
      %v2179 = vsel %vm2115, %v2043, %v2147
      %v2180 = vsel %vm2116, %v2046, %v2148
      %v2181 = vsel %vm2117, %v2048, %v2149
      %v2182 = vsel %vm2118, %v2051, %v2150
      %v2183 = vsel %vm2119, %v2053, %v2151
      %v2184 = vsel %vm2120, %v2056, %v2152
      %v2185 = vsel %vm2121, %v2058, %v2153
      %v2186 = vsel %vm2122, %v2061, %v2154
      %v2187 = vsel %vm2123, %v2063, %v2155
      %v2188 = vsel %vm2124, %v2066, %v2156
      %v2189 = vsel %vm2125, %v2068, %v2157
      %v2190 = vsel %vm2126, %v2071, %v2158
      %v2191 = vsel %vm2127, %v2073, %v2159
      %v2192 = vsel %vm2128, %v2076, %v2160
      %v2193 = vsel %vm2129, %v2078, %v2161
      %v2194 = vsel %vm2130, %v2081, %v2162
      %v2195 = vsel %vm2131, %v2083, %v2163
      %v2196 = vsel %vm2132, %v2086, %v2164
      %v2197 = vsel %vm2133, %v2088, %v2165
      %v2198 = vsel %vm2134, %v2091, %v2166
      %v2199 = vsel %vm2135, %v2093, %v2167
      %v2200 = vsel %vm2136, %v2096, %v2168
      %v2201 = vsel %vm2137, %v2098, %v2169
      %v2202 = vsel %vm2138, %v2101, %v2170
      %v2203 = vsel %vm2139, %v2103, %v2171
      %v2204 = vsel %vm2140, %v2106, %v2172
      %v2205 = vsel %vm2141, %v2108, %v2173
      %vm2206 = vcmask 64512
      %2207 = vst.msk [vmem:[#allocation2 + $0x13] sm:$0xff] %vm2206, %v2174
      %2208 = vst.msk [vmem:[#allocation2 + $0x1b] sm:$0xff] %vm2206, %v2175
      %vm2209 = vcmask 58369
      %2210 = vst.msk [vmem:[#allocation2 + $0x11] sm:$0x2] %vm2209, %v2174
      %vm2211 = vcmask 63494
      %2212 = vst.msk [vmem:[#allocation2 + $0x1d] sm:$0x40] %vm2211, %v2175
      %2213 = vst.msk [vmem:[#allocation2 + $0x25] sm:$0xff] %vm2206, %v2176
      %2214 = vst.msk [vmem:[#allocation2 + $0x2d] sm:$0xff] %vm2206, %v2177
      %2215 = vst.msk [vmem:[#allocation2 + $0x23] sm:$0x2] %vm2209, %v2176
      %2216 = vst.msk [vmem:[#allocation2 + $0x2f] sm:$0x40] %vm2211, %v2177
      %2217 = vst.msk [vmem:[#allocation2 + $0x37] sm:$0xff] %vm2206, %v2178
      %2218 = vst.msk [vmem:[#allocation2 + $0x3f] sm:$0xff] %vm2206, %v2179
      %2219 = vst.msk [vmem:[#allocation2 + $0x35] sm:$0x2] %vm2209, %v2178
      %2220 = vst.msk [vmem:[#allocation2 + $0x41] sm:$0x40] %vm2211, %v2179
      %2221 = vst.msk [vmem:[#allocation2 + $0x49] sm:$0xff] %vm2206, %v2180
      %2222 = vst.msk [vmem:[#allocation2 + $0x51] sm:$0xff] %vm2206, %v2181
      %2223 = vst.msk [vmem:[#allocation2 + $0x47] sm:$0x2] %vm2209, %v2180
      %2224 = vst.msk [vmem:[#allocation2 + $0x53] sm:$0x40] %vm2211, %v2181
      %2225 = vst.msk [vmem:[#allocation2 + $0x5b] sm:$0xff] %vm2206, %v2182
      %2226 = vst.msk [vmem:[#allocation2 + $0x63] sm:$0xff] %vm2206, %v2183
      %2227 = vst.msk [vmem:[#allocation2 + $0x59] sm:$0x2] %vm2209, %v2182
      %2228 = vst.msk [vmem:[#allocation2 + $0x65] sm:$0x40] %vm2211, %v2183
      %2229 = vst.msk [vmem:[#allocation2 + $0x6d] sm:$0xff] %vm2206, %v2184
      %2230 = vst.msk [vmem:[#allocation2 + $0x75] sm:$0xff] %vm2206, %v2185
      %2231 = vst.msk [vmem:[#allocation2 + $0x6b] sm:$0x2] %vm2209, %v2184
      %2232 = vst.msk [vmem:[#allocation2 + $0x77] sm:$0x40] %vm2211, %v2185
      %2233 = vst.msk [vmem:[#allocation2 + $0x7f] sm:$0xff] %vm2206, %v2186
      %2234 = vst.msk [vmem:[#allocation2 + $0x87] sm:$0xff] %vm2206, %v2187
      %2235 = vst.msk [vmem:[#allocation2 + $0x7d] sm:$0x2] %vm2209, %v2186
      %2236 = vst.msk [vmem:[#allocation2 + $0x89] sm:$0x40] %vm2211, %v2187
      %2237 = vst.msk [vmem:[#allocation2 + $0x91] sm:$0xff] %vm2206, %v2188
      %2238 = vst.msk [vmem:[#allocation2 + $0x99] sm:$0xff] %vm2206, %v2189
      %2239 = vst.msk [vmem:[#allocation2 + $0x8f] sm:$0x2] %vm2209, %v2188
      %2240 = vst.msk [vmem:[#allocation2 + $0x9b] sm:$0x40] %vm2211, %v2189
      %2241 = vst.msk [vmem:[#allocation2 + $0xa3] sm:$0xff] %vm2206, %v2190
      %2242 = vst.msk [vmem:[#allocation2 + $0xab] sm:$0xff] %vm2206, %v2191
      %2243 = vst.msk [vmem:[#allocation2 + $0xa1] sm:$0x2] %vm2209, %v2190
      %2244 = vst.msk [vmem:[#allocation2 + $0xad] sm:$0x40] %vm2211, %v2191
      %2245 = vst.msk [vmem:[#allocation2 + $0xb5] sm:$0xff] %vm2206, %v2192
      %2246 = vst.msk [vmem:[#allocation2 + $0xbd] sm:$0xff] %vm2206, %v2193
      %2247 = vst.msk [vmem:[#allocation2 + $0xb3] sm:$0x2] %vm2209, %v2192
      %2248 = vst.msk [vmem:[#allocation2 + $0xbf] sm:$0x40] %vm2211, %v2193
      %2249 = vst.msk [vmem:[#allocation2 + $0xc7] sm:$0xff] %vm2206, %v2194
      %2250 = vst.msk [vmem:[#allocation2 + $0xcf] sm:$0xff] %vm2206, %v2195
      %2251 = vst.msk [vmem:[#allocation2 + $0xc5] sm:$0x2] %vm2209, %v2194
      %2252 = vst.msk [vmem:[#allocation2 + $0xd1] sm:$0x40] %vm2211, %v2195
      %2253 = vst.msk [vmem:[#allocation2 + $0xd9] sm:$0xff] %vm2206, %v2196
      %2254 = vst.msk [vmem:[#allocation2 + $0xe1] sm:$0xff] %vm2206, %v2197
      %2255 = vst.msk [vmem:[#allocation2 + $0xd7] sm:$0x2] %vm2209, %v2196
      %2256 = vst.msk [vmem:[#allocation2 + $0xe3] sm:$0x40] %vm2211, %v2197
      %2257 = vst.msk [vmem:[#allocation2 + $0xeb] sm:$0xff] %vm2206, %v2198
      %2258 = vst.msk [vmem:[#allocation2 + $0xf3] sm:$0xff] %vm2206, %v2199
      %2259 = vst.msk [vmem:[#allocation2 + $0xe9] sm:$0x2] %vm2209, %v2198
      %2260 = vst.msk [vmem:[#allocation2 + $0xf5] sm:$0x40] %vm2211, %v2199
      %2261 = vst.msk [vmem:[#allocation2 + $0xfd] sm:$0xff] %vm2206, %v2200
      %2262 = vst.msk [vmem:[#allocation2 + $0x105] sm:$0xff] %vm2206, %v2201
      %2263 = vst.msk [vmem:[#allocation2 + $0xfb] sm:$0x2] %vm2209, %v2200
      %2264 = vst.msk [vmem:[#allocation2 + $0x107] sm:$0x40] %vm2211, %v2201
      %2265 = vst.msk [vmem:[#allocation2 + $0x10f] sm:$0xff] %vm2206, %v2202
      %2266 = vst.msk [vmem:[#allocation2 + $0x117] sm:$0xff] %vm2206, %v2203
      %2267 = vst.msk [vmem:[#allocation2 + $0x10d] sm:$0x2] %vm2209, %v2202
      %2268 = vst.msk [vmem:[#allocation2 + $0x119] sm:$0x40] %vm2211, %v2203
      %2269 = vst.msk [vmem:[#allocation2 + $0x121] sm:$0xff] %vm2206, %v2204
      %2270 = vst.msk [vmem:[#allocation2 + $0x129] sm:$0xff] %vm2206, %v2205
      %2271 = vst.msk [vmem:[#allocation2 + $0x11f] sm:$0x2] %vm2209, %v2204
      %2272 = vst.msk [vmem:[#allocation2 + $0x12b] sm:$0x40] %vm2211, %v2205
      %v2273 = vld [vmem:[#allocation2 + $0x24] sm:$0xff]
      %v2274 = vld [vmem:[#allocation2 + $0x2c] sm:$0xff]
      %v2275 = vld [vmem:[#allocation2 + $0x34] sm:$0x3]
      %2276 = vst.msk [vmem:[#allocation2] sm:$0xff] %vm2206, %v2273
      %2277 = vst.msk [vmem:[#allocation2 + $0x8] sm:$0xff] %vm2206, %v2274
      %vm2278 = vcmask 58368
      %2279 = vst.msk [vmem:[#allocation2 + $0x10] sm:$0x3] %vm2278, %v2275
      %v2280 = vld [vmem:[#allocation2 + $0x10e] sm:$0xff]
      %v2281 = vld [vmem:[#allocation2 + $0x116] sm:$0xff]
      %v2282 = vld [vmem:[#allocation2 + $0x11e] sm:$0x3]
      %2283 = vst.msk [vmem:[#allocation2 + $0x132] sm:$0xff] %vm2206, %v2280
      %2284 = vst.msk [vmem:[#allocation2 + $0x13a] sm:$0xff] %vm2206, %v2281
      %2285 = vst.msk [vmem:[#allocation2 + $0x142] sm:$0x3] %vm2278, %v2282
      %v2286 = vld [vmem:[#allocation2] ss:$2 sm:$0xff]
      %s2287 = scalar_lea.vmem [#allocation2], 1
      %v2288 = vld [vmem:[%s2287] ss:$2 sm:$0xff]
      %s2289 = scalar_lea.vmem [#allocation2], 2
      %v2290 = vld [vmem:[%s2289] ss:$2 sm:$0xff]
      %s2291 = scalar_lea.vmem [#allocation2], 3
      %v2292 = vld [vmem:[%s2291] ss:$2 sm:$0xff]
      %s2293 = scalar_lea.vmem [#allocation2], 18
      %v2294 = vld [vmem:[%s2293] ss:$2 sm:$0xff]
      %s2295 = scalar_lea.vmem [#allocation2], 19
      %v2296 = vld [vmem:[%s2295] ss:$2 sm:$0xff]
      %s2297 = scalar_lea.vmem [#allocation2], 20
      %v2298 = vld [vmem:[%s2297] ss:$2 sm:$0xff]
      %s2299 = scalar_lea.vmem [#allocation2], 21
      %v2300 = vld [vmem:[%s2299] ss:$2 sm:$0xff]
      %s2301 = scalar_lea.vmem [#allocation2], 36
      %v2302 = vld [vmem:[%s2301] ss:$2 sm:$0xff]
      %s2303 = scalar_lea.vmem [#allocation2], 37
      %v2304 = vld [vmem:[%s2303] ss:$2 sm:$0xff]
      %s2305 = scalar_lea.vmem [#allocation2], 38
      %v2306 = vld [vmem:[%s2305] ss:$2 sm:$0xff]
      %s2307 = scalar_lea.vmem [#allocation2], 39
      %v2308 = vld [vmem:[%s2307] ss:$2 sm:$0xff]
      %s2309 = scalar_lea.vmem [#allocation2], 54
      %v2310 = vld [vmem:[%s2309] ss:$2 sm:$0xff]
      %s2311 = scalar_lea.vmem [#allocation2], 55
      %v2312 = vld [vmem:[%s2311] ss:$2 sm:$0xff]
      %s2313 = scalar_lea.vmem [#allocation2], 56
      %v2314 = vld [vmem:[%s2313] ss:$2 sm:$0xff]
      %s2315 = scalar_lea.vmem [#allocation2], 57
      %v2316 = vld [vmem:[%s2315] ss:$2 sm:$0xff]
      %2318 = vrot.lane.b32.xlu0 %v2288, 8
      %v2319 = vpop.permute.xlu0 %2318
      %2322 = vrot.lane.b32.xlu0 %v2290, 16
      %v2323 = vpop.permute.xlu0 %2322
      %2326 = vrot.lane.b32.xlu0 %v2292, 24
      %v2327 = vpop.permute.xlu0 %2326
      %2330 = vrot.lane.b32.xlu0 %v2294, 32
      %v2331 = vpop.permute.xlu0 %2330
      %2334 = vrot.lane.b32.xlu0 %v2296, 40
      %v2335 = vpop.permute.xlu0 %2334
      %2338 = vrot.lane.b32.xlu0 %v2298, 48
      %v2339 = vpop.permute.xlu0 %2338
      %2342 = vrot.lane.b32.xlu0 %v2300, 56
      %v2343 = vpop.permute.xlu0 %2342
      %2346 = vrot.lane.b32.xlu0 %v2302, 64
      %v2347 = vpop.permute.xlu0 %2346
      %2350 = vrot.lane.b32.xlu0 %v2304, 72
      %v2351 = vpop.permute.xlu0 %2350
      %2354 = vrot.lane.b32.xlu0 %v2306, 80
      %v2355 = vpop.permute.xlu0 %2354
      %2358 = vrot.lane.b32.xlu0 %v2308, 88
      %v2359 = vpop.permute.xlu0 %2358
      %2362 = vrot.lane.b32.xlu0 %v2310, 96
      %v2363 = vpop.permute.xlu0 %2362
      %2366 = vrot.lane.b32.xlu0 %v2312, 104
      %v2367 = vpop.permute.xlu0 %2366
      %2370 = vrot.lane.b32.xlu0 %v2314, 112
      %v2371 = vpop.permute.xlu0 %2370
      %2374 = vrot.lane.b32.xlu0 %v2316, 120
      %v2375 = vpop.permute.xlu0 %2374
      %v2377 = vsel %vm2206, %v2286, %v2319
      %vm2378 = vcmask 130048
      %v2379 = vsel %vm2378, %v2377, %v2323
      %v2380 = vsel %vm427, %v2379, %v2327
      %vm2381 = vcmask 261120
      %v2382 = vsel %vm2381, %v2380, %v2331
      %vm2383 = vcmask 326656
      %v2384 = vsel %vm2383, %v2382, %v2335
      %vm2385 = vcmask 392192
      %v2386 = vsel %vm2385, %v2384, %v2339
      %vm2387 = vcmask 457728
      %v2388 = vsel %vm2387, %v2386, %v2343
      %vm2389 = vcmask 523264
      %v2390 = vsel %vm2389, %v2388, %v2347
      %vm2391 = vcmask 588800
      %v2392 = vsel %vm2391, %v2390, %v2351
      %vm2393 = vcmask 654336
      %v2394 = vsel %vm2393, %v2392, %v2355
      %vm2395 = vcmask 719872
      %v2396 = vsel %vm2395, %v2394, %v2359
      %vm2397 = vcmask 785408
      %v2398 = vsel %vm2397, %v2396, %v2363
      %vm2399 = vcmask 850944
      %v2400 = vsel %vm2399, %v2398, %v2367
      %vm2401 = vcmask 916480
      %v2402 = vsel %vm2401, %v2400, %v2371
      %vm2403 = vcmask 982016
      %v2404 = vsel %vm2403, %v2402, %v2375
      %s2405 = scalar_lea.vmem [#allocation2], 72
      %v2406 = vld [vmem:[%s2405] ss:$2 sm:$0xff]
      %s2407 = scalar_lea.vmem [#allocation2], 73
      %v2408 = vld [vmem:[%s2407] ss:$2 sm:$0xff]
      %s2409 = scalar_lea.vmem [#allocation2], 74
      %v2410 = vld [vmem:[%s2409] ss:$2 sm:$0xff]
      %s2411 = scalar_lea.vmem [#allocation2], 75
      %v2412 = vld [vmem:[%s2411] ss:$2 sm:$0xff]
      %s2413 = scalar_lea.vmem [#allocation2], 90
      %v2414 = vld [vmem:[%s2413] ss:$2 sm:$0xff]
      %s2415 = scalar_lea.vmem [#allocation2], 91
      %v2416 = vld [vmem:[%s2415] ss:$2 sm:$0xff]
      %s2417 = scalar_lea.vmem [#allocation2], 92
      %v2418 = vld [vmem:[%s2417] ss:$2 sm:$0xff]
      %s2419 = scalar_lea.vmem [#allocation2], 93
      %v2420 = vld [vmem:[%s2419] ss:$2 sm:$0xff]
      %2421 = vrot.lane.b32.xlu0 %v2304, 8
      %v2422 = vpop.permute.xlu0 %2421
      %2424 = vrot.lane.b32.xlu0 %v2306, 16
      %v2425 = vpop.permute.xlu0 %2424
      %2427 = vrot.lane.b32.xlu0 %v2308, 24
      %v2428 = vpop.permute.xlu0 %2427
      %2430 = vrot.lane.b32.xlu0 %v2310, 32
      %v2431 = vpop.permute.xlu0 %2430
      %2433 = vrot.lane.b32.xlu0 %v2312, 40
      %v2434 = vpop.permute.xlu0 %2433
      %2436 = vrot.lane.b32.xlu0 %v2314, 48
      %v2437 = vpop.permute.xlu0 %2436
      %2439 = vrot.lane.b32.xlu0 %v2316, 56
      %v2440 = vpop.permute.xlu0 %2439
      %2443 = vrot.lane.b32.xlu0 %v2406, 64
      %v2444 = vpop.permute.xlu0 %2443
      %2447 = vrot.lane.b32.xlu0 %v2408, 72
      %v2448 = vpop.permute.xlu0 %2447
      %2451 = vrot.lane.b32.xlu0 %v2410, 80
      %v2452 = vpop.permute.xlu0 %2451
      %2455 = vrot.lane.b32.xlu0 %v2412, 88
      %v2456 = vpop.permute.xlu0 %2455
      %2459 = vrot.lane.b32.xlu0 %v2414, 96
      %v2460 = vpop.permute.xlu0 %2459
      %2463 = vrot.lane.b32.xlu0 %v2416, 104
      %v2464 = vpop.permute.xlu0 %2463
      %2467 = vrot.lane.b32.xlu0 %v2418, 112
      %v2468 = vpop.permute.xlu0 %2467
      %2471 = vrot.lane.b32.xlu0 %v2420, 120
      %v2472 = vpop.permute.xlu0 %2471
      %v2474 = vsel %vm2206, %v2302, %v2422
      %v2475 = vsel %vm2378, %v2474, %v2425
      %v2476 = vsel %vm427, %v2475, %v2428
      %v2477 = vsel %vm2381, %v2476, %v2431
      %v2478 = vsel %vm2383, %v2477, %v2434
      %v2479 = vsel %vm2385, %v2478, %v2437
      %v2480 = vsel %vm2387, %v2479, %v2440
      %v2481 = vsel %vm2389, %v2480, %v2444
      %v2482 = vsel %vm2391, %v2481, %v2448
      %v2483 = vsel %vm2393, %v2482, %v2452
      %v2484 = vsel %vm2395, %v2483, %v2456
      %v2485 = vsel %vm2397, %v2484, %v2460
      %v2486 = vsel %vm2399, %v2485, %v2464
      %v2487 = vsel %vm2401, %v2486, %v2468
      %v2488 = vsel %vm2403, %v2487, %v2472
      %s2489 = scalar_lea.vmem [#allocation2], 108
      %v2490 = vld [vmem:[%s2489] ss:$2 sm:$0xff]
      %s2491 = scalar_lea.vmem [#allocation2], 109
      %v2492 = vld [vmem:[%s2491] ss:$2 sm:$0xff]
      %s2493 = scalar_lea.vmem [#allocation2], 110
      %v2494 = vld [vmem:[%s2493] ss:$2 sm:$0xff]
      %s2495 = scalar_lea.vmem [#allocation2], 111
      %v2496 = vld [vmem:[%s2495] ss:$2 sm:$0xff]
      %s2497 = scalar_lea.vmem [#allocation2], 126
      %v2498 = vld [vmem:[%s2497] ss:$2 sm:$0xff]
      %s2499 = scalar_lea.vmem [#allocation2], 127
      %v2500 = vld [vmem:[%s2499] ss:$2 sm:$0xff]
      %s2501 = scalar_lea.vmem [#allocation2], 128
      %v2502 = vld [vmem:[%s2501] ss:$2 sm:$0xff]
      %s2503 = scalar_lea.vmem [#allocation2], 129
      %v2504 = vld [vmem:[%s2503] ss:$2 sm:$0xff]
      %2505 = vrot.lane.b32.xlu0 %v2408, 8
      %v2506 = vpop.permute.xlu0 %2505
      %2508 = vrot.lane.b32.xlu0 %v2410, 16
      %v2509 = vpop.permute.xlu0 %2508
      %2511 = vrot.lane.b32.xlu0 %v2412, 24
      %v2512 = vpop.permute.xlu0 %2511
      %2514 = vrot.lane.b32.xlu0 %v2414, 32
      %v2515 = vpop.permute.xlu0 %2514
      %2517 = vrot.lane.b32.xlu0 %v2416, 40
      %v2518 = vpop.permute.xlu0 %2517
      %2520 = vrot.lane.b32.xlu0 %v2418, 48
      %v2521 = vpop.permute.xlu0 %2520
      %2523 = vrot.lane.b32.xlu0 %v2420, 56
      %v2524 = vpop.permute.xlu0 %2523
      %2527 = vrot.lane.b32.xlu0 %v2490, 64
      %v2528 = vpop.permute.xlu0 %2527
      %2531 = vrot.lane.b32.xlu0 %v2492, 72
      %v2532 = vpop.permute.xlu0 %2531
      %2535 = vrot.lane.b32.xlu0 %v2494, 80
      %v2536 = vpop.permute.xlu0 %2535
      %2539 = vrot.lane.b32.xlu0 %v2496, 88
      %v2540 = vpop.permute.xlu0 %2539
      %2543 = vrot.lane.b32.xlu0 %v2498, 96
      %v2544 = vpop.permute.xlu0 %2543
      %2547 = vrot.lane.b32.xlu0 %v2500, 104
      %v2548 = vpop.permute.xlu0 %2547
      %2551 = vrot.lane.b32.xlu0 %v2502, 112
      %v2552 = vpop.permute.xlu0 %2551
      %2555 = vrot.lane.b32.xlu0 %v2504, 120
      %v2556 = vpop.permute.xlu0 %2555
      %v2558 = vsel %vm2206, %v2406, %v2506
      %v2559 = vsel %vm2378, %v2558, %v2509
      %v2560 = vsel %vm427, %v2559, %v2512
      %v2561 = vsel %vm2381, %v2560, %v2515
      %v2562 = vsel %vm2383, %v2561, %v2518
      %v2563 = vsel %vm2385, %v2562, %v2521
      %v2564 = vsel %vm2387, %v2563, %v2524
      %v2565 = vsel %vm2389, %v2564, %v2528
      %v2566 = vsel %vm2391, %v2565, %v2532
      %v2567 = vsel %vm2393, %v2566, %v2536
      %v2568 = vsel %vm2395, %v2567, %v2540
      %v2569 = vsel %vm2397, %v2568, %v2544
      %v2570 = vsel %vm2399, %v2569, %v2548
      %v2571 = vsel %vm2401, %v2570, %v2552
      %v2572 = vsel %vm2403, %v2571, %v2556
      %s2573 = scalar_lea.vmem [#allocation2], 144
      %v2574 = vld [vmem:[%s2573] ss:$2 sm:$0xff]
      %s2575 = scalar_lea.vmem [#allocation2], 145
      %v2576 = vld [vmem:[%s2575] ss:$2 sm:$0xff]
      %s2577 = scalar_lea.vmem [#allocation2], 146
      %v2578 = vld [vmem:[%s2577] ss:$2 sm:$0xff]
      %s2579 = scalar_lea.vmem [#allocation2], 147
      %v2580 = vld [vmem:[%s2579] ss:$2 sm:$0xff]
      %s2581 = scalar_lea.vmem [#allocation2], 162
      %v2582 = vld [vmem:[%s2581] ss:$2 sm:$0xff]
      %s2583 = scalar_lea.vmem [#allocation2], 163
      %v2584 = vld [vmem:[%s2583] ss:$2 sm:$0xff]
      %s2585 = scalar_lea.vmem [#allocation2], 164
      %v2586 = vld [vmem:[%s2585] ss:$2 sm:$0xff]
      %s2587 = scalar_lea.vmem [#allocation2], 165
      %v2588 = vld [vmem:[%s2587] ss:$2 sm:$0xff]
      %2589 = vrot.lane.b32.xlu0 %v2492, 8
      %v2590 = vpop.permute.xlu0 %2589
      %2592 = vrot.lane.b32.xlu0 %v2494, 16
      %v2593 = vpop.permute.xlu0 %2592
      %2595 = vrot.lane.b32.xlu0 %v2496, 24
      %v2596 = vpop.permute.xlu0 %2595
      %2598 = vrot.lane.b32.xlu0 %v2498, 32
      %v2599 = vpop.permute.xlu0 %2598
      %2601 = vrot.lane.b32.xlu0 %v2500, 40
      %v2602 = vpop.permute.xlu0 %2601
      %2604 = vrot.lane.b32.xlu0 %v2502, 48
      %v2605 = vpop.permute.xlu0 %2604
      %2607 = vrot.lane.b32.xlu0 %v2504, 56
      %v2608 = vpop.permute.xlu0 %2607
      %2611 = vrot.lane.b32.xlu0 %v2574, 64
      %v2612 = vpop.permute.xlu0 %2611
      %2615 = vrot.lane.b32.xlu0 %v2576, 72
      %v2616 = vpop.permute.xlu0 %2615
      %2619 = vrot.lane.b32.xlu0 %v2578, 80
      %v2620 = vpop.permute.xlu0 %2619
      %2623 = vrot.lane.b32.xlu0 %v2580, 88
      %v2624 = vpop.permute.xlu0 %2623
      %2627 = vrot.lane.b32.xlu0 %v2582, 96
      %v2628 = vpop.permute.xlu0 %2627
      %2631 = vrot.lane.b32.xlu0 %v2584, 104
      %v2632 = vpop.permute.xlu0 %2631
      %2635 = vrot.lane.b32.xlu0 %v2586, 112
      %v2636 = vpop.permute.xlu0 %2635
      %2639 = vrot.lane.b32.xlu0 %v2588, 120
      %v2640 = vpop.permute.xlu0 %2639
      %v2642 = vsel %vm2206, %v2490, %v2590
      %v2643 = vsel %vm2378, %v2642, %v2593
      %v2644 = vsel %vm427, %v2643, %v2596
      %v2645 = vsel %vm2381, %v2644, %v2599
      %v2646 = vsel %vm2383, %v2645, %v2602
      %v2647 = vsel %vm2385, %v2646, %v2605
      %v2648 = vsel %vm2387, %v2647, %v2608
      %v2649 = vsel %vm2389, %v2648, %v2612
      %v2650 = vsel %vm2391, %v2649, %v2616
      %v2651 = vsel %vm2393, %v2650, %v2620
      %v2652 = vsel %vm2395, %v2651, %v2624
      %v2653 = vsel %vm2397, %v2652, %v2628
      %v2654 = vsel %vm2399, %v2653, %v2632
      %v2655 = vsel %vm2401, %v2654, %v2636
      %v2656 = vsel %vm2403, %v2655, %v2640
      %s2657 = scalar_lea.vmem [#allocation2], 180
      %v2658 = vld [vmem:[%s2657] ss:$2 sm:$0xff]
      %s2659 = scalar_lea.vmem [#allocation2], 181
      %v2660 = vld [vmem:[%s2659] ss:$2 sm:$0xff]
      %s2661 = scalar_lea.vmem [#allocation2], 182
      %v2662 = vld [vmem:[%s2661] ss:$2 sm:$0xff]
      %s2663 = scalar_lea.vmem [#allocation2], 183
      %v2664 = vld [vmem:[%s2663] ss:$2 sm:$0xff]
      %s2665 = scalar_lea.vmem [#allocation2], 198
      %v2666 = vld [vmem:[%s2665] ss:$2 sm:$0xff]
      %s2667 = scalar_lea.vmem [#allocation2], 199
      %v2668 = vld [vmem:[%s2667] ss:$2 sm:$0xff]
      %s2669 = scalar_lea.vmem [#allocation2], 200
      %v2670 = vld [vmem:[%s2669] ss:$2 sm:$0xff]
      %s2671 = scalar_lea.vmem [#allocation2], 201
      %v2672 = vld [vmem:[%s2671] ss:$2 sm:$0xff]
      %2673 = vrot.lane.b32.xlu0 %v2576, 8
      %v2674 = vpop.permute.xlu0 %2673
      %2676 = vrot.lane.b32.xlu0 %v2578, 16
      %v2677 = vpop.permute.xlu0 %2676
      %2679 = vrot.lane.b32.xlu0 %v2580, 24
      %v2680 = vpop.permute.xlu0 %2679
      %2682 = vrot.lane.b32.xlu0 %v2582, 32
      %v2683 = vpop.permute.xlu0 %2682
      %2685 = vrot.lane.b32.xlu0 %v2584, 40
      %v2686 = vpop.permute.xlu0 %2685
      %2688 = vrot.lane.b32.xlu0 %v2586, 48
      %v2689 = vpop.permute.xlu0 %2688
      %2691 = vrot.lane.b32.xlu0 %v2588, 56
      %v2692 = vpop.permute.xlu0 %2691
      %2695 = vrot.lane.b32.xlu0 %v2658, 64
      %v2696 = vpop.permute.xlu0 %2695
      %2699 = vrot.lane.b32.xlu0 %v2660, 72
      %v2700 = vpop.permute.xlu0 %2699
      %2703 = vrot.lane.b32.xlu0 %v2662, 80
      %v2704 = vpop.permute.xlu0 %2703
      %2707 = vrot.lane.b32.xlu0 %v2664, 88
      %v2708 = vpop.permute.xlu0 %2707
      %2711 = vrot.lane.b32.xlu0 %v2666, 96
      %v2712 = vpop.permute.xlu0 %2711
      %2715 = vrot.lane.b32.xlu0 %v2668, 104
      %v2716 = vpop.permute.xlu0 %2715
      %2719 = vrot.lane.b32.xlu0 %v2670, 112
      %v2720 = vpop.permute.xlu0 %2719
      %2723 = vrot.lane.b32.xlu0 %v2672, 120
      %v2724 = vpop.permute.xlu0 %2723
      %v2726 = vsel %vm2206, %v2574, %v2674
      %v2727 = vsel %vm2378, %v2726, %v2677
      %v2728 = vsel %vm427, %v2727, %v2680
      %v2729 = vsel %vm2381, %v2728, %v2683
      %v2730 = vsel %vm2383, %v2729, %v2686
      %v2731 = vsel %vm2385, %v2730, %v2689
      %v2732 = vsel %vm2387, %v2731, %v2692
      %v2733 = vsel %vm2389, %v2732, %v2696
      %v2734 = vsel %vm2391, %v2733, %v2700
      %v2735 = vsel %vm2393, %v2734, %v2704
      %v2736 = vsel %vm2395, %v2735, %v2708
      %v2737 = vsel %vm2397, %v2736, %v2712
      %v2738 = vsel %vm2399, %v2737, %v2716
      %v2739 = vsel %vm2401, %v2738, %v2720
      %v2740 = vsel %vm2403, %v2739, %v2724
      %s2741 = scalar_lea.vmem [#allocation2], 216
      %v2742 = vld [vmem:[%s2741] ss:$2 sm:$0xff]
      %s2743 = scalar_lea.vmem [#allocation2], 217
      %v2744 = vld [vmem:[%s2743] ss:$2 sm:$0xff]
      %s2745 = scalar_lea.vmem [#allocation2], 218
      %v2746 = vld [vmem:[%s2745] ss:$2 sm:$0xff]
      %s2747 = scalar_lea.vmem [#allocation2], 219
      %v2748 = vld [vmem:[%s2747] ss:$2 sm:$0xff]
      %s2749 = scalar_lea.vmem [#allocation2], 234
      %v2750 = vld [vmem:[%s2749] ss:$2 sm:$0xff]
      %s2751 = scalar_lea.vmem [#allocation2], 235
      %v2752 = vld [vmem:[%s2751] ss:$2 sm:$0xff]
      %s2753 = scalar_lea.vmem [#allocation2], 236
      %v2754 = vld [vmem:[%s2753] ss:$2 sm:$0xff]
      %s2755 = scalar_lea.vmem [#allocation2], 237
      %v2756 = vld [vmem:[%s2755] ss:$2 sm:$0xff]
      %2757 = vrot.lane.b32.xlu0 %v2660, 8
      %v2758 = vpop.permute.xlu0 %2757
      %2760 = vrot.lane.b32.xlu0 %v2662, 16
      %v2761 = vpop.permute.xlu0 %2760
      %2763 = vrot.lane.b32.xlu0 %v2664, 24
      %v2764 = vpop.permute.xlu0 %2763
      %2766 = vrot.lane.b32.xlu0 %v2666, 32
      %v2767 = vpop.permute.xlu0 %2766
      %2769 = vrot.lane.b32.xlu0 %v2668, 40
      %v2770 = vpop.permute.xlu0 %2769
      %2772 = vrot.lane.b32.xlu0 %v2670, 48
      %v2773 = vpop.permute.xlu0 %2772
      %2775 = vrot.lane.b32.xlu0 %v2672, 56
      %v2776 = vpop.permute.xlu0 %2775
      %2779 = vrot.lane.b32.xlu0 %v2742, 64
      %v2780 = vpop.permute.xlu0 %2779
      %2783 = vrot.lane.b32.xlu0 %v2744, 72
      %v2784 = vpop.permute.xlu0 %2783
      %2787 = vrot.lane.b32.xlu0 %v2746, 80
      %v2788 = vpop.permute.xlu0 %2787
      %2791 = vrot.lane.b32.xlu0 %v2748, 88
      %v2792 = vpop.permute.xlu0 %2791
      %2795 = vrot.lane.b32.xlu0 %v2750, 96
      %v2796 = vpop.permute.xlu0 %2795
      %2799 = vrot.lane.b32.xlu0 %v2752, 104
      %v2800 = vpop.permute.xlu0 %2799
      %2803 = vrot.lane.b32.xlu0 %v2754, 112
      %v2804 = vpop.permute.xlu0 %2803
      %2807 = vrot.lane.b32.xlu0 %v2756, 120
      %v2808 = vpop.permute.xlu0 %2807
      %v2810 = vsel %vm2206, %v2658, %v2758
      %v2811 = vsel %vm2378, %v2810, %v2761
      %v2812 = vsel %vm427, %v2811, %v2764
      %v2813 = vsel %vm2381, %v2812, %v2767
      %v2814 = vsel %vm2383, %v2813, %v2770
      %v2815 = vsel %vm2385, %v2814, %v2773
      %v2816 = vsel %vm2387, %v2815, %v2776
      %v2817 = vsel %vm2389, %v2816, %v2780
      %v2818 = vsel %vm2391, %v2817, %v2784
      %v2819 = vsel %vm2393, %v2818, %v2788
      %v2820 = vsel %vm2395, %v2819, %v2792
      %v2821 = vsel %vm2397, %v2820, %v2796
      %v2822 = vsel %vm2399, %v2821, %v2800
      %v2823 = vsel %vm2401, %v2822, %v2804
      %v2824 = vsel %vm2403, %v2823, %v2808
      %s2825 = scalar_lea.vmem [#allocation2], 252
      %v2826 = vld [vmem:[%s2825] ss:$2 sm:$0xff]
      %s2827 = scalar_lea.vmem [#allocation2], 253
      %v2828 = vld [vmem:[%s2827] ss:$2 sm:$0xff]
      %s2829 = scalar_lea.vmem [#allocation2], 254
      %v2830 = vld [vmem:[%s2829] ss:$2 sm:$0xff]
      %s2831 = scalar_lea.vmem [#allocation2], 255
      %v2832 = vld [vmem:[%s2831] ss:$2 sm:$0xff]
      %s2833 = scalar_lea.vmem [#allocation2], 270
      %v2834 = vld [vmem:[%s2833] ss:$2 sm:$0xff]
      %s2835 = scalar_lea.vmem [#allocation2], 271
      %v2836 = vld [vmem:[%s2835] ss:$2 sm:$0xff]
      %s2837 = scalar_lea.vmem [#allocation2], 272
      %v2838 = vld [vmem:[%s2837] ss:$2 sm:$0xff]
      %s2839 = scalar_lea.vmem [#allocation2], 273
      %v2840 = vld [vmem:[%s2839] ss:$2 sm:$0xff]
      %2841 = vrot.lane.b32.xlu0 %v2744, 8
      %v2842 = vpop.permute.xlu0 %2841
      %2844 = vrot.lane.b32.xlu0 %v2746, 16
      %v2845 = vpop.permute.xlu0 %2844
      %2847 = vrot.lane.b32.xlu0 %v2748, 24
      %v2848 = vpop.permute.xlu0 %2847
      %2850 = vrot.lane.b32.xlu0 %v2750, 32
      %v2851 = vpop.permute.xlu0 %2850
      %2853 = vrot.lane.b32.xlu0 %v2752, 40
      %v2854 = vpop.permute.xlu0 %2853
      %2856 = vrot.lane.b32.xlu0 %v2754, 48
      %v2857 = vpop.permute.xlu0 %2856
      %2859 = vrot.lane.b32.xlu0 %v2756, 56
      %v2860 = vpop.permute.xlu0 %2859
      %2863 = vrot.lane.b32.xlu0 %v2826, 64
      %v2864 = vpop.permute.xlu0 %2863
      %2867 = vrot.lane.b32.xlu0 %v2828, 72
      %v2868 = vpop.permute.xlu0 %2867
      %2871 = vrot.lane.b32.xlu0 %v2830, 80
      %v2872 = vpop.permute.xlu0 %2871
      %2875 = vrot.lane.b32.xlu0 %v2832, 88
      %v2876 = vpop.permute.xlu0 %2875
      %2879 = vrot.lane.b32.xlu0 %v2834, 96
      %v2880 = vpop.permute.xlu0 %2879
      %2883 = vrot.lane.b32.xlu0 %v2836, 104
      %v2884 = vpop.permute.xlu0 %2883
      %2887 = vrot.lane.b32.xlu0 %v2838, 112
      %v2888 = vpop.permute.xlu0 %2887
      %2891 = vrot.lane.b32.xlu0 %v2840, 120
      %v2892 = vpop.permute.xlu0 %2891
      %v2894 = vsel %vm2206, %v2742, %v2842
      %v2895 = vsel %vm2378, %v2894, %v2845
      %v2896 = vsel %vm427, %v2895, %v2848
      %v2897 = vsel %vm2381, %v2896, %v2851
      %v2898 = vsel %vm2383, %v2897, %v2854
      %v2899 = vsel %vm2385, %v2898, %v2857
      %v2900 = vsel %vm2387, %v2899, %v2860
      %v2901 = vsel %vm2389, %v2900, %v2864
      %v2902 = vsel %vm2391, %v2901, %v2868
      %v2903 = vsel %vm2393, %v2902, %v2872
      %v2904 = vsel %vm2395, %v2903, %v2876
      %v2905 = vsel %vm2397, %v2904, %v2880
      %v2906 = vsel %vm2399, %v2905, %v2884
      %v2907 = vsel %vm2401, %v2906, %v2888
      %v2908 = vsel %vm2403, %v2907, %v2892
      %s2909 = scalar_lea.vmem [#allocation2], 288
      %v2910 = vld [vmem:[%s2909] ss:$2 sm:$0xff]
      %s2911 = scalar_lea.vmem [#allocation2], 289
      %v2912 = vld [vmem:[%s2911] ss:$2 sm:$0xff]
      %s2913 = scalar_lea.vmem [#allocation2], 290
      %v2914 = vld [vmem:[%s2913] ss:$2 sm:$0xff]
      %s2915 = scalar_lea.vmem [#allocation2], 291
      %v2916 = vld [vmem:[%s2915] ss:$2 sm:$0xff]
      %s2917 = scalar_lea.vmem [#allocation2], 306
      %v2918 = vld [vmem:[%s2917] ss:$2 sm:$0xff]
      %s2919 = scalar_lea.vmem [#allocation2], 307
      %v2920 = vld [vmem:[%s2919] ss:$2 sm:$0xff]
      %s2921 = scalar_lea.vmem [#allocation2], 308
      %v2922 = vld [vmem:[%s2921] ss:$2 sm:$0xff]
      %s2923 = scalar_lea.vmem [#allocation2], 309
      %v2924 = vld [vmem:[%s2923] ss:$2 sm:$0xff]
      %2925 = vrot.lane.b32.xlu0 %v2828, 8
      %v2926 = vpop.permute.xlu0 %2925
      %2928 = vrot.lane.b32.xlu0 %v2830, 16
      %v2929 = vpop.permute.xlu0 %2928
      %2931 = vrot.lane.b32.xlu0 %v2832, 24
      %v2932 = vpop.permute.xlu0 %2931
      %2934 = vrot.lane.b32.xlu0 %v2834, 32
      %v2935 = vpop.permute.xlu0 %2934
      %2937 = vrot.lane.b32.xlu0 %v2836, 40
      %v2938 = vpop.permute.xlu0 %2937
      %2940 = vrot.lane.b32.xlu0 %v2838, 48
      %v2941 = vpop.permute.xlu0 %2940
      %2943 = vrot.lane.b32.xlu0 %v2840, 56
      %v2944 = vpop.permute.xlu0 %2943
      %2947 = vrot.lane.b32.xlu0 %v2910, 64
      %v2948 = vpop.permute.xlu0 %2947
      %2951 = vrot.lane.b32.xlu0 %v2912, 72
      %v2952 = vpop.permute.xlu0 %2951
      %2955 = vrot.lane.b32.xlu0 %v2914, 80
      %v2956 = vpop.permute.xlu0 %2955
      %2959 = vrot.lane.b32.xlu0 %v2916, 88
      %v2960 = vpop.permute.xlu0 %2959
      %2963 = vrot.lane.b32.xlu0 %v2918, 96
      %v2964 = vpop.permute.xlu0 %2963
      %2967 = vrot.lane.b32.xlu0 %v2920, 104
      %v2968 = vpop.permute.xlu0 %2967
      %2971 = vrot.lane.b32.xlu0 %v2922, 112
      %v2972 = vpop.permute.xlu0 %2971
      %2975 = vrot.lane.b32.xlu0 %v2924, 120
      %v2976 = vpop.permute.xlu0 %2975
      %v2978 = vsel %vm2206, %v2826, %v2926
      %v2979 = vsel %vm2378, %v2978, %v2929
      %v2980 = vsel %vm427, %v2979, %v2932
      %v2981 = vsel %vm2381, %v2980, %v2935
      %v2982 = vsel %vm2383, %v2981, %v2938
      %v2983 = vsel %vm2385, %v2982, %v2941
      %v2984 = vsel %vm2387, %v2983, %v2944
      %v2985 = vsel %vm2389, %v2984, %v2948
      %v2986 = vsel %vm2391, %v2985, %v2952
      %v2987 = vsel %vm2393, %v2986, %v2956
      %v2988 = vsel %vm2395, %v2987, %v2960
      %v2989 = vsel %vm2397, %v2988, %v2964
      %v2990 = vsel %vm2399, %v2989, %v2968
      %v2991 = vsel %vm2401, %v2990, %v2972
      %v2992 = vsel %vm2403, %v2991, %v2976
      %v2993 = vpack.c.bf16 %v2488, %v2404
      %v2994 = vpack.c.bf16 %v2656, %v2572
      %v2995 = vpack.c.bf16 %v2824, %v2740
      %v2996 = vpack.c.bf16 %v2992, %v2908
      %v2997 = vld [vmem:[%s3] sm:$0xf]
      %v2998 = vld [vmem:[%s3 + $0x4] sm:$0xf]
      %v2999 = vld [vmem:[%s3 + $0x8] sm:$0xf]
      %v3000 = vld [vmem:[%s3 + $0xc] sm:$0xf]
      %v3001 = vld [vmem:[%s3 + $0x10] sm:$0xf]
      %v3002 = vld [vmem:[%s3 + $0x14] sm:$0xf]
      %v3003 = vld [vmem:[%s3 + $0x18] sm:$0xf]
      %v3004 = vld [vmem:[%s3 + $0x1c] sm:$0xf]
      %v3005 = vld [vmem:[%s3 + $0x20] sm:$0xf]
      %v3006 = vld [vmem:[%s3 + $0x24] sm:$0xf]
      %v3007 = vld [vmem:[%s3 + $0x28] sm:$0xf]
      %v3008 = vld [vmem:[%s3 + $0x2c] sm:$0xf]
      %v3009 = vld [vmem:[%s3 + $0x30] sm:$0xf]
      %v3010 = vld [vmem:[%s3 + $0x34] sm:$0xf]
      %v3011 = vld [vmem:[%s3 + $0x38] sm:$0xf]
      %v3012 = vld [vmem:[%s3 + $0x3c] sm:$0xf]
      %v3029 = vunpack.c.l.b16 %v2997
      %v3030 = vunpack.c.l.b16 %v2998
      %v3031 = vunpack.c.l.b16 %v2999
      %v3032 = vunpack.c.l.b16 %v3000
      %v3033 = vunpack.c.l.b16 %v3001
      %v3034 = vunpack.c.l.b16 %v3002
      %v3035 = vunpack.c.l.b16 %v3003
      %v3036 = vunpack.c.l.b16 %v3004
      %v3037 = vunpack.c.l.b16 %v3005
      %v3038 = vunpack.c.l.b16 %v3006
      %v3039 = vunpack.c.l.b16 %v3007
      %v3040 = vunpack.c.l.b16 %v3008
      %v3041 = vunpack.c.l.b16 %v3009
      %v3042 = vunpack.c.l.b16 %v3010
      %v3043 = vunpack.c.l.b16 %v3011
      %v3044 = vunpack.c.l.b16 %v3012
      %v3045 = vpack.c.b16 %v3030, %v3029
      %v3046 = vpack.c.b16 %v3032, %v3031
      %v3047 = vpack.c.b16 %v3034, %v3033
      %v3048 = vpack.c.b16 %v3036, %v3035
      %v3049 = vpack.c.b16 %v3038, %v3037
      %v3050 = vpack.c.b16 %v3040, %v3039
      %v3051 = vpack.c.b16 %v3042, %v3041
      %v3052 = vpack.c.b16 %v3044, %v3043
      %3061 = vmatpush.bf16.msra.mxu0 %v3052
      %3062 = vmatpush.bf16.msra.mxu0 %v3051
      %3063 = vmatpush.bf16.msra.mxu0 %v3050
      %3064 = vmatpush.bf16.msra.mxu0 %v3049
      %3065 = vmatpush.bf16.msra.mxu0 %v3048
      %3066 = vmatpush.bf16.msra.mxu0 %v3047
      %3067 = vmatpush.bf16.msra.mxu0 %v3046
      %3068 = vmatpush.bf16.msra.mxu0 %v3045
      %3069 = vmatmul.bf16.gmra.mxu0 %v2993
      %v3070 = vpop.f32.mrf.mxu0
      %v3071 = vadd.f32 0.0, %v3070
      %v3072 = vpop.f32.mrf.mxu0
      %v3073 = vadd.f32 0.0, %v3072
      %3074 = vmatmul.bf16.gmra.mxu0 %v2994
      %v3075 = vpop.f32.mrf.mxu0
      %v3076 = vadd.f32 0.0, %v3075
      %v3077 = vpop.f32.mrf.mxu0
      %v3078 = vadd.f32 0.0, %v3077
      %3079 = vmatmul.bf16.gmra.mxu0 %v2995
      %v3080 = vpop.f32.mrf.mxu0
      %v3081 = vadd.f32 0.0, %v3080
      %v3082 = vpop.f32.mrf.mxu0
      %v3083 = vadd.f32 0.0, %v3082
      %3084 = vmatmul.bf16.gmra.mxu0 %v2996
      %v3085 = vpop.f32.mrf.mxu0
      %v3086 = vadd.f32 0.0, %v3085
      %v3087 = vpop.f32.mrf.mxu0
      %v3088 = vadd.f32 0.0, %v3087
      %3089 = vdwg.mxu0
      %v3090 = vsel %vm2378, %v3071, 0.0
      %v3091 = vsel %vm2378, %v3073, 0.0
      %v3092 = vadd.f32 %v3090, %v3091
      %v3093 = vsel %vm2378, %v3076, 0.0
      %v3094 = vadd.f32 %v3092, %v3093
      %v3095 = vsel %vm2378, %v3078, 0.0
      %v3096 = vadd.f32 %v3094, %v3095
      %v3097 = vsel %vm2378, %v3081, 0.0
      %v3098 = vadd.f32 %v3096, %v3097
      %v3099 = vsel %vm2378, %v3083, 0.0
      %v3100 = vadd.f32 %v3098, %v3099
      %v3101 = vsel %vm2378, %v3086, 0.0
      %v3102 = vadd.f32 %v3100, %v3101
      %v3103 = vsel %vm2378, %v3088, 0.0
      %v3104 = vadd.f32 %v3102, %v3103
      %v3105 = vrot.slane %v3104, 4
      %v3106 = vadd.f32 %v3104, %v3105
      %v3107 = vrot.slane %v3106, 2
      %v3108 = vadd.f32 %v3106, %v3107
      %v3109 = vrot.slane %v3108, 1
      %v3110 = vadd.f32 %v3108, %v3109
      %v3111 = vrcp.pop 64.0
      %v3112 = vmul.f32 64.0, %v3111
      %v3113 = vsub.f32 1.0, %v3112
      %v3114 = vmul.f32 %v3111, %v3113
      %v3115 = vadd.f32 %v3111, %v3114
      %vm3116 = vweird.f32 %v3111
      %v3117 = vsel %vm3116, %v3111, %v3115
      %v3118 = vmul.f32 %v3110, %v3117
      %v3119 = vsub.f32 %v3071, %v3118
      %v3120 = vsub.f32 %v3073, %v3118
      %v3121 = vsub.f32 %v3076, %v3118
      %v3122 = vsub.f32 %v3078, %v3118
      %v3123 = vsub.f32 %v3081, %v3118
      %v3124 = vsub.f32 %v3083, %v3118
      %v3125 = vsub.f32 %v3086, %v3118
      %v3126 = vsub.f32 %v3088, %v3118
      %v3127 = vmul.f32 %v3119, %v3119
      %v3128 = vmul.f32 %v3120, %v3120
      %v3129 = vmul.f32 %v3121, %v3121
      %v3130 = vmul.f32 %v3122, %v3122
      %v3131 = vmul.f32 %v3123, %v3123
      %v3132 = vmul.f32 %v3124, %v3124
      %v3133 = vmul.f32 %v3125, %v3125
      %v3134 = vmul.f32 %v3126, %v3126
      %v3135 = vsel %vm2378, %v3127, 0.0
      %v3136 = vsel %vm2378, %v3128, 0.0
      %v3137 = vadd.f32 %v3135, %v3136
      %v3138 = vsel %vm2378, %v3129, 0.0
      %v3139 = vadd.f32 %v3137, %v3138
      %v3140 = vsel %vm2378, %v3130, 0.0
      %v3141 = vadd.f32 %v3139, %v3140
      %v3142 = vsel %vm2378, %v3131, 0.0
      %v3143 = vadd.f32 %v3141, %v3142
      %v3144 = vsel %vm2378, %v3132, 0.0
      %v3145 = vadd.f32 %v3143, %v3144
      %v3146 = vsel %vm2378, %v3133, 0.0
      %v3147 = vadd.f32 %v3145, %v3146
      %v3148 = vsel %vm2378, %v3134, 0.0
      %v3149 = vadd.f32 %v3147, %v3148
      %v3150 = vrot.slane %v3149, 4
      %v3151 = vadd.f32 %v3149, %v3150
      %v3152 = vrot.slane %v3151, 2
      %v3153 = vadd.f32 %v3151, %v3152
      %v3154 = vrot.slane %v3153, 1
      %v3155 = vadd.f32 %v3153, %v3154
      %v3156 = vmul.f32 %v3155, %v3117
      %v3157 = vadd.f32 %v3156, 1e-05
      %v3158 = vrsqrt.pop %v3157
      %v3159 = vmul.f32 %v3158, %v3157
      %v3160 = vmul.f32 %v3159, %v3158
      %v3161 = vmul.f32 0.5, %v3160
      %v3162 = vsub.f32 1.5, %v3161
      %v3163 = vmul.f32 %v3158, %v3162
      %vm3164 = vweird.f32 %v3157
      %vm3165 = vweird.f32 %v3158
      %vm3166 = vmor %vm3164, %vm3165
      %v3167 = vsel %vm3166, %v3158, %v3163
      %v3168 = vmul.f32 %v3119, %v3167
      %v3169 = vmul.f32 %v3120, %v3167
      %v3170 = vmul.f32 %v3121, %v3167
      %v3171 = vmul.f32 %v3122, %v3167
      %v3172 = vmul.f32 %v3123, %v3167
      %v3173 = vmul.f32 %v3124, %v3167
      %v3174 = vmul.f32 %v3125, %v3167
      %v3175 = vmul.f32 %v3126, %v3167
      %vm3176 = vcmp.gt.f32.partialorder %v3168, 0.0
      %vm3177 = vcmp.gt.f32.partialorder %v3169, 0.0
      %vm3178 = vcmp.gt.f32.partialorder %v3170, 0.0
      %vm3179 = vcmp.gt.f32.partialorder %v3171, 0.0
      %vm3180 = vcmp.gt.f32.partialorder %v3172, 0.0
      %vm3181 = vcmp.gt.f32.partialorder %v3173, 0.0
      %vm3182 = vcmp.gt.f32.partialorder %v3174, 0.0
      %vm3183 = vcmp.gt.f32.partialorder %v3175, 0.0
      %v3184 = vmul.f32 %v3168, 0.2
      %v3185 = vmul.f32 %v3169, 0.2
      %v3186 = vmul.f32 %v3170, 0.2
      %v3187 = vmul.f32 %v3171, 0.2
      %v3188 = vmul.f32 %v3172, 0.2
      %v3189 = vmul.f32 %v3173, 0.2
      %v3190 = vmul.f32 %v3174, 0.2
      %v3191 = vmul.f32 %v3175, 0.2
      %v3192 = vsel %vm3176, %v3168, %v3184
      %v3193 = vsel %vm3177, %v3169, %v3185
      %v3194 = vsel %vm3178, %v3170, %v3186
      %v3195 = vsel %vm3179, %v3171, %v3187
      %v3196 = vsel %vm3180, %v3172, %v3188
      %v3197 = vsel %vm3181, %v3173, %v3189
      %v3198 = vsel %vm3182, %v3174, %v3190
      %v3199 = vsel %vm3183, %v3175, %v3191
      %3200 = vst.msk [vmem:[#allocation3 + $0xb] sm:$0xff] %vm2378, %v3192
      %vm3201 = vcmask 123905
      %3202 = vst.msk [vmem:[#allocation3 + $0x9] sm:$0x2] %vm3201, %v3192
      %vm3203 = vcmask 129030
      %3204 = vst.msk [vmem:[#allocation3 + $0xd] sm:$0x40] %vm3203, %v3192
      %3205 = vst.msk [vmem:[#allocation3 + $0x15] sm:$0xff] %vm2378, %v3193
      %3206 = vst.msk [vmem:[#allocation3 + $0x13] sm:$0x2] %vm3201, %v3193
      %3207 = vst.msk [vmem:[#allocation3 + $0x17] sm:$0x40] %vm3203, %v3193
      %3208 = vst.msk [vmem:[#allocation3 + $0x1f] sm:$0xff] %vm2378, %v3194
      %3209 = vst.msk [vmem:[#allocation3 + $0x1d] sm:$0x2] %vm3201, %v3194
      %3210 = vst.msk [vmem:[#allocation3 + $0x21] sm:$0x40] %vm3203, %v3194
      %3211 = vst.msk [vmem:[#allocation3 + $0x29] sm:$0xff] %vm2378, %v3195
      %3212 = vst.msk [vmem:[#allocation3 + $0x27] sm:$0x2] %vm3201, %v3195
      %3213 = vst.msk [vmem:[#allocation3 + $0x2b] sm:$0x40] %vm3203, %v3195
      %3214 = vst.msk [vmem:[#allocation3 + $0x33] sm:$0xff] %vm2378, %v3196
      %3215 = vst.msk [vmem:[#allocation3 + $0x31] sm:$0x2] %vm3201, %v3196
      %3216 = vst.msk [vmem:[#allocation3 + $0x35] sm:$0x40] %vm3203, %v3196
      %3217 = vst.msk [vmem:[#allocation3 + $0x3d] sm:$0xff] %vm2378, %v3197
      %3218 = vst.msk [vmem:[#allocation3 + $0x3b] sm:$0x2] %vm3201, %v3197
      %3219 = vst.msk [vmem:[#allocation3 + $0x3f] sm:$0x40] %vm3203, %v3197
      %3220 = vst.msk [vmem:[#allocation3 + $0x47] sm:$0xff] %vm2378, %v3198
      %3221 = vst.msk [vmem:[#allocation3 + $0x45] sm:$0x2] %vm3201, %v3198
      %3222 = vst.msk [vmem:[#allocation3 + $0x49] sm:$0x40] %vm3203, %v3198
      %3223 = vst.msk [vmem:[#allocation3 + $0x51] sm:$0xff] %vm2378, %v3199
      %3224 = vst.msk [vmem:[#allocation3 + $0x4f] sm:$0x2] %vm3201, %v3199
      %3225 = vst.msk [vmem:[#allocation3 + $0x53] sm:$0x40] %vm3203, %v3199
      %v3226 = vld [vmem:[#allocation3 + $0x14] sm:$0xff]
      %v3227 = vld [vmem:[#allocation3 + $0x1c] sm:$0x3]
      %3228 = vst.msk [vmem:[#allocation3] sm:$0xff] %vm2378, %v3226
      %vm3229 = vcmask 123904
      %3230 = vst.msk [vmem:[#allocation3 + $0x8] sm:$0x3] %vm3229, %v3227
      %v3231 = vld [vmem:[#allocation3 + $0x46] sm:$0xff]
      %v3232 = vld [vmem:[#allocation3 + $0x4e] sm:$0x3]
      %3233 = vst.msk [vmem:[#allocation3 + $0x5a] sm:$0xff] %vm2378, %v3231
      %3234 = vst.msk [vmem:[#allocation3 + $0x62] sm:$0x3] %vm3229, %v3232
      %v3235 = vld [vmem:[#allocation3] ss:$2 sm:$0xf]
      %s3236 = scalar_lea.vmem [#allocation3], 1
      %v3237 = vld [vmem:[%s3236] ss:$2 sm:$0xf]
      %s3238 = scalar_lea.vmem [#allocation3], 2
      %v3239 = vld [vmem:[%s3238] ss:$2 sm:$0xf]
      %s3240 = scalar_lea.vmem [#allocation3], 3
      %v3241 = vld [vmem:[%s3240] ss:$2 sm:$0xf]
      %s3242 = scalar_lea.vmem [#allocation3], 10
      %v3243 = vld [vmem:[%s3242] ss:$2 sm:$0xf]
      %s3244 = scalar_lea.vmem [#allocation3], 11
      %v3245 = vld [vmem:[%s3244] ss:$2 sm:$0xf]
      %s3246 = scalar_lea.vmem [#allocation3], 12
      %v3247 = vld [vmem:[%s3246] ss:$2 sm:$0xf]
      %s3248 = scalar_lea.vmem [#allocation3], 13
      %v3249 = vld [vmem:[%s3248] ss:$2 sm:$0xf]
      %s3250 = scalar_lea.vmem [#allocation3], 20
      %v3251 = vld [vmem:[%s3250] ss:$2 sm:$0xf]
      %s3252 = scalar_lea.vmem [#allocation3], 21
      %v3253 = vld [vmem:[%s3252] ss:$2 sm:$0xf]
      %s3254 = scalar_lea.vmem [#allocation3], 22
      %v3255 = vld [vmem:[%s3254] ss:$2 sm:$0xf]
      %s3256 = scalar_lea.vmem [#allocation3], 23
      %v3257 = vld [vmem:[%s3256] ss:$2 sm:$0xf]
      %s3258 = scalar_lea.vmem [#allocation3], 30
      %v3259 = vld [vmem:[%s3258] ss:$2 sm:$0xf]
      %s3260 = scalar_lea.vmem [#allocation3], 31
      %v3261 = vld [vmem:[%s3260] ss:$2 sm:$0xf]
      %s3262 = scalar_lea.vmem [#allocation3], 32
      %v3263 = vld [vmem:[%s3262] ss:$2 sm:$0xf]
      %s3264 = scalar_lea.vmem [#allocation3], 33
      %v3265 = vld [vmem:[%s3264] ss:$2 sm:$0xf]
      %3267 = vrot.lane.b32.xlu0 %v3237, 16
      %v3268 = vpop.permute.xlu0 %3267
      %3271 = vrot.lane.b32.xlu0 %v3239, 32
      %v3272 = vpop.permute.xlu0 %3271
      %3275 = vrot.lane.b32.xlu0 %v3241, 48
      %v3276 = vpop.permute.xlu0 %3275
      %3279 = vrot.lane.b32.xlu0 %v3243, 64
      %v3280 = vpop.permute.xlu0 %3279
      %3283 = vrot.lane.b32.xlu0 %v3245, 80
      %v3284 = vpop.permute.xlu0 %3283
      %3287 = vrot.lane.b32.xlu0 %v3247, 96
      %v3288 = vpop.permute.xlu0 %3287
      %3291 = vrot.lane.b32.xlu0 %v3249, 112
      %v3292 = vpop.permute.xlu0 %3291
      %3295 = vrot.lane.b32.xlu0 %v3253, 16
      %v3296 = vpop.permute.xlu0 %3295
      %3299 = vrot.lane.b32.xlu0 %v3255, 32
      %v3300 = vpop.permute.xlu0 %3299
      %3303 = vrot.lane.b32.xlu0 %v3257, 48
      %v3304 = vpop.permute.xlu0 %3303
      %3307 = vrot.lane.b32.xlu0 %v3259, 64
      %v3308 = vpop.permute.xlu0 %3307
      %3311 = vrot.lane.b32.xlu0 %v3261, 80
      %v3312 = vpop.permute.xlu0 %3311
      %3315 = vrot.lane.b32.xlu0 %v3263, 96
      %v3316 = vpop.permute.xlu0 %3315
      %3319 = vrot.lane.b32.xlu0 %v3265, 112
      %v3320 = vpop.permute.xlu0 %3319
      %v3322 = vsel %vm2378, %v3235, %v3268
      %v3323 = vsel %vm2381, %v3322, %v3272
      %v3324 = vsel %vm2385, %v3323, %v3276
      %v3325 = vsel %vm2389, %v3324, %v3280
      %v3326 = vsel %vm2393, %v3325, %v3284
      %v3327 = vsel %vm2397, %v3326, %v3288
      %v3328 = vsel %vm2401, %v3327, %v3292
      %v3329 = vsel %vm2378, %v3251, %v3296
      %v3330 = vsel %vm2381, %v3329, %v3300
      %v3331 = vsel %vm2385, %v3330, %v3304
      %v3332 = vsel %vm2389, %v3331, %v3308
      %v3333 = vsel %vm2393, %v3332, %v3312
      %v3334 = vsel %vm2397, %v3333, %v3316
      %v3335 = vsel %vm2401, %v3334, %v3320
      %s3336 = scalar_lea.vmem [#allocation3], 40
      %v3337 = vld [vmem:[%s3336] ss:$2 sm:$0xf]
      %s3338 = scalar_lea.vmem [#allocation3], 41
      %v3339 = vld [vmem:[%s3338] ss:$2 sm:$0xf]
      %s3340 = scalar_lea.vmem [#allocation3], 42
      %v3341 = vld [vmem:[%s3340] ss:$2 sm:$0xf]
      %s3342 = scalar_lea.vmem [#allocation3], 43
      %v3343 = vld [vmem:[%s3342] ss:$2 sm:$0xf]
      %s3344 = scalar_lea.vmem [#allocation3], 50
      %v3345 = vld [vmem:[%s3344] ss:$2 sm:$0xf]
      %s3346 = scalar_lea.vmem [#allocation3], 51
      %v3347 = vld [vmem:[%s3346] ss:$2 sm:$0xf]
      %s3348 = scalar_lea.vmem [#allocation3], 52
      %v3349 = vld [vmem:[%s3348] ss:$2 sm:$0xf]
      %s3350 = scalar_lea.vmem [#allocation3], 53
      %v3351 = vld [vmem:[%s3350] ss:$2 sm:$0xf]
      %3353 = vrot.lane.b32.xlu0 %v3339, 16
      %v3354 = vpop.permute.xlu0 %3353
      %3357 = vrot.lane.b32.xlu0 %v3341, 32
      %v3358 = vpop.permute.xlu0 %3357
      %3361 = vrot.lane.b32.xlu0 %v3343, 48
      %v3362 = vpop.permute.xlu0 %3361
      %3365 = vrot.lane.b32.xlu0 %v3345, 64
      %v3366 = vpop.permute.xlu0 %3365
      %3369 = vrot.lane.b32.xlu0 %v3347, 80
      %v3370 = vpop.permute.xlu0 %3369
      %3373 = vrot.lane.b32.xlu0 %v3349, 96
      %v3374 = vpop.permute.xlu0 %3373
      %3377 = vrot.lane.b32.xlu0 %v3351, 112
      %v3378 = vpop.permute.xlu0 %3377
      %v3380 = vsel %vm2378, %v3337, %v3354
      %v3381 = vsel %vm2381, %v3380, %v3358
      %v3382 = vsel %vm2385, %v3381, %v3362
      %v3383 = vsel %vm2389, %v3382, %v3366
      %v3384 = vsel %vm2393, %v3383, %v3370
      %v3385 = vsel %vm2397, %v3384, %v3374
      %v3386 = vsel %vm2401, %v3385, %v3378
      %s3387 = scalar_lea.vmem [#allocation3], 60
      %v3388 = vld [vmem:[%s3387] ss:$2 sm:$0xf]
      %s3389 = scalar_lea.vmem [#allocation3], 61
      %v3390 = vld [vmem:[%s3389] ss:$2 sm:$0xf]
      %s3391 = scalar_lea.vmem [#allocation3], 62
      %v3392 = vld [vmem:[%s3391] ss:$2 sm:$0xf]
      %s3393 = scalar_lea.vmem [#allocation3], 63
      %v3394 = vld [vmem:[%s3393] ss:$2 sm:$0xf]
      %s3395 = scalar_lea.vmem [#allocation3], 70
      %v3396 = vld [vmem:[%s3395] ss:$2 sm:$0xf]
      %s3397 = scalar_lea.vmem [#allocation3], 71
      %v3398 = vld [vmem:[%s3397] ss:$2 sm:$0xf]
      %s3399 = scalar_lea.vmem [#allocation3], 72
      %v3400 = vld [vmem:[%s3399] ss:$2 sm:$0xf]
      %s3401 = scalar_lea.vmem [#allocation3], 73
      %v3402 = vld [vmem:[%s3401] ss:$2 sm:$0xf]
      %3404 = vrot.lane.b32.xlu0 %v3390, 16
      %v3405 = vpop.permute.xlu0 %3404
      %3408 = vrot.lane.b32.xlu0 %v3392, 32
      %v3409 = vpop.permute.xlu0 %3408
      %3412 = vrot.lane.b32.xlu0 %v3394, 48
      %v3413 = vpop.permute.xlu0 %3412
      %3416 = vrot.lane.b32.xlu0 %v3396, 64
      %v3417 = vpop.permute.xlu0 %3416
      %3420 = vrot.lane.b32.xlu0 %v3398, 80
      %v3421 = vpop.permute.xlu0 %3420
      %3424 = vrot.lane.b32.xlu0 %v3400, 96
      %v3425 = vpop.permute.xlu0 %3424
      %3428 = vrot.lane.b32.xlu0 %v3402, 112
      %v3429 = vpop.permute.xlu0 %3428
      %v3431 = vsel %vm2378, %v3388, %v3405
      %v3432 = vsel %vm2381, %v3431, %v3409
      %v3433 = vsel %vm2385, %v3432, %v3413
      %v3434 = vsel %vm2389, %v3433, %v3417
      %v3435 = vsel %vm2393, %v3434, %v3421
      %v3436 = vsel %vm2397, %v3435, %v3425
      %v3437 = vsel %vm2401, %v3436, %v3429
      %s3438 = scalar_lea.vmem [#allocation3], 80
      %v3439 = vld [vmem:[%s3438] ss:$2 sm:$0xf]
      %s3440 = scalar_lea.vmem [#allocation3], 81
      %v3441 = vld [vmem:[%s3440] ss:$2 sm:$0xf]
      %s3442 = scalar_lea.vmem [#allocation3], 82
      %v3443 = vld [vmem:[%s3442] ss:$2 sm:$0xf]
      %s3444 = scalar_lea.vmem [#allocation3], 83
      %v3445 = vld [vmem:[%s3444] ss:$2 sm:$0xf]
      %s3446 = scalar_lea.vmem [#allocation3], 90
      %v3447 = vld [vmem:[%s3446] ss:$2 sm:$0xf]
      %s3448 = scalar_lea.vmem [#allocation3], 91
      %v3449 = vld [vmem:[%s3448] ss:$2 sm:$0xf]
      %s3450 = scalar_lea.vmem [#allocation3], 92
      %v3451 = vld [vmem:[%s3450] ss:$2 sm:$0xf]
      %s3452 = scalar_lea.vmem [#allocation3], 93
      %v3453 = vld [vmem:[%s3452] ss:$2 sm:$0xf]
      %3455 = vrot.lane.b32.xlu0 %v3441, 16
      %v3456 = vpop.permute.xlu0 %3455
      %3459 = vrot.lane.b32.xlu0 %v3443, 32
      %v3460 = vpop.permute.xlu0 %3459
      %3463 = vrot.lane.b32.xlu0 %v3445, 48
      %v3464 = vpop.permute.xlu0 %3463
      %3467 = vrot.lane.b32.xlu0 %v3447, 64
      %v3468 = vpop.permute.xlu0 %3467
      %3471 = vrot.lane.b32.xlu0 %v3449, 80
      %v3472 = vpop.permute.xlu0 %3471
      %3475 = vrot.lane.b32.xlu0 %v3451, 96
      %v3476 = vpop.permute.xlu0 %3475
      %3479 = vrot.lane.b32.xlu0 %v3453, 112
      %v3480 = vpop.permute.xlu0 %3479
      %v3482 = vsel %vm2378, %v3439, %v3456
      %v3483 = vsel %vm2381, %v3482, %v3460
      %v3484 = vsel %vm2385, %v3483, %v3464
      %v3485 = vsel %vm2389, %v3484, %v3468
      %v3486 = vsel %vm2393, %v3485, %v3472
      %v3487 = vsel %vm2397, %v3486, %v3476
      %v3488 = vsel %vm2401, %v3487, %v3480
      %v3491 = vrot.slane %v3335, 4
      %v3492 = vrot.slane %v3386, 4
      %v3497 = vrot.slane %v3437, 4
      %v3498 = vrot.slane %v3488, 4
      %vm3501 = vcmask 1043456
      %v3502 = vsel %vm3501, %v3328, %v3491
      %v3503 = vsel %vm3501, %v3335, %v3492
      %v3504 = vsel %vm3501, %v3386, %v3497
      %v3505 = vsel %vm3501, %v3437, %v3498
      %v3506 = vpack.c.bf16 %v3504, %v3502
      %v3507 = vpack.c.bf16 %v3505, %v3503
      %v3508 = vld [vmem:[%s4] sm:$0xf]
      %v3509 = vld [vmem:[%s4 + $0x4] sm:$0xf]
      %v3510 = vld [vmem:[%s4 + $0x8] sm:$0xf]
      %v3511 = vld [vmem:[%s4 + $0xc] sm:$0xf]
      %v3512 = vld [vmem:[%s4 + $0x10] sm:$0xf]
      %v3513 = vld [vmem:[%s4 + $0x14] sm:$0xf]
      %v3514 = vld [vmem:[%s4 + $0x18] sm:$0xf]
      %v3515 = vld [vmem:[%s4 + $0x1c] sm:$0xf]
      %v3516 = vld [vmem:[%s4 + $0x20] sm:$0xf]
      %v3517 = vld [vmem:[%s4 + $0x24] sm:$0xf]
      %v3518 = vld [vmem:[%s4 + $0x28] sm:$0xf]
      %v3519 = vld [vmem:[%s4 + $0x2c] sm:$0xf]
      %v3520 = vld [vmem:[%s4 + $0x30] sm:$0xf]
      %v3521 = vld [vmem:[%s4 + $0x34] sm:$0xf]
      %v3522 = vld [vmem:[%s4 + $0x38] sm:$0xf]
      %v3523 = vld [vmem:[%s4 + $0x3c] sm:$0xf]
      %v3524 = vld [vmem:[%s4 + $0x40] sm:$0xf]
      %v3525 = vld [vmem:[%s4 + $0x44] sm:$0xf]
      %v3526 = vld [vmem:[%s4 + $0x48] sm:$0xf]
      %v3527 = vld [vmem:[%s4 + $0x4c] sm:$0xf]
      %v3528 = vld [vmem:[%s4 + $0x50] sm:$0xf]
      %v3529 = vld [vmem:[%s4 + $0x54] sm:$0xf]
      %v3530 = vld [vmem:[%s4 + $0x58] sm:$0xf]
      %v3531 = vld [vmem:[%s4 + $0x5c] sm:$0xf]
      %v3532 = vld [vmem:[%s4 + $0x60] sm:$0xf]
      %v3533 = vld [vmem:[%s4 + $0x64] sm:$0xf]
      %v3534 = vld [vmem:[%s4 + $0x68] sm:$0xf]
      %v3535 = vld [vmem:[%s4 + $0x6c] sm:$0xf]
      %v3536 = vld [vmem:[%s4 + $0x70] sm:$0xf]
      %v3537 = vld [vmem:[%s4 + $0x74] sm:$0xf]
      %v3538 = vld [vmem:[%s4 + $0x78] sm:$0xf]
      %v3539 = vld [vmem:[%s4 + $0x7c] sm:$0xf]
      %v3572 = vunpack.c.l.b16 %v3508
      %v3573 = vunpack.c.l.b16 %v3509
      %v3574 = vunpack.c.l.b16 %v3510
      %v3575 = vunpack.c.l.b16 %v3511
      %v3576 = vunpack.c.l.b16 %v3512
      %v3577 = vunpack.c.l.b16 %v3513
      %v3578 = vunpack.c.l.b16 %v3514
      %v3579 = vunpack.c.l.b16 %v3515
      %v3580 = vunpack.c.l.b16 %v3516
      %v3581 = vunpack.c.l.b16 %v3517
      %v3582 = vunpack.c.l.b16 %v3518
      %v3583 = vunpack.c.l.b16 %v3519
      %v3584 = vunpack.c.l.b16 %v3520
      %v3585 = vunpack.c.l.b16 %v3521
      %v3586 = vunpack.c.l.b16 %v3522
      %v3587 = vunpack.c.l.b16 %v3523
      %v3588 = vunpack.c.l.b16 %v3524
      %v3589 = vunpack.c.l.b16 %v3525
      %v3590 = vunpack.c.l.b16 %v3526
      %v3591 = vunpack.c.l.b16 %v3527
      %v3592 = vunpack.c.l.b16 %v3528
      %v3593 = vunpack.c.l.b16 %v3529
      %v3594 = vunpack.c.l.b16 %v3530
      %v3595 = vunpack.c.l.b16 %v3531
      %v3596 = vunpack.c.l.b16 %v3532
      %v3597 = vunpack.c.l.b16 %v3533
      %v3598 = vunpack.c.l.b16 %v3534
      %v3599 = vunpack.c.l.b16 %v3535
      %v3600 = vunpack.c.l.b16 %v3536
      %v3601 = vunpack.c.l.b16 %v3537
      %v3602 = vunpack.c.l.b16 %v3538
      %v3603 = vunpack.c.l.b16 %v3539
      %v3604 = vpack.c.b16 %v3573, %v3572
      %v3605 = vpack.c.b16 %v3575, %v3574
      %v3606 = vpack.c.b16 %v3577, %v3576
      %v3607 = vpack.c.b16 %v3579, %v3578
      %v3608 = vpack.c.b16 %v3581, %v3580
      %v3609 = vpack.c.b16 %v3583, %v3582
      %v3610 = vpack.c.b16 %v3585, %v3584
      %v3611 = vpack.c.b16 %v3587, %v3586
      %v3612 = vpack.c.b16 %v3589, %v3588
      %v3613 = vpack.c.b16 %v3591, %v3590
      %v3614 = vpack.c.b16 %v3593, %v3592
      %v3615 = vpack.c.b16 %v3595, %v3594
      %v3616 = vpack.c.b16 %v3597, %v3596
      %v3617 = vpack.c.b16 %v3599, %v3598
      %v3618 = vpack.c.b16 %v3601, %v3600
      %v3619 = vpack.c.b16 %v3603, %v3602
      %3636 = vmatpush.bf16.msra.mxu0 %v3611
      %3637 = vmatpush.bf16.msra.mxu0 %v3610
      %3638 = vmatpush.bf16.msra.mxu0 %v3609
      %3639 = vmatpush.bf16.msra.mxu0 %v3608
      %3640 = vmatpush.bf16.msra.mxu0 %v3607
      %3641 = vmatpush.bf16.msra.mxu0 %v3606
      %3642 = vmatpush.bf16.msra.mxu0 %v3605
      %3643 = vmatpush.bf16.msra.mxu0 %v3604
      %3644 = vmatmul.bf16.gmra.mxu0 %v3506
      %v3645 = vpop.f32.mrf.mxu0
      %v3646 = vadd.f32 0.0, %v3645
      %v3647 = vpop.f32.mrf.mxu0
      %v3648 = vadd.f32 0.0, %v3647
      %3649 = vdwg.mxu0
      %3650 = vmatpush.bf16.msra.mxu0 %v3619
      %3651 = vmatpush.bf16.msra.mxu0 %v3618
      %3652 = vmatpush.bf16.msra.mxu0 %v3617
      %3653 = vmatpush.bf16.msra.mxu0 %v3616
      %3654 = vmatpush.bf16.msra.mxu0 %v3615
      %3655 = vmatpush.bf16.msra.mxu0 %v3614
      %3656 = vmatpush.bf16.msra.mxu0 %v3613
      %3657 = vmatpush.bf16.msra.mxu0 %v3612
      %3658 = vmatmul.bf16.gmra.mxu0 %v3507
      %v3659 = vpop.f32.mrf.mxu0
      %v3660 = vadd.f32 %v3646, %v3659
      %v3661 = vpop.f32.mrf.mxu0
      %v3662 = vadd.f32 %v3648, %v3661
      %3663 = vdwg.mxu0
      %v3664 = vsel %vm2381, %v3660, 0.0
      %v3665 = vsel %vm2381, %v3662, 0.0
      %v3666 = vadd.f32 %v3664, %v3665
      %v3667 = vrot.slane %v3666, 4
      %v3668 = vadd.f32 %v3666, %v3667
      %v3669 = vrot.slane %v3668, 2
      %v3670 = vadd.f32 %v3668, %v3669
      %v3671 = vrot.slane %v3670, 1
      %v3672 = vadd.f32 %v3670, %v3671
      %v3673 = vrcp.pop 16.0
      %v3674 = vmul.f32 16.0, %v3673
      %v3675 = vsub.f32 1.0, %v3674
      %v3676 = vmul.f32 %v3673, %v3675
      %v3677 = vadd.f32 %v3673, %v3676
      %vm3678 = vweird.f32 %v3673
      %v3679 = vsel %vm3678, %v3673, %v3677
      %v3680 = vmul.f32 %v3672, %v3679
      %v3681 = vsub.f32 %v3660, %v3680
      %v3682 = vsub.f32 %v3662, %v3680
      %v3683 = vmul.f32 %v3681, %v3681
      %v3684 = vmul.f32 %v3682, %v3682
      %v3685 = vsel %vm2381, %v3683, 0.0
      %v3686 = vsel %vm2381, %v3684, 0.0
      %v3687 = vadd.f32 %v3685, %v3686
      %v3688 = vrot.slane %v3687, 4
      %v3689 = vadd.f32 %v3687, %v3688
      %v3690 = vrot.slane %v3689, 2
      %v3691 = vadd.f32 %v3689, %v3690
      %v3692 = vrot.slane %v3691, 1
      %v3693 = vadd.f32 %v3691, %v3692
      %v3694 = vmul.f32 %v3693, %v3679
      %v3695 = vadd.f32 %v3694, 1e-05
      %v3696 = vrsqrt.pop %v3695
      %v3697 = vmul.f32 %v3696, %v3695
      %v3698 = vmul.f32 %v3697, %v3696
      %v3699 = vmul.f32 0.5, %v3698
      %v3700 = vsub.f32 1.5, %v3699
      %v3701 = vmul.f32 %v3696, %v3700
      %vm3702 = vweird.f32 %v3695
      %vm3703 = vweird.f32 %v3696
      %vm3704 = vmor %vm3702, %vm3703
      %v3705 = vsel %vm3704, %v3696, %v3701
      %v3706 = vmul.f32 %v3681, %v3705
      %v3707 = vmul.f32 %v3682, %v3705
      %vm3708 = vcmp.gt.f32.partialorder %v3706, 0.0
      %vm3709 = vcmp.gt.f32.partialorder %v3707, 0.0
      %v3710 = vmul.f32 %v3706, 0.2
      %v3711 = vmul.f32 %v3707, 0.2
      %v3712 = vsel %vm3708, %v3706, %v3710
      %v3713 = vsel %vm3709, %v3707, %v3711
      %vm3714 = vcmask 257024
      %3715 = vst.msk [vmem:[#allocation4 + $0x7] sm:$0xf] %vm3714, %v3712
      %vm3716 = vcmask 254977
      %3717 = vst.msk [vmem:[#allocation4 + $0x5] sm:$0x2] %vm3716, %v3712
      %vm3718 = vcmask 256002
      %3719 = vst.msk [vmem:[#allocation4 + $0x9] sm:$0x4] %vm3718, %v3712
      %vm3720 = vcmask 261124
      %3721 = vst.msk [vmem:[#allocation4 + $0x9] sm:$0xf0] %vm3720, %v3712
      %vm3722 = vcmask 259077
      %3723 = vst.msk [vmem:[#allocation4 + $0x7] sm:$0x20] %vm3722, %v3712
      %vm3724 = vcmask 260102
      %3725 = vst.msk [vmem:[#allocation4 + $0xb] sm:$0x40] %vm3724, %v3712
      %3726 = vst.msk [vmem:[#allocation4 + $0x13] sm:$0xf] %vm3714, %v3713
      %3727 = vst.msk [vmem:[#allocation4 + $0x11] sm:$0x2] %vm3716, %v3713
      %3728 = vst.msk [vmem:[#allocation4 + $0x15] sm:$0x4] %vm3718, %v3713
      %3729 = vst.msk [vmem:[#allocation4 + $0x15] sm:$0xf0] %vm3720, %v3713
      %3730 = vst.msk [vmem:[#allocation4 + $0x13] sm:$0x20] %vm3722, %v3713
      %3731 = vst.msk [vmem:[#allocation4 + $0x17] sm:$0x40] %vm3724, %v3713
      %v3732 = vld [vmem:[#allocation4 + $0xc] sm:$0x3f]
      %vm3733 = vcmask 259072
      %3734 = vst.msk [vmem:[#allocation4] sm:$0x3f] %vm3733, %v3732
      %v3735 = vld [vmem:[#allocation4 + $0x12] sm:$0x3f]
      %3736 = vst.msk [vmem:[#allocation4 + $0x1e] sm:$0x3f] %vm3733, %v3735
      %v3737 = vld [vmem:[#allocation4] sm:$0x7]
      %v3738 = vld [vmem:[#allocation4 + $0x1] sm:$0x7]
      %v3739 = vld [vmem:[#allocation4 + $0x2] sm:$0x7]
      %v3740 = vld [vmem:[#allocation4 + $0x3] sm:$0x7]
      %v3741 = vld [vmem:[#allocation4 + $0x6] sm:$0x7]
      %v3742 = vld [vmem:[#allocation4 + $0x7] sm:$0x7]
      %v3743 = vld [vmem:[#allocation4 + $0x8] sm:$0x7]
      %v3744 = vld [vmem:[#allocation4 + $0x9] sm:$0x7]
      %v3745 = vld [vmem:[#allocation4 + $0xc] sm:$0x7]
      %v3746 = vld [vmem:[#allocation4 + $0xd] sm:$0x7]
      %v3747 = vld [vmem:[#allocation4 + $0xe] sm:$0x7]
      %v3748 = vld [vmem:[#allocation4 + $0xf] sm:$0x7]
      %v3749 = vld [vmem:[#allocation4 + $0x12] sm:$0x7]
      %v3750 = vld [vmem:[#allocation4 + $0x13] sm:$0x7]
      %v3751 = vld [vmem:[#allocation4 + $0x14] sm:$0x7]
      %v3752 = vld [vmem:[#allocation4 + $0x15] sm:$0x7]
      %3754 = vrot.lane.b32.xlu0 %v3738, 32
      %v3755 = vpop.permute.xlu0 %3754
      %3758 = vrot.lane.b32.xlu0 %v3739, 64
      %v3759 = vpop.permute.xlu0 %3758
      %3762 = vrot.lane.b32.xlu0 %v3740, 96
      %v3763 = vpop.permute.xlu0 %3762
      %3766 = vrot.lane.b32.xlu0 %v3742, 32
      %v3767 = vpop.permute.xlu0 %3766
      %3770 = vrot.lane.b32.xlu0 %v3743, 64
      %v3771 = vpop.permute.xlu0 %3770
      %3774 = vrot.lane.b32.xlu0 %v3744, 96
      %v3775 = vpop.permute.xlu0 %3774
      %3778 = vrot.lane.b32.xlu0 %v3746, 32
      %v3779 = vpop.permute.xlu0 %3778
      %3782 = vrot.lane.b32.xlu0 %v3747, 64
      %v3783 = vpop.permute.xlu0 %3782
      %3786 = vrot.lane.b32.xlu0 %v3748, 96
      %v3787 = vpop.permute.xlu0 %3786
      %3790 = vrot.lane.b32.xlu0 %v3750, 32
      %v3791 = vpop.permute.xlu0 %3790
      %3794 = vrot.lane.b32.xlu0 %v3751, 64
      %v3795 = vpop.permute.xlu0 %3794
      %3798 = vrot.lane.b32.xlu0 %v3752, 96
      %v3799 = vpop.permute.xlu0 %3798
      %v3801 = vsel %vm2381, %v3737, %v3755
      %v3802 = vsel %vm2389, %v3801, %v3759
      %v3803 = vsel %vm2397, %v3802, %v3763
      %v3804 = vsel %vm2381, %v3741, %v3767
      %v3805 = vsel %vm2389, %v3804, %v3771
      %v3806 = vsel %vm2397, %v3805, %v3775
      %v3807 = vsel %vm2381, %v3745, %v3779
      %v3808 = vsel %vm2389, %v3807, %v3783
      %v3809 = vsel %vm2397, %v3808, %v3787
      %v3810 = vsel %vm2381, %v3749, %v3791
      %v3811 = vsel %vm2389, %v3810, %v3795
      %v3812 = vsel %vm2397, %v3811, %v3799
      %v3813 = vld [vmem:[#allocation4 + $0x18] sm:$0x7]
      %v3814 = vld [vmem:[#allocation4 + $0x19] sm:$0x7]
      %v3815 = vld [vmem:[#allocation4 + $0x1a] sm:$0x7]
      %v3816 = vld [vmem:[#allocation4 + $0x1b] sm:$0x7]
      %3818 = vrot.lane.b32.xlu0 %v3814, 32
      %v3819 = vpop.permute.xlu0 %3818
      %3822 = vrot.lane.b32.xlu0 %v3815, 64
      %v3823 = vpop.permute.xlu0 %3822
      %3826 = vrot.lane.b32.xlu0 %v3816, 96
      %v3827 = vpop.permute.xlu0 %3826
      %v3829 = vsel %vm2381, %v3813, %v3819
      %v3830 = vsel %vm2389, %v3829, %v3823
      %v3831 = vsel %vm2397, %v3830, %v3827
      %v3832 = vld [vmem:[#allocation4 + $0x1e] sm:$0x7]
      %v3833 = vld [vmem:[#allocation4 + $0x1f] sm:$0x7]
      %v3834 = vld [vmem:[#allocation4 + $0x20] sm:$0x7]
      %v3835 = vld [vmem:[#allocation4 + $0x21] sm:$0x7]
      %3837 = vrot.lane.b32.xlu0 %v3833, 32
      %v3838 = vpop.permute.xlu0 %3837
      %3841 = vrot.lane.b32.xlu0 %v3834, 64
      %v3842 = vpop.permute.xlu0 %3841
      %3845 = vrot.lane.b32.xlu0 %v3835, 96
      %v3846 = vpop.permute.xlu0 %3845
      %v3848 = vsel %vm2381, %v3832, %v3838
      %v3849 = vsel %vm2389, %v3848, %v3842
      %v3850 = vsel %vm2397, %v3849, %v3846
      %v3855 = vrot.slane %v3806, 5
      %v3856 = vrot.slane %v3809, 5
      %v3857 = vrot.slane %v3812, 5
      %v3858 = vrot.slane %v3831, 5
      %v3864 = vrot.slane %v3809, 2
      %v3865 = vrot.slane %v3812, 2
      %v3866 = vrot.slane %v3831, 2
      %v3867 = vrot.slane %v3850, 2
      %vm3872 = vcmask 1042432
      %v3873 = vsel %vm3872, %v3803, %v3855
      %v3874 = vsel %vm3872, %v3806, %v3856
      %v3875 = vsel %vm3872, %v3809, %v3857
      %v3876 = vsel %vm3872, %v3812, %v3858
      %v3877 = vsel %vm2015, %v3873, %v3864
      %v3878 = vsel %vm2015, %v3874, %v3865
      %v3879 = vsel %vm2015, %v3875, %v3866
      %v3880 = vsel %vm2015, %v3876, %v3867
      %v3881 = vpack.c.bf16 %v3864, %v3877
      %v3882 = vpack.c.bf16 %v3865, %v3878
      %v3883 = vpack.c.bf16 %v3866, %v3879
      %v3884 = vpack.c.bf16 %v3867, %v3880
      %v3885 = vld [vmem:[%s5] sm:$0xf]
      %v3886 = vld [vmem:[%s5 + $0x4] sm:$0xf]
      %v3887 = vld [vmem:[%s5 + $0x8] sm:$0xf]
      %v3888 = vld [vmem:[%s5 + $0xc] sm:$0xf]
      %v3889 = vld [vmem:[%s5 + $0x10] sm:$0xf]
      %v3890 = vld [vmem:[%s5 + $0x14] sm:$0xf]
      %v3891 = vld [vmem:[%s5 + $0x18] sm:$0xf]
      %v3892 = vld [vmem:[%s5 + $0x1c] sm:$0xf]
      %v3893 = vld [vmem:[%s5 + $0x20] sm:$0xf]
      %v3894 = vld [vmem:[%s5 + $0x24] sm:$0xf]
      %v3895 = vld [vmem:[%s5 + $0x28] sm:$0xf]
      %v3896 = vld [vmem:[%s5 + $0x2c] sm:$0xf]
      %v3897 = vld [vmem:[%s5 + $0x30] sm:$0xf]
      %v3898 = vld [vmem:[%s5 + $0x34] sm:$0xf]
      %v3899 = vld [vmem:[%s5 + $0x38] sm:$0xf]
      %v3900 = vld [vmem:[%s5 + $0x3c] sm:$0xf]
      %v3901 = vld [vmem:[%s5 + $0x40] sm:$0xf]
      %v3902 = vld [vmem:[%s5 + $0x44] sm:$0xf]
      %v3903 = vld [vmem:[%s5 + $0x48] sm:$0xf]
      %v3904 = vld [vmem:[%s5 + $0x4c] sm:$0xf]
      %v3905 = vld [vmem:[%s5 + $0x50] sm:$0xf]
      %v3906 = vld [vmem:[%s5 + $0x54] sm:$0xf]
      %v3907 = vld [vmem:[%s5 + $0x58] sm:$0xf]
      %v3908 = vld [vmem:[%s5 + $0x5c] sm:$0xf]
      %v3909 = vld [vmem:[%s5 + $0x60] sm:$0xf]
      %v3910 = vld [vmem:[%s5 + $0x64] sm:$0xf]
      %v3911 = vld [vmem:[%s5 + $0x68] sm:$0xf]
      %v3912 = vld [vmem:[%s5 + $0x6c] sm:$0xf]
      %v3913 = vld [vmem:[%s5 + $0x70] sm:$0xf]
      %v3914 = vld [vmem:[%s5 + $0x74] sm:$0xf]
      %v3915 = vld [vmem:[%s5 + $0x78] sm:$0xf]
      %v3916 = vld [vmem:[%s5 + $0x7c] sm:$0xf]
      %v3917 = vld [vmem:[%s5 + $0x80] sm:$0xf]
      %v3918 = vld [vmem:[%s5 + $0x84] sm:$0xf]
      %v3919 = vld [vmem:[%s5 + $0x88] sm:$0xf]
      %v3920 = vld [vmem:[%s5 + $0x8c] sm:$0xf]
      %v3921 = vld [vmem:[%s5 + $0x90] sm:$0xf]
      %v3922 = vld [vmem:[%s5 + $0x94] sm:$0xf]
      %v3923 = vld [vmem:[%s5 + $0x98] sm:$0xf]
      %v3924 = vld [vmem:[%s5 + $0x9c] sm:$0xf]
      %v3925 = vld [vmem:[%s5 + $0xa0] sm:$0xf]
      %v3926 = vld [vmem:[%s5 + $0xa4] sm:$0xf]
      %v3927 = vld [vmem:[%s5 + $0xa8] sm:$0xf]
      %v3928 = vld [vmem:[%s5 + $0xac] sm:$0xf]
      %v3929 = vld [vmem:[%s5 + $0xb0] sm:$0xf]
      %v3930 = vld [vmem:[%s5 + $0xb4] sm:$0xf]
      %v3931 = vld [vmem:[%s5 + $0xb8] sm:$0xf]
      %v3932 = vld [vmem:[%s5 + $0xbc] sm:$0xf]
      %v3933 = vld [vmem:[%s5 + $0xc0] sm:$0xf]
      %v3934 = vld [vmem:[%s5 + $0xc4] sm:$0xf]
      %v3935 = vld [vmem:[%s5 + $0xc8] sm:$0xf]
      %v3936 = vld [vmem:[%s5 + $0xcc] sm:$0xf]
      %v3937 = vld [vmem:[%s5 + $0xd0] sm:$0xf]
      %v3938 = vld [vmem:[%s5 + $0xd4] sm:$0xf]
      %v3939 = vld [vmem:[%s5 + $0xd8] sm:$0xf]
      %v3940 = vld [vmem:[%s5 + $0xdc] sm:$0xf]
      %v3941 = vld [vmem:[%s5 + $0xe0] sm:$0xf]
      %v3942 = vld [vmem:[%s5 + $0xe4] sm:$0xf]
      %v3943 = vld [vmem:[%s5 + $0xe8] sm:$0xf]
      %v3944 = vld [vmem:[%s5 + $0xec] sm:$0xf]
      %v3945 = vld [vmem:[%s5 + $0xf0] sm:$0xf]
      %v3946 = vld [vmem:[%s5 + $0xf4] sm:$0xf]
      %v3947 = vld [vmem:[%s5 + $0xf8] sm:$0xf]
      %v3948 = vld [vmem:[%s5 + $0xfc] sm:$0xf]
      %v4013 = vunpack.c.l.b16 %v3885
      %v4014 = vunpack.c.l.b16 %v3886
      %v4015 = vunpack.c.l.b16 %v3887
      %v4016 = vunpack.c.l.b16 %v3888
      %v4017 = vunpack.c.l.b16 %v3889
      %v4018 = vunpack.c.l.b16 %v3890
      %v4019 = vunpack.c.l.b16 %v3891
      %v4020 = vunpack.c.l.b16 %v3892
      %v4021 = vunpack.c.l.b16 %v3893
      %v4022 = vunpack.c.l.b16 %v3894
      %v4023 = vunpack.c.l.b16 %v3895
      %v4024 = vunpack.c.l.b16 %v3896
      %v4025 = vunpack.c.l.b16 %v3897
      %v4026 = vunpack.c.l.b16 %v3898
      %v4027 = vunpack.c.l.b16 %v3899
      %v4028 = vunpack.c.l.b16 %v3900
      %v4029 = vunpack.c.l.b16 %v3901
      %v4030 = vunpack.c.l.b16 %v3902
      %v4031 = vunpack.c.l.b16 %v3903
      %v4032 = vunpack.c.l.b16 %v3904
      %v4033 = vunpack.c.l.b16 %v3905
      %v4034 = vunpack.c.l.b16 %v3906
      %v4035 = vunpack.c.l.b16 %v3907
      %v4036 = vunpack.c.l.b16 %v3908
      %v4037 = vunpack.c.l.b16 %v3909
      %v4038 = vunpack.c.l.b16 %v3910
      %v4039 = vunpack.c.l.b16 %v3911
      %v4040 = vunpack.c.l.b16 %v3912
      %v4041 = vunpack.c.l.b16 %v3913
      %v4042 = vunpack.c.l.b16 %v3914
      %v4043 = vunpack.c.l.b16 %v3915
      %v4044 = vunpack.c.l.b16 %v3916
      %v4045 = vunpack.c.l.b16 %v3917
      %v4046 = vunpack.c.l.b16 %v3918
      %v4047 = vunpack.c.l.b16 %v3919
      %v4048 = vunpack.c.l.b16 %v3920
      %v4049 = vunpack.c.l.b16 %v3921
      %v4050 = vunpack.c.l.b16 %v3922
      %v4051 = vunpack.c.l.b16 %v3923
      %v4052 = vunpack.c.l.b16 %v3924
      %v4053 = vunpack.c.l.b16 %v3925
      %v4054 = vunpack.c.l.b16 %v3926
      %v4055 = vunpack.c.l.b16 %v3927
      %v4056 = vunpack.c.l.b16 %v3928
      %v4057 = vunpack.c.l.b16 %v3929
      %v4058 = vunpack.c.l.b16 %v3930
      %v4059 = vunpack.c.l.b16 %v3931
      %v4060 = vunpack.c.l.b16 %v3932
      %v4061 = vunpack.c.l.b16 %v3933
      %v4062 = vunpack.c.l.b16 %v3934
      %v4063 = vunpack.c.l.b16 %v3935
      %v4064 = vunpack.c.l.b16 %v3936
      %v4065 = vunpack.c.l.b16 %v3937
      %v4066 = vunpack.c.l.b16 %v3938
      %v4067 = vunpack.c.l.b16 %v3939
      %v4068 = vunpack.c.l.b16 %v3940
      %v4069 = vunpack.c.l.b16 %v3941
      %v4070 = vunpack.c.l.b16 %v3942
      %v4071 = vunpack.c.l.b16 %v3943
      %v4072 = vunpack.c.l.b16 %v3944
      %v4073 = vunpack.c.l.b16 %v3945
      %v4074 = vunpack.c.l.b16 %v3946
      %v4075 = vunpack.c.l.b16 %v3947
      %v4076 = vunpack.c.l.b16 %v3948
      %v4077 = vpack.c.b16 %v4014, %v4013
      %v4078 = vpack.c.b16 %v4016, %v4015
      %v4079 = vpack.c.b16 %v4018, %v4017
      %v4080 = vpack.c.b16 %v4020, %v4019
      %v4081 = vpack.c.b16 %v4022, %v4021
      %v4082 = vpack.c.b16 %v4024, %v4023
      %v4083 = vpack.c.b16 %v4026, %v4025
      %v4084 = vpack.c.b16 %v4028, %v4027
      %v4085 = vpack.c.b16 %v4030, %v4029
      %v4086 = vpack.c.b16 %v4032, %v4031
      %v4087 = vpack.c.b16 %v4034, %v4033
      %v4088 = vpack.c.b16 %v4036, %v4035
      %v4089 = vpack.c.b16 %v4038, %v4037
      %v4090 = vpack.c.b16 %v4040, %v4039
      %v4091 = vpack.c.b16 %v4042, %v4041
      %v4092 = vpack.c.b16 %v4044, %v4043
      %v4093 = vpack.c.b16 %v4046, %v4045
      %v4094 = vpack.c.b16 %v4048, %v4047
      %v4095 = vpack.c.b16 %v4050, %v4049
      %v4096 = vpack.c.b16 %v4052, %v4051
      %v4097 = vpack.c.b16 %v4054, %v4053
      %v4098 = vpack.c.b16 %v4056, %v4055
      %v4099 = vpack.c.b16 %v4058, %v4057
      %v4100 = vpack.c.b16 %v4060, %v4059
      %v4101 = vpack.c.b16 %v4062, %v4061
      %v4102 = vpack.c.b16 %v4064, %v4063
      %v4103 = vpack.c.b16 %v4066, %v4065
      %v4104 = vpack.c.b16 %v4068, %v4067
      %v4105 = vpack.c.b16 %v4070, %v4069
      %v4106 = vpack.c.b16 %v4072, %v4071
      %v4107 = vpack.c.b16 %v4074, %v4073
      %v4108 = vpack.c.b16 %v4076, %v4075
      %4141 = vmatpush.bf16.msra.mxu0 %v4084
      %4142 = vmatpush.bf16.msra.mxu0 %v4083
      %4143 = vmatpush.bf16.msra.mxu0 %v4082
      %4144 = vmatpush.bf16.msra.mxu0 %v4081
      %4145 = vmatpush.bf16.msra.mxu0 %v4080
      %4146 = vmatpush.bf16.msra.mxu0 %v4079
      %4147 = vmatpush.bf16.msra.mxu0 %v4078
      %4148 = vmatpush.bf16.msra.mxu0 %v4077
      %4149 = vmatmul.bf16.gmra.mxu0 %v3881
      %v4150 = vpop.f32.mrf.mxu0
      %v4151 = vadd.f32 0.0, %v4150
      %v4152 = vpop.f32.mrf.mxu0
      %v4153 = vadd.f32 0.0, %v4152
      %4154 = vdwg.mxu0
      %4155 = vmatpush.bf16.msra.mxu0 %v4092
      %4156 = vmatpush.bf16.msra.mxu0 %v4091
      %4157 = vmatpush.bf16.msra.mxu0 %v4090
      %4158 = vmatpush.bf16.msra.mxu0 %v4089
      %4159 = vmatpush.bf16.msra.mxu0 %v4088
      %4160 = vmatpush.bf16.msra.mxu0 %v4087
      %4161 = vmatpush.bf16.msra.mxu0 %v4086
      %4162 = vmatpush.bf16.msra.mxu0 %v4085
      %4163 = vmatmul.bf16.gmra.mxu0 %v3882
      %v4164 = vpop.f32.mrf.mxu0
      %v4165 = vadd.f32 %v4151, %v4164
      %v4166 = vpop.f32.mrf.mxu0
      %v4167 = vadd.f32 %v4153, %v4166
      %4168 = vdwg.mxu0
      %4169 = vmatpush.bf16.msra.mxu0 %v4100
      %4170 = vmatpush.bf16.msra.mxu0 %v4099
      %4171 = vmatpush.bf16.msra.mxu0 %v4098
      %4172 = vmatpush.bf16.msra.mxu0 %v4097
      %4173 = vmatpush.bf16.msra.mxu0 %v4096
      %4174 = vmatpush.bf16.msra.mxu0 %v4095
      %4175 = vmatpush.bf16.msra.mxu0 %v4094
      %4176 = vmatpush.bf16.msra.mxu0 %v4093
      %4177 = vmatmul.bf16.gmra.mxu0 %v3883
      %v4178 = vpop.f32.mrf.mxu0
      %v4179 = vadd.f32 %v4165, %v4178
      %v4180 = vpop.f32.mrf.mxu0
      %v4181 = vadd.f32 %v4167, %v4180
      %4182 = vdwg.mxu0
      %4183 = vmatpush.bf16.msra.mxu0 %v4108
      %4184 = vmatpush.bf16.msra.mxu0 %v4107
      %4185 = vmatpush.bf16.msra.mxu0 %v4106
      %4186 = vmatpush.bf16.msra.mxu0 %v4105
      %4187 = vmatpush.bf16.msra.mxu0 %v4104
      %4188 = vmatpush.bf16.msra.mxu0 %v4103
      %4189 = vmatpush.bf16.msra.mxu0 %v4102
      %4190 = vmatpush.bf16.msra.mxu0 %v4101
      %4191 = vmatmul.bf16.gmra.mxu0 %v3884
      %v4192 = vpop.f32.mrf.mxu0
      %v4193 = vadd.f32 %v4179, %v4192
      %v4194 = vpop.f32.mrf.mxu0
      %v4195 = vadd.f32 %v4181, %v4194
      %4196 = vdwg.mxu0
      %v4197 = vsel %vm2389, %v4193, 0.0
      %vm4198 = vcmask 516096
      %v4199 = vsel %vm4198, %v4195, 0.0
      %v4200 = vadd.f32 %v4197, %v4199
      %v4201 = vrot.slane %v4200, 4
      %v4202 = vadd.f32 %v4200, %v4201
      %v4203 = vrot.slane %v4202, 2
      %v4204 = vadd.f32 %v4202, %v4203
      %v4205 = vrot.slane %v4204, 1
      %v4206 = vadd.f32 %v4204, %v4205
      %v4207 = vrcp.pop 9.0
      %v4208 = vmul.f32 9.0, %v4207
      %v4209 = vsub.f32 1.0, %v4208
      %v4210 = vmul.f32 %v4207, %v4209
      %v4211 = vadd.f32 %v4207, %v4210
      %vm4212 = vweird.f32 %v4207
      %v4213 = vsel %vm4212, %v4207, %v4211
      %v4214 = vmul.f32 %v4206, %v4213
      %v4215 = vsub.f32 %v4193, %v4214
      %v4216 = vsub.f32 %v4195, %v4214
      %v4217 = vmul.f32 %v4215, %v4215
      %v4218 = vmul.f32 %v4216, %v4216
      %v4219 = vsel %vm2389, %v4217, 0.0
      %v4220 = vsel %vm4198, %v4218, 0.0
      %v4221 = vadd.f32 %v4219, %v4220
      %v4222 = vrot.slane %v4221, 4
      %v4223 = vadd.f32 %v4221, %v4222
      %v4224 = vrot.slane %v4223, 2
      %v4225 = vadd.f32 %v4223, %v4224
      %v4226 = vrot.slane %v4225, 1
      %v4227 = vadd.f32 %v4225, %v4226
      %v4228 = vmul.f32 %v4227, %v4213
      %v4229 = vadd.f32 %v4228, 1e-05
      %v4230 = vrsqrt.pop %v4229
      %v4231 = vmul.f32 %v4230, %v4229
      %v4232 = vmul.f32 %v4231, %v4230
      %v4233 = vmul.f32 0.5, %v4232
      %v4234 = vsub.f32 1.5, %v4233
      %v4235 = vmul.f32 %v4230, %v4234
      %vm4236 = vweird.f32 %v4229
      %vm4237 = vweird.f32 %v4230
      %vm4238 = vmor %vm4236, %vm4237
      %v4239 = vsel %vm4238, %v4230, %v4235
      %v4240 = vmul.f32 %v4215, %v4239
      %v4241 = vmul.f32 %v4216, %v4239
      %vm4242 = vcmp.gt.f32.partialorder %v4240, 0.0
      %vm4243 = vcmp.gt.f32.partialorder %v4241, 0.0
      %v4244 = vmul.f32 %v4240, 0.2
      %v4245 = vmul.f32 %v4241, 0.2
      %v4246 = vsel %vm4242, %v4240, %v4244
      %v4247 = vsel %vm4243, %v4241, %v4245
      %vm4248 = vcmask 518144
      %4249 = vst.msk [vmem:[#allocation5 + $0x6] sm:$0x7] %vm4248, %v4246
      %vm4250 = vcmask 517121
      %4251 = vst.msk [vmem:[#allocation5 + $0x4] sm:$0x2] %vm4250, %v4246
      %4252 = vst.msk [vmem:[#allocation5 + $0x8] sm:$0x2] %vm4250, %v4246
      %vm4253 = vcmask 521219
      %4254 = vst.msk [vmem:[#allocation5 + $0x8] sm:$0x38] %vm4253, %v4246
      %vm4255 = vcmask 520196
      %4256 = vst.msk [vmem:[#allocation5 + $0x6] sm:$0x10] %vm4255, %v4246
      %4257 = vst.msk [vmem:[#allocation5 + $0xa] sm:$0x10] %vm4255, %v4246
      %vm4258 = vcmask 523270
      %4259 = vst.msk [vmem:[#allocation5 + $0xa] sm:$0xc0] %vm4258, %v4246
      %4260 = vst.msk [vmem:[#allocation5 + $0x12] sm:$0x1] %vm4198, %v4247
      %vm4261 = vcmask 523271
      %4262 = vst.msk [vmem:[#allocation5 + $0x8] sm:$0x80] %vm4261, %v4246
      %4263 = vst.msk [vmem:[#allocation5 + $0xc] sm:$0x80] %vm4261, %v4246
      %v4264 = vld [vmem:[#allocation5 + $0xa] sm:$0x1f]
      %vm4265 = vcmask 520192
      %4266 = vst.msk [vmem:[#allocation5] sm:$0x1f] %vm4265, %v4264
      %v4267 = vld [vmem:[#allocation5 + $0xa] sm:$0x1f]
      %4268 = vst.msk [vmem:[#allocation5 + $0x14] sm:$0x1f] %vm4265, %v4267
      %v4269 = vld [vmem:[#allocation5] sm:$0x3]
      %v4270 = vld [vmem:[#allocation5 + $0x1] sm:$0x3]
      %v4271 = vld [vmem:[#allocation5 + $0x2] sm:$0x3]
      %v4272 = vld [vmem:[#allocation5 + $0x3] sm:$0x3]
      %v4273 = vld [vmem:[#allocation5 + $0x5] sm:$0x3]
      %v4274 = vld [vmem:[#allocation5 + $0x6] sm:$0x3]
      %v4275 = vld [vmem:[#allocation5 + $0x7] sm:$0x3]
      %v4276 = vld [vmem:[#allocation5 + $0x8] sm:$0x3]
      %v4277 = vld [vmem:[#allocation5 + $0xa] sm:$0x3]
      %v4278 = vld [vmem:[#allocation5 + $0xb] sm:$0x3]
      %v4279 = vld [vmem:[#allocation5 + $0xc] sm:$0x3]
      %v4280 = vld [vmem:[#allocation5 + $0xd] sm:$0x3]
      %v4281 = vld [vmem:[#allocation5 + $0xf] sm:$0x3]
      %v4282 = vld [vmem:[#allocation5 + $0x10] sm:$0x3]
      %v4283 = vld [vmem:[#allocation5 + $0x11] sm:$0x3]
      %v4284 = vld [vmem:[#allocation5 + $0x12] sm:$0x3]
      %4286 = vrot.lane.b32.xlu0 %v4270, 64
      %v4287 = vpop.permute.xlu0 %4286
      %4290 = vrot.lane.b32.xlu0 %v4272, 64
      %v4291 = vpop.permute.xlu0 %4290
      %4294 = vrot.lane.b32.xlu0 %v4274, 64
      %v4295 = vpop.permute.xlu0 %4294
      %4298 = vrot.lane.b32.xlu0 %v4276, 64
      %v4299 = vpop.permute.xlu0 %4298
      %4302 = vrot.lane.b32.xlu0 %v4278, 64
      %v4303 = vpop.permute.xlu0 %4302
      %4306 = vrot.lane.b32.xlu0 %v4280, 64
      %v4307 = vpop.permute.xlu0 %4306
      %4310 = vrot.lane.b32.xlu0 %v4282, 64
      %v4311 = vpop.permute.xlu0 %4310
      %4314 = vrot.lane.b32.xlu0 %v4284, 64
      %v4315 = vpop.permute.xlu0 %4314
      %v4317 = vsel %vm2389, %v4269, %v4287
      %v4318 = vsel %vm2389, %v4271, %v4291
      %v4319 = vsel %vm2389, %v4273, %v4295
      %v4320 = vsel %vm2389, %v4275, %v4299
      %v4321 = vsel %vm2389, %v4277, %v4303
      %v4322 = vsel %vm2389, %v4279, %v4307
      %v4323 = vsel %vm2389, %v4281, %v4311
      %v4324 = vsel %vm2389, %v4283, %v4315
      %v4325 = vld [vmem:[#allocation5 + $0x14] sm:$0x3]
      %v4326 = vld [vmem:[#allocation5 + $0x15] sm:$0x3]
      %v4327 = vld [vmem:[#allocation5 + $0x16] sm:$0x3]
      %v4328 = vld [vmem:[#allocation5 + $0x17] sm:$0x3]
      %4330 = vrot.lane.b32.xlu0 %v4326, 64
      %v4331 = vpop.permute.xlu0 %4330
      %4334 = vrot.lane.b32.xlu0 %v4328, 64
      %v4335 = vpop.permute.xlu0 %4334
      %v4337 = vsel %vm2389, %v4325, %v4331
      %v4338 = vsel %vm2389, %v4327, %v4335
      %v4347 = vrot.slane %v4319, 6
      %v4348 = vrot.slane %v4320, 6
      %v4349 = vrot.slane %v4321, 6
      %v4350 = vrot.slane %v4322, 6
      %v4351 = vrot.slane %v4323, 6
      %v4352 = vrot.slane %v4324, 6
      %v4353 = vrot.slane %v4337, 6
      %v4354 = vrot.slane %v4338, 6
      %vm4363 = vcmask 1041408
      %v4364 = vsel %vm4363, %v4317, %v4347
      %v4365 = vsel %vm4363, %v4318, %v4348
      %v4366 = vsel %vm4363, %v4319, %v4349
      %v4367 = vsel %vm4363, %v4320, %v4350
      %v4368 = vsel %vm4363, %v4321, %v4351
      %v4369 = vsel %vm4363, %v4322, %v4352
      %v4370 = vsel %vm4363, %v4323, %v4353
      %v4371 = vsel %vm4363, %v4324, %v4354
      %v4372 = vpack.c.bf16 %v4364, %v4364
      %v4373 = vpack.c.bf16 %v4365, %v4365
      %v4374 = vpack.c.bf16 %v4366, %v4366
      %v4375 = vpack.c.bf16 %v4367, %v4367
      %v4376 = vpack.c.bf16 %v4368, %v4368
      %v4377 = vpack.c.bf16 %v4369, %v4369
      %v4378 = vpack.c.bf16 %v4370, %v4370
      %v4379 = vpack.c.bf16 %v4371, %v4371
      %v4380 = vld [vmem:[%s6] sm:$0xf]
      %v4381 = vld [vmem:[%s6 + $0x4] sm:$0xf]
      %v4382 = vld [vmem:[%s6 + $0x8] sm:$0xf]
      %v4383 = vld [vmem:[%s6 + $0xc] sm:$0xf]
      %v4384 = vld [vmem:[%s6 + $0x10] sm:$0xf]
      %v4385 = vld [vmem:[%s6 + $0x14] sm:$0xf]
      %v4386 = vld [vmem:[%s6 + $0x18] sm:$0xf]
      %v4387 = vld [vmem:[%s6 + $0x1c] sm:$0xf]
      %v4388 = vld [vmem:[%s6 + $0x20] sm:$0xf]
      %v4389 = vld [vmem:[%s6 + $0x24] sm:$0xf]
      %v4390 = vld [vmem:[%s6 + $0x28] sm:$0xf]
      %v4391 = vld [vmem:[%s6 + $0x2c] sm:$0xf]
      %v4392 = vld [vmem:[%s6 + $0x30] sm:$0xf]
      %v4393 = vld [vmem:[%s6 + $0x34] sm:$0xf]
      %v4394 = vld [vmem:[%s6 + $0x38] sm:$0xf]
      %v4395 = vld [vmem:[%s6 + $0x3c] sm:$0xf]
      %v4396 = vld [vmem:[%s6 + $0x40] sm:$0xf]
      %v4397 = vld [vmem:[%s6 + $0x44] sm:$0xf]
      %v4398 = vld [vmem:[%s6 + $0x48] sm:$0xf]
      %v4399 = vld [vmem:[%s6 + $0x4c] sm:$0xf]
      %v4400 = vld [vmem:[%s6 + $0x50] sm:$0xf]
      %v4401 = vld [vmem:[%s6 + $0x54] sm:$0xf]
      %v4402 = vld [vmem:[%s6 + $0x58] sm:$0xf]
      %v4403 = vld [vmem:[%s6 + $0x5c] sm:$0xf]
      %v4404 = vld [vmem:[%s6 + $0x60] sm:$0xf]
      %v4405 = vld [vmem:[%s6 + $0x64] sm:$0xf]
      %v4406 = vld [vmem:[%s6 + $0x68] sm:$0xf]
      %v4407 = vld [vmem:[%s6 + $0x6c] sm:$0xf]
      %v4408 = vld [vmem:[%s6 + $0x70] sm:$0xf]
      %v4409 = vld [vmem:[%s6 + $0x74] sm:$0xf]
      %v4410 = vld [vmem:[%s6 + $0x78] sm:$0xf]
      %v4411 = vld [vmem:[%s6 + $0x7c] sm:$0xf]
      %v4412 = vld [vmem:[%s6 + $0x80] sm:$0xf]
      %v4413 = vld [vmem:[%s6 + $0x84] sm:$0xf]
      %v4414 = vld [vmem:[%s6 + $0x88] sm:$0xf]
      %v4415 = vld [vmem:[%s6 + $0x8c] sm:$0xf]
      %v4416 = vld [vmem:[%s6 + $0x90] sm:$0xf]
      %v4417 = vld [vmem:[%s6 + $0x94] sm:$0xf]
      %v4418 = vld [vmem:[%s6 + $0x98] sm:$0xf]
      %v4419 = vld [vmem:[%s6 + $0x9c] sm:$0xf]
      %v4420 = vld [vmem:[%s6 + $0xa0] sm:$0xf]
      %v4421 = vld [vmem:[%s6 + $0xa4] sm:$0xf]
      %v4422 = vld [vmem:[%s6 + $0xa8] sm:$0xf]
      %v4423 = vld [vmem:[%s6 + $0xac] sm:$0xf]
      %v4424 = vld [vmem:[%s6 + $0xb0] sm:$0xf]
      %v4425 = vld [vmem:[%s6 + $0xb4] sm:$0xf]
      %v4426 = vld [vmem:[%s6 + $0xb8] sm:$0xf]
      %v4427 = vld [vmem:[%s6 + $0xbc] sm:$0xf]
      %v4428 = vld [vmem:[%s6 + $0xc0] sm:$0xf]
      %v4429 = vld [vmem:[%s6 + $0xc4] sm:$0xf]
      %v4430 = vld [vmem:[%s6 + $0xc8] sm:$0xf]
      %v4431 = vld [vmem:[%s6 + $0xcc] sm:$0xf]
      %v4432 = vld [vmem:[%s6 + $0xd0] sm:$0xf]
      %v4433 = vld [vmem:[%s6 + $0xd4] sm:$0xf]
      %v4434 = vld [vmem:[%s6 + $0xd8] sm:$0xf]
      %v4435 = vld [vmem:[%s6 + $0xdc] sm:$0xf]
      %v4436 = vld [vmem:[%s6 + $0xe0] sm:$0xf]
      %v4437 = vld [vmem:[%s6 + $0xe4] sm:$0xf]
      %v4438 = vld [vmem:[%s6 + $0xe8] sm:$0xf]
      %v4439 = vld [vmem:[%s6 + $0xec] sm:$0xf]
      %v4440 = vld [vmem:[%s6 + $0xf0] sm:$0xf]
      %v4441 = vld [vmem:[%s6 + $0xf4] sm:$0xf]
      %v4442 = vld [vmem:[%s6 + $0xf8] sm:$0xf]
      %v4443 = vld [vmem:[%s6 + $0xfc] sm:$0xf]
      %v4444 = vld [vmem:[%s6 + $0x100] sm:$0xf]
      %v4445 = vld [vmem:[%s6 + $0x104] sm:$0xf]
      %v4446 = vld [vmem:[%s6 + $0x108] sm:$0xf]
      %v4447 = vld [vmem:[%s6 + $0x10c] sm:$0xf]
      %v4448 = vld [vmem:[%s6 + $0x110] sm:$0xf]
      %v4449 = vld [vmem:[%s6 + $0x114] sm:$0xf]
      %v4450 = vld [vmem:[%s6 + $0x118] sm:$0xf]
      %v4451 = vld [vmem:[%s6 + $0x11c] sm:$0xf]
      %v4452 = vld [vmem:[%s6 + $0x120] sm:$0xf]
      %v4453 = vld [vmem:[%s6 + $0x124] sm:$0xf]
      %v4454 = vld [vmem:[%s6 + $0x128] sm:$0xf]
      %v4455 = vld [vmem:[%s6 + $0x12c] sm:$0xf]
      %v4456 = vld [vmem:[%s6 + $0x130] sm:$0xf]
      %v4457 = vld [vmem:[%s6 + $0x134] sm:$0xf]
      %v4458 = vld [vmem:[%s6 + $0x138] sm:$0xf]
      %v4459 = vld [vmem:[%s6 + $0x13c] sm:$0xf]
      %v4460 = vld [vmem:[%s6 + $0x140] sm:$0xf]
      %v4461 = vld [vmem:[%s6 + $0x144] sm:$0xf]
      %v4462 = vld [vmem:[%s6 + $0x148] sm:$0xf]
      %v4463 = vld [vmem:[%s6 + $0x14c] sm:$0xf]
      %v4464 = vld [vmem:[%s6 + $0x150] sm:$0xf]
      %v4465 = vld [vmem:[%s6 + $0x154] sm:$0xf]
      %v4466 = vld [vmem:[%s6 + $0x158] sm:$0xf]
      %v4467 = vld [vmem:[%s6 + $0x15c] sm:$0xf]
      %v4468 = vld [vmem:[%s6 + $0x160] sm:$0xf]
      %v4469 = vld [vmem:[%s6 + $0x164] sm:$0xf]
      %v4470 = vld [vmem:[%s6 + $0x168] sm:$0xf]
      %v4471 = vld [vmem:[%s6 + $0x16c] sm:$0xf]
      %v4472 = vld [vmem:[%s6 + $0x170] sm:$0xf]
      %v4473 = vld [vmem:[%s6 + $0x174] sm:$0xf]
      %v4474 = vld [vmem:[%s6 + $0x178] sm:$0xf]
      %v4475 = vld [vmem:[%s6 + $0x17c] sm:$0xf]
      %v4476 = vld [vmem:[%s6 + $0x180] sm:$0xf]
      %v4477 = vld [vmem:[%s6 + $0x184] sm:$0xf]
      %v4478 = vld [vmem:[%s6 + $0x188] sm:$0xf]
      %v4479 = vld [vmem:[%s6 + $0x18c] sm:$0xf]
      %v4480 = vld [vmem:[%s6 + $0x190] sm:$0xf]
      %v4481 = vld [vmem:[%s6 + $0x194] sm:$0xf]
      %v4482 = vld [vmem:[%s6 + $0x198] sm:$0xf]
      %v4483 = vld [vmem:[%s6 + $0x19c] sm:$0xf]
      %v4484 = vld [vmem:[%s6 + $0x1a0] sm:$0xf]
      %v4485 = vld [vmem:[%s6 + $0x1a4] sm:$0xf]
      %v4486 = vld [vmem:[%s6 + $0x1a8] sm:$0xf]
      %v4487 = vld [vmem:[%s6 + $0x1ac] sm:$0xf]
      %v4488 = vld [vmem:[%s6 + $0x1b0] sm:$0xf]
      %v4489 = vld [vmem:[%s6 + $0x1b4] sm:$0xf]
      %v4490 = vld [vmem:[%s6 + $0x1b8] sm:$0xf]
      %v4491 = vld [vmem:[%s6 + $0x1bc] sm:$0xf]
      %v4492 = vld [vmem:[%s6 + $0x1c0] sm:$0xf]
      %v4493 = vld [vmem:[%s6 + $0x1c4] sm:$0xf]
      %v4494 = vld [vmem:[%s6 + $0x1c8] sm:$0xf]
      %v4495 = vld [vmem:[%s6 + $0x1cc] sm:$0xf]
      %v4496 = vld [vmem:[%s6 + $0x1d0] sm:$0xf]
      %v4497 = vld [vmem:[%s6 + $0x1d4] sm:$0xf]
      %v4498 = vld [vmem:[%s6 + $0x1d8] sm:$0xf]
      %v4499 = vld [vmem:[%s6 + $0x1dc] sm:$0xf]
      %v4500 = vld [vmem:[%s6 + $0x1e0] sm:$0xf]
      %v4501 = vld [vmem:[%s6 + $0x1e4] sm:$0xf]
      %v4502 = vld [vmem:[%s6 + $0x1e8] sm:$0xf]
      %v4503 = vld [vmem:[%s6 + $0x1ec] sm:$0xf]
      %v4504 = vld [vmem:[%s6 + $0x1f0] sm:$0xf]
      %v4505 = vld [vmem:[%s6 + $0x1f4] sm:$0xf]
      %v4506 = vld [vmem:[%s6 + $0x1f8] sm:$0xf]
      %v4507 = vld [vmem:[%s6 + $0x1fc] sm:$0xf]
      %v4508 = vld [vmem:[#allocation6] sm:$0x1]
      %v4510 = vperm.slane %v4508, 0
      %v4640 = vunpack.c.l.b16 %v4380
      %v4641 = vunpack.c.l.b16 %v4381
      %v4642 = vunpack.c.l.b16 %v4382
      %v4643 = vunpack.c.l.b16 %v4383
      %v4644 = vunpack.c.l.b16 %v4384
      %v4645 = vunpack.c.l.b16 %v4385
      %v4646 = vunpack.c.l.b16 %v4386
      %v4647 = vunpack.c.l.b16 %v4387
      %v4648 = vunpack.c.l.b16 %v4388
      %v4649 = vunpack.c.l.b16 %v4389
      %v4650 = vunpack.c.l.b16 %v4390
      %v4651 = vunpack.c.l.b16 %v4391
      %v4652 = vunpack.c.l.b16 %v4392
      %v4653 = vunpack.c.l.b16 %v4393
      %v4654 = vunpack.c.l.b16 %v4394
      %v4655 = vunpack.c.l.b16 %v4395
      %v4656 = vunpack.c.l.b16 %v4396
      %v4657 = vunpack.c.l.b16 %v4397
      %v4658 = vunpack.c.l.b16 %v4398
      %v4659 = vunpack.c.l.b16 %v4399
      %v4660 = vunpack.c.l.b16 %v4400
      %v4661 = vunpack.c.l.b16 %v4401
      %v4662 = vunpack.c.l.b16 %v4402
      %v4663 = vunpack.c.l.b16 %v4403
      %v4664 = vunpack.c.l.b16 %v4404
      %v4665 = vunpack.c.l.b16 %v4405
      %v4666 = vunpack.c.l.b16 %v4406
      %v4667 = vunpack.c.l.b16 %v4407
      %v4668 = vunpack.c.l.b16 %v4408
      %v4669 = vunpack.c.l.b16 %v4409
      %v4670 = vunpack.c.l.b16 %v4410
      %v4671 = vunpack.c.l.b16 %v4411
      %v4672 = vunpack.c.l.b16 %v4412
      %v4673 = vunpack.c.l.b16 %v4413
      %v4674 = vunpack.c.l.b16 %v4414
      %v4675 = vunpack.c.l.b16 %v4415
      %v4676 = vunpack.c.l.b16 %v4416
      %v4677 = vunpack.c.l.b16 %v4417
      %v4678 = vunpack.c.l.b16 %v4418
      %v4679 = vunpack.c.l.b16 %v4419
      %v4680 = vunpack.c.l.b16 %v4420
      %v4681 = vunpack.c.l.b16 %v4421
      %v4682 = vunpack.c.l.b16 %v4422
      %v4683 = vunpack.c.l.b16 %v4423
      %v4684 = vunpack.c.l.b16 %v4424
      %v4685 = vunpack.c.l.b16 %v4425
      %v4686 = vunpack.c.l.b16 %v4426
      %v4687 = vunpack.c.l.b16 %v4427
      %v4688 = vunpack.c.l.b16 %v4428
      %v4689 = vunpack.c.l.b16 %v4429
      %v4690 = vunpack.c.l.b16 %v4430
      %v4691 = vunpack.c.l.b16 %v4431
      %v4692 = vunpack.c.l.b16 %v4432
      %v4693 = vunpack.c.l.b16 %v4433
      %v4694 = vunpack.c.l.b16 %v4434
      %v4695 = vunpack.c.l.b16 %v4435
      %v4696 = vunpack.c.l.b16 %v4436
      %v4697 = vunpack.c.l.b16 %v4437
      %v4698 = vunpack.c.l.b16 %v4438
      %v4699 = vunpack.c.l.b16 %v4439
      %v4700 = vunpack.c.l.b16 %v4440
      %v4701 = vunpack.c.l.b16 %v4441
      %v4702 = vunpack.c.l.b16 %v4442
      %v4703 = vunpack.c.l.b16 %v4443
      %v4704 = vunpack.c.l.b16 %v4444
      %v4705 = vunpack.c.l.b16 %v4445
      %v4706 = vunpack.c.l.b16 %v4446
      %v4707 = vunpack.c.l.b16 %v4447
      %v4708 = vunpack.c.l.b16 %v4448
      %v4709 = vunpack.c.l.b16 %v4449
      %v4710 = vunpack.c.l.b16 %v4450
      %v4711 = vunpack.c.l.b16 %v4451
      %v4712 = vunpack.c.l.b16 %v4452
      %v4713 = vunpack.c.l.b16 %v4453
      %v4714 = vunpack.c.l.b16 %v4454
      %v4715 = vunpack.c.l.b16 %v4455
      %v4716 = vunpack.c.l.b16 %v4456
      %v4717 = vunpack.c.l.b16 %v4457
      %v4718 = vunpack.c.l.b16 %v4458
      %v4719 = vunpack.c.l.b16 %v4459
      %v4720 = vunpack.c.l.b16 %v4460
      %v4721 = vunpack.c.l.b16 %v4461
      %v4722 = vunpack.c.l.b16 %v4462
      %v4723 = vunpack.c.l.b16 %v4463
      %v4724 = vunpack.c.l.b16 %v4464
      %v4725 = vunpack.c.l.b16 %v4465
      %v4726 = vunpack.c.l.b16 %v4466
      %v4727 = vunpack.c.l.b16 %v4467
      %v4728 = vunpack.c.l.b16 %v4468
      %v4729 = vunpack.c.l.b16 %v4469
      %v4730 = vunpack.c.l.b16 %v4470
      %v4731 = vunpack.c.l.b16 %v4471
      %v4732 = vunpack.c.l.b16 %v4472
      %v4733 = vunpack.c.l.b16 %v4473
      %v4734 = vunpack.c.l.b16 %v4474
      %v4735 = vunpack.c.l.b16 %v4475
      %v4736 = vunpack.c.l.b16 %v4476
      %v4737 = vunpack.c.l.b16 %v4477
      %v4738 = vunpack.c.l.b16 %v4478
      %v4739 = vunpack.c.l.b16 %v4479
      %v4740 = vunpack.c.l.b16 %v4480
      %v4741 = vunpack.c.l.b16 %v4481
      %v4742 = vunpack.c.l.b16 %v4482
      %v4743 = vunpack.c.l.b16 %v4483
      %v4744 = vunpack.c.l.b16 %v4484
      %v4745 = vunpack.c.l.b16 %v4485
      %v4746 = vunpack.c.l.b16 %v4486
      %v4747 = vunpack.c.l.b16 %v4487
      %v4748 = vunpack.c.l.b16 %v4488
      %v4749 = vunpack.c.l.b16 %v4489
      %v4750 = vunpack.c.l.b16 %v4490
      %v4751 = vunpack.c.l.b16 %v4491
      %v4752 = vunpack.c.l.b16 %v4492
      %v4753 = vunpack.c.l.b16 %v4493
      %v4754 = vunpack.c.l.b16 %v4494
      %v4755 = vunpack.c.l.b16 %v4495
      %v4756 = vunpack.c.l.b16 %v4496
      %v4757 = vunpack.c.l.b16 %v4497
      %v4758 = vunpack.c.l.b16 %v4498
      %v4759 = vunpack.c.l.b16 %v4499
      %v4760 = vunpack.c.l.b16 %v4500
      %v4761 = vunpack.c.l.b16 %v4501
      %v4762 = vunpack.c.l.b16 %v4502
      %v4763 = vunpack.c.l.b16 %v4503
      %v4764 = vunpack.c.l.b16 %v4504
      %v4765 = vunpack.c.l.b16 %v4505
      %v4766 = vunpack.c.l.b16 %v4506
      %v4767 = vunpack.c.l.b16 %v4507
      %v4768 = vpack.c.b16 %v4641, %v4640
      %v4769 = vpack.c.b16 %v4643, %v4642
      %v4770 = vpack.c.b16 %v4645, %v4644
      %v4771 = vpack.c.b16 %v4647, %v4646
      %v4772 = vpack.c.b16 %v4649, %v4648
      %v4773 = vpack.c.b16 %v4651, %v4650
      %v4774 = vpack.c.b16 %v4653, %v4652
      %v4775 = vpack.c.b16 %v4655, %v4654
      %v4776 = vpack.c.b16 %v4657, %v4656
      %v4777 = vpack.c.b16 %v4659, %v4658
      %v4778 = vpack.c.b16 %v4661, %v4660
      %v4779 = vpack.c.b16 %v4663, %v4662
      %v4780 = vpack.c.b16 %v4665, %v4664
      %v4781 = vpack.c.b16 %v4667, %v4666
      %v4782 = vpack.c.b16 %v4669, %v4668
      %v4783 = vpack.c.b16 %v4671, %v4670
      %v4784 = vpack.c.b16 %v4673, %v4672
      %v4785 = vpack.c.b16 %v4675, %v4674
      %v4786 = vpack.c.b16 %v4677, %v4676
      %v4787 = vpack.c.b16 %v4679, %v4678
      %v4788 = vpack.c.b16 %v4681, %v4680
      %v4789 = vpack.c.b16 %v4683, %v4682
      %v4790 = vpack.c.b16 %v4685, %v4684
      %v4791 = vpack.c.b16 %v4687, %v4686
      %v4792 = vpack.c.b16 %v4689, %v4688
      %v4793 = vpack.c.b16 %v4691, %v4690
      %v4794 = vpack.c.b16 %v4693, %v4692
      %v4795 = vpack.c.b16 %v4695, %v4694
      %v4796 = vpack.c.b16 %v4697, %v4696
      %v4797 = vpack.c.b16 %v4699, %v4698
      %v4798 = vpack.c.b16 %v4701, %v4700
      %v4799 = vpack.c.b16 %v4703, %v4702
      %v4800 = vpack.c.b16 %v4705, %v4704
      %v4801 = vpack.c.b16 %v4707, %v4706
      %v4802 = vpack.c.b16 %v4709, %v4708
      %v4803 = vpack.c.b16 %v4711, %v4710
      %v4804 = vpack.c.b16 %v4713, %v4712
      %v4805 = vpack.c.b16 %v4715, %v4714
      %v4806 = vpack.c.b16 %v4717, %v4716
      %v4807 = vpack.c.b16 %v4719, %v4718
      %v4808 = vpack.c.b16 %v4721, %v4720
      %v4809 = vpack.c.b16 %v4723, %v4722
      %v4810 = vpack.c.b16 %v4725, %v4724
      %v4811 = vpack.c.b16 %v4727, %v4726
      %v4812 = vpack.c.b16 %v4729, %v4728
      %v4813 = vpack.c.b16 %v4731, %v4730
      %v4814 = vpack.c.b16 %v4733, %v4732
      %v4815 = vpack.c.b16 %v4735, %v4734
      %v4816 = vpack.c.b16 %v4737, %v4736
      %v4817 = vpack.c.b16 %v4739, %v4738
      %v4818 = vpack.c.b16 %v4741, %v4740
      %v4819 = vpack.c.b16 %v4743, %v4742
      %v4820 = vpack.c.b16 %v4745, %v4744
      %v4821 = vpack.c.b16 %v4747, %v4746
      %v4822 = vpack.c.b16 %v4749, %v4748
      %v4823 = vpack.c.b16 %v4751, %v4750
      %v4824 = vpack.c.b16 %v4753, %v4752
      %v4825 = vpack.c.b16 %v4755, %v4754
      %v4826 = vpack.c.b16 %v4757, %v4756
      %v4827 = vpack.c.b16 %v4759, %v4758
      %v4828 = vpack.c.b16 %v4761, %v4760
      %v4829 = vpack.c.b16 %v4763, %v4762
      %v4830 = vpack.c.b16 %v4765, %v4764
      %v4831 = vpack.c.b16 %v4767, %v4766
      %4896 = vmatpush.bf16.msra.mxu0 %v4775
      %4897 = vmatpush.bf16.msra.mxu0 %v4774
      %4898 = vmatpush.bf16.msra.mxu0 %v4773
      %4899 = vmatpush.bf16.msra.mxu0 %v4772
      %4900 = vmatpush.bf16.msra.mxu0 %v4771
      %4901 = vmatpush.bf16.msra.mxu0 %v4770
      %4902 = vmatpush.bf16.msra.mxu0 %v4769
      %4903 = vmatpush.bf16.msra.mxu0 %v4768
      %4904 = vmatmul.bf16.gmra.mxu0 %v4372
      %v4905 = vpop.f32.mrf.mxu0
      %v4906 = vadd.f32 %v4510, %v4905
      %v4907 = vpop.f32.mrf.mxu0
      %4908 = vdwg.mxu0
      %4909 = vmatpush.bf16.msra.mxu0 %v4783
      %4910 = vmatpush.bf16.msra.mxu0 %v4782
      %4911 = vmatpush.bf16.msra.mxu0 %v4781
      %4912 = vmatpush.bf16.msra.mxu0 %v4780
      %4913 = vmatpush.bf16.msra.mxu0 %v4779
      %4914 = vmatpush.bf16.msra.mxu0 %v4778
      %4915 = vmatpush.bf16.msra.mxu0 %v4777
      %4916 = vmatpush.bf16.msra.mxu0 %v4776
      %4917 = vmatmul.bf16.gmra.mxu0 %v4373
      %v4918 = vpop.f32.mrf.mxu0
      %v4919 = vadd.f32 %v4906, %v4918
      %v4920 = vpop.f32.mrf.mxu0
      %4921 = vdwg.mxu0
      %4922 = vmatpush.bf16.msra.mxu0 %v4791
      %4923 = vmatpush.bf16.msra.mxu0 %v4790
      %4924 = vmatpush.bf16.msra.mxu0 %v4789
      %4925 = vmatpush.bf16.msra.mxu0 %v4788
      %4926 = vmatpush.bf16.msra.mxu0 %v4787
      %4927 = vmatpush.bf16.msra.mxu0 %v4786
      %4928 = vmatpush.bf16.msra.mxu0 %v4785
      %4929 = vmatpush.bf16.msra.mxu0 %v4784
      %4930 = vmatmul.bf16.gmra.mxu0 %v4374
      %v4931 = vpop.f32.mrf.mxu0
      %v4932 = vadd.f32 %v4919, %v4931
      %v4933 = vpop.f32.mrf.mxu0
      %4934 = vdwg.mxu0
      %4935 = vmatpush.bf16.msra.mxu0 %v4799
      %4936 = vmatpush.bf16.msra.mxu0 %v4798
      %4937 = vmatpush.bf16.msra.mxu0 %v4797
      %4938 = vmatpush.bf16.msra.mxu0 %v4796
      %4939 = vmatpush.bf16.msra.mxu0 %v4795
      %4940 = vmatpush.bf16.msra.mxu0 %v4794
      %4941 = vmatpush.bf16.msra.mxu0 %v4793
      %4942 = vmatpush.bf16.msra.mxu0 %v4792
      %4943 = vmatmul.bf16.gmra.mxu0 %v4375
      %v4944 = vpop.f32.mrf.mxu0
      %v4945 = vadd.f32 %v4932, %v4944
      %v4946 = vpop.f32.mrf.mxu0
      %4947 = vdwg.mxu0
      %4948 = vmatpush.bf16.msra.mxu0 %v4807
      %4949 = vmatpush.bf16.msra.mxu0 %v4806
      %4950 = vmatpush.bf16.msra.mxu0 %v4805
      %4951 = vmatpush.bf16.msra.mxu0 %v4804
      %4952 = vmatpush.bf16.msra.mxu0 %v4803
      %4953 = vmatpush.bf16.msra.mxu0 %v4802
      %4954 = vmatpush.bf16.msra.mxu0 %v4801
      %4955 = vmatpush.bf16.msra.mxu0 %v4800
      %4956 = vmatmul.bf16.gmra.mxu0 %v4376
      %v4957 = vpop.f32.mrf.mxu0
      %v4958 = vadd.f32 %v4945, %v4957
      %v4959 = vpop.f32.mrf.mxu0
      %4960 = vdwg.mxu0
      %4961 = vmatpush.bf16.msra.mxu0 %v4815
      %4962 = vmatpush.bf16.msra.mxu0 %v4814
      %4963 = vmatpush.bf16.msra.mxu0 %v4813
      %4964 = vmatpush.bf16.msra.mxu0 %v4812
      %4965 = vmatpush.bf16.msra.mxu0 %v4811
      %4966 = vmatpush.bf16.msra.mxu0 %v4810
      %4967 = vmatpush.bf16.msra.mxu0 %v4809
      %4968 = vmatpush.bf16.msra.mxu0 %v4808
      %4969 = vmatmul.bf16.gmra.mxu0 %v4377
      %v4970 = vpop.f32.mrf.mxu0
      %v4971 = vadd.f32 %v4958, %v4970
      %v4972 = vpop.f32.mrf.mxu0
      %4973 = vdwg.mxu0
      %4974 = vmatpush.bf16.msra.mxu0 %v4823
      %4975 = vmatpush.bf16.msra.mxu0 %v4822
      %4976 = vmatpush.bf16.msra.mxu0 %v4821
      %4977 = vmatpush.bf16.msra.mxu0 %v4820
      %4978 = vmatpush.bf16.msra.mxu0 %v4819
      %4979 = vmatpush.bf16.msra.mxu0 %v4818
      %4980 = vmatpush.bf16.msra.mxu0 %v4817
      %4981 = vmatpush.bf16.msra.mxu0 %v4816
      %4982 = vmatmul.bf16.gmra.mxu0 %v4378
      %v4983 = vpop.f32.mrf.mxu0
      %v4984 = vadd.f32 %v4971, %v4983
      %v4985 = vpop.f32.mrf.mxu0
      %4986 = vdwg.mxu0
      %4987 = vmatpush.bf16.msra.mxu0 %v4831
      %4988 = vmatpush.bf16.msra.mxu0 %v4830
      %4989 = vmatpush.bf16.msra.mxu0 %v4829
      %4990 = vmatpush.bf16.msra.mxu0 %v4828
      %4991 = vmatpush.bf16.msra.mxu0 %v4827
      %4992 = vmatpush.bf16.msra.mxu0 %v4826
      %4993 = vmatpush.bf16.msra.mxu0 %v4825
      %4994 = vmatpush.bf16.msra.mxu0 %v4824
      %4995 = vmatmul.bf16.gmra.mxu0 %v4379
      %v4996 = vpop.f32.mrf.mxu0
      %v4997 = vadd.f32 %v4984, %v4996
      %v4998 = vpop.f32.mrf.mxu0
      %4999 = vdwg.mxu0
      %v5000 = vxor.u32 %v4997, 2147483648
      %v5001 = vmul.f32 %v5000, 1.442695
      %v5002 = vpow.pop %v5001
      %v5003 = vadd.f32 %v5002, 1.0
      %v5004 = vrcp.pop %v5003
      %v5005 = vmul.f32 %v5003, %v5004
      %v5006 = vsub.f32 1.0, %v5005
      %v5007 = vmul.f32 %v5004, %v5006
      %v5008 = vadd.f32 %v5004, %v5007
      %vm5009 = vweird.f32 %v5003
      %vm5010 = vweird.f32 %v5004
      %vm5011 = vmor %vm5009, %vm5010
      %v5012 = vsel %vm5011, %v5004, %v5008
      %v5013 = vand.u32 2147483647, %v5003
      %vm5014 = vcmp.eq.f32.partialorder %v5013, 8.507059e+37
      %v5015 = vand.u32 %v5003, 2147483648
      %v5016 = vor.u32 1.1754944e-38, %v5015
      %v5017 = vsel %vm5014, %v5016, %v5012
      %v5018 = vmul.f32 1.0, %v5017
      %vm5019 = vcmask 3072
      %5020 = vst.msk [vmem:[%s305] sm:$0xf] %vm5019, %v5018
      %p5021 = scmp.lt.s32.totalorder %s21, 1
      %s5022 = scalar_select %p5021, %s21, 1
      %s5023 = smul.addr %s5022, 4
      %s5024 = scalar_lea.vmem %s8, %s5023
      // Predicated region
      $region53: #{_lambda_.1} parent=51 // pred_check
        %p5025 = pneg %p212
      $region54: #{_lambda_.1} parent=51 // pred_check_branch
        %5027 = sbr.rel (%p5025) target = $region56
      $region55: #{_lambda_.1} parent=51 // pred_region
        _
      $region56: #{_lambda_.1} parent=51 // pred_fallthru
        _
    $region52: #{_lambda_.1} parent=5 // pred_fallthru
      _
    %p5028 = scmp.le.s32.totalorder 2, %s16
    // Predicated region
    $region57: #{_lambda_.1} parent=5 // pred_check
      %p5029 = pneg %p5028
    $region58: #{_lambda_.1} parent=5 // pred_check_branch
      %5031 = sbr.rel (%p5029) target = $region60
    $region59: #{_lambda_.1} parent=5 // pred_region
      %s5032 = ssub.s32 %s16, 2
      // Predicated region
      $region61: #{_lambda_.1} parent=59 // pred_check
        %p5033 = pneg %p218
      $region62: #{_lambda_.1} parent=59 // pred_check_branch
        %5035 = sbr.rel (%p5033) target = $region64
      $region63: #{_lambda_.1} parent=59 // pred_region
        %p5036 = scmp.lt.s32.totalorder %s22, 1
        %s5037 = scalar_select %p5036, %s22, 1
        %s5038 = smul.addr %s5037, 4
        %s5039 = scalar_lea.vmem %s8, %s5038
      $region64: #{_lambda_.1} parent=59 // pred_fallthru
        _
    $region60: #{_lambda_.1} parent=5 // pred_fallthru
      _
  $region6: #{_lambda_.1} parent=0 // loop_footer
    %s20 = sadd.s32 1, %s16
  $region7: #{_lambda_.1} parent=0 // loop_footer_branch
    %15 = sbr.rel target = $region3
  $region8: #{_lambda_.1} parent=0 // loop_exit
    _

</llo_original>
